<compile_context>
chip_gen: v7x
topology: tpu7x:2x2x1
jax: 0.10.0
libtpu: 0.0.40
codegen_flags: <defaults>
</compile_context>

<pallas_src>
import functools

import jax
import jax.numpy as jnp
from jax import lax
from jax.experimental import pallas as pl
from jax.experimental.pallas import tpu as pltpu

# ---- model hyper-parameters (DEFAULT_ARGS, with T chosen for the synthetic run) ----
L, T, D1, D2, N, Z = 2, 3, 5, 5, 50, 2
IN = L + T              # M_u input dim (no net_fb)
TAU_X = 10.0
RES_INIT_G = 1.5
RES_BURN_STEPS = 200

B_PAD, F_PAD = 8, 128                    # padded batch / feature tile sizes
PREC = jax.lax.Precision.HIGHEST         # keep full f32 accuracy on the MXU


def _pad_to(x, shape):
    pads = [(0, s - d) for d, s in zip(x.shape, shape)]
    return jnp.pad(x, pads)


def m2net_rollout_kernel(o_ref, x0_ref, w_rec_ref, w_out_ref, b_out_ref,
                         z_ref, xf_ref, *, t_chunk, total_steps, needs_guard):
    """T_CHUNK reservoir steps per grid iteration; state carried in xf_ref."""
    chunk = pl.program_id(0)

    @pl.when(chunk == 0)
    def _():
        xf_ref[...] = x0_ref[...]

    # Hoist weight / bias loads out of the per-step loop (once per chunk).
    w_rec = w_rec_ref[...]          # (2*F_PAD, F_PAD)  = [J ; W_in | b_in-row]
    w_out = w_out_ref[...]          # (F_PAD, F_PAD)
    b_out = b_out_ref[...]          # (B_PAD, F_PAD), pre-broadcast offline
    base = chunk * t_chunk

    def step(t, x):
        o_t = o_ref[t]                                    # (B_PAD, F_PAD)
        # pre = [x || o] @ [J ; W_in] ; the ones-lane in o injects b_in exactly.
        xo = jnp.concatenate([x, o_t], axis=-1)           # (B_PAD, 2*F_PAD)
        g = jnp.tanh(jnp.dot(xo, w_rec, precision=PREC,
                             preferred_element_type=jnp.float32))
        x_new = x * (1.0 - 1.0 / TAU_X) + g * (1.0 / TAU_X)
        if needs_guard:  # only emitted when steps % t_chunk != 0
            x_new = jnp.where(base + t < total_steps, x_new, x)
        # z = M_ro(W_ro(x_new)) with m2/out acts = 'none' fused into w_out.
        z_ref[t] = jnp.dot(x_new, w_out, precision=PREC,
                           preferred_element_type=jnp.float32) + b_out
        return x_new

    unroll = True if t_chunk <= 16 else 8
    xf_ref[...] = lax.fori_loop(0, t_chunk, step, xf_ref[...], unroll=unroll)


def prepare_params(params):
    """One-time exact fusion + padding of the weights (outside the per-call path)."""
    w_in = jnp.dot(params["Mu_w"], params["Wu"], precision=PREC)      # (IN, N)
    b_in = jnp.dot(params["Mu_b"], params["Wu"], precision=PREC)      # (N,)
    w_out = jnp.dot(params["Wro"], params["Mro_w"], precision=PREC)   # (N, Z)

    # Stacked recurrent weight: rows [0:F_PAD) = J, rows [F_PAD:2*F_PAD) = W_in,
    # with b_in folded into row F_PAD + IN (matched by the ones-lane in o_pad).
    w_rec = jnp.zeros((2 * F_PAD, F_PAD), jnp.float32)
    w_rec = w_rec.at[:N, :N].set(params["J"])
    w_rec = w_rec.at[F_PAD:F_PAD + IN, :N].set(w_in)
    w_rec = w_rec.at[F_PAD + IN, :N].set(b_in)

    b_out = jnp.zeros((B_PAD, F_PAD), jnp.float32).at[:, :Z].set(params["Mro_b"])
    return {
        "w_rec": w_rec,
        "w_out": _pad_to(w_out, (F_PAD, F_PAD)),
        "b_out": b_out,
    }


@functools.partial(jax.jit, static_argnames=("t_chunk",))
def m2net_rollout(o_seq, x_state, prep, *, t_chunk=32):
    """Run `steps` M2Net.forward steps in one kernel.

    o_seq: (steps, B, L+T); x_state: (1, N) or (B, N).
    Returns (z_seq (steps, B, Z), x_final (B, N)).
    """
    steps, B, _ = o_seq.shape
    tc = max(1, min(int(t_chunk), steps))
    steps_pad = int(pl.cdiv(steps, tc)) * tc
    n_chunks = steps_pad // tc
    needs_guard = steps_pad != steps

    # Pad inputs; lane IN of o carries the constant 1.0 that injects b_in.
    o_pad = jnp.zeros((steps_pad, B_PAD, F_PAD), jnp.float32)
    o_pad = o_pad.at[:steps, :B, :IN].set(o_seq.astype(jnp.float32))
    o_pad = o_pad.at[:, :, IN].set(1.0)
    x0_pad = _pad_to(jnp.broadcast_to(x_state, (B, N)).astype(jnp.float32),
                     (B_PAD, F_PAD))

    kernel = functools.partial(m2net_rollout_kernel, t_chunk=tc,
                               total_steps=steps, needs_guard=needs_guard)

    weight_bytes = 4 * sum(int(a.size) for a in prep.values())
    cost = pl.CostEstimate(
        flops=int(steps_pad * 2 * B_PAD * F_PAD * F_PAD * 3),
        transcendentals=int(steps_pad * B_PAD * F_PAD),
        bytes_accessed=int(4 * (o_pad.size + steps_pad * B_PAD * F_PAD
                                + 2 * x0_pad.size) + weight_bytes),
    )

    z_pad, xf_pad = pl.pallas_call(
        kernel,
        out_shape=(jax.ShapeDtypeStruct((steps_pad, B_PAD, F_PAD), jnp.float32),
                   jax.ShapeDtypeStruct((B_PAD, F_PAD), jnp.float32)),
        grid_spec=pltpu.PrefetchScalarGridSpec(
            num_scalar_prefetch=0,
            grid=(n_chunks,),
            in_specs=[
                pl.BlockSpec((tc, B_PAD, F_PAD), lambda c: (c, 0, 0)),   # o chunk
                pl.BlockSpec((B_PAD, F_PAD), lambda c: (0, 0)),          # x0
                pl.BlockSpec((2 * F_PAD, F_PAD), lambda c: (0, 0)),      # [J;W_in|b_in]
                pl.BlockSpec((F_PAD, F_PAD), lambda c: (0, 0)),          # W_out
                pl.BlockSpec((B_PAD, F_PAD), lambda c: (0, 0)),          # b_out
            ],
            out_specs=[
                pl.BlockSpec((tc, B_PAD, F_PAD), lambda c: (c, 0, 0)),   # z chunk
                pl.BlockSpec((B_PAD, F_PAD), lambda c: (0, 0)),          # final x
            ],
        ),
        compiler_params=pltpu.CompilerParams(
            dimension_semantics=("arbitrary",)),         # recurrence => serial grid
        cost_estimate=cost,
    )(o_pad, x0_pad, prep["w_rec"], prep["w_out"], prep["b_out"])

    return z_pad[:steps, :B, :Z], xf_pad[:B, :N]


def m2net_forward(o, x_state, prep):
    """Single M2Net.forward step (the module's forward() semantics)."""
    z_seq, x_new = m2net_rollout(o[None], x_state, prep)
    return z_seq[0], x_new


def init_params(key):
    """Deterministic synthetic parameters with the same shapes/stds as the module."""
    ks = jax.random.split(key, 8)
    params = {
        # nn.Linear(L+T, D1, bias=True), stored transposed -> (IN, D1)
        "Mu_w": jax.random.normal(ks[0], (IN, D1), jnp.float32) / jnp.sqrt(IN),
        "Mu_b": jax.random.normal(ks[1], (D1,), jnp.float32) * 0.1,
        # W_u: Linear(D1, N, bias=False), std = g/sqrt(D1), transposed -> (D1, N)
        "Wu": jax.random.normal(ks[2], (D1, N), jnp.float32) * (RES_INIT_G / jnp.sqrt(D1)),
        # J: Linear(N, N, bias=False), std = g/sqrt(N)
        "J": jax.random.normal(ks[3], (N, N), jnp.float32) * (RES_INIT_G / jnp.sqrt(N)),
        # W_ro: Linear(N, D2, bias=False), std = g/sqrt(D2), transposed -> (N, D2)
        "Wro": jax.random.normal(ks[4], (N, D2), jnp.float32) * (RES_INIT_G / jnp.sqrt(D2)),
        # M_ro: Linear(D2, Z, bias=True), transposed -> (D2, Z)
        "Mro_w": jax.random.normal(ks[5], (D2, Z), jnp.float32) / jnp.sqrt(D2),
        "Mro_b": jax.random.normal(ks[6], (Z,), jnp.float32) * 0.1,
    }
    # reservoir state reset: x ~ N(0,1), shape (1, N)
    x0 = jax.random.normal(ks[7], (1, N), jnp.float32)
    return params, x0


def burn_in(x, j_t, steps=RES_BURN_STEPS):
    # M2Reservoir.burn_in (initialization-time glue), plain JAX.
    def body(_, x):
        g = jnp.tanh(jnp.dot(x, j_t, precision=PREC))
        return x + (-x + g) / TAU_X
    return lax.fori_loop(0, steps, body, x)


def m2net_ref_rollout(o_seq, x, p):
    # pure-JAX reference of the UNFUSED per-step forward (validates the fusion).
    B = o_seq.shape[1]
    x = jnp.broadcast_to(x, (B, N))
    dot = functools.partial(jnp.dot, precision=PREC)
    zs = []
    for t in range(o_seq.shape[0]):
        u = dot(o_seq[t], p["Mu_w"]) + p["Mu_b"]
        g = jnp.tanh(dot(x, p["J"]) + dot(u, p["Wu"]))
        x = x + (-x + g) / TAU_X
        v = dot(x, p["Wro"])
        zs.append(dot(v, p["Mro_w"]) + p["Mro_b"])
    return jnp.stack(zs), x


if __name__ == "__main__":
    key = jax.random.PRNGKey(0)
    kp, ko = jax.random.split(key)
    params, x0 = init_params(kp)
    x0 = burn_in(x0, params["J"])
    prep = prepare_params(params)          # one-time fusion/padding, cached on device

    STEPS, B = 8, 2
    o_seq = jax.random.normal(ko, (STEPS, B, IN), jnp.float32)   # (steps, batch, L+T)

    # multi-step rollout: one pallas_call, weights resident, state never leaves VMEM
    z_seq, x_new = m2net_rollout(o_seq, x0, prep)
    jax.block_until_ready((z_seq, x_new))

    z_ref, xr_ref = m2net_ref_rollout(o_seq, x0, params)
    assert z_seq.shape == (STEPS, B, Z) and x_new.shape == (B, N)
    assert jnp.allclose(z_seq, z_ref, atol=1e-5, rtol=1e-5)
    assert jnp.allclose(x_new, xr_ref, atol=1e-5, rtol=1e-5)

    # single-step forward (module's forward() semantics)
    z1, x1 = m2net_forward(o_seq[0], x0, prep)
    z1_ref, x1_ref = m2net_ref_rollout(o_seq[:1], x0, params)
    assert jnp.allclose(z1, z1_ref[0], atol=1e-5, rtol=1e-5)
    assert jnp.allclose(x1, x1_ref, atol=1e-5, rtol=1e-5)

    # ragged rollout: steps not a multiple of T_CHUNK exercises the in-kernel guard
    STEPS2 = 11
    o_seq2 = jax.random.normal(jax.random.PRNGKey(2), (STEPS2, B, IN), jnp.float32)
    z2, x2 = m2net_rollout(o_seq2, x0, prep, t_chunk=4)
    jax.block_until_ready((z2, x2))
    z2_ref, x2_ref = m2net_ref_rollout(o_seq2, x0, params)
    assert jnp.allclose(z2, z2_ref, atol=1e-5, rtol=1e-5)
    assert jnp.allclose(x2, x2_ref, atol=1e-5, rtol=1e-5)

    print("KERNEL_OK")
</pallas_src>

<mosaic_0001>
module attributes {stable_mosaic.version = 11 : i64} {
  func.func @m2net_rollout_kernel(%arg0: i32, %arg1: memref<8x8x128xf32, #tpu.memory_space<vmem>>, %arg2: memref<8x128xf32, #tpu.memory_space<vmem>>, %arg3: memref<256x128xf32, #tpu.memory_space<vmem>>, %arg4: memref<128x128xf32, #tpu.memory_space<vmem>>, %arg5: memref<8x128xf32, #tpu.memory_space<vmem>>, %arg6: memref<8x8x128xf32, #tpu.memory_space<vmem>>, %arg7: memref<8x128xf32, #tpu.memory_space<vmem>>) attributes {dimension_semantics = [#tpu.dimension_semantics<arbitrary>], iteration_bounds = array<i64: 1>, scalar_prefetch = 0 : i64, scratch_operands = 0 : i64, tpu.core_type = #tpu.core_type<tc>, window_params = [{transform_indices = @transform_0, window_bounds = array<i64: 8, 8, 128>}, {pipeline_mode = #tpu.pipeline_mode<synchronous>, transform_indices = @transform_1, window_bounds = array<i64: 8, 128>}, {pipeline_mode = #tpu.pipeline_mode<synchronous>, transform_indices = @transform_2, window_bounds = array<i64: 256, 128>}, {pipeline_mode = #tpu.pipeline_mode<synchronous>, transform_indices = @transform_3, window_bounds = array<i64: 128, 128>}, {pipeline_mode = #tpu.pipeline_mode<synchronous>, transform_indices = @transform_4, window_bounds = array<i64: 8, 128>}, {transform_indices = @transform_5, window_bounds = array<i64: 8, 8, 128>}, {pipeline_mode = #tpu.pipeline_mode<synchronous>, transform_indices = @transform_6, window_bounds = array<i64: 8, 128>}]} {
    %c0_i32 = arith.constant 0 : i32
    %0 = arith.cmpi eq, %arg0, %c0_i32 : i32
    %1 = arith.extui %0 : i1 to i32
    %c0_i32_0 = arith.constant 0 : i32
    %2 = arith.cmpi ne, %1, %c0_i32_0 : i32
    scf.if %2 {
      %c0_74 = arith.constant 0 : index
      %c0_75 = arith.constant 0 : index
      %144 = vector.load %arg2[%c0_74, %c0_75] : memref<8x128xf32, #tpu.memory_space<vmem>>, vector<8x128xf32>
      %c0_76 = arith.constant 0 : index
      %c0_77 = arith.constant 0 : index
      %145 = vector.load %arg7[%c0_76, %c0_77] : memref<8x128xf32, #tpu.memory_space<vmem>>, vector<8x128xf32>
      tpu.vector_store %arg7[%c0_76, %c0_77], %144 {strides = array<i32>} : memref<8x128xf32, #tpu.memory_space<vmem>>, vector<8x128xf32>,
    } else {
    }
    %c0 = arith.constant 0 : index
    %c0_1 = arith.constant 0 : index
    %3 = vector.load %arg3[%c0, %c0_1] : memref<256x128xf32, #tpu.memory_space<vmem>>, vector<256x128xf32>
    %c0_2 = arith.constant 0 : index
    %c0_3 = arith.constant 0 : index
    %4 = vector.load %arg4[%c0_2, %c0_3] : memref<128x128xf32, #tpu.memory_space<vmem>>, vector<128x128xf32>
    %c0_4 = arith.constant 0 : index
    %c0_5 = arith.constant 0 : index
    %5 = vector.load %arg5[%c0_4, %c0_5] : memref<8x128xf32, #tpu.memory_space<vmem>>, vector<8x128xf32>
    %c0_6 = arith.constant 0 : index
    %c0_7 = arith.constant 0 : index
    %6 = vector.load %arg7[%c0_6, %c0_7] : memref<8x128xf32, #tpu.memory_space<vmem>>, vector<8x128xf32>
    %c0_i32_8 = arith.constant 0 : i32
    %7 = arith.index_cast %c0_i32_8 : i32 to index
    %c0_9 = arith.constant 0 : index
    %c0_10 = arith.constant 0 : index
    %8 = vector.load %arg1[%7, %c0_9, %c0_10] : memref<8x8x128xf32, #tpu.memory_space<vmem>>, vector<1x8x128xf32>
    %9 = vector.shape_cast %8 : vector<1x8x128xf32> to vector<8x128xf32>
    %10 = tpu.concatenate %6, %9 in 1 : vector<8x128xf32>, vector<8x128xf32> -> vector<8x256xf32>
    %cst = arith.constant dense<0.000000e+00> : vector<8x128xf32>
    %11 = tpu.matmul %10, %3, %cst {dimension_numbers = #tpu.dot_dimension_numbers<[1], [0], [0], [1], [0, 0, 1, 1], [], []>, precision = #tpu.contract_precision<fp32>} : vector<8x256xf32>, vector<256x128xf32>, vector<8x128xf32> -> vector<8x128xf32>
    %12 = math.tanh %11 : vector<8x128xf32>
    %cst_11 = arith.constant 0.899999976 : f32
    %13 = vector.broadcast %cst_11 : f32 to vector<8x128xf32>
    %14 = arith.mulf %6, %13 : vector<8x128xf32>
    %cst_12 = arith.constant 1.000000e-01 : f32
    %15 = vector.broadcast %cst_12 : f32 to vector<8x128xf32>
    %16 = arith.mulf %12, %15 : vector<8x128xf32>
    %17 = arith.addf %14, %16 : vector<8x128xf32>
    %cst_13 = arith.constant dense<0.000000e+00> : vector<8x128xf32>
    %18 = tpu.matmul %17, %4, %cst_13 {dimension_numbers = #tpu.dot_dimension_numbers<[1], [0], [0], [1], [0, 0, 1, 1], [], []>, precision = #tpu.contract_precision<fp32>} : vector<8x128xf32>, vector<128x128xf32>, vector<8x128xf32> -> vector<8x128xf32>
    %19 = arith.addf %18, %5 : vector<8x128xf32>
    %20 = arith.index_cast %c0_i32_8 : i32 to index
    %c0_14 = arith.constant 0 : index
    %c0_15 = arith.constant 0 : index
    %21 = vector.load %arg6[%20, %c0_14, %c0_15] : memref<8x8x128xf32, #tpu.memory_space<vmem>>, vector<1x8x128xf32>
    %22 = vector.shape_cast %21 : vector<1x8x128xf32> to vector<8x128xf32>
    %23 = vector.shape_cast %19 : vector<8x128xf32> to vector<1x8x128xf32>
    tpu.vector_store %arg6[%20, %c0_14, %c0_15], %23 {strides = array<i32>} : memref<8x8x128xf32, #tpu.memory_space<vmem>>, vector<1x8x128xf32>,
    %c1_i32 = arith.constant 1 : i32
    %24 = arith.index_cast %c1_i32 : i32 to index
    %c0_16 = arith.constant 0 : index
    %c0_17 = arith.constant 0 : index
    %25 = vector.load %arg1[%24, %c0_16, %c0_17] : memref<8x8x128xf32, #tpu.memory_space<vmem>>, vector<1x8x128xf32>
    %26 = vector.shape_cast %25 : vector<1x8x128xf32> to vector<8x128xf32>
    %27 = tpu.concatenate %17, %26 in 1 : vector<8x128xf32>, vector<8x128xf32> -> vector<8x256xf32>
    %cst_18 = arith.constant dense<0.000000e+00> : vector<8x128xf32>
    %28 = tpu.matmul %27, %3, %cst_18 {dimension_numbers = #tpu.dot_dimension_numbers<[1], [0], [0], [1], [0, 0, 1, 1], [], []>, precision = #tpu.contract_precision<fp32>} : vector<8x256xf32>, vector<256x128xf32>, vector<8x128xf32> -> vector<8x128xf32>
    %29 = math.tanh %28 : vector<8x128xf32>
    %cst_19 = arith.constant 0.899999976 : f32
    %30 = vector.broadcast %cst_19 : f32 to vector<8x128xf32>
    %31 = arith.mulf %17, %30 : vector<8x128xf32>
    %cst_20 = arith.constant 1.000000e-01 : f32
    %32 = vector.broadcast %cst_20 : f32 to vector<8x128xf32>
    %33 = arith.mulf %29, %32 : vector<8x128xf32>
    %34 = arith.addf %31, %33 : vector<8x128xf32>
    %cst_21 = arith.constant dense<0.000000e+00> : vector<8x128xf32>
    %35 = tpu.matmul %34, %4, %cst_21 {dimension_numbers = #tpu.dot_dimension_numbers<[1], [0], [0], [1], [0, 0, 1, 1], [], []>, precision = #tpu.contract_precision<fp32>} : vector<8x128xf32>, vector<128x128xf32>, vector<8x128xf32> -> vector<8x128xf32>
    %36 = arith.addf %35, %5 : vector<8x128xf32>
    %37 = arith.index_cast %c1_i32 : i32 to index
    %c0_22 = arith.constant 0 : index
    %c0_23 = arith.constant 0 : index
    %38 = vector.load %arg6[%37, %c0_22, %c0_23] : memref<8x8x128xf32, #tpu.memory_space<vmem>>, vector<1x8x128xf32>
    %39 = vector.shape_cast %38 : vector<1x8x128xf32> to vector<8x128xf32>
    %40 = vector.shape_cast %36 : vector<8x128xf32> to vector<1x8x128xf32>
    tpu.vector_store %arg6[%37, %c0_22, %c0_23], %40 {strides = array<i32>} : memref<8x8x128xf32, #tpu.memory_space<vmem>>, vector<1x8x128xf32>,
    %c2_i32 = arith.constant 2 : i32
    %41 = arith.index_cast %c2_i32 : i32 to index
    %c0_24 = arith.constant 0 : index
    %c0_25 = arith.constant 0 : index
    %42 = vector.load %arg1[%41, %c0_24, %c0_25] : memref<8x8x128xf32, #tpu.memory_space<vmem>>, vector<1x8x128xf32>
    %43 = vector.shape_cast %42 : vector<1x8x128xf32> to vector<8x128xf32>
    %44 = tpu.concatenate %34, %43 in 1 : vector<8x128xf32>, vector<8x128xf32> -> vector<8x256xf32>
    %cst_26 = arith.constant dense<0.000000e+00> : vector<8x128xf32>
    %45 = tpu.matmul %44, %3, %cst_26 {dimension_numbers = #tpu.dot_dimension_numbers<[1], [0], [0], [1], [0, 0, 1, 1], [], []>, precision = #tpu.contract_precision<fp32>} : vector<8x256xf32>, vector<256x128xf32>, vector<8x128xf32> -> vector<8x128xf32>
    %46 = math.tanh %45 : vector<8x128xf32>
    %cst_27 = arith.constant 0.899999976 : f32
    %47 = vector.broadcast %cst_27 : f32 to vector<8x128xf32>
    %48 = arith.mulf %34, %47 : vector<8x128xf32>
    %cst_28 = arith.constant 1.000000e-01 : f32
    %49 = vector.broadcast %cst_28 : f32 to vector<8x128xf32>
    %50 = arith.mulf %46, %49 : vector<8x128xf32>
    %51 = arith.addf %48, %50 : vector<8x128xf32>
    %cst_29 = arith.constant dense<0.000000e+00> : vector<8x128xf32>
    %52 = tpu.matmul %51, %4, %cst_29 {dimension_numbers = #tpu.dot_dimension_numbers<[1], [0], [0], [1], [0, 0, 1, 1], [], []>, precision = #tpu.contract_precision<fp32>} : vector<8x128xf32>, vector<128x128xf32>, vector<8x128xf32> -> vector<8x128xf32>
    %53 = arith.addf %52, %5 : vector<8x128xf32>
    %54 = arith.index_cast %c2_i32 : i32 to index
    %c0_30 = arith.constant 0 : index
    %c0_31 = arith.constant 0 : index
    %55 = vector.load %arg6[%54, %c0_30, %c0_31] : memref<8x8x128xf32, #tpu.memory_space<vmem>>, vector<1x8x128xf32>
    %56 = vector.shape_cast %55 : vector<1x8x128xf32> to vector<8x128xf32>
    %57 = vector.shape_cast %53 : vector<8x128xf32> to vector<1x8x128xf32>
    tpu.vector_store %arg6[%54, %c0_30, %c0_31], %57 {strides = array<i32>} : memref<8x8x128xf32, #tpu.memory_space<vmem>>, vector<1x8x128xf32>,
    %c3_i32 = arith.constant 3 : i32
    %58 = arith.index_cast %c3_i32 : i32 to index
    %c0_32 = arith.constant 0 : index
    %c0_33 = arith.constant 0 : index
    %59 = vector.load %arg1[%58, %c0_32, %c0_33] : memref<8x8x128xf32, #tpu.memory_space<vmem>>, vector<1x8x128xf32>
    %60 = vector.shape_cast %59 : vector<1x8x128xf32> to vector<8x128xf32>
    %61 = tpu.concatenate %51, %60 in 1 : vector<8x128xf32>, vector<8x128xf32> -> vector<8x256xf32>
    %cst_34 = arith.constant dense<0.000000e+00> : vector<8x128xf32>
    %62 = tpu.matmul %61, %3, %cst_34 {dimension_numbers = #tpu.dot_dimension_numbers<[1], [0], [0], [1], [0, 0, 1, 1], [], []>, precision = #tpu.contract_precision<fp32>} : vector<8x256xf32>, vector<256x128xf32>, vector<8x128xf32> -> vector<8x128xf32>
    %63 = math.tanh %62 : vector<8x128xf32>
    %cst_35 = arith.constant 0.899999976 : f32
    %64 = vector.broadcast %cst_35 : f32 to vector<8x128xf32>
    %65 = arith.mulf %51, %64 : vector<8x128xf32>
    %cst_36 = arith.constant 1.000000e-01 : f32
    %66 = vector.broadcast %cst_36 : f32 to vector<8x128xf32>
    %67 = arith.mulf %63, %66 : vector<8x128xf32>
    %68 = arith.addf %65, %67 : vector<8x128xf32>
    %cst_37 = arith.constant dense<0.000000e+00> : vector<8x128xf32>
    %69 = tpu.matmul %68, %4, %cst_37 {dimension_numbers = #tpu.dot_dimension_numbers<[1], [0], [0], [1], [0, 0, 1, 1], [], []>, precision = #tpu.contract_precision<fp32>} : vector<8x128xf32>, vector<128x128xf32>, vector<8x128xf32> -> vector<8x128xf32>
    %70 = arith.addf %69, %5 : vector<8x128xf32>
    %71 = arith.index_cast %c3_i32 : i32 to index
    %c0_38 = arith.constant 0 : index
    %c0_39 = arith.constant 0 : index
    %72 = vector.load %arg6[%71, %c0_38, %c0_39] : memref<8x8x128xf32, #tpu.memory_space<vmem>>, vector<1x8x128xf32>
    %73 = vector.shape_cast %72 : vector<1x8x128xf32> to vector<8x128xf32>
    %74 = vector.shape_cast %70 : vector<8x128xf32> to vector<1x8x128xf32>
    tpu.vector_store %arg6[%71, %c0_38, %c0_39], %74 {strides = array<i32>} : memref<8x8x128xf32, #tpu.memory_space<vmem>>, vector<1x8x128xf32>,
    %c4_i32 = arith.constant 4 : i32
    %75 = arith.index_cast %c4_i32 : i32 to index
    %c0_40 = arith.constant 0 : index
    %c0_41 = arith.constant 0 : index
    %76 = vector.load %arg1[%75, %c0_40, %c0_41] : memref<8x8x128xf32, #tpu.memory_space<vmem>>, vector<1x8x128xf32>
    %77 = vector.shape_cast %76 : vector<1x8x128xf32> to vector<8x128xf32>
    %78 = tpu.concatenate %68, %77 in 1 : vector<8x128xf32>, vector<8x128xf32> -> vector<8x256xf32>
    %cst_42 = arith.constant dense<0.000000e+00> : vector<8x128xf32>
    %79 = tpu.matmul %78, %3, %cst_42 {dimension_numbers = #tpu.dot_dimension_numbers<[1], [0], [0], [1], [0, 0, 1, 1], [], []>, precision = #tpu.contract_precision<fp32>} : vector<8x256xf32>, vector<256x128xf32>, vector<8x128xf32> -> vector<8x128xf32>
    %80 = math.tanh %79 : vector<8x128xf32>
    %cst_43 = arith.constant 0.899999976 : f32
    %81 = vector.broadcast %cst_43 : f32 to vector<8x128xf32>
    %82 = arith.mulf %68, %81 : vector<8x128xf32>
    %cst_44 = arith.constant 1.000000e-01 : f32
    %83 = vector.broadcast %cst_44 : f32 to vector<8x128xf32>
    %84 = arith.mulf %80, %83 : vector<8x128xf32>
    %85 = arith.addf %82, %84 : vector<8x128xf32>
    %cst_45 = arith.constant dense<0.000000e+00> : vector<8x128xf32>
    %86 = tpu.matmul %85, %4, %cst_45 {dimension_numbers = #tpu.dot_dimension_numbers<[1], [0], [0], [1], [0, 0, 1, 1], [], []>, precision = #tpu.contract_precision<fp32>} : vector<8x128xf32>, vector<128x128xf32>, vector<8x128xf32> -> vector<8x128xf32>
    %87 = arith.addf %86, %5 : vector<8x128xf32>
    %88 = arith.index_cast %c4_i32 : i32 to index
    %c0_46 = arith.constant 0 : index
    %c0_47 = arith.constant 0 : index
    %89 = vector.load %arg6[%88, %c0_46, %c0_47] : memref<8x8x128xf32, #tpu.memory_space<vmem>>, vector<1x8x128xf32>
    %90 = vector.shape_cast %89 : vector<1x8x128xf32> to vector<8x128xf32>
    %91 = vector.shape_cast %87 : vector<8x128xf32> to vector<1x8x128xf32>
    tpu.vector_store %arg6[%88, %c0_46, %c0_47], %91 {strides = array<i32>} : memref<8x8x128xf32, #tpu.memory_space<vmem>>, vector<1x8x128xf32>,
    %c5_i32 = arith.constant 5 : i32
    %92 = arith.index_cast %c5_i32 : i32 to index
    %c0_48 = arith.constant 0 : index
    %c0_49 = arith.constant 0 : index
    %93 = vector.load %arg1[%92, %c0_48, %c0_49] : memref<8x8x128xf32, #tpu.memory_space<vmem>>, vector<1x8x128xf32>
    %94 = vector.shape_cast %93 : vector<1x8x128xf32> to vector<8x128xf32>
    %95 = tpu.concatenate %85, %94 in 1 : vector<8x128xf32>, vector<8x128xf32> -> vector<8x256xf32>
    %cst_50 = arith.constant dense<0.000000e+00> : vector<8x128xf32>
    %96 = tpu.matmul %95, %3, %cst_50 {dimension_numbers = #tpu.dot_dimension_numbers<[1], [0], [0], [1], [0, 0, 1, 1], [], []>, precision = #tpu.contract_precision<fp32>} : vector<8x256xf32>, vector<256x128xf32>, vector<8x128xf32> -> vector<8x128xf32>
    %97 = math.tanh %96 : vector<8x128xf32>
    %cst_51 = arith.constant 0.899999976 : f32
    %98 = vector.broadcast %cst_51 : f32 to vector<8x128xf32>
    %99 = arith.mulf %85, %98 : vector<8x128xf32>
    %cst_52 = arith.constant 1.000000e-01 : f32
    %100 = vector.broadcast %cst_52 : f32 to vector<8x128xf32>
    %101 = arith.mulf %97, %100 : vector<8x128xf32>
    %102 = arith.addf %99, %101 : vector<8x128xf32>
    %cst_53 = arith.constant dense<0.000000e+00> : vector<8x128xf32>
    %103 = tpu.matmul %102, %4, %cst_53 {dimension_numbers = #tpu.dot_dimension_numbers<[1], [0], [0], [1], [0, 0, 1, 1], [], []>, precision = #tpu.contract_precision<fp32>} : vector<8x128xf32>, vector<128x128xf32>, vector<8x128xf32> -> vector<8x128xf32>
    %104 = arith.addf %103, %5 : vector<8x128xf32>
    %105 = arith.index_cast %c5_i32 : i32 to index
    %c0_54 = arith.constant 0 : index
    %c0_55 = arith.constant 0 : index
    %106 = vector.load %arg6[%105, %c0_54, %c0_55] : memref<8x8x128xf32, #tpu.memory_space<vmem>>, vector<1x8x128xf32>
    %107 = vector.shape_cast %106 : vector<1x8x128xf32> to vector<8x128xf32>
    %108 = vector.shape_cast %104 : vector<8x128xf32> to vector<1x8x128xf32>
    tpu.vector_store %arg6[%105, %c0_54, %c0_55], %108 {strides = array<i32>} : memref<8x8x128xf32, #tpu.memory_space<vmem>>, vector<1x8x128xf32>,
    %c6_i32 = arith.constant 6 : i32
    %109 = arith.index_cast %c6_i32 : i32 to index
    %c0_56 = arith.constant 0 : index
    %c0_57 = arith.constant 0 : index
    %110 = vector.load %arg1[%109, %c0_56, %c0_57] : memref<8x8x128xf32, #tpu.memory_space<vmem>>, vector<1x8x128xf32>
    %111 = vector.shape_cast %110 : vector<1x8x128xf32> to vector<8x128xf32>
    %112 = tpu.concatenate %102, %111 in 1 : vector<8x128xf32>, vector<8x128xf32> -> vector<8x256xf32>
    %cst_58 = arith.constant dense<0.000000e+00> : vector<8x128xf32>
    %113 = tpu.matmul %112, %3, %cst_58 {dimension_numbers = #tpu.dot_dimension_numbers<[1], [0], [0], [1], [0, 0, 1, 1], [], []>, precision = #tpu.contract_precision<fp32>} : vector<8x256xf32>, vector<256x128xf32>, vector<8x128xf32> -> vector<8x128xf32>
    %114 = math.tanh %113 : vector<8x128xf32>
    %cst_59 = arith.constant 0.899999976 : f32
    %115 = vector.broadcast %cst_59 : f32 to vector<8x128xf32>
    %116 = arith.mulf %102, %115 : vector<8x128xf32>
    %cst_60 = arith.constant 1.000000e-01 : f32
    %117 = vector.broadcast %cst_60 : f32 to vector<8x128xf32>
    %118 = arith.mulf %114, %117 : vector<8x128xf32>
    %119 = arith.addf %116, %118 : vector<8x128xf32>
    %cst_61 = arith.constant dense<0.000000e+00> : vector<8x128xf32>
    %120 = tpu.matmul %119, %4, %cst_61 {dimension_numbers = #tpu.dot_dimension_numbers<[1], [0], [0], [1], [0, 0, 1, 1], [], []>, precision = #tpu.contract_precision<fp32>} : vector<8x128xf32>, vector<128x128xf32>, vector<8x128xf32> -> vector<8x128xf32>
    %121 = arith.addf %120, %5 : vector<8x128xf32>
    %122 = arith.index_cast %c6_i32 : i32 to index
    %c0_62 = arith.constant 0 : index
    %c0_63 = arith.constant 0 : index
    %123 = vector.load %arg6[%122, %c0_62, %c0_63] : memref<8x8x128xf32, #tpu.memory_space<vmem>>, vector<1x8x128xf32>
    %124 = vector.shape_cast %123 : vector<1x8x128xf32> to vector<8x128xf32>
    %125 = vector.shape_cast %121 : vector<8x128xf32> to vector<1x8x128xf32>
    tpu.vector_store %arg6[%122, %c0_62, %c0_63], %125 {strides = array<i32>} : memref<8x8x128xf32, #tpu.memory_space<vmem>>, vector<1x8x128xf32>,
    %c7_i32 = arith.constant 7 : i32
    %126 = arith.index_cast %c7_i32 : i32 to index
    %c0_64 = arith.constant 0 : index
    %c0_65 = arith.constant 0 : index
    %127 = vector.load %arg1[%126, %c0_64, %c0_65] : memref<8x8x128xf32, #tpu.memory_space<vmem>>, vector<1x8x128xf32>
    %128 = vector.shape_cast %127 : vector<1x8x128xf32> to vector<8x128xf32>
    %129 = tpu.concatenate %119, %128 in 1 : vector<8x128xf32>, vector<8x128xf32> -> vector<8x256xf32>
    %cst_66 = arith.constant dense<0.000000e+00> : vector<8x128xf32>
    %130 = tpu.matmul %129, %3, %cst_66 {dimension_numbers = #tpu.dot_dimension_numbers<[1], [0], [0], [1], [0, 0, 1, 1], [], []>, precision = #tpu.contract_precision<fp32>} : vector<8x256xf32>, vector<256x128xf32>, vector<8x128xf32> -> vector<8x128xf32>
    %131 = math.tanh %130 : vector<8x128xf32>
    %cst_67 = arith.constant 0.899999976 : f32
    %132 = vector.broadcast %cst_67 : f32 to vector<8x128xf32>
    %133 = arith.mulf %119, %132 : vector<8x128xf32>
    %cst_68 = arith.constant 1.000000e-01 : f32
    %134 = vector.broadcast %cst_68 : f32 to vector<8x128xf32>
    %135 = arith.mulf %131, %134 : vector<8x128xf32>
    %136 = arith.addf %133, %135 : vector<8x128xf32>
    %cst_69 = arith.constant dense<0.000000e+00> : vector<8x128xf32>
    %137 = tpu.matmul %136, %4, %cst_69 {dimension_numbers = #tpu.dot_dimension_numbers<[1], [0], [0], [1], [0, 0, 1, 1], [], []>, precision = #tpu.contract_precision<fp32>} : vector<8x128xf32>, vector<128x128xf32>, vector<8x128xf32> -> vector<8x128xf32>
    %138 = arith.addf %137, %5 : vector<8x128xf32>
    %139 = arith.index_cast %c7_i32 : i32 to index
    %c0_70 = arith.constant 0 : index
    %c0_71 = arith.constant 0 : index
    %140 = vector.load %arg6[%139, %c0_70, %c0_71] : memref<8x8x128xf32, #tpu.memory_space<vmem>>, vector<1x8x128xf32>
    %141 = vector.shape_cast %140 : vector<1x8x128xf32> to vector<8x128xf32>
    %142 = vector.shape_cast %138 : vector<8x128xf32> to vector<1x8x128xf32>
    tpu.vector_store %arg6[%139, %c0_70, %c0_71], %142 {strides = array<i32>} : memref<8x8x128xf32, #tpu.memory_space<vmem>>, vector<1x8x128xf32>,
    %c8_i32 = arith.constant 8 : i32
    %c0_72 = arith.constant 0 : index
    %c0_73 = arith.constant 0 : index
    %143 = vector.load %arg7[%c0_72, %c0_73] : memref<8x128xf32, #tpu.memory_space<vmem>>, vector<8x128xf32>
    tpu.vector_store %arg7[%c0_72, %c0_73], %136 {strides = array<i32>} : memref<8x128xf32, #tpu.memory_space<vmem>>, vector<8x128xf32>,
    return
  }
  func.func @transform_0(%arg0: i32) -> (i32, i32, i32) {
    %c0_i32 = arith.constant 0 : i32
    %c0_i32_0 = arith.constant 0 : i32
    %c0_i32_1 = arith.constant 0 : i32
    return %arg0, %c0_i32, %c0_i32_0 : i32, i32, i32
  }
  func.func @transform_1(%arg0: i32) -> (i32, i32) {
    %c0_i32 = arith.constant 0 : i32
    %c0_i32_0 = arith.constant 0 : i32
    %c0_i32_1 = arith.constant 0 : i32
    return %c0_i32, %c0_i32_0 : i32, i32
  }
  func.func @transform_2(%arg0: i32) -> (i32, i32) {
    %c0_i32 = arith.constant 0 : i32
    %c0_i32_0 = arith.constant 0 : i32
    %c0_i32_1 = arith.constant 0 : i32
    return %c0_i32, %c0_i32_0 : i32, i32
  }
  func.func @transform_3(%arg0: i32) -> (i32, i32) {
    %c0_i32 = arith.constant 0 : i32
    %c0_i32_0 = arith.constant 0 : i32
    %c0_i32_1 = arith.constant 0 : i32
    return %c0_i32, %c0_i32_0 : i32, i32
  }
  func.func @transform_4(%arg0: i32) -> (i32, i32) {
    %c0_i32 = arith.constant 0 : i32
    %c0_i32_0 = arith.constant 0 : i32
    %c0_i32_1 = arith.constant 0 : i32
    return %c0_i32, %c0_i32_0 : i32, i32
  }
  func.func @transform_5(%arg0: i32) -> (i32, i32, i32) {
    %c0_i32 = arith.constant 0 : i32
    %c0_i32_0 = arith.constant 0 : i32
    %c0_i32_1 = arith.constant 0 : i32
    return %arg0, %c0_i32, %c0_i32_0 : i32, i32, i32
  }
  func.func @transform_6(%arg0: i32) -> (i32, i32) {
    %c0_i32 = arith.constant 0 : i32
    %c0_i32_0 = arith.constant 0 : i32
    %c0_i32_1 = arith.constant 0 : i32
    return %c0_i32, %c0_i32_0 : i32, i32
  }
}

</mosaic_0001>

<llo_original>
// kernel: m2net_rollout.1
$region0: #{m2net_rollout.1}
  #allocation0 [shape = 'u32[]', space=smem, size = 0x4, offset = 0x4, fixed_abs, tag = 'smem constant byte address 0x4 - core index']
  #allocation1 [shape = 'u32[144,128]{1,0:T(1,128)}', space=vmem, size = 0x12000, scoped, tag = 'internal scratch']
  %s0 = inlined_call_operand.vmem [shape: f32[8,8,128], index: 0, kind: input, shape index: {}]
  %s1 = inlined_call_operand.vmem [shape: f32[8,128], index: 1, kind: input, shape index: {}]
  %s2 = inlined_call_operand.vmem [shape: f32[256,128], index: 2, kind: input, shape index: {}]
  %s3 = inlined_call_operand.hbm [shape: f32[128,128], index: 3, kind: input, shape index: {}]
  %s4 = inlined_call_operand.vmem [shape: f32[8,128], index: 4, kind: input, shape index: {}]
  %s5 = inlined_call_operand.vmem [shape: f32[8,8,128], index: 5, kind: output, shape index: {0}]
  %s6 = inlined_call_operand.vmem [shape: f32[8,128], index: 6, kind: output, shape index: {1}]
  %7 = xla_tuple %s5, %s6
  %s8 = sld [smem:[#allocation0]]
  $region46: #{m2net_rollout.1} parent=0
    _
  %s10 = ssub.s32 1, %s8
  %s11 = scalar_select 0, %s10, %s8
  $region1: #{m2net_rollout.1} parent=0
    #allocation2 [shape = 'u8[65536]{0}', space=vmem, size = 0x10000, scoped, tag = 'input window, operand 3, single buffered']
    #allocation3 [shape = 's32[1]{0}', space=sflag, size = 0x4, scoped, tag = 'scoped memory for m2net_rollout.1']
    %12 = vsyncpa [#allocation3], 0
    // Predicated region
    $region2: #{m2net_rollout.1} parent=1 // pred_check
      _
    $region3: #{m2net_rollout.1} parent=1 // pred_check_branch
      %14 = sbr.rel (0) target = $region5
    $region4: #{m2net_rollout.1} parent=1 // pred_region
      _
    $region5: #{m2net_rollout.1} parent=1 // pred_fallthru
      _
    // Predicated region
    $region6: #{m2net_rollout.1} parent=1 // pred_check
      _
    $region7: #{m2net_rollout.1} parent=1 // pred_check_branch
      %16 = sbr.rel (0) target = $region9
    $region8: #{m2net_rollout.1} parent=1 // pred_region
      _
    $region9: #{m2net_rollout.1} parent=1 // pred_fallthru
      _
    // Predicated region
    $region10: #{m2net_rollout.1} parent=1 // pred_check
      _
    $region11: #{m2net_rollout.1} parent=1 // pred_check_branch
      %18 = sbr.rel (0) target = $region13
    $region12: #{m2net_rollout.1} parent=1 // pred_region
      _
    $region13: #{m2net_rollout.1} parent=1 // pred_fallthru
      _
    // Predicated region
    $region14: #{m2net_rollout.1} parent=1 // pred_check
      _
    $region15: #{m2net_rollout.1} parent=1 // pred_check_branch
      %20 = sbr.rel (0) target = $region17
    $region16: #{m2net_rollout.1} parent=1 // pred_region
      %s22 = ssub.s32 2048, 2048
      %23 = vsyncadd [#allocation3], %s22
      %s24 = sshll.u32 [#allocation2], 4
      %s25 = int_to_ptr.vmem [resolvable:$true] %s24
      %30 = dma.hbm_to_vmem [thread:$0]  %s3, 2048, %s25, [#allocation3], 128, 128, 8
    $region17: #{m2net_rollout.1} parent=1 // pred_fallthru
      _
    // Predicated region
    $region18: #{m2net_rollout.1} parent=1 // pred_check
      _
    $region19: #{m2net_rollout.1} parent=1 // pred_check_branch
      %32 = sbr.rel (0) target = $region21
    $region20: #{m2net_rollout.1} parent=1 // pred_region
      _
    $region21: #{m2net_rollout.1} parent=1 // pred_fallthru
      _
    // Predicated region
    $region22: #{m2net_rollout.1} parent=1 // pred_check
      _
    $region23: #{m2net_rollout.1} parent=1 // pred_check_branch
      %34 = sbr.rel (0) target = $region25
    $region24: #{m2net_rollout.1} parent=1 // pred_region
      %35 = dma.done [#allocation3], 2048
    $region25: #{m2net_rollout.1} parent=1 // pred_fallthru
      _
    %p36 = scmp.eq.s32.totalorder 0, 0
    // Predicated region
    $region26: #{m2net_rollout.1} parent=1 // pred_check
      %p37 = pneg %p36
    $region27: #{m2net_rollout.1} parent=1 // pred_check_branch
      %39 = sbr.rel (%p37) target = $region29
    $region28: #{m2net_rollout.1} parent=1 // pred_region
      %v40 = vld [vmem:[%s1] sm:$0xff]
      %41 = vst [vmem:[%s6] sm:$0xff] %v40
    $region29: #{m2net_rollout.1} parent=1 // pred_fallthru
      _
    %v42 = vld [vmem:[%s2] sm:$0xff]
    %v43 = vld [vmem:[%s2 + $0x8] sm:$0xff]
    %v44 = vld [vmem:[%s2 + $0x10] sm:$0xff]
    %v45 = vld [vmem:[%s2 + $0x18] sm:$0xff]
    %v46 = vld [vmem:[%s2 + $0x20] sm:$0xff]
    %v47 = vld [vmem:[%s2 + $0x28] sm:$0xff]
    %v48 = vld [vmem:[%s2 + $0x30] sm:$0xff]
    %v49 = vld [vmem:[%s2 + $0x38] sm:$0xff]
    %v50 = vld [vmem:[%s2 + $0x40] sm:$0xff]
    %v51 = vld [vmem:[%s2 + $0x48] sm:$0xff]
    %v52 = vld [vmem:[%s2 + $0x50] sm:$0xff]
    %v53 = vld [vmem:[%s2 + $0x58] sm:$0xff]
    %v54 = vld [vmem:[%s2 + $0x60] sm:$0xff]
    %v55 = vld [vmem:[%s2 + $0x68] sm:$0xff]
    %v56 = vld [vmem:[%s2 + $0x70] sm:$0xff]
    %v57 = vld [vmem:[%s2 + $0x78] sm:$0xff]
    %v58 = vld [vmem:[%s2 + $0x80] sm:$0xff]
    %v59 = vld [vmem:[%s2 + $0x88] sm:$0xff]
    %v60 = vld [vmem:[%s2 + $0x90] sm:$0xff]
    %v61 = vld [vmem:[%s2 + $0x98] sm:$0xff]
    %v62 = vld [vmem:[%s2 + $0xa0] sm:$0xff]
    %v63 = vld [vmem:[%s2 + $0xa8] sm:$0xff]
    %v64 = vld [vmem:[%s2 + $0xb0] sm:$0xff]
    %v65 = vld [vmem:[%s2 + $0xb8] sm:$0xff]
    %v66 = vld [vmem:[%s2 + $0xc0] sm:$0xff]
    %v67 = vld [vmem:[%s2 + $0xc8] sm:$0xff]
    %v68 = vld [vmem:[%s2 + $0xd0] sm:$0xff]
    %v69 = vld [vmem:[%s2 + $0xd8] sm:$0xff]
    %v70 = vld [vmem:[%s2 + $0xe0] sm:$0xff]
    %v71 = vld [vmem:[%s2 + $0xe8] sm:$0xff]
    %v72 = vld [vmem:[%s2 + $0xf0] sm:$0xff]
    %v73 = vld [vmem:[%s2 + $0xf8] sm:$0xff]
    %v74 = vld [vmem:[#allocation2] sm:$0xff]
    %v75 = vld [vmem:[#allocation2 + $0x8] sm:$0xff]
    %v76 = vld [vmem:[#allocation2 + $0x10] sm:$0xff]
    %v77 = vld [vmem:[#allocation2 + $0x18] sm:$0xff]
    %v78 = vld [vmem:[#allocation2 + $0x20] sm:$0xff]
    %v79 = vld [vmem:[#allocation2 + $0x28] sm:$0xff]
    %v80 = vld [vmem:[#allocation2 + $0x30] sm:$0xff]
    %v81 = vld [vmem:[#allocation2 + $0x38] sm:$0xff]
    %v82 = vld [vmem:[#allocation2 + $0x40] sm:$0xff]
    %v83 = vld [vmem:[#allocation2 + $0x48] sm:$0xff]
    %v84 = vld [vmem:[#allocation2 + $0x50] sm:$0xff]
    %v85 = vld [vmem:[#allocation2 + $0x58] sm:$0xff]
    %v86 = vld [vmem:[#allocation2 + $0x60] sm:$0xff]
    %v87 = vld [vmem:[#allocation2 + $0x68] sm:$0xff]
    %v88 = vld [vmem:[#allocation2 + $0x70] sm:$0xff]
    %v89 = vld [vmem:[#allocation2 + $0x78] sm:$0xff]
    %v90 = vld [vmem:[%s4] sm:$0xff]
    %v91 = vld [vmem:[%s6] sm:$0xff]
    %v92 = vld [vmem:[%s0] sm:$0xff]
    %93 = vmatprep.subr.mxu0 0.0
    %v94 = vand.u32 %v42, 4294901760
    %95 = vmatpush1.msra.mxu0 %v94
    %96 = vmatprep.subr.mxu0 0.0
    %v97 = vand.u32 %v43, 4294901760
    %98 = vmatpush1.msra.mxu0 %v97
    %99 = vmatprep.subr.mxu0 0.0
    %v100 = vand.u32 %v44, 4294901760
    %101 = vmatpush1.msra.mxu0 %v100
    %102 = vmatprep.subr.mxu0 0.0
    %v103 = vand.u32 %v45, 4294901760
    %104 = vmatpush1.msra.mxu0 %v103
    %105 = vmatprep.subr.mxu0 0.0
    %v106 = vand.u32 %v46, 4294901760
    %107 = vmatpush1.msra.mxu0 %v106
    %108 = vmatprep.subr.mxu0 0.0
    %v109 = vand.u32 %v47, 4294901760
    %110 = vmatpush1.msra.mxu0 %v109
    %111 = vmatprep.subr.mxu0 0.0
    %v112 = vand.u32 %v48, 4294901760
    %113 = vmatpush1.msra.mxu0 %v112
    %114 = vmatprep.subr.mxu0 0.0
    %v115 = vand.u32 %v49, 4294901760
    %116 = vmatpush1.msra.mxu0 %v115
    %117 = vmatprep.subr.mxu0 0.0
    %v118 = vand.u32 %v50, 4294901760
    %119 = vmatpush1.msra.mxu0 %v118
    %120 = vmatprep.subr.mxu0 0.0
    %v121 = vand.u32 %v51, 4294901760
    %122 = vmatpush1.msra.mxu0 %v121
    %123 = vmatprep.subr.mxu0 0.0
    %v124 = vand.u32 %v52, 4294901760
    %125 = vmatpush1.msra.mxu0 %v124
    %126 = vmatprep.subr.mxu0 0.0
    %v127 = vand.u32 %v53, 4294901760
    %128 = vmatpush1.msra.mxu0 %v127
    %129 = vmatprep.subr.mxu0 0.0
    %v130 = vand.u32 %v54, 4294901760
    %131 = vmatpush1.msra.mxu0 %v130
    %132 = vmatprep.subr.mxu0 0.0
    %v133 = vand.u32 %v55, 4294901760
    %134 = vmatpush1.msra.mxu0 %v133
    %135 = vmatprep.subr.mxu0 0.0
    %v136 = vand.u32 %v56, 4294901760
    %137 = vmatpush1.msra.mxu0 %v136
    %138 = vmatprep.subr.mxu0 0.0
    %v139 = vand.u32 %v57, 4294901760
    %140 = vmatpush1.msra.mxu0 %v139
    %141 = vmatprep.subr.mxu0 0.0
    %v142 = vand.u32 %v58, 4294901760
    %143 = vmatpush1.msra.mxu0 %v142
    %144 = vmatprep.subr.mxu0 0.0
    %v145 = vand.u32 %v59, 4294901760
    %146 = vmatpush1.msra.mxu0 %v145
    %147 = vmatprep.subr.mxu0 0.0
    %v148 = vand.u32 %v60, 4294901760
    %149 = vmatpush1.msra.mxu0 %v148
    %150 = vmatprep.subr.mxu0 0.0
    %v151 = vand.u32 %v61, 4294901760
    %152 = vmatpush1.msra.mxu0 %v151
    %153 = vmatprep.subr.mxu0 0.0
    %v154 = vand.u32 %v62, 4294901760
    %155 = vmatpush1.msra.mxu0 %v154
    %156 = vmatprep.subr.mxu0 0.0
    %v157 = vand.u32 %v63, 4294901760
    %158 = vmatpush1.msra.mxu0 %v157
    %159 = vmatprep.subr.mxu0 0.0
    %v160 = vand.u32 %v64, 4294901760
    %161 = vmatpush1.msra.mxu0 %v160
    %162 = vmatprep.subr.mxu0 0.0
    %v163 = vand.u32 %v65, 4294901760
    %164 = vmatpush1.msra.mxu0 %v163
    %165 = vmatprep.subr.mxu0 0.0
    %v166 = vand.u32 %v66, 4294901760
    %167 = vmatpush1.msra.mxu0 %v166
    %168 = vmatprep.subr.mxu0 0.0
    %v169 = vand.u32 %v67, 4294901760
    %170 = vmatpush1.msra.mxu0 %v169
    %171 = vmatprep.subr.mxu0 0.0
    %v172 = vand.u32 %v68, 4294901760
    %173 = vmatpush1.msra.mxu0 %v172
    %174 = vmatprep.subr.mxu0 0.0
    %v175 = vand.u32 %v69, 4294901760
    %176 = vmatpush1.msra.mxu0 %v175
    %177 = vmatprep.subr.mxu0 0.0
    %v178 = vand.u32 %v70, 4294901760
    %179 = vmatpush1.msra.mxu0 %v178
    %180 = vmatprep.subr.mxu0 0.0
    %v181 = vand.u32 %v71, 4294901760
    %182 = vmatpush1.msra.mxu0 %v181
    %183 = vmatprep.subr.mxu0 0.0
    %v184 = vand.u32 %v72, 4294901760
    %185 = vmatpush1.msra.mxu0 %v184
    %186 = vmatprep.subr.mxu0 0.0
    %v187 = vand.u32 %v73, 4294901760
    %188 = vmatpush1.msra.mxu0 %v187
    %v189 = vand.u32 %v92, 4294901760
    %v190 = vsub.f32 %v92, %v189
    %v191 = vand.u32 %v190, 4294901760
    %v192 = vsub.f32 %v190, %v191
    %v193 = vand.u32 %v192, 4294901760
    %194 = vmatprep.mubr.f32.mxu0 %v193
    %v195 = vand.u32 %v91, 4294901760
    %v196 = vsub.f32 %v91, %v195
    %v197 = vand.u32 %v196, 4294901760
    %v198 = vsub.f32 %v196, %v197
    %v199 = vand.u32 %v198, 4294901760
    %200 = vmatmul.mubr.f32.gmra.mrb[0].mxu0 %v199
    %v201 = vpop.f32.mrb[0].mxu0
    %v202 = vadd.f32 0.0, %v201
    %v203 = vpop.f32.mrb[0].mxu0
    %204 = vdwg.mxu0
    %205 = vmatprep.subr.mxu0 0.0
    %v206 = vand.u32 %v42, 4294901760
    %v207 = vsub.f32 %v42, %v206
    %v208 = vand.u32 %v207, 4294901760
    %v209 = vsub.f32 %v207, %v208
    %v210 = vand.u32 %v209, 4294901760
    %211 = vmatpush1.msra.mxu0 %v210
    %212 = vmatprep.subr.mxu0 0.0
    %v213 = vand.u32 %v43, 4294901760
    %v214 = vsub.f32 %v43, %v213
    %v215 = vand.u32 %v214, 4294901760
    %v216 = vsub.f32 %v214, %v215
    %v217 = vand.u32 %v216, 4294901760
    %218 = vmatpush1.msra.mxu0 %v217
    %219 = vmatprep.subr.mxu0 0.0
    %v220 = vand.u32 %v44, 4294901760
    %v221 = vsub.f32 %v44, %v220
    %v222 = vand.u32 %v221, 4294901760
    %v223 = vsub.f32 %v221, %v222
    %v224 = vand.u32 %v223, 4294901760
    %225 = vmatpush1.msra.mxu0 %v224
    %226 = vmatprep.subr.mxu0 0.0
    %v227 = vand.u32 %v45, 4294901760
    %v228 = vsub.f32 %v45, %v227
    %v229 = vand.u32 %v228, 4294901760
    %v230 = vsub.f32 %v228, %v229
    %v231 = vand.u32 %v230, 4294901760
    %232 = vmatpush1.msra.mxu0 %v231
    %233 = vmatprep.subr.mxu0 0.0
    %v234 = vand.u32 %v46, 4294901760
    %v235 = vsub.f32 %v46, %v234
    %v236 = vand.u32 %v235, 4294901760
    %v237 = vsub.f32 %v235, %v236
    %v238 = vand.u32 %v237, 4294901760
    %239 = vmatpush1.msra.mxu0 %v238
    %240 = vmatprep.subr.mxu0 0.0
    %v241 = vand.u32 %v47, 4294901760
    %v242 = vsub.f32 %v47, %v241
    %v243 = vand.u32 %v242, 4294901760
    %v244 = vsub.f32 %v242, %v243
    %v245 = vand.u32 %v244, 4294901760
    %246 = vmatpush1.msra.mxu0 %v245
    %247 = vmatprep.subr.mxu0 0.0
    %v248 = vand.u32 %v48, 4294901760
    %v249 = vsub.f32 %v48, %v248
    %v250 = vand.u32 %v249, 4294901760
    %v251 = vsub.f32 %v249, %v250
    %v252 = vand.u32 %v251, 4294901760
    %253 = vmatpush1.msra.mxu0 %v252
    %254 = vmatprep.subr.mxu0 0.0
    %v255 = vand.u32 %v49, 4294901760
    %v256 = vsub.f32 %v49, %v255
    %v257 = vand.u32 %v256, 4294901760
    %v258 = vsub.f32 %v256, %v257
    %v259 = vand.u32 %v258, 4294901760
    %260 = vmatpush1.msra.mxu0 %v259
    %261 = vmatprep.subr.mxu0 0.0
    %v262 = vand.u32 %v50, 4294901760
    %v263 = vsub.f32 %v50, %v262
    %v264 = vand.u32 %v263, 4294901760
    %v265 = vsub.f32 %v263, %v264
    %v266 = vand.u32 %v265, 4294901760
    %267 = vmatpush1.msra.mxu0 %v266
    %268 = vmatprep.subr.mxu0 0.0
    %v269 = vand.u32 %v51, 4294901760
    %v270 = vsub.f32 %v51, %v269
    %v271 = vand.u32 %v270, 4294901760
    %v272 = vsub.f32 %v270, %v271
    %v273 = vand.u32 %v272, 4294901760
    %274 = vmatpush1.msra.mxu0 %v273
    %275 = vmatprep.subr.mxu0 0.0
    %v276 = vand.u32 %v52, 4294901760
    %v277 = vsub.f32 %v52, %v276
    %v278 = vand.u32 %v277, 4294901760
    %v279 = vsub.f32 %v277, %v278
    %v280 = vand.u32 %v279, 4294901760
    %281 = vmatpush1.msra.mxu0 %v280
    %282 = vmatprep.subr.mxu0 0.0
    %v283 = vand.u32 %v53, 4294901760
    %v284 = vsub.f32 %v53, %v283
    %v285 = vand.u32 %v284, 4294901760
    %v286 = vsub.f32 %v284, %v285
    %v287 = vand.u32 %v286, 4294901760
    %288 = vmatpush1.msra.mxu0 %v287
    %289 = vmatprep.subr.mxu0 0.0
    %v290 = vand.u32 %v54, 4294901760
    %v291 = vsub.f32 %v54, %v290
    %v292 = vand.u32 %v291, 4294901760
    %v293 = vsub.f32 %v291, %v292
    %v294 = vand.u32 %v293, 4294901760
    %295 = vmatpush1.msra.mxu0 %v294
    %296 = vmatprep.subr.mxu0 0.0
    %v297 = vand.u32 %v55, 4294901760
    %v298 = vsub.f32 %v55, %v297
    %v299 = vand.u32 %v298, 4294901760
    %v300 = vsub.f32 %v298, %v299
    %v301 = vand.u32 %v300, 4294901760
    %302 = vmatpush1.msra.mxu0 %v301
    %303 = vmatprep.subr.mxu0 0.0
    %v304 = vand.u32 %v56, 4294901760
    %v305 = vsub.f32 %v56, %v304
    %v306 = vand.u32 %v305, 4294901760
    %v307 = vsub.f32 %v305, %v306
    %v308 = vand.u32 %v307, 4294901760
    %309 = vmatpush1.msra.mxu0 %v308
    %310 = vmatprep.subr.mxu0 0.0
    %v311 = vand.u32 %v57, 4294901760
    %v312 = vsub.f32 %v57, %v311
    %v313 = vand.u32 %v312, 4294901760
    %v314 = vsub.f32 %v312, %v313
    %v315 = vand.u32 %v314, 4294901760
    %316 = vmatpush1.msra.mxu0 %v315
    %317 = vmatprep.subr.mxu0 0.0
    %v318 = vand.u32 %v58, 4294901760
    %v319 = vsub.f32 %v58, %v318
    %v320 = vand.u32 %v319, 4294901760
    %v321 = vsub.f32 %v319, %v320
    %v322 = vand.u32 %v321, 4294901760
    %323 = vmatpush1.msra.mxu0 %v322
    %324 = vmatprep.subr.mxu0 0.0
    %v325 = vand.u32 %v59, 4294901760
    %v326 = vsub.f32 %v59, %v325
    %v327 = vand.u32 %v326, 4294901760
    %v328 = vsub.f32 %v326, %v327
    %v329 = vand.u32 %v328, 4294901760
    %330 = vmatpush1.msra.mxu0 %v329
    %331 = vmatprep.subr.mxu0 0.0
    %v332 = vand.u32 %v60, 4294901760
    %v333 = vsub.f32 %v60, %v332
    %v334 = vand.u32 %v333, 4294901760
    %v335 = vsub.f32 %v333, %v334
    %v336 = vand.u32 %v335, 4294901760
    %337 = vmatpush1.msra.mxu0 %v336
    %338 = vmatprep.subr.mxu0 0.0
    %v339 = vand.u32 %v61, 4294901760
    %v340 = vsub.f32 %v61, %v339
    %v341 = vand.u32 %v340, 4294901760
    %v342 = vsub.f32 %v340, %v341
    %v343 = vand.u32 %v342, 4294901760
    %344 = vmatpush1.msra.mxu0 %v343
    %345 = vmatprep.subr.mxu0 0.0
    %v346 = vand.u32 %v62, 4294901760
    %v347 = vsub.f32 %v62, %v346
    %v348 = vand.u32 %v347, 4294901760
    %v349 = vsub.f32 %v347, %v348
    %v350 = vand.u32 %v349, 4294901760
    %351 = vmatpush1.msra.mxu0 %v350
    %352 = vmatprep.subr.mxu0 0.0
    %v353 = vand.u32 %v63, 4294901760
    %v354 = vsub.f32 %v63, %v353
    %v355 = vand.u32 %v354, 4294901760
    %v356 = vsub.f32 %v354, %v355
    %v357 = vand.u32 %v356, 4294901760
    %358 = vmatpush1.msra.mxu0 %v357
    %359 = vmatprep.subr.mxu0 0.0
    %v360 = vand.u32 %v64, 4294901760
    %v361 = vsub.f32 %v64, %v360
    %v362 = vand.u32 %v361, 4294901760
    %v363 = vsub.f32 %v361, %v362
    %v364 = vand.u32 %v363, 4294901760
    %365 = vmatpush1.msra.mxu0 %v364
    %366 = vmatprep.subr.mxu0 0.0
    %v367 = vand.u32 %v65, 4294901760
    %v368 = vsub.f32 %v65, %v367
    %v369 = vand.u32 %v368, 4294901760
    %v370 = vsub.f32 %v368, %v369
    %v371 = vand.u32 %v370, 4294901760
    %372 = vmatpush1.msra.mxu0 %v371
    %373 = vmatprep.subr.mxu0 0.0
    %v374 = vand.u32 %v66, 4294901760
    %v375 = vsub.f32 %v66, %v374
    %v376 = vand.u32 %v375, 4294901760
    %v377 = vsub.f32 %v375, %v376
    %v378 = vand.u32 %v377, 4294901760
    %379 = vmatpush1.msra.mxu0 %v378
    %380 = vmatprep.subr.mxu0 0.0
    %v381 = vand.u32 %v67, 4294901760
    %v382 = vsub.f32 %v67, %v381
    %v383 = vand.u32 %v382, 4294901760
    %v384 = vsub.f32 %v382, %v383
    %v385 = vand.u32 %v384, 4294901760
    %386 = vmatpush1.msra.mxu0 %v385
    %387 = vmatprep.subr.mxu0 0.0
    %v388 = vand.u32 %v68, 4294901760
    %v389 = vsub.f32 %v68, %v388
    %v390 = vand.u32 %v389, 4294901760
    %v391 = vsub.f32 %v389, %v390
    %v392 = vand.u32 %v391, 4294901760
    %393 = vmatpush1.msra.mxu0 %v392
    %394 = vmatprep.subr.mxu0 0.0
    %v395 = vand.u32 %v69, 4294901760
    %v396 = vsub.f32 %v69, %v395
    %v397 = vand.u32 %v396, 4294901760
    %v398 = vsub.f32 %v396, %v397
    %v399 = vand.u32 %v398, 4294901760
    %400 = vmatpush1.msra.mxu0 %v399
    %401 = vmatprep.subr.mxu0 0.0
    %v402 = vand.u32 %v70, 4294901760
    %v403 = vsub.f32 %v70, %v402
    %v404 = vand.u32 %v403, 4294901760
    %v405 = vsub.f32 %v403, %v404
    %v406 = vand.u32 %v405, 4294901760
    %407 = vmatpush1.msra.mxu0 %v406
    %408 = vmatprep.subr.mxu0 0.0
    %v409 = vand.u32 %v71, 4294901760
    %v410 = vsub.f32 %v71, %v409
    %v411 = vand.u32 %v410, 4294901760
    %v412 = vsub.f32 %v410, %v411
    %v413 = vand.u32 %v412, 4294901760
    %414 = vmatpush1.msra.mxu0 %v413
    %415 = vmatprep.subr.mxu0 0.0
    %v416 = vand.u32 %v72, 4294901760
    %v417 = vsub.f32 %v72, %v416
    %v418 = vand.u32 %v417, 4294901760
    %v419 = vsub.f32 %v417, %v418
    %v420 = vand.u32 %v419, 4294901760
    %421 = vmatpush1.msra.mxu0 %v420
    %422 = vmatprep.subr.mxu0 0.0
    %v423 = vand.u32 %v73, 4294901760
    %v424 = vsub.f32 %v73, %v423
    %v425 = vand.u32 %v424, 4294901760
    %v426 = vsub.f32 %v424, %v425
    %v427 = vand.u32 %v426, 4294901760
    %428 = vmatpush1.msra.mxu0 %v427
    %v429 = vand.u32 %v92, 4294901760
    %430 = vmatprep.mubr.f32.mxu0 %v429
    %v431 = vand.u32 %v91, 4294901760
    %432 = vmatmul.mubr.f32.gmra.mrb[0].mxu0 %v431
    %v433 = vpop.f32.mrb[0].mxu0
    %v434 = vadd.f32 %v202, %v433
    %v435 = vpop.f32.mrb[0].mxu0
    %436 = vdwg.mxu0
    %437 = vmatprep.subr.mxu0 0.0
    %v438 = vand.u32 %v42, 4294901760
    %v439 = vsub.f32 %v42, %v438
    %440 = vmatpush1.msra.mxu0 %v439
    %441 = vmatprep.subr.mxu0 0.0
    %v442 = vand.u32 %v43, 4294901760
    %v443 = vsub.f32 %v43, %v442
    %444 = vmatpush1.msra.mxu0 %v443
    %445 = vmatprep.subr.mxu0 0.0
    %v446 = vand.u32 %v44, 4294901760
    %v447 = vsub.f32 %v44, %v446
    %448 = vmatpush1.msra.mxu0 %v447
    %449 = vmatprep.subr.mxu0 0.0
    %v450 = vand.u32 %v45, 4294901760
    %v451 = vsub.f32 %v45, %v450
    %452 = vmatpush1.msra.mxu0 %v451
    %453 = vmatprep.subr.mxu0 0.0
    %v454 = vand.u32 %v46, 4294901760
    %v455 = vsub.f32 %v46, %v454
    %456 = vmatpush1.msra.mxu0 %v455
    %457 = vmatprep.subr.mxu0 0.0
    %v458 = vand.u32 %v47, 4294901760
    %v459 = vsub.f32 %v47, %v458
    %460 = vmatpush1.msra.mxu0 %v459
    %461 = vmatprep.subr.mxu0 0.0
    %v462 = vand.u32 %v48, 4294901760
    %v463 = vsub.f32 %v48, %v462
    %464 = vmatpush1.msra.mxu0 %v463
    %465 = vmatprep.subr.mxu0 0.0
    %v466 = vand.u32 %v49, 4294901760
    %v467 = vsub.f32 %v49, %v466
    %468 = vmatpush1.msra.mxu0 %v467
    %469 = vmatprep.subr.mxu0 0.0
    %v470 = vand.u32 %v50, 4294901760
    %v471 = vsub.f32 %v50, %v470
    %472 = vmatpush1.msra.mxu0 %v471
    %473 = vmatprep.subr.mxu0 0.0
    %v474 = vand.u32 %v51, 4294901760
    %v475 = vsub.f32 %v51, %v474
    %476 = vmatpush1.msra.mxu0 %v475
    %477 = vmatprep.subr.mxu0 0.0
    %v478 = vand.u32 %v52, 4294901760
    %v479 = vsub.f32 %v52, %v478
    %480 = vmatpush1.msra.mxu0 %v479
    %481 = vmatprep.subr.mxu0 0.0
    %v482 = vand.u32 %v53, 4294901760
    %v483 = vsub.f32 %v53, %v482
    %484 = vmatpush1.msra.mxu0 %v483
    %485 = vmatprep.subr.mxu0 0.0
    %v486 = vand.u32 %v54, 4294901760
    %v487 = vsub.f32 %v54, %v486
    %488 = vmatpush1.msra.mxu0 %v487
    %489 = vmatprep.subr.mxu0 0.0
    %v490 = vand.u32 %v55, 4294901760
    %v491 = vsub.f32 %v55, %v490
    %492 = vmatpush1.msra.mxu0 %v491
    %493 = vmatprep.subr.mxu0 0.0
    %v494 = vand.u32 %v56, 4294901760
    %v495 = vsub.f32 %v56, %v494
    %496 = vmatpush1.msra.mxu0 %v495
    %497 = vmatprep.subr.mxu0 0.0
    %v498 = vand.u32 %v57, 4294901760
    %v499 = vsub.f32 %v57, %v498
    %500 = vmatpush1.msra.mxu0 %v499
    %501 = vmatprep.subr.mxu0 0.0
    %v502 = vand.u32 %v58, 4294901760
    %v503 = vsub.f32 %v58, %v502
    %504 = vmatpush1.msra.mxu0 %v503
    %505 = vmatprep.subr.mxu0 0.0
    %v506 = vand.u32 %v59, 4294901760
    %v507 = vsub.f32 %v59, %v506
    %508 = vmatpush1.msra.mxu0 %v507
    %509 = vmatprep.subr.mxu0 0.0
    %v510 = vand.u32 %v60, 4294901760
    %v511 = vsub.f32 %v60, %v510
    %512 = vmatpush1.msra.mxu0 %v511
    %513 = vmatprep.subr.mxu0 0.0
    %v514 = vand.u32 %v61, 4294901760
    %v515 = vsub.f32 %v61, %v514
    %516 = vmatpush1.msra.mxu0 %v515
    %517 = vmatprep.subr.mxu0 0.0
    %v518 = vand.u32 %v62, 4294901760
    %v519 = vsub.f32 %v62, %v518
    %520 = vmatpush1.msra.mxu0 %v519
    %521 = vmatprep.subr.mxu0 0.0
    %v522 = vand.u32 %v63, 4294901760
    %v523 = vsub.f32 %v63, %v522
    %524 = vmatpush1.msra.mxu0 %v523
    %525 = vmatprep.subr.mxu0 0.0
    %v526 = vand.u32 %v64, 4294901760
    %v527 = vsub.f32 %v64, %v526
    %528 = vmatpush1.msra.mxu0 %v527
    %529 = vmatprep.subr.mxu0 0.0
    %v530 = vand.u32 %v65, 4294901760
    %v531 = vsub.f32 %v65, %v530
    %532 = vmatpush1.msra.mxu0 %v531
    %533 = vmatprep.subr.mxu0 0.0
    %v534 = vand.u32 %v66, 4294901760
    %v535 = vsub.f32 %v66, %v534
    %536 = vmatpush1.msra.mxu0 %v535
    %537 = vmatprep.subr.mxu0 0.0
    %v538 = vand.u32 %v67, 4294901760
    %v539 = vsub.f32 %v67, %v538
    %540 = vmatpush1.msra.mxu0 %v539
    %541 = vmatprep.subr.mxu0 0.0
    %v542 = vand.u32 %v68, 4294901760
    %v543 = vsub.f32 %v68, %v542
    %544 = vmatpush1.msra.mxu0 %v543
    %545 = vmatprep.subr.mxu0 0.0
    %v546 = vand.u32 %v69, 4294901760
    %v547 = vsub.f32 %v69, %v546
    %548 = vmatpush1.msra.mxu0 %v547
    %549 = vmatprep.subr.mxu0 0.0
    %v550 = vand.u32 %v70, 4294901760
    %v551 = vsub.f32 %v70, %v550
    %552 = vmatpush1.msra.mxu0 %v551
    %553 = vmatprep.subr.mxu0 0.0
    %v554 = vand.u32 %v71, 4294901760
    %v555 = vsub.f32 %v71, %v554
    %556 = vmatpush1.msra.mxu0 %v555
    %557 = vmatprep.subr.mxu0 0.0
    %v558 = vand.u32 %v72, 4294901760
    %v559 = vsub.f32 %v72, %v558
    %560 = vmatpush1.msra.mxu0 %v559
    %561 = vmatprep.subr.mxu0 0.0
    %v562 = vand.u32 %v73, 4294901760
    %v563 = vsub.f32 %v73, %v562
    %564 = vmatpush1.msra.mxu0 %v563
    %v565 = vand.u32 %v92, 4294901760
    %v566 = vsub.f32 %v92, %v565
    %567 = vmatprep.mubr.f32.mxu0 %v566
    %v568 = vand.u32 %v91, 4294901760
    %v569 = vsub.f32 %v91, %v568
    %570 = vmatmul.mubr.f32.gmra.mrb[0].mxu0 %v569
    %v571 = vpop.f32.mrb[0].mxu0
    %v572 = vadd.f32 %v434, %v571
    %v573 = vpop.f32.mrb[0].mxu0
    %574 = vdwg.mxu0
    %575 = vmatprep.subr.mxu0 0.0
    %v576 = vand.u32 %v42, 4294901760
    %577 = vmatpush1.msra.mxu0 %v576
    %578 = vmatprep.subr.mxu0 0.0
    %v579 = vand.u32 %v43, 4294901760
    %580 = vmatpush1.msra.mxu0 %v579
    %581 = vmatprep.subr.mxu0 0.0
    %v582 = vand.u32 %v44, 4294901760
    %583 = vmatpush1.msra.mxu0 %v582
    %584 = vmatprep.subr.mxu0 0.0
    %v585 = vand.u32 %v45, 4294901760
    %586 = vmatpush1.msra.mxu0 %v585
    %587 = vmatprep.subr.mxu0 0.0
    %v588 = vand.u32 %v46, 4294901760
    %589 = vmatpush1.msra.mxu0 %v588
    %590 = vmatprep.subr.mxu0 0.0
    %v591 = vand.u32 %v47, 4294901760
    %592 = vmatpush1.msra.mxu0 %v591
    %593 = vmatprep.subr.mxu0 0.0
    %v594 = vand.u32 %v48, 4294901760
    %595 = vmatpush1.msra.mxu0 %v594
    %596 = vmatprep.subr.mxu0 0.0
    %v597 = vand.u32 %v49, 4294901760
    %598 = vmatpush1.msra.mxu0 %v597
    %599 = vmatprep.subr.mxu0 0.0
    %v600 = vand.u32 %v50, 4294901760
    %601 = vmatpush1.msra.mxu0 %v600
    %602 = vmatprep.subr.mxu0 0.0
    %v603 = vand.u32 %v51, 4294901760
    %604 = vmatpush1.msra.mxu0 %v603
    %605 = vmatprep.subr.mxu0 0.0
    %v606 = vand.u32 %v52, 4294901760
    %607 = vmatpush1.msra.mxu0 %v606
    %608 = vmatprep.subr.mxu0 0.0
    %v609 = vand.u32 %v53, 4294901760
    %610 = vmatpush1.msra.mxu0 %v609
    %611 = vmatprep.subr.mxu0 0.0
    %v612 = vand.u32 %v54, 4294901760
    %613 = vmatpush1.msra.mxu0 %v612
    %614 = vmatprep.subr.mxu0 0.0
    %v615 = vand.u32 %v55, 4294901760
    %616 = vmatpush1.msra.mxu0 %v615
    %617 = vmatprep.subr.mxu0 0.0
    %v618 = vand.u32 %v56, 4294901760
    %619 = vmatpush1.msra.mxu0 %v618
    %620 = vmatprep.subr.mxu0 0.0
    %v621 = vand.u32 %v57, 4294901760
    %622 = vmatpush1.msra.mxu0 %v621
    %623 = vmatprep.subr.mxu0 0.0
    %v624 = vand.u32 %v58, 4294901760
    %625 = vmatpush1.msra.mxu0 %v624
    %626 = vmatprep.subr.mxu0 0.0
    %v627 = vand.u32 %v59, 4294901760
    %628 = vmatpush1.msra.mxu0 %v627
    %629 = vmatprep.subr.mxu0 0.0
    %v630 = vand.u32 %v60, 4294901760
    %631 = vmatpush1.msra.mxu0 %v630
    %632 = vmatprep.subr.mxu0 0.0
    %v633 = vand.u32 %v61, 4294901760
    %634 = vmatpush1.msra.mxu0 %v633
    %635 = vmatprep.subr.mxu0 0.0
    %v636 = vand.u32 %v62, 4294901760
    %637 = vmatpush1.msra.mxu0 %v636
    %638 = vmatprep.subr.mxu0 0.0
    %v639 = vand.u32 %v63, 4294901760
    %640 = vmatpush1.msra.mxu0 %v639
    %641 = vmatprep.subr.mxu0 0.0
    %v642 = vand.u32 %v64, 4294901760
    %643 = vmatpush1.msra.mxu0 %v642
    %644 = vmatprep.subr.mxu0 0.0
    %v645 = vand.u32 %v65, 4294901760
    %646 = vmatpush1.msra.mxu0 %v645
    %647 = vmatprep.subr.mxu0 0.0
    %v648 = vand.u32 %v66, 4294901760
    %649 = vmatpush1.msra.mxu0 %v648
    %650 = vmatprep.subr.mxu0 0.0
    %v651 = vand.u32 %v67, 4294901760
    %652 = vmatpush1.msra.mxu0 %v651
    %653 = vmatprep.subr.mxu0 0.0
    %v654 = vand.u32 %v68, 4294901760
    %655 = vmatpush1.msra.mxu0 %v654
    %656 = vmatprep.subr.mxu0 0.0
    %v657 = vand.u32 %v69, 4294901760
    %658 = vmatpush1.msra.mxu0 %v657
    %659 = vmatprep.subr.mxu0 0.0
    %v660 = vand.u32 %v70, 4294901760
    %661 = vmatpush1.msra.mxu0 %v660
    %662 = vmatprep.subr.mxu0 0.0
    %v663 = vand.u32 %v71, 4294901760
    %664 = vmatpush1.msra.mxu0 %v663
    %665 = vmatprep.subr.mxu0 0.0
    %v666 = vand.u32 %v72, 4294901760
    %667 = vmatpush1.msra.mxu0 %v666
    %668 = vmatprep.subr.mxu0 0.0
    %v669 = vand.u32 %v73, 4294901760
    %670 = vmatpush1.msra.mxu0 %v669
    %v671 = vand.u32 %v92, 4294901760
    %v672 = vsub.f32 %v92, %v671
    %v673 = vand.u32 %v672, 4294901760
    %674 = vmatprep.mubr.f32.mxu0 %v673
    %v675 = vand.u32 %v91, 4294901760
    %v676 = vsub.f32 %v91, %v675
    %v677 = vand.u32 %v676, 4294901760
    %678 = vmatmul.mubr.f32.gmra.mrb[0].mxu0 %v677
    %v679 = vpop.f32.mrb[0].mxu0
    %v680 = vadd.f32 %v572, %v679
    %v681 = vpop.f32.mrb[0].mxu0
    %682 = vdwg.mxu0
    %683 = vmatprep.subr.mxu0 0.0
    %v684 = vand.u32 %v42, 4294901760
    %v685 = vsub.f32 %v42, %v684
    %v686 = vand.u32 %v685, 4294901760
    %687 = vmatpush1.msra.mxu0 %v686
    %688 = vmatprep.subr.mxu0 0.0
    %v689 = vand.u32 %v43, 4294901760
    %v690 = vsub.f32 %v43, %v689
    %v691 = vand.u32 %v690, 4294901760
    %692 = vmatpush1.msra.mxu0 %v691
    %693 = vmatprep.subr.mxu0 0.0
    %v694 = vand.u32 %v44, 4294901760
    %v695 = vsub.f32 %v44, %v694
    %v696 = vand.u32 %v695, 4294901760
    %697 = vmatpush1.msra.mxu0 %v696
    %698 = vmatprep.subr.mxu0 0.0
    %v699 = vand.u32 %v45, 4294901760
    %v700 = vsub.f32 %v45, %v699
    %v701 = vand.u32 %v700, 4294901760
    %702 = vmatpush1.msra.mxu0 %v701
    %703 = vmatprep.subr.mxu0 0.0
    %v704 = vand.u32 %v46, 4294901760
    %v705 = vsub.f32 %v46, %v704
    %v706 = vand.u32 %v705, 4294901760
    %707 = vmatpush1.msra.mxu0 %v706
    %708 = vmatprep.subr.mxu0 0.0
    %v709 = vand.u32 %v47, 4294901760
    %v710 = vsub.f32 %v47, %v709
    %v711 = vand.u32 %v710, 4294901760
    %712 = vmatpush1.msra.mxu0 %v711
    %713 = vmatprep.subr.mxu0 0.0
    %v714 = vand.u32 %v48, 4294901760
    %v715 = vsub.f32 %v48, %v714
    %v716 = vand.u32 %v715, 4294901760
    %717 = vmatpush1.msra.mxu0 %v716
    %718 = vmatprep.subr.mxu0 0.0
    %v719 = vand.u32 %v49, 4294901760
    %v720 = vsub.f32 %v49, %v719
    %v721 = vand.u32 %v720, 4294901760
    %722 = vmatpush1.msra.mxu0 %v721
    %723 = vmatprep.subr.mxu0 0.0
    %v724 = vand.u32 %v50, 4294901760
    %v725 = vsub.f32 %v50, %v724
    %v726 = vand.u32 %v725, 4294901760
    %727 = vmatpush1.msra.mxu0 %v726
    %728 = vmatprep.subr.mxu0 0.0
    %v729 = vand.u32 %v51, 4294901760
    %v730 = vsub.f32 %v51, %v729
    %v731 = vand.u32 %v730, 4294901760
    %732 = vmatpush1.msra.mxu0 %v731
    %733 = vmatprep.subr.mxu0 0.0
    %v734 = vand.u32 %v52, 4294901760
    %v735 = vsub.f32 %v52, %v734
    %v736 = vand.u32 %v735, 4294901760
    %737 = vmatpush1.msra.mxu0 %v736
    %738 = vmatprep.subr.mxu0 0.0
    %v739 = vand.u32 %v53, 4294901760
    %v740 = vsub.f32 %v53, %v739
    %v741 = vand.u32 %v740, 4294901760
    %742 = vmatpush1.msra.mxu0 %v741
    %743 = vmatprep.subr.mxu0 0.0
    %v744 = vand.u32 %v54, 4294901760
    %v745 = vsub.f32 %v54, %v744
    %v746 = vand.u32 %v745, 4294901760
    %747 = vmatpush1.msra.mxu0 %v746
    %748 = vmatprep.subr.mxu0 0.0
    %v749 = vand.u32 %v55, 4294901760
    %v750 = vsub.f32 %v55, %v749
    %v751 = vand.u32 %v750, 4294901760
    %752 = vmatpush1.msra.mxu0 %v751
    %753 = vmatprep.subr.mxu0 0.0
    %v754 = vand.u32 %v56, 4294901760
    %v755 = vsub.f32 %v56, %v754
    %v756 = vand.u32 %v755, 4294901760
    %757 = vmatpush1.msra.mxu0 %v756
    %758 = vmatprep.subr.mxu0 0.0
    %v759 = vand.u32 %v57, 4294901760
    %v760 = vsub.f32 %v57, %v759
    %v761 = vand.u32 %v760, 4294901760
    %762 = vmatpush1.msra.mxu0 %v761
    %763 = vmatprep.subr.mxu0 0.0
    %v764 = vand.u32 %v58, 4294901760
    %v765 = vsub.f32 %v58, %v764
    %v766 = vand.u32 %v765, 4294901760
    %767 = vmatpush1.msra.mxu0 %v766
    %768 = vmatprep.subr.mxu0 0.0
    %v769 = vand.u32 %v59, 4294901760
    %v770 = vsub.f32 %v59, %v769
    %v771 = vand.u32 %v770, 4294901760
    %772 = vmatpush1.msra.mxu0 %v771
    %773 = vmatprep.subr.mxu0 0.0
    %v774 = vand.u32 %v60, 4294901760
    %v775 = vsub.f32 %v60, %v774
    %v776 = vand.u32 %v775, 4294901760
    %777 = vmatpush1.msra.mxu0 %v776
    %778 = vmatprep.subr.mxu0 0.0
    %v779 = vand.u32 %v61, 4294901760
    %v780 = vsub.f32 %v61, %v779
    %v781 = vand.u32 %v780, 4294901760
    %782 = vmatpush1.msra.mxu0 %v781
    %783 = vmatprep.subr.mxu0 0.0
    %v784 = vand.u32 %v62, 4294901760
    %v785 = vsub.f32 %v62, %v784
    %v786 = vand.u32 %v785, 4294901760
    %787 = vmatpush1.msra.mxu0 %v786
    %788 = vmatprep.subr.mxu0 0.0
    %v789 = vand.u32 %v63, 4294901760
    %v790 = vsub.f32 %v63, %v789
    %v791 = vand.u32 %v790, 4294901760
    %792 = vmatpush1.msra.mxu0 %v791
    %793 = vmatprep.subr.mxu0 0.0
    %v794 = vand.u32 %v64, 4294901760
    %v795 = vsub.f32 %v64, %v794
    %v796 = vand.u32 %v795, 4294901760
    %797 = vmatpush1.msra.mxu0 %v796
    %798 = vmatprep.subr.mxu0 0.0
    %v799 = vand.u32 %v65, 4294901760
    %v800 = vsub.f32 %v65, %v799
    %v801 = vand.u32 %v800, 4294901760
    %802 = vmatpush1.msra.mxu0 %v801
    %803 = vmatprep.subr.mxu0 0.0
    %v804 = vand.u32 %v66, 4294901760
    %v805 = vsub.f32 %v66, %v804
    %v806 = vand.u32 %v805, 4294901760
    %807 = vmatpush1.msra.mxu0 %v806
    %808 = vmatprep.subr.mxu0 0.0
    %v809 = vand.u32 %v67, 4294901760
    %v810 = vsub.f32 %v67, %v809
    %v811 = vand.u32 %v810, 4294901760
    %812 = vmatpush1.msra.mxu0 %v811
    %813 = vmatprep.subr.mxu0 0.0
    %v814 = vand.u32 %v68, 4294901760
    %v815 = vsub.f32 %v68, %v814
    %v816 = vand.u32 %v815, 4294901760
    %817 = vmatpush1.msra.mxu0 %v816
    %818 = vmatprep.subr.mxu0 0.0
    %v819 = vand.u32 %v69, 4294901760
    %v820 = vsub.f32 %v69, %v819
    %v821 = vand.u32 %v820, 4294901760
    %822 = vmatpush1.msra.mxu0 %v821
    %823 = vmatprep.subr.mxu0 0.0
    %v824 = vand.u32 %v70, 4294901760
    %v825 = vsub.f32 %v70, %v824
    %v826 = vand.u32 %v825, 4294901760
    %827 = vmatpush1.msra.mxu0 %v826
    %828 = vmatprep.subr.mxu0 0.0
    %v829 = vand.u32 %v71, 4294901760
    %v830 = vsub.f32 %v71, %v829
    %v831 = vand.u32 %v830, 4294901760
    %832 = vmatpush1.msra.mxu0 %v831
    %833 = vmatprep.subr.mxu0 0.0
    %v834 = vand.u32 %v72, 4294901760
    %v835 = vsub.f32 %v72, %v834
    %v836 = vand.u32 %v835, 4294901760
    %837 = vmatpush1.msra.mxu0 %v836
    %838 = vmatprep.subr.mxu0 0.0
    %v839 = vand.u32 %v73, 4294901760
    %v840 = vsub.f32 %v73, %v839
    %v841 = vand.u32 %v840, 4294901760
    %842 = vmatpush1.msra.mxu0 %v841
    %v843 = vand.u32 %v92, 4294901760
    %844 = vmatprep.mubr.f32.mxu0 %v843
    %v845 = vand.u32 %v91, 4294901760
    %846 = vmatmul.mubr.f32.gmra.mrb[0].mxu0 %v845
    %v847 = vpop.f32.mrb[0].mxu0
    %v848 = vadd.f32 %v680, %v847
    %v849 = vpop.f32.mrb[0].mxu0
    %850 = vdwg.mxu0
    %851 = vmatprep.subr.mxu0 0.0
    %v852 = vand.u32 %v42, 4294901760
    %853 = vmatpush1.msra.mxu0 %v852
    %854 = vmatprep.subr.mxu0 0.0
    %v855 = vand.u32 %v43, 4294901760
    %856 = vmatpush1.msra.mxu0 %v855
    %857 = vmatprep.subr.mxu0 0.0
    %v858 = vand.u32 %v44, 4294901760
    %859 = vmatpush1.msra.mxu0 %v858
    %860 = vmatprep.subr.mxu0 0.0
    %v861 = vand.u32 %v45, 4294901760
    %862 = vmatpush1.msra.mxu0 %v861
    %863 = vmatprep.subr.mxu0 0.0
    %v864 = vand.u32 %v46, 4294901760
    %865 = vmatpush1.msra.mxu0 %v864
    %866 = vmatprep.subr.mxu0 0.0
    %v867 = vand.u32 %v47, 4294901760
    %868 = vmatpush1.msra.mxu0 %v867
    %869 = vmatprep.subr.mxu0 0.0
    %v870 = vand.u32 %v48, 4294901760
    %871 = vmatpush1.msra.mxu0 %v870
    %872 = vmatprep.subr.mxu0 0.0
    %v873 = vand.u32 %v49, 4294901760
    %874 = vmatpush1.msra.mxu0 %v873
    %875 = vmatprep.subr.mxu0 0.0
    %v876 = vand.u32 %v50, 4294901760
    %877 = vmatpush1.msra.mxu0 %v876
    %878 = vmatprep.subr.mxu0 0.0
    %v879 = vand.u32 %v51, 4294901760
    %880 = vmatpush1.msra.mxu0 %v879
    %881 = vmatprep.subr.mxu0 0.0
    %v882 = vand.u32 %v52, 4294901760
    %883 = vmatpush1.msra.mxu0 %v882
    %884 = vmatprep.subr.mxu0 0.0
    %v885 = vand.u32 %v53, 4294901760
    %886 = vmatpush1.msra.mxu0 %v885
    %887 = vmatprep.subr.mxu0 0.0
    %v888 = vand.u32 %v54, 4294901760
    %889 = vmatpush1.msra.mxu0 %v888
    %890 = vmatprep.subr.mxu0 0.0
    %v891 = vand.u32 %v55, 4294901760
    %892 = vmatpush1.msra.mxu0 %v891
    %893 = vmatprep.subr.mxu0 0.0
    %v894 = vand.u32 %v56, 4294901760
    %895 = vmatpush1.msra.mxu0 %v894
    %896 = vmatprep.subr.mxu0 0.0
    %v897 = vand.u32 %v57, 4294901760
    %898 = vmatpush1.msra.mxu0 %v897
    %899 = vmatprep.subr.mxu0 0.0
    %v900 = vand.u32 %v58, 4294901760
    %901 = vmatpush1.msra.mxu0 %v900
    %902 = vmatprep.subr.mxu0 0.0
    %v903 = vand.u32 %v59, 4294901760
    %904 = vmatpush1.msra.mxu0 %v903
    %905 = vmatprep.subr.mxu0 0.0
    %v906 = vand.u32 %v60, 4294901760
    %907 = vmatpush1.msra.mxu0 %v906
    %908 = vmatprep.subr.mxu0 0.0
    %v909 = vand.u32 %v61, 4294901760
    %910 = vmatpush1.msra.mxu0 %v909
    %911 = vmatprep.subr.mxu0 0.0
    %v912 = vand.u32 %v62, 4294901760
    %913 = vmatpush1.msra.mxu0 %v912
    %914 = vmatprep.subr.mxu0 0.0
    %v915 = vand.u32 %v63, 4294901760
    %916 = vmatpush1.msra.mxu0 %v915
    %917 = vmatprep.subr.mxu0 0.0
    %v918 = vand.u32 %v64, 4294901760
    %919 = vmatpush1.msra.mxu0 %v918
    %920 = vmatprep.subr.mxu0 0.0
    %v921 = vand.u32 %v65, 4294901760
    %922 = vmatpush1.msra.mxu0 %v921
    %923 = vmatprep.subr.mxu0 0.0
    %v924 = vand.u32 %v66, 4294901760
    %925 = vmatpush1.msra.mxu0 %v924
    %926 = vmatprep.subr.mxu0 0.0
    %v927 = vand.u32 %v67, 4294901760
    %928 = vmatpush1.msra.mxu0 %v927
    %929 = vmatprep.subr.mxu0 0.0
    %v930 = vand.u32 %v68, 4294901760
    %931 = vmatpush1.msra.mxu0 %v930
    %932 = vmatprep.subr.mxu0 0.0
    %v933 = vand.u32 %v69, 4294901760
    %934 = vmatpush1.msra.mxu0 %v933
    %935 = vmatprep.subr.mxu0 0.0
    %v936 = vand.u32 %v70, 4294901760
    %937 = vmatpush1.msra.mxu0 %v936
    %938 = vmatprep.subr.mxu0 0.0
    %v939 = vand.u32 %v71, 4294901760
    %940 = vmatpush1.msra.mxu0 %v939
    %941 = vmatprep.subr.mxu0 0.0
    %v942 = vand.u32 %v72, 4294901760
    %943 = vmatpush1.msra.mxu0 %v942
    %944 = vmatprep.subr.mxu0 0.0
    %v945 = vand.u32 %v73, 4294901760
    %946 = vmatpush1.msra.mxu0 %v945
    %v947 = vand.u32 %v92, 4294901760
    %948 = vmatprep.mubr.f32.mxu0 %v947
    %v949 = vand.u32 %v91, 4294901760
    %950 = vmatmul.mubr.f32.gmra.mrb[0].mxu0 %v949
    %v951 = vpop.f32.mrb[0].mxu0
    %v952 = vadd.f32 %v848, %v951
    %v953 = vpop.f32.mrb[0].mxu0
    %954 = vdwg.mxu0
    %v955 = vtanh.pop %v952
    %v956 = vmul.f32 %v91, 0.9
    %v957 = vmul.f32 %v955, 0.1
    %v958 = vadd.f32 %v956, %v957
    %959 = vmatprep.subr.mxu0 0.0
    %v960 = vand.u32 %v74, 4294901760
    %961 = vmatpush1.msra.mxu0 %v960
    %962 = vmatprep.subr.mxu0 0.0
    %v963 = vand.u32 %v75, 4294901760
    %964 = vmatpush1.msra.mxu0 %v963
    %965 = vmatprep.subr.mxu0 0.0
    %v966 = vand.u32 %v76, 4294901760
    %967 = vmatpush1.msra.mxu0 %v966
    %968 = vmatprep.subr.mxu0 0.0
    %v969 = vand.u32 %v77, 4294901760
    %970 = vmatpush1.msra.mxu0 %v969
    %971 = vmatprep.subr.mxu0 0.0
    %v972 = vand.u32 %v78, 4294901760
    %973 = vmatpush1.msra.mxu0 %v972
    %974 = vmatprep.subr.mxu0 0.0
    %v975 = vand.u32 %v79, 4294901760
    %976 = vmatpush1.msra.mxu0 %v975
    %977 = vmatprep.subr.mxu0 0.0
    %v978 = vand.u32 %v80, 4294901760
    %979 = vmatpush1.msra.mxu0 %v978
    %980 = vmatprep.subr.mxu0 0.0
    %v981 = vand.u32 %v81, 4294901760
    %982 = vmatpush1.msra.mxu0 %v981
    %983 = vmatprep.subr.mxu0 0.0
    %v984 = vand.u32 %v82, 4294901760
    %985 = vmatpush1.msra.mxu0 %v984
    %986 = vmatprep.subr.mxu0 0.0
    %v987 = vand.u32 %v83, 4294901760
    %988 = vmatpush1.msra.mxu0 %v987
    %989 = vmatprep.subr.mxu0 0.0
    %v990 = vand.u32 %v84, 4294901760
    %991 = vmatpush1.msra.mxu0 %v990
    %992 = vmatprep.subr.mxu0 0.0
    %v993 = vand.u32 %v85, 4294901760
    %994 = vmatpush1.msra.mxu0 %v993
    %995 = vmatprep.subr.mxu0 0.0
    %v996 = vand.u32 %v86, 4294901760
    %997 = vmatpush1.msra.mxu0 %v996
    %998 = vmatprep.subr.mxu0 0.0
    %v999 = vand.u32 %v87, 4294901760
    %1000 = vmatpush1.msra.mxu0 %v999
    %1001 = vmatprep.subr.mxu0 0.0
    %v1002 = vand.u32 %v88, 4294901760
    %1003 = vmatpush1.msra.mxu0 %v1002
    %1004 = vmatprep.subr.mxu0 0.0
    %v1005 = vand.u32 %v89, 4294901760
    %1006 = vmatpush1.msra.mxu0 %v1005
    %1007 = vmatprep.subr.mxu0 0.0
    %1008 = vmatpush1.msra.mxu0 0.0
    %1009 = vmatprep.subr.mxu0 0.0
    %1010 = vmatpush1.msra.mxu0 0.0
    %1011 = vmatprep.subr.mxu0 0.0
    %1012 = vmatpush1.msra.mxu0 0.0
    %1013 = vmatprep.subr.mxu0 0.0
    %1014 = vmatpush1.msra.mxu0 0.0
    %1015 = vmatprep.subr.mxu0 0.0
    %1016 = vmatpush1.msra.mxu0 0.0
    %1017 = vmatprep.subr.mxu0 0.0
    %1018 = vmatpush1.msra.mxu0 0.0
    %1019 = vmatprep.subr.mxu0 0.0
    %1020 = vmatpush1.msra.mxu0 0.0
    %1021 = vmatprep.subr.mxu0 0.0
    %1022 = vmatpush1.msra.mxu0 0.0
    %1023 = vmatprep.subr.mxu0 0.0
    %1024 = vmatpush1.msra.mxu0 0.0
    %1025 = vmatprep.subr.mxu0 0.0
    %1026 = vmatpush1.msra.mxu0 0.0
    %1027 = vmatprep.subr.mxu0 0.0
    %1028 = vmatpush1.msra.mxu0 0.0
    %1029 = vmatprep.subr.mxu0 0.0
    %1030 = vmatpush1.msra.mxu0 0.0
    %1031 = vmatprep.subr.mxu0 0.0
    %1032 = vmatpush1.msra.mxu0 0.0
    %1033 = vmatprep.subr.mxu0 0.0
    %1034 = vmatpush1.msra.mxu0 0.0
    %1035 = vmatprep.subr.mxu0 0.0
    %1036 = vmatpush1.msra.mxu0 0.0
    %1037 = vmatprep.subr.mxu0 0.0
    %1038 = vmatpush1.msra.mxu0 0.0
    %1039 = vmatprep.mubr.f32.mxu0 0.0
    %v1040 = vand.u32 %v958, 4294901760
    %v1041 = vsub.f32 %v958, %v1040
    %v1042 = vand.u32 %v1041, 4294901760
    %v1043 = vsub.f32 %v1041, %v1042
    %v1044 = vand.u32 %v1043, 4294901760
    %1045 = vmatmul.mubr.f32.gmra.mrb[0].mxu0 %v1044
    %v1046 = vpop.f32.mrb[0].mxu0
    %v1047 = vadd.f32 %v90, %v1046
    %v1048 = vpop.f32.mrb[0].mxu0
    %1049 = vdwg.mxu0
    %1050 = vmatprep.subr.mxu0 0.0
    %v1051 = vand.u32 %v74, 4294901760
    %v1052 = vsub.f32 %v74, %v1051
    %v1053 = vand.u32 %v1052, 4294901760
    %v1054 = vsub.f32 %v1052, %v1053
    %v1055 = vand.u32 %v1054, 4294901760
    %1056 = vmatpush1.msra.mxu0 %v1055
    %1057 = vmatprep.subr.mxu0 0.0
    %v1058 = vand.u32 %v75, 4294901760
    %v1059 = vsub.f32 %v75, %v1058
    %v1060 = vand.u32 %v1059, 4294901760
    %v1061 = vsub.f32 %v1059, %v1060
    %v1062 = vand.u32 %v1061, 4294901760
    %1063 = vmatpush1.msra.mxu0 %v1062
    %1064 = vmatprep.subr.mxu0 0.0
    %v1065 = vand.u32 %v76, 4294901760
    %v1066 = vsub.f32 %v76, %v1065
    %v1067 = vand.u32 %v1066, 4294901760
    %v1068 = vsub.f32 %v1066, %v1067
    %v1069 = vand.u32 %v1068, 4294901760
    %1070 = vmatpush1.msra.mxu0 %v1069
    %1071 = vmatprep.subr.mxu0 0.0
    %v1072 = vand.u32 %v77, 4294901760
    %v1073 = vsub.f32 %v77, %v1072
    %v1074 = vand.u32 %v1073, 4294901760
    %v1075 = vsub.f32 %v1073, %v1074
    %v1076 = vand.u32 %v1075, 4294901760
    %1077 = vmatpush1.msra.mxu0 %v1076
    %1078 = vmatprep.subr.mxu0 0.0
    %v1079 = vand.u32 %v78, 4294901760
    %v1080 = vsub.f32 %v78, %v1079
    %v1081 = vand.u32 %v1080, 4294901760
    %v1082 = vsub.f32 %v1080, %v1081
    %v1083 = vand.u32 %v1082, 4294901760
    %1084 = vmatpush1.msra.mxu0 %v1083
    %1085 = vmatprep.subr.mxu0 0.0
    %v1086 = vand.u32 %v79, 4294901760
    %v1087 = vsub.f32 %v79, %v1086
    %v1088 = vand.u32 %v1087, 4294901760
    %v1089 = vsub.f32 %v1087, %v1088
    %v1090 = vand.u32 %v1089, 4294901760
    %1091 = vmatpush1.msra.mxu0 %v1090
    %1092 = vmatprep.subr.mxu0 0.0
    %v1093 = vand.u32 %v80, 4294901760
    %v1094 = vsub.f32 %v80, %v1093
    %v1095 = vand.u32 %v1094, 4294901760
    %v1096 = vsub.f32 %v1094, %v1095
    %v1097 = vand.u32 %v1096, 4294901760
    %1098 = vmatpush1.msra.mxu0 %v1097
    %1099 = vmatprep.subr.mxu0 0.0
    %v1100 = vand.u32 %v81, 4294901760
    %v1101 = vsub.f32 %v81, %v1100
    %v1102 = vand.u32 %v1101, 4294901760
    %v1103 = vsub.f32 %v1101, %v1102
    %v1104 = vand.u32 %v1103, 4294901760
    %1105 = vmatpush1.msra.mxu0 %v1104
    %1106 = vmatprep.subr.mxu0 0.0
    %v1107 = vand.u32 %v82, 4294901760
    %v1108 = vsub.f32 %v82, %v1107
    %v1109 = vand.u32 %v1108, 4294901760
    %v1110 = vsub.f32 %v1108, %v1109
    %v1111 = vand.u32 %v1110, 4294901760
    %1112 = vmatpush1.msra.mxu0 %v1111
    %1113 = vmatprep.subr.mxu0 0.0
    %v1114 = vand.u32 %v83, 4294901760
    %v1115 = vsub.f32 %v83, %v1114
    %v1116 = vand.u32 %v1115, 4294901760
    %v1117 = vsub.f32 %v1115, %v1116
    %v1118 = vand.u32 %v1117, 4294901760
    %1119 = vmatpush1.msra.mxu0 %v1118
    %1120 = vmatprep.subr.mxu0 0.0
    %v1121 = vand.u32 %v84, 4294901760
    %v1122 = vsub.f32 %v84, %v1121
    %v1123 = vand.u32 %v1122, 4294901760
    %v1124 = vsub.f32 %v1122, %v1123
    %v1125 = vand.u32 %v1124, 4294901760
    %1126 = vmatpush1.msra.mxu0 %v1125
    %1127 = vmatprep.subr.mxu0 0.0
    %v1128 = vand.u32 %v85, 4294901760
    %v1129 = vsub.f32 %v85, %v1128
    %v1130 = vand.u32 %v1129, 4294901760
    %v1131 = vsub.f32 %v1129, %v1130
    %v1132 = vand.u32 %v1131, 4294901760
    %1133 = vmatpush1.msra.mxu0 %v1132
    %1134 = vmatprep.subr.mxu0 0.0
    %v1135 = vand.u32 %v86, 4294901760
    %v1136 = vsub.f32 %v86, %v1135
    %v1137 = vand.u32 %v1136, 4294901760
    %v1138 = vsub.f32 %v1136, %v1137
    %v1139 = vand.u32 %v1138, 4294901760
    %1140 = vmatpush1.msra.mxu0 %v1139
    %1141 = vmatprep.subr.mxu0 0.0
    %v1142 = vand.u32 %v87, 4294901760
    %v1143 = vsub.f32 %v87, %v1142
    %v1144 = vand.u32 %v1143, 4294901760
    %v1145 = vsub.f32 %v1143, %v1144
    %v1146 = vand.u32 %v1145, 4294901760
    %1147 = vmatpush1.msra.mxu0 %v1146
    %1148 = vmatprep.subr.mxu0 0.0
    %v1149 = vand.u32 %v88, 4294901760
    %v1150 = vsub.f32 %v88, %v1149
    %v1151 = vand.u32 %v1150, 4294901760
    %v1152 = vsub.f32 %v1150, %v1151
    %v1153 = vand.u32 %v1152, 4294901760
    %1154 = vmatpush1.msra.mxu0 %v1153
    %1155 = vmatprep.subr.mxu0 0.0
    %v1156 = vand.u32 %v89, 4294901760
    %v1157 = vsub.f32 %v89, %v1156
    %v1158 = vand.u32 %v1157, 4294901760
    %v1159 = vsub.f32 %v1157, %v1158
    %v1160 = vand.u32 %v1159, 4294901760
    %1161 = vmatpush1.msra.mxu0 %v1160
    %1162 = vmatprep.subr.mxu0 0.0
    %1163 = vmatpush1.msra.mxu0 0.0
    %1164 = vmatprep.subr.mxu0 0.0
    %1165 = vmatpush1.msra.mxu0 0.0
    %1166 = vmatprep.subr.mxu0 0.0
    %1167 = vmatpush1.msra.mxu0 0.0
    %1168 = vmatprep.subr.mxu0 0.0
    %1169 = vmatpush1.msra.mxu0 0.0
    %1170 = vmatprep.subr.mxu0 0.0
    %1171 = vmatpush1.msra.mxu0 0.0
    %1172 = vmatprep.subr.mxu0 0.0
    %1173 = vmatpush1.msra.mxu0 0.0
    %1174 = vmatprep.subr.mxu0 0.0
    %1175 = vmatpush1.msra.mxu0 0.0
    %1176 = vmatprep.subr.mxu0 0.0
    %1177 = vmatpush1.msra.mxu0 0.0
    %1178 = vmatprep.subr.mxu0 0.0
    %1179 = vmatpush1.msra.mxu0 0.0
    %1180 = vmatprep.subr.mxu0 0.0
    %1181 = vmatpush1.msra.mxu0 0.0
    %1182 = vmatprep.subr.mxu0 0.0
    %1183 = vmatpush1.msra.mxu0 0.0
    %1184 = vmatprep.subr.mxu0 0.0
    %1185 = vmatpush1.msra.mxu0 0.0
    %1186 = vmatprep.subr.mxu0 0.0
    %1187 = vmatpush1.msra.mxu0 0.0
    %1188 = vmatprep.subr.mxu0 0.0
    %1189 = vmatpush1.msra.mxu0 0.0
    %1190 = vmatprep.subr.mxu0 0.0
    %1191 = vmatpush1.msra.mxu0 0.0
    %1192 = vmatprep.subr.mxu0 0.0
    %1193 = vmatpush1.msra.mxu0 0.0
    %1194 = vmatprep.mubr.f32.mxu0 0.0
    %v1195 = vand.u32 %v958, 4294901760
    %1196 = vmatmul.mubr.f32.gmra.mrb[0].mxu0 %v1195
    %v1197 = vpop.f32.mrb[0].mxu0
    %v1198 = vadd.f32 %v1047, %v1197
    %v1199 = vpop.f32.mrb[0].mxu0
    %1200 = vdwg.mxu0
    %1201 = vmatprep.subr.mxu0 0.0
    %v1202 = vand.u32 %v74, 4294901760
    %v1203 = vsub.f32 %v74, %v1202
    %1204 = vmatpush1.msra.mxu0 %v1203
    %1205 = vmatprep.subr.mxu0 0.0
    %v1206 = vand.u32 %v75, 4294901760
    %v1207 = vsub.f32 %v75, %v1206
    %1208 = vmatpush1.msra.mxu0 %v1207
    %1209 = vmatprep.subr.mxu0 0.0
    %v1210 = vand.u32 %v76, 4294901760
    %v1211 = vsub.f32 %v76, %v1210
    %1212 = vmatpush1.msra.mxu0 %v1211
    %1213 = vmatprep.subr.mxu0 0.0
    %v1214 = vand.u32 %v77, 4294901760
    %v1215 = vsub.f32 %v77, %v1214
    %1216 = vmatpush1.msra.mxu0 %v1215
    %1217 = vmatprep.subr.mxu0 0.0
    %v1218 = vand.u32 %v78, 4294901760
    %v1219 = vsub.f32 %v78, %v1218
    %1220 = vmatpush1.msra.mxu0 %v1219
    %1221 = vmatprep.subr.mxu0 0.0
    %v1222 = vand.u32 %v79, 4294901760
    %v1223 = vsub.f32 %v79, %v1222
    %1224 = vmatpush1.msra.mxu0 %v1223
    %1225 = vmatprep.subr.mxu0 0.0
    %v1226 = vand.u32 %v80, 4294901760
    %v1227 = vsub.f32 %v80, %v1226
    %1228 = vmatpush1.msra.mxu0 %v1227
    %1229 = vmatprep.subr.mxu0 0.0
    %v1230 = vand.u32 %v81, 4294901760
    %v1231 = vsub.f32 %v81, %v1230
    %1232 = vmatpush1.msra.mxu0 %v1231
    %1233 = vmatprep.subr.mxu0 0.0
    %v1234 = vand.u32 %v82, 4294901760
    %v1235 = vsub.f32 %v82, %v1234
    %1236 = vmatpush1.msra.mxu0 %v1235
    %1237 = vmatprep.subr.mxu0 0.0
    %v1238 = vand.u32 %v83, 4294901760
    %v1239 = vsub.f32 %v83, %v1238
    %1240 = vmatpush1.msra.mxu0 %v1239
    %1241 = vmatprep.subr.mxu0 0.0
    %v1242 = vand.u32 %v84, 4294901760
    %v1243 = vsub.f32 %v84, %v1242
    %1244 = vmatpush1.msra.mxu0 %v1243
    %1245 = vmatprep.subr.mxu0 0.0
    %v1246 = vand.u32 %v85, 4294901760
    %v1247 = vsub.f32 %v85, %v1246
    %1248 = vmatpush1.msra.mxu0 %v1247
    %1249 = vmatprep.subr.mxu0 0.0
    %v1250 = vand.u32 %v86, 4294901760
    %v1251 = vsub.f32 %v86, %v1250
    %1252 = vmatpush1.msra.mxu0 %v1251
    %1253 = vmatprep.subr.mxu0 0.0
    %v1254 = vand.u32 %v87, 4294901760
    %v1255 = vsub.f32 %v87, %v1254
    %1256 = vmatpush1.msra.mxu0 %v1255
    %1257 = vmatprep.subr.mxu0 0.0
    %v1258 = vand.u32 %v88, 4294901760
    %v1259 = vsub.f32 %v88, %v1258
    %1260 = vmatpush1.msra.mxu0 %v1259
    %1261 = vmatprep.subr.mxu0 0.0
    %v1262 = vand.u32 %v89, 4294901760
    %v1263 = vsub.f32 %v89, %v1262
    %1264 = vmatpush1.msra.mxu0 %v1263
    %1265 = vmatprep.subr.mxu0 0.0
    %1266 = vmatpush1.msra.mxu0 0.0
    %1267 = vmatprep.subr.mxu0 0.0
    %1268 = vmatpush1.msra.mxu0 0.0
    %1269 = vmatprep.subr.mxu0 0.0
    %1270 = vmatpush1.msra.mxu0 0.0
    %1271 = vmatprep.subr.mxu0 0.0
    %1272 = vmatpush1.msra.mxu0 0.0
    %1273 = vmatprep.subr.mxu0 0.0
    %1274 = vmatpush1.msra.mxu0 0.0
    %1275 = vmatprep.subr.mxu0 0.0
    %1276 = vmatpush1.msra.mxu0 0.0
    %1277 = vmatprep.subr.mxu0 0.0
    %1278 = vmatpush1.msra.mxu0 0.0
    %1279 = vmatprep.subr.mxu0 0.0
    %1280 = vmatpush1.msra.mxu0 0.0
    %1281 = vmatprep.subr.mxu0 0.0
    %1282 = vmatpush1.msra.mxu0 0.0
    %1283 = vmatprep.subr.mxu0 0.0
    %1284 = vmatpush1.msra.mxu0 0.0
    %1285 = vmatprep.subr.mxu0 0.0
    %1286 = vmatpush1.msra.mxu0 0.0
    %1287 = vmatprep.subr.mxu0 0.0
    %1288 = vmatpush1.msra.mxu0 0.0
    %1289 = vmatprep.subr.mxu0 0.0
    %1290 = vmatpush1.msra.mxu0 0.0
    %1291 = vmatprep.subr.mxu0 0.0
    %1292 = vmatpush1.msra.mxu0 0.0
    %1293 = vmatprep.subr.mxu0 0.0
    %1294 = vmatpush1.msra.mxu0 0.0
    %1295 = vmatprep.subr.mxu0 0.0
    %1296 = vmatpush1.msra.mxu0 0.0
    %1297 = vmatprep.mubr.f32.mxu0 0.0
    %v1298 = vand.u32 %v958, 4294901760
    %v1299 = vsub.f32 %v958, %v1298
    %1300 = vmatmul.mubr.f32.gmra.mrb[0].mxu0 %v1299
    %v1301 = vpop.f32.mrb[0].mxu0
    %v1302 = vadd.f32 %v1198, %v1301
    %v1303 = vpop.f32.mrb[0].mxu0
    %1304 = vdwg.mxu0
    %1305 = vmatprep.subr.mxu0 0.0
    %v1306 = vand.u32 %v74, 4294901760
    %1307 = vmatpush1.msra.mxu0 %v1306
    %1308 = vmatprep.subr.mxu0 0.0
    %v1309 = vand.u32 %v75, 4294901760
    %1310 = vmatpush1.msra.mxu0 %v1309
    %1311 = vmatprep.subr.mxu0 0.0
    %v1312 = vand.u32 %v76, 4294901760
    %1313 = vmatpush1.msra.mxu0 %v1312
    %1314 = vmatprep.subr.mxu0 0.0
    %v1315 = vand.u32 %v77, 4294901760
    %1316 = vmatpush1.msra.mxu0 %v1315
    %1317 = vmatprep.subr.mxu0 0.0
    %v1318 = vand.u32 %v78, 4294901760
    %1319 = vmatpush1.msra.mxu0 %v1318
    %1320 = vmatprep.subr.mxu0 0.0
    %v1321 = vand.u32 %v79, 4294901760
    %1322 = vmatpush1.msra.mxu0 %v1321
    %1323 = vmatprep.subr.mxu0 0.0
    %v1324 = vand.u32 %v80, 4294901760
    %1325 = vmatpush1.msra.mxu0 %v1324
    %1326 = vmatprep.subr.mxu0 0.0
    %v1327 = vand.u32 %v81, 4294901760
    %1328 = vmatpush1.msra.mxu0 %v1327
    %1329 = vmatprep.subr.mxu0 0.0
    %v1330 = vand.u32 %v82, 4294901760
    %1331 = vmatpush1.msra.mxu0 %v1330
    %1332 = vmatprep.subr.mxu0 0.0
    %v1333 = vand.u32 %v83, 4294901760
    %1334 = vmatpush1.msra.mxu0 %v1333
    %1335 = vmatprep.subr.mxu0 0.0
    %v1336 = vand.u32 %v84, 4294901760
    %1337 = vmatpush1.msra.mxu0 %v1336
    %1338 = vmatprep.subr.mxu0 0.0
    %v1339 = vand.u32 %v85, 4294901760
    %1340 = vmatpush1.msra.mxu0 %v1339
    %1341 = vmatprep.subr.mxu0 0.0
    %v1342 = vand.u32 %v86, 4294901760
    %1343 = vmatpush1.msra.mxu0 %v1342
    %1344 = vmatprep.subr.mxu0 0.0
    %v1345 = vand.u32 %v87, 4294901760
    %1346 = vmatpush1.msra.mxu0 %v1345
    %1347 = vmatprep.subr.mxu0 0.0
    %v1348 = vand.u32 %v88, 4294901760
    %1349 = vmatpush1.msra.mxu0 %v1348
    %1350 = vmatprep.subr.mxu0 0.0
    %v1351 = vand.u32 %v89, 4294901760
    %1352 = vmatpush1.msra.mxu0 %v1351
    %1353 = vmatprep.subr.mxu0 0.0
    %1354 = vmatpush1.msra.mxu0 0.0
    %1355 = vmatprep.subr.mxu0 0.0
    %1356 = vmatpush1.msra.mxu0 0.0
    %1357 = vmatprep.subr.mxu0 0.0
    %1358 = vmatpush1.msra.mxu0 0.0
    %1359 = vmatprep.subr.mxu0 0.0
    %1360 = vmatpush1.msra.mxu0 0.0
    %1361 = vmatprep.subr.mxu0 0.0
    %1362 = vmatpush1.msra.mxu0 0.0
    %1363 = vmatprep.subr.mxu0 0.0
    %1364 = vmatpush1.msra.mxu0 0.0
    %1365 = vmatprep.subr.mxu0 0.0
    %1366 = vmatpush1.msra.mxu0 0.0
    %1367 = vmatprep.subr.mxu0 0.0
    %1368 = vmatpush1.msra.mxu0 0.0
    %1369 = vmatprep.subr.mxu0 0.0
    %1370 = vmatpush1.msra.mxu0 0.0
    %1371 = vmatprep.subr.mxu0 0.0
    %1372 = vmatpush1.msra.mxu0 0.0
    %1373 = vmatprep.subr.mxu0 0.0
    %1374 = vmatpush1.msra.mxu0 0.0
    %1375 = vmatprep.subr.mxu0 0.0
    %1376 = vmatpush1.msra.mxu0 0.0
    %1377 = vmatprep.subr.mxu0 0.0
    %1378 = vmatpush1.msra.mxu0 0.0
    %1379 = vmatprep.subr.mxu0 0.0
    %1380 = vmatpush1.msra.mxu0 0.0
    %1381 = vmatprep.subr.mxu0 0.0
    %1382 = vmatpush1.msra.mxu0 0.0
    %1383 = vmatprep.subr.mxu0 0.0
    %1384 = vmatpush1.msra.mxu0 0.0
    %1385 = vmatprep.mubr.f32.mxu0 0.0
    %v1386 = vand.u32 %v958, 4294901760
    %v1387 = vsub.f32 %v958, %v1386
    %v1388 = vand.u32 %v1387, 4294901760
    %1389 = vmatmul.mubr.f32.gmra.mrb[0].mxu0 %v1388
    %v1390 = vpop.f32.mrb[0].mxu0
    %v1391 = vadd.f32 %v1302, %v1390
    %v1392 = vpop.f32.mrb[0].mxu0
    %1393 = vdwg.mxu0
    %1394 = vmatprep.subr.mxu0 0.0
    %v1395 = vand.u32 %v74, 4294901760
    %v1396 = vsub.f32 %v74, %v1395
    %v1397 = vand.u32 %v1396, 4294901760
    %1398 = vmatpush1.msra.mxu0 %v1397
    %1399 = vmatprep.subr.mxu0 0.0
    %v1400 = vand.u32 %v75, 4294901760
    %v1401 = vsub.f32 %v75, %v1400
    %v1402 = vand.u32 %v1401, 4294901760
    %1403 = vmatpush1.msra.mxu0 %v1402
    %1404 = vmatprep.subr.mxu0 0.0
    %v1405 = vand.u32 %v76, 4294901760
    %v1406 = vsub.f32 %v76, %v1405
    %v1407 = vand.u32 %v1406, 4294901760
    %1408 = vmatpush1.msra.mxu0 %v1407
    %1409 = vmatprep.subr.mxu0 0.0
    %v1410 = vand.u32 %v77, 4294901760
    %v1411 = vsub.f32 %v77, %v1410
    %v1412 = vand.u32 %v1411, 4294901760
    %1413 = vmatpush1.msra.mxu0 %v1412
    %1414 = vmatprep.subr.mxu0 0.0
    %v1415 = vand.u32 %v78, 4294901760
    %v1416 = vsub.f32 %v78, %v1415
    %v1417 = vand.u32 %v1416, 4294901760
    %1418 = vmatpush1.msra.mxu0 %v1417
    %1419 = vmatprep.subr.mxu0 0.0
    %v1420 = vand.u32 %v79, 4294901760
    %v1421 = vsub.f32 %v79, %v1420
    %v1422 = vand.u32 %v1421, 4294901760
    %1423 = vmatpush1.msra.mxu0 %v1422
    %1424 = vmatprep.subr.mxu0 0.0
    %v1425 = vand.u32 %v80, 4294901760
    %v1426 = vsub.f32 %v80, %v1425
    %v1427 = vand.u32 %v1426, 4294901760
    %1428 = vmatpush1.msra.mxu0 %v1427
    %1429 = vmatprep.subr.mxu0 0.0
    %v1430 = vand.u32 %v81, 4294901760
    %v1431 = vsub.f32 %v81, %v1430
    %v1432 = vand.u32 %v1431, 4294901760
    %1433 = vmatpush1.msra.mxu0 %v1432
    %1434 = vmatprep.subr.mxu0 0.0
    %v1435 = vand.u32 %v82, 4294901760
    %v1436 = vsub.f32 %v82, %v1435
    %v1437 = vand.u32 %v1436, 4294901760
    %1438 = vmatpush1.msra.mxu0 %v1437
    %1439 = vmatprep.subr.mxu0 0.0
    %v1440 = vand.u32 %v83, 4294901760
    %v1441 = vsub.f32 %v83, %v1440
    %v1442 = vand.u32 %v1441, 4294901760
    %1443 = vmatpush1.msra.mxu0 %v1442
    %1444 = vmatprep.subr.mxu0 0.0
    %v1445 = vand.u32 %v84, 4294901760
    %v1446 = vsub.f32 %v84, %v1445
    %v1447 = vand.u32 %v1446, 4294901760
    %1448 = vmatpush1.msra.mxu0 %v1447
    %1449 = vmatprep.subr.mxu0 0.0
    %v1450 = vand.u32 %v85, 4294901760
    %v1451 = vsub.f32 %v85, %v1450
    %v1452 = vand.u32 %v1451, 4294901760
    %1453 = vmatpush1.msra.mxu0 %v1452
    %1454 = vmatprep.subr.mxu0 0.0
    %v1455 = vand.u32 %v86, 4294901760
    %v1456 = vsub.f32 %v86, %v1455
    %v1457 = vand.u32 %v1456, 4294901760
    %1458 = vmatpush1.msra.mxu0 %v1457
    %1459 = vmatprep.subr.mxu0 0.0
    %v1460 = vand.u32 %v87, 4294901760
    %v1461 = vsub.f32 %v87, %v1460
    %v1462 = vand.u32 %v1461, 4294901760
    %1463 = vmatpush1.msra.mxu0 %v1462
    %1464 = vmatprep.subr.mxu0 0.0
    %v1465 = vand.u32 %v88, 4294901760
    %v1466 = vsub.f32 %v88, %v1465
    %v1467 = vand.u32 %v1466, 4294901760
    %1468 = vmatpush1.msra.mxu0 %v1467
    %1469 = vmatprep.subr.mxu0 0.0
    %v1470 = vand.u32 %v89, 4294901760
    %v1471 = vsub.f32 %v89, %v1470
    %v1472 = vand.u32 %v1471, 4294901760
    %1473 = vmatpush1.msra.mxu0 %v1472
    %1474 = vmatprep.subr.mxu0 0.0
    %1475 = vmatpush1.msra.mxu0 0.0
    %1476 = vmatprep.subr.mxu0 0.0
    %1477 = vmatpush1.msra.mxu0 0.0
    %1478 = vmatprep.subr.mxu0 0.0
    %1479 = vmatpush1.msra.mxu0 0.0
    %1480 = vmatprep.subr.mxu0 0.0
    %1481 = vmatpush1.msra.mxu0 0.0
    %1482 = vmatprep.subr.mxu0 0.0
    %1483 = vmatpush1.msra.mxu0 0.0
    %1484 = vmatprep.subr.mxu0 0.0
    %1485 = vmatpush1.msra.mxu0 0.0
    %1486 = vmatprep.subr.mxu0 0.0
    %1487 = vmatpush1.msra.mxu0 0.0
    %1488 = vmatprep.subr.mxu0 0.0
    %1489 = vmatpush1.msra.mxu0 0.0
    %1490 = vmatprep.subr.mxu0 0.0
    %1491 = vmatpush1.msra.mxu0 0.0
    %1492 = vmatprep.subr.mxu0 0.0
    %1493 = vmatpush1.msra.mxu0 0.0
    %1494 = vmatprep.subr.mxu0 0.0
    %1495 = vmatpush1.msra.mxu0 0.0
    %1496 = vmatprep.subr.mxu0 0.0
    %1497 = vmatpush1.msra.mxu0 0.0
    %1498 = vmatprep.subr.mxu0 0.0
    %1499 = vmatpush1.msra.mxu0 0.0
    %1500 = vmatprep.subr.mxu0 0.0
    %1501 = vmatpush1.msra.mxu0 0.0
    %1502 = vmatprep.subr.mxu0 0.0
    %1503 = vmatpush1.msra.mxu0 0.0
    %1504 = vmatprep.subr.mxu0 0.0
    %1505 = vmatpush1.msra.mxu0 0.0
    %1506 = vmatprep.mubr.f32.mxu0 0.0
    %v1507 = vand.u32 %v958, 4294901760
    %1508 = vmatmul.mubr.f32.gmra.mrb[0].mxu0 %v1507
    %v1509 = vpop.f32.mrb[0].mxu0
    %v1510 = vadd.f32 %v1391, %v1509
    %v1511 = vpop.f32.mrb[0].mxu0
    %1512 = vdwg.mxu0
    %1513 = vmatprep.subr.mxu0 0.0
    %v1514 = vand.u32 %v74, 4294901760
    %1515 = vmatpush1.msra.mxu0 %v1514
    %1516 = vmatprep.subr.mxu0 0.0
    %v1517 = vand.u32 %v75, 4294901760
    %1518 = vmatpush1.msra.mxu0 %v1517
    %1519 = vmatprep.subr.mxu0 0.0
    %v1520 = vand.u32 %v76, 4294901760
    %1521 = vmatpush1.msra.mxu0 %v1520
    %1522 = vmatprep.subr.mxu0 0.0
    %v1523 = vand.u32 %v77, 4294901760
    %1524 = vmatpush1.msra.mxu0 %v1523
    %1525 = vmatprep.subr.mxu0 0.0
    %v1526 = vand.u32 %v78, 4294901760
    %1527 = vmatpush1.msra.mxu0 %v1526
    %1528 = vmatprep.subr.mxu0 0.0
    %v1529 = vand.u32 %v79, 4294901760
    %1530 = vmatpush1.msra.mxu0 %v1529
    %1531 = vmatprep.subr.mxu0 0.0
    %v1532 = vand.u32 %v80, 4294901760
    %1533 = vmatpush1.msra.mxu0 %v1532
    %1534 = vmatprep.subr.mxu0 0.0
    %v1535 = vand.u32 %v81, 4294901760
    %1536 = vmatpush1.msra.mxu0 %v1535
    %1537 = vmatprep.subr.mxu0 0.0
    %v1538 = vand.u32 %v82, 4294901760
    %1539 = vmatpush1.msra.mxu0 %v1538
    %1540 = vmatprep.subr.mxu0 0.0
    %v1541 = vand.u32 %v83, 4294901760
    %1542 = vmatpush1.msra.mxu0 %v1541
    %1543 = vmatprep.subr.mxu0 0.0
    %v1544 = vand.u32 %v84, 4294901760
    %1545 = vmatpush1.msra.mxu0 %v1544
    %1546 = vmatprep.subr.mxu0 0.0
    %v1547 = vand.u32 %v85, 4294901760
    %1548 = vmatpush1.msra.mxu0 %v1547
    %1549 = vmatprep.subr.mxu0 0.0
    %v1550 = vand.u32 %v86, 4294901760
    %1551 = vmatpush1.msra.mxu0 %v1550
    %1552 = vmatprep.subr.mxu0 0.0
    %v1553 = vand.u32 %v87, 4294901760
    %1554 = vmatpush1.msra.mxu0 %v1553
    %1555 = vmatprep.subr.mxu0 0.0
    %v1556 = vand.u32 %v88, 4294901760
    %1557 = vmatpush1.msra.mxu0 %v1556
    %1558 = vmatprep.subr.mxu0 0.0
    %v1559 = vand.u32 %v89, 4294901760
    %1560 = vmatpush1.msra.mxu0 %v1559
    %1561 = vmatprep.subr.mxu0 0.0
    %1562 = vmatpush1.msra.mxu0 0.0
    %1563 = vmatprep.subr.mxu0 0.0
    %1564 = vmatpush1.msra.mxu0 0.0
    %1565 = vmatprep.subr.mxu0 0.0
    %1566 = vmatpush1.msra.mxu0 0.0
    %1567 = vmatprep.subr.mxu0 0.0
    %1568 = vmatpush1.msra.mxu0 0.0
    %1569 = vmatprep.subr.mxu0 0.0
    %1570 = vmatpush1.msra.mxu0 0.0
    %1571 = vmatprep.subr.mxu0 0.0
    %1572 = vmatpush1.msra.mxu0 0.0
    %1573 = vmatprep.subr.mxu0 0.0
    %1574 = vmatpush1.msra.mxu0 0.0
    %1575 = vmatprep.subr.mxu0 0.0
    %1576 = vmatpush1.msra.mxu0 0.0
    %1577 = vmatprep.subr.mxu0 0.0
    %1578 = vmatpush1.msra.mxu0 0.0
    %1579 = vmatprep.subr.mxu0 0.0
    %1580 = vmatpush1.msra.mxu0 0.0
    %1581 = vmatprep.subr.mxu0 0.0
    %1582 = vmatpush1.msra.mxu0 0.0
    %1583 = vmatprep.subr.mxu0 0.0
    %1584 = vmatpush1.msra.mxu0 0.0
    %1585 = vmatprep.subr.mxu0 0.0
    %1586 = vmatpush1.msra.mxu0 0.0
    %1587 = vmatprep.subr.mxu0 0.0
    %1588 = vmatpush1.msra.mxu0 0.0
    %1589 = vmatprep.subr.mxu0 0.0
    %1590 = vmatpush1.msra.mxu0 0.0
    %1591 = vmatprep.subr.mxu0 0.0
    %1592 = vmatpush1.msra.mxu0 0.0
    %1593 = vmatprep.mubr.f32.mxu0 0.0
    %v1594 = vand.u32 %v958, 4294901760
    %1595 = vmatmul.mubr.f32.gmra.mrb[0].mxu0 %v1594
    %v1596 = vpop.f32.mrb[0].mxu0
    %v1597 = vadd.f32 %v1510, %v1596
    %v1598 = vpop.f32.mrb[0].mxu0
    %1599 = vdwg.mxu0
    %1600 = vst [vmem:[%s5] sm:$0xff] %v1597
    %s1601 = scalar_lea.vmem %s0, 8
    %v1602 = vld [vmem:[%s1601] sm:$0xff]
    %1603 = vmatprep.subr.mxu0 0.0
    %v1604 = vand.u32 %v42, 4294901760
    %1605 = vmatpush1.msra.mxu0 %v1604
    %1606 = vmatprep.subr.mxu0 0.0
    %v1607 = vand.u32 %v43, 4294901760
    %1608 = vmatpush1.msra.mxu0 %v1607
    %1609 = vmatprep.subr.mxu0 0.0
    %v1610 = vand.u32 %v44, 4294901760
    %1611 = vmatpush1.msra.mxu0 %v1610
    %1612 = vmatprep.subr.mxu0 0.0
    %v1613 = vand.u32 %v45, 4294901760
    %1614 = vmatpush1.msra.mxu0 %v1613
    %1615 = vmatprep.subr.mxu0 0.0
    %v1616 = vand.u32 %v46, 4294901760
    %1617 = vmatpush1.msra.mxu0 %v1616
    %1618 = vmatprep.subr.mxu0 0.0
    %v1619 = vand.u32 %v47, 4294901760
    %1620 = vmatpush1.msra.mxu0 %v1619
    %1621 = vmatprep.subr.mxu0 0.0
    %v1622 = vand.u32 %v48, 4294901760
    %1623 = vmatpush1.msra.mxu0 %v1622
    %1624 = vmatprep.subr.mxu0 0.0
    %v1625 = vand.u32 %v49, 4294901760
    %1626 = vmatpush1.msra.mxu0 %v1625
    %1627 = vmatprep.subr.mxu0 0.0
    %v1628 = vand.u32 %v50, 4294901760
    %1629 = vmatpush1.msra.mxu0 %v1628
    %1630 = vmatprep.subr.mxu0 0.0
    %v1631 = vand.u32 %v51, 4294901760
    %1632 = vmatpush1.msra.mxu0 %v1631
    %1633 = vmatprep.subr.mxu0 0.0
    %v1634 = vand.u32 %v52, 4294901760
    %1635 = vmatpush1.msra.mxu0 %v1634
    %1636 = vmatprep.subr.mxu0 0.0
    %v1637 = vand.u32 %v53, 4294901760
    %1638 = vmatpush1.msra.mxu0 %v1637
    %1639 = vmatprep.subr.mxu0 0.0
    %v1640 = vand.u32 %v54, 4294901760
    %1641 = vmatpush1.msra.mxu0 %v1640
    %1642 = vmatprep.subr.mxu0 0.0
    %v1643 = vand.u32 %v55, 4294901760
    %1644 = vmatpush1.msra.mxu0 %v1643
    %1645 = vmatprep.subr.mxu0 0.0
    %v1646 = vand.u32 %v56, 4294901760
    %1647 = vmatpush1.msra.mxu0 %v1646
    %1648 = vmatprep.subr.mxu0 0.0
    %v1649 = vand.u32 %v57, 4294901760
    %1650 = vmatpush1.msra.mxu0 %v1649
    %1651 = vmatprep.subr.mxu0 0.0
    %v1652 = vand.u32 %v58, 4294901760
    %1653 = vmatpush1.msra.mxu0 %v1652
    %1654 = vmatprep.subr.mxu0 0.0
    %v1655 = vand.u32 %v59, 4294901760
    %1656 = vmatpush1.msra.mxu0 %v1655
    %1657 = vmatprep.subr.mxu0 0.0
    %v1658 = vand.u32 %v60, 4294901760
    %1659 = vmatpush1.msra.mxu0 %v1658
    %1660 = vmatprep.subr.mxu0 0.0
    %v1661 = vand.u32 %v61, 4294901760
    %1662 = vmatpush1.msra.mxu0 %v1661
    %1663 = vmatprep.subr.mxu0 0.0
    %v1664 = vand.u32 %v62, 4294901760
    %1665 = vmatpush1.msra.mxu0 %v1664
    %1666 = vmatprep.subr.mxu0 0.0
    %v1667 = vand.u32 %v63, 4294901760
    %1668 = vmatpush1.msra.mxu0 %v1667
    %1669 = vmatprep.subr.mxu0 0.0
    %v1670 = vand.u32 %v64, 4294901760
    %1671 = vmatpush1.msra.mxu0 %v1670
    %1672 = vmatprep.subr.mxu0 0.0
    %v1673 = vand.u32 %v65, 4294901760
    %1674 = vmatpush1.msra.mxu0 %v1673
    %1675 = vmatprep.subr.mxu0 0.0
    %v1676 = vand.u32 %v66, 4294901760
    %1677 = vmatpush1.msra.mxu0 %v1676
    %1678 = vmatprep.subr.mxu0 0.0
    %v1679 = vand.u32 %v67, 4294901760
    %1680 = vmatpush1.msra.mxu0 %v1679
    %1681 = vmatprep.subr.mxu0 0.0
    %v1682 = vand.u32 %v68, 4294901760
    %1683 = vmatpush1.msra.mxu0 %v1682
    %1684 = vmatprep.subr.mxu0 0.0
    %v1685 = vand.u32 %v69, 4294901760
    %1686 = vmatpush1.msra.mxu0 %v1685
    %1687 = vmatprep.subr.mxu0 0.0
    %v1688 = vand.u32 %v70, 4294901760
    %1689 = vmatpush1.msra.mxu0 %v1688
    %1690 = vmatprep.subr.mxu0 0.0
    %v1691 = vand.u32 %v71, 4294901760
    %1692 = vmatpush1.msra.mxu0 %v1691
    %1693 = vmatprep.subr.mxu0 0.0
    %v1694 = vand.u32 %v72, 4294901760
    %1695 = vmatpush1.msra.mxu0 %v1694
    %1696 = vmatprep.subr.mxu0 0.0
    %v1697 = vand.u32 %v73, 4294901760
    %1698 = vmatpush1.msra.mxu0 %v1697
    %v1699 = vand.u32 %v1602, 4294901760
    %v1700 = vsub.f32 %v1602, %v1699
    %v1701 = vand.u32 %v1700, 4294901760
    %v1702 = vsub.f32 %v1700, %v1701
    %v1703 = vand.u32 %v1702, 4294901760
    %1704 = vmatprep.mubr.f32.mxu0 %v1703
    %v1705 = vand.u32 %v958, 4294901760
    %v1706 = vsub.f32 %v958, %v1705
    %v1707 = vand.u32 %v1706, 4294901760
    %v1708 = vsub.f32 %v1706, %v1707
    %v1709 = vand.u32 %v1708, 4294901760
    %1710 = vmatmul.mubr.f32.gmra.mrb[0].mxu0 %v1709
    %v1711 = vpop.f32.mrb[0].mxu0
    %v1712 = vadd.f32 0.0, %v1711
    %v1713 = vpop.f32.mrb[0].mxu0
    %1714 = vdwg.mxu0
    %1715 = vmatprep.subr.mxu0 0.0
    %v1716 = vand.u32 %v42, 4294901760
    %v1717 = vsub.f32 %v42, %v1716
    %v1718 = vand.u32 %v1717, 4294901760
    %v1719 = vsub.f32 %v1717, %v1718
    %v1720 = vand.u32 %v1719, 4294901760
    %1721 = vmatpush1.msra.mxu0 %v1720
    %1722 = vmatprep.subr.mxu0 0.0
    %v1723 = vand.u32 %v43, 4294901760
    %v1724 = vsub.f32 %v43, %v1723
    %v1725 = vand.u32 %v1724, 4294901760
    %v1726 = vsub.f32 %v1724, %v1725
    %v1727 = vand.u32 %v1726, 4294901760
    %1728 = vmatpush1.msra.mxu0 %v1727
    %1729 = vmatprep.subr.mxu0 0.0
    %v1730 = vand.u32 %v44, 4294901760
    %v1731 = vsub.f32 %v44, %v1730
    %v1732 = vand.u32 %v1731, 4294901760
    %v1733 = vsub.f32 %v1731, %v1732
    %v1734 = vand.u32 %v1733, 4294901760
    %1735 = vmatpush1.msra.mxu0 %v1734
    %1736 = vmatprep.subr.mxu0 0.0
    %v1737 = vand.u32 %v45, 4294901760
    %v1738 = vsub.f32 %v45, %v1737
    %v1739 = vand.u32 %v1738, 4294901760
    %v1740 = vsub.f32 %v1738, %v1739
    %v1741 = vand.u32 %v1740, 4294901760
    %1742 = vmatpush1.msra.mxu0 %v1741
    %1743 = vmatprep.subr.mxu0 0.0
    %v1744 = vand.u32 %v46, 4294901760
    %v1745 = vsub.f32 %v46, %v1744
    %v1746 = vand.u32 %v1745, 4294901760
    %v1747 = vsub.f32 %v1745, %v1746
    %v1748 = vand.u32 %v1747, 4294901760
    %1749 = vmatpush1.msra.mxu0 %v1748
    %1750 = vmatprep.subr.mxu0 0.0
    %v1751 = vand.u32 %v47, 4294901760
    %v1752 = vsub.f32 %v47, %v1751
    %v1753 = vand.u32 %v1752, 4294901760
    %v1754 = vsub.f32 %v1752, %v1753
    %v1755 = vand.u32 %v1754, 4294901760
    %1756 = vmatpush1.msra.mxu0 %v1755
    %1757 = vmatprep.subr.mxu0 0.0
    %v1758 = vand.u32 %v48, 4294901760
    %v1759 = vsub.f32 %v48, %v1758
    %v1760 = vand.u32 %v1759, 4294901760
    %v1761 = vsub.f32 %v1759, %v1760
    %v1762 = vand.u32 %v1761, 4294901760
    %1763 = vmatpush1.msra.mxu0 %v1762
    %1764 = vmatprep.subr.mxu0 0.0
    %v1765 = vand.u32 %v49, 4294901760
    %v1766 = vsub.f32 %v49, %v1765
    %v1767 = vand.u32 %v1766, 4294901760
    %v1768 = vsub.f32 %v1766, %v1767
    %v1769 = vand.u32 %v1768, 4294901760
    %1770 = vmatpush1.msra.mxu0 %v1769
    %1771 = vmatprep.subr.mxu0 0.0
    %v1772 = vand.u32 %v50, 4294901760
    %v1773 = vsub.f32 %v50, %v1772
    %v1774 = vand.u32 %v1773, 4294901760
    %v1775 = vsub.f32 %v1773, %v1774
    %v1776 = vand.u32 %v1775, 4294901760
    %1777 = vmatpush1.msra.mxu0 %v1776
    %1778 = vmatprep.subr.mxu0 0.0
    %v1779 = vand.u32 %v51, 4294901760
    %v1780 = vsub.f32 %v51, %v1779
    %v1781 = vand.u32 %v1780, 4294901760
    %v1782 = vsub.f32 %v1780, %v1781
    %v1783 = vand.u32 %v1782, 4294901760
    %1784 = vmatpush1.msra.mxu0 %v1783
    %1785 = vmatprep.subr.mxu0 0.0
    %v1786 = vand.u32 %v52, 4294901760
    %v1787 = vsub.f32 %v52, %v1786
    %v1788 = vand.u32 %v1787, 4294901760
    %v1789 = vsub.f32 %v1787, %v1788
    %v1790 = vand.u32 %v1789, 4294901760
    %1791 = vmatpush1.msra.mxu0 %v1790
    %1792 = vmatprep.subr.mxu0 0.0
    %v1793 = vand.u32 %v53, 4294901760
    %v1794 = vsub.f32 %v53, %v1793
    %v1795 = vand.u32 %v1794, 4294901760
    %v1796 = vsub.f32 %v1794, %v1795
    %v1797 = vand.u32 %v1796, 4294901760
    %1798 = vmatpush1.msra.mxu0 %v1797
    %1799 = vmatprep.subr.mxu0 0.0
    %v1800 = vand.u32 %v54, 4294901760
    %v1801 = vsub.f32 %v54, %v1800
    %v1802 = vand.u32 %v1801, 4294901760
    %v1803 = vsub.f32 %v1801, %v1802
    %v1804 = vand.u32 %v1803, 4294901760
    %1805 = vmatpush1.msra.mxu0 %v1804
    %1806 = vmatprep.subr.mxu0 0.0
    %v1807 = vand.u32 %v55, 4294901760
    %v1808 = vsub.f32 %v55, %v1807
    %v1809 = vand.u32 %v1808, 4294901760
    %v1810 = vsub.f32 %v1808, %v1809
    %v1811 = vand.u32 %v1810, 4294901760
    %1812 = vmatpush1.msra.mxu0 %v1811
    %1813 = vmatprep.subr.mxu0 0.0
    %v1814 = vand.u32 %v56, 4294901760
    %v1815 = vsub.f32 %v56, %v1814
    %v1816 = vand.u32 %v1815, 4294901760
    %v1817 = vsub.f32 %v1815, %v1816
    %v1818 = vand.u32 %v1817, 4294901760
    %1819 = vmatpush1.msra.mxu0 %v1818
    %1820 = vmatprep.subr.mxu0 0.0
    %v1821 = vand.u32 %v57, 4294901760
    %v1822 = vsub.f32 %v57, %v1821
    %v1823 = vand.u32 %v1822, 4294901760
    %v1824 = vsub.f32 %v1822, %v1823
    %v1825 = vand.u32 %v1824, 4294901760
    %1826 = vmatpush1.msra.mxu0 %v1825
    %1827 = vmatprep.subr.mxu0 0.0
    %v1828 = vand.u32 %v58, 4294901760
    %v1829 = vsub.f32 %v58, %v1828
    %v1830 = vand.u32 %v1829, 4294901760
    %v1831 = vsub.f32 %v1829, %v1830
    %v1832 = vand.u32 %v1831, 4294901760
    %1833 = vmatpush1.msra.mxu0 %v1832
    %1834 = vmatprep.subr.mxu0 0.0
    %v1835 = vand.u32 %v59, 4294901760
    %v1836 = vsub.f32 %v59, %v1835
    %v1837 = vand.u32 %v1836, 4294901760
    %v1838 = vsub.f32 %v1836, %v1837
    %v1839 = vand.u32 %v1838, 4294901760
    %1840 = vmatpush1.msra.mxu0 %v1839
    %1841 = vmatprep.subr.mxu0 0.0
    %v1842 = vand.u32 %v60, 4294901760
    %v1843 = vsub.f32 %v60, %v1842
    %v1844 = vand.u32 %v1843, 4294901760
    %v1845 = vsub.f32 %v1843, %v1844
    %v1846 = vand.u32 %v1845, 4294901760
    %1847 = vmatpush1.msra.mxu0 %v1846
    %1848 = vmatprep.subr.mxu0 0.0
    %v1849 = vand.u32 %v61, 4294901760
    %v1850 = vsub.f32 %v61, %v1849
    %v1851 = vand.u32 %v1850, 4294901760
    %v1852 = vsub.f32 %v1850, %v1851
    %v1853 = vand.u32 %v1852, 4294901760
    %1854 = vmatpush1.msra.mxu0 %v1853
    %1855 = vmatprep.subr.mxu0 0.0
    %v1856 = vand.u32 %v62, 4294901760
    %v1857 = vsub.f32 %v62, %v1856
    %v1858 = vand.u32 %v1857, 4294901760
    %v1859 = vsub.f32 %v1857, %v1858
    %v1860 = vand.u32 %v1859, 4294901760
    %1861 = vmatpush1.msra.mxu0 %v1860
    %1862 = vmatprep.subr.mxu0 0.0
    %v1863 = vand.u32 %v63, 4294901760
    %v1864 = vsub.f32 %v63, %v1863
    %v1865 = vand.u32 %v1864, 4294901760
    %v1866 = vsub.f32 %v1864, %v1865
    %v1867 = vand.u32 %v1866, 4294901760
    %1868 = vmatpush1.msra.mxu0 %v1867
    %1869 = vmatprep.subr.mxu0 0.0
    %v1870 = vand.u32 %v64, 4294901760
    %v1871 = vsub.f32 %v64, %v1870
    %v1872 = vand.u32 %v1871, 4294901760
    %v1873 = vsub.f32 %v1871, %v1872
    %v1874 = vand.u32 %v1873, 4294901760
    %1875 = vmatpush1.msra.mxu0 %v1874
    %1876 = vmatprep.subr.mxu0 0.0
    %v1877 = vand.u32 %v65, 4294901760
    %v1878 = vsub.f32 %v65, %v1877
    %v1879 = vand.u32 %v1878, 4294901760
    %v1880 = vsub.f32 %v1878, %v1879
    %v1881 = vand.u32 %v1880, 4294901760
    %1882 = vmatpush1.msra.mxu0 %v1881
    %1883 = vmatprep.subr.mxu0 0.0
    %v1884 = vand.u32 %v66, 4294901760
    %v1885 = vsub.f32 %v66, %v1884
    %v1886 = vand.u32 %v1885, 4294901760
    %v1887 = vsub.f32 %v1885, %v1886
    %v1888 = vand.u32 %v1887, 4294901760
    %1889 = vmatpush1.msra.mxu0 %v1888
    %1890 = vmatprep.subr.mxu0 0.0
    %v1891 = vand.u32 %v67, 4294901760
    %v1892 = vsub.f32 %v67, %v1891
    %v1893 = vand.u32 %v1892, 4294901760
    %v1894 = vsub.f32 %v1892, %v1893
    %v1895 = vand.u32 %v1894, 4294901760
    %1896 = vmatpush1.msra.mxu0 %v1895
    %1897 = vmatprep.subr.mxu0 0.0
    %v1898 = vand.u32 %v68, 4294901760
    %v1899 = vsub.f32 %v68, %v1898
    %v1900 = vand.u32 %v1899, 4294901760
    %v1901 = vsub.f32 %v1899, %v1900
    %v1902 = vand.u32 %v1901, 4294901760
    %1903 = vmatpush1.msra.mxu0 %v1902
    %1904 = vmatprep.subr.mxu0 0.0
    %v1905 = vand.u32 %v69, 4294901760
    %v1906 = vsub.f32 %v69, %v1905
    %v1907 = vand.u32 %v1906, 4294901760
    %v1908 = vsub.f32 %v1906, %v1907
    %v1909 = vand.u32 %v1908, 4294901760
    %1910 = vmatpush1.msra.mxu0 %v1909
    %1911 = vmatprep.subr.mxu0 0.0
    %v1912 = vand.u32 %v70, 4294901760
    %v1913 = vsub.f32 %v70, %v1912
    %v1914 = vand.u32 %v1913, 4294901760
    %v1915 = vsub.f32 %v1913, %v1914
    %v1916 = vand.u32 %v1915, 4294901760
    %1917 = vmatpush1.msra.mxu0 %v1916
    %1918 = vmatprep.subr.mxu0 0.0
    %v1919 = vand.u32 %v71, 4294901760
    %v1920 = vsub.f32 %v71, %v1919
    %v1921 = vand.u32 %v1920, 4294901760
    %v1922 = vsub.f32 %v1920, %v1921
    %v1923 = vand.u32 %v1922, 4294901760
    %1924 = vmatpush1.msra.mxu0 %v1923
    %1925 = vmatprep.subr.mxu0 0.0
    %v1926 = vand.u32 %v72, 4294901760
    %v1927 = vsub.f32 %v72, %v1926
    %v1928 = vand.u32 %v1927, 4294901760
    %v1929 = vsub.f32 %v1927, %v1928
    %v1930 = vand.u32 %v1929, 4294901760
    %1931 = vmatpush1.msra.mxu0 %v1930
    %1932 = vmatprep.subr.mxu0 0.0
    %v1933 = vand.u32 %v73, 4294901760
    %v1934 = vsub.f32 %v73, %v1933
    %v1935 = vand.u32 %v1934, 4294901760
    %v1936 = vsub.f32 %v1934, %v1935
    %v1937 = vand.u32 %v1936, 4294901760
    %1938 = vmatpush1.msra.mxu0 %v1937
    %v1939 = vand.u32 %v1602, 4294901760
    %1940 = vmatprep.mubr.f32.mxu0 %v1939
    %v1941 = vand.u32 %v958, 4294901760
    %1942 = vmatmul.mubr.f32.gmra.mrb[0].mxu0 %v1941
    %v1943 = vpop.f32.mrb[0].mxu0
    %v1944 = vadd.f32 %v1712, %v1943
    %v1945 = vpop.f32.mrb[0].mxu0
    %1946 = vdwg.mxu0
    %1947 = vmatprep.subr.mxu0 0.0
    %v1948 = vand.u32 %v42, 4294901760
    %v1949 = vsub.f32 %v42, %v1948
    %1950 = vmatpush1.msra.mxu0 %v1949
    %1951 = vmatprep.subr.mxu0 0.0
    %v1952 = vand.u32 %v43, 4294901760
    %v1953 = vsub.f32 %v43, %v1952
    %1954 = vmatpush1.msra.mxu0 %v1953
    %1955 = vmatprep.subr.mxu0 0.0
    %v1956 = vand.u32 %v44, 4294901760
    %v1957 = vsub.f32 %v44, %v1956
    %1958 = vmatpush1.msra.mxu0 %v1957
    %1959 = vmatprep.subr.mxu0 0.0
    %v1960 = vand.u32 %v45, 4294901760
    %v1961 = vsub.f32 %v45, %v1960
    %1962 = vmatpush1.msra.mxu0 %v1961
    %1963 = vmatprep.subr.mxu0 0.0
    %v1964 = vand.u32 %v46, 4294901760
    %v1965 = vsub.f32 %v46, %v1964
    %1966 = vmatpush1.msra.mxu0 %v1965
    %1967 = vmatprep.subr.mxu0 0.0
    %v1968 = vand.u32 %v47, 4294901760
    %v1969 = vsub.f32 %v47, %v1968
    %1970 = vmatpush1.msra.mxu0 %v1969
    %1971 = vmatprep.subr.mxu0 0.0
    %v1972 = vand.u32 %v48, 4294901760
    %v1973 = vsub.f32 %v48, %v1972
    %1974 = vmatpush1.msra.mxu0 %v1973
    %1975 = vmatprep.subr.mxu0 0.0
    %v1976 = vand.u32 %v49, 4294901760
    %v1977 = vsub.f32 %v49, %v1976
    %1978 = vmatpush1.msra.mxu0 %v1977
    %1979 = vmatprep.subr.mxu0 0.0
    %v1980 = vand.u32 %v50, 4294901760
    %v1981 = vsub.f32 %v50, %v1980
    %1982 = vmatpush1.msra.mxu0 %v1981
    %1983 = vmatprep.subr.mxu0 0.0
    %v1984 = vand.u32 %v51, 4294901760
    %v1985 = vsub.f32 %v51, %v1984
    %1986 = vmatpush1.msra.mxu0 %v1985
    %1987 = vmatprep.subr.mxu0 0.0
    %v1988 = vand.u32 %v52, 4294901760
    %v1989 = vsub.f32 %v52, %v1988
    %1990 = vmatpush1.msra.mxu0 %v1989
    %1991 = vmatprep.subr.mxu0 0.0
    %v1992 = vand.u32 %v53, 4294901760
    %v1993 = vsub.f32 %v53, %v1992
    %1994 = vmatpush1.msra.mxu0 %v1993
    %1995 = vmatprep.subr.mxu0 0.0
    %v1996 = vand.u32 %v54, 4294901760
    %v1997 = vsub.f32 %v54, %v1996
    %1998 = vmatpush1.msra.mxu0 %v1997
    %1999 = vmatprep.subr.mxu0 0.0
    %v2000 = vand.u32 %v55, 4294901760
    %v2001 = vsub.f32 %v55, %v2000
    %2002 = vmatpush1.msra.mxu0 %v2001
    %2003 = vmatprep.subr.mxu0 0.0
    %v2004 = vand.u32 %v56, 4294901760
    %v2005 = vsub.f32 %v56, %v2004
    %2006 = vmatpush1.msra.mxu0 %v2005
    %2007 = vmatprep.subr.mxu0 0.0
    %v2008 = vand.u32 %v57, 4294901760
    %v2009 = vsub.f32 %v57, %v2008
    %2010 = vmatpush1.msra.mxu0 %v2009
    %2011 = vmatprep.subr.mxu0 0.0
    %v2012 = vand.u32 %v58, 4294901760
    %v2013 = vsub.f32 %v58, %v2012
    %2014 = vmatpush1.msra.mxu0 %v2013
    %2015 = vmatprep.subr.mxu0 0.0
    %v2016 = vand.u32 %v59, 4294901760
    %v2017 = vsub.f32 %v59, %v2016
    %2018 = vmatpush1.msra.mxu0 %v2017
    %2019 = vmatprep.subr.mxu0 0.0
    %v2020 = vand.u32 %v60, 4294901760
    %v2021 = vsub.f32 %v60, %v2020
    %2022 = vmatpush1.msra.mxu0 %v2021
    %2023 = vmatprep.subr.mxu0 0.0
    %v2024 = vand.u32 %v61, 4294901760
    %v2025 = vsub.f32 %v61, %v2024
    %2026 = vmatpush1.msra.mxu0 %v2025
    %2027 = vmatprep.subr.mxu0 0.0
    %v2028 = vand.u32 %v62, 4294901760
    %v2029 = vsub.f32 %v62, %v2028
    %2030 = vmatpush1.msra.mxu0 %v2029
    %2031 = vmatprep.subr.mxu0 0.0
    %v2032 = vand.u32 %v63, 4294901760
    %v2033 = vsub.f32 %v63, %v2032
    %2034 = vmatpush1.msra.mxu0 %v2033
    %2035 = vmatprep.subr.mxu0 0.0
    %v2036 = vand.u32 %v64, 4294901760
    %v2037 = vsub.f32 %v64, %v2036
    %2038 = vmatpush1.msra.mxu0 %v2037
    %2039 = vmatprep.subr.mxu0 0.0
    %v2040 = vand.u32 %v65, 4294901760
    %v2041 = vsub.f32 %v65, %v2040
    %2042 = vmatpush1.msra.mxu0 %v2041
    %2043 = vmatprep.subr.mxu0 0.0
    %v2044 = vand.u32 %v66, 4294901760
    %v2045 = vsub.f32 %v66, %v2044
    %2046 = vmatpush1.msra.mxu0 %v2045
    %2047 = vmatprep.subr.mxu0 0.0
    %v2048 = vand.u32 %v67, 4294901760
    %v2049 = vsub.f32 %v67, %v2048
    %2050 = vmatpush1.msra.mxu0 %v2049
    %2051 = vmatprep.subr.mxu0 0.0
    %v2052 = vand.u32 %v68, 4294901760
    %v2053 = vsub.f32 %v68, %v2052
    %2054 = vmatpush1.msra.mxu0 %v2053
    %2055 = vmatprep.subr.mxu0 0.0
    %v2056 = vand.u32 %v69, 4294901760
    %v2057 = vsub.f32 %v69, %v2056
    %2058 = vmatpush1.msra.mxu0 %v2057
    %2059 = vmatprep.subr.mxu0 0.0
    %v2060 = vand.u32 %v70, 4294901760
    %v2061 = vsub.f32 %v70, %v2060
    %2062 = vmatpush1.msra.mxu0 %v2061
    %2063 = vmatprep.subr.mxu0 0.0
    %v2064 = vand.u32 %v71, 4294901760
    %v2065 = vsub.f32 %v71, %v2064
    %2066 = vmatpush1.msra.mxu0 %v2065
    %2067 = vmatprep.subr.mxu0 0.0
    %v2068 = vand.u32 %v72, 4294901760
    %v2069 = vsub.f32 %v72, %v2068
    %2070 = vmatpush1.msra.mxu0 %v2069
    %2071 = vmatprep.subr.mxu0 0.0
    %v2072 = vand.u32 %v73, 4294901760
    %v2073 = vsub.f32 %v73, %v2072
    %2074 = vmatpush1.msra.mxu0 %v2073
    %v2075 = vand.u32 %v1602, 4294901760
    %v2076 = vsub.f32 %v1602, %v2075
    %2077 = vmatprep.mubr.f32.mxu0 %v2076
    %v2078 = vand.u32 %v958, 4294901760
    %v2079 = vsub.f32 %v958, %v2078
    %2080 = vmatmul.mubr.f32.gmra.mrb[0].mxu0 %v2079
    %v2081 = vpop.f32.mrb[0].mxu0
    %v2082 = vadd.f32 %v1944, %v2081
    %v2083 = vpop.f32.mrb[0].mxu0
    %2084 = vdwg.mxu0
    %2085 = vmatprep.subr.mxu0 0.0
    %v2086 = vand.u32 %v42, 4294901760
    %2087 = vmatpush1.msra.mxu0 %v2086
    %2088 = vmatprep.subr.mxu0 0.0
    %v2089 = vand.u32 %v43, 4294901760
    %2090 = vmatpush1.msra.mxu0 %v2089
    %2091 = vmatprep.subr.mxu0 0.0
    %v2092 = vand.u32 %v44, 4294901760
    %2093 = vmatpush1.msra.mxu0 %v2092
    %2094 = vmatprep.subr.mxu0 0.0
    %v2095 = vand.u32 %v45, 4294901760
    %2096 = vmatpush1.msra.mxu0 %v2095
    %2097 = vmatprep.subr.mxu0 0.0
    %v2098 = vand.u32 %v46, 4294901760
    %2099 = vmatpush1.msra.mxu0 %v2098
    %2100 = vmatprep.subr.mxu0 0.0
    %v2101 = vand.u32 %v47, 4294901760
    %2102 = vmatpush1.msra.mxu0 %v2101
    %2103 = vmatprep.subr.mxu0 0.0
    %v2104 = vand.u32 %v48, 4294901760
    %2105 = vmatpush1.msra.mxu0 %v2104
    %2106 = vmatprep.subr.mxu0 0.0
    %v2107 = vand.u32 %v49, 4294901760
    %2108 = vmatpush1.msra.mxu0 %v2107
    %2109 = vmatprep.subr.mxu0 0.0
    %v2110 = vand.u32 %v50, 4294901760
    %2111 = vmatpush1.msra.mxu0 %v2110
    %2112 = vmatprep.subr.mxu0 0.0
    %v2113 = vand.u32 %v51, 4294901760
    %2114 = vmatpush1.msra.mxu0 %v2113
    %2115 = vmatprep.subr.mxu0 0.0
    %v2116 = vand.u32 %v52, 4294901760
    %2117 = vmatpush1.msra.mxu0 %v2116
    %2118 = vmatprep.subr.mxu0 0.0
    %v2119 = vand.u32 %v53, 4294901760
    %2120 = vmatpush1.msra.mxu0 %v2119
    %2121 = vmatprep.subr.mxu0 0.0
    %v2122 = vand.u32 %v54, 4294901760
    %2123 = vmatpush1.msra.mxu0 %v2122
    %2124 = vmatprep.subr.mxu0 0.0
    %v2125 = vand.u32 %v55, 4294901760
    %2126 = vmatpush1.msra.mxu0 %v2125
    %2127 = vmatprep.subr.mxu0 0.0
    %v2128 = vand.u32 %v56, 4294901760
    %2129 = vmatpush1.msra.mxu0 %v2128
    %2130 = vmatprep.subr.mxu0 0.0
    %v2131 = vand.u32 %v57, 4294901760
    %2132 = vmatpush1.msra.mxu0 %v2131
    %2133 = vmatprep.subr.mxu0 0.0
    %v2134 = vand.u32 %v58, 4294901760
    %2135 = vmatpush1.msra.mxu0 %v2134
    %2136 = vmatprep.subr.mxu0 0.0
    %v2137 = vand.u32 %v59, 4294901760
    %2138 = vmatpush1.msra.mxu0 %v2137
    %2139 = vmatprep.subr.mxu0 0.0
    %v2140 = vand.u32 %v60, 4294901760
    %2141 = vmatpush1.msra.mxu0 %v2140
    %2142 = vmatprep.subr.mxu0 0.0
    %v2143 = vand.u32 %v61, 4294901760
    %2144 = vmatpush1.msra.mxu0 %v2143
    %2145 = vmatprep.subr.mxu0 0.0
    %v2146 = vand.u32 %v62, 4294901760
    %2147 = vmatpush1.msra.mxu0 %v2146
    %2148 = vmatprep.subr.mxu0 0.0
    %v2149 = vand.u32 %v63, 4294901760
    %2150 = vmatpush1.msra.mxu0 %v2149
    %2151 = vmatprep.subr.mxu0 0.0
    %v2152 = vand.u32 %v64, 4294901760
    %2153 = vmatpush1.msra.mxu0 %v2152
    %2154 = vmatprep.subr.mxu0 0.0
    %v2155 = vand.u32 %v65, 4294901760
    %2156 = vmatpush1.msra.mxu0 %v2155
    %2157 = vmatprep.subr.mxu0 0.0
    %v2158 = vand.u32 %v66, 4294901760
    %2159 = vmatpush1.msra.mxu0 %v2158
    %2160 = vmatprep.subr.mxu0 0.0
    %v2161 = vand.u32 %v67, 4294901760
    %2162 = vmatpush1.msra.mxu0 %v2161
    %2163 = vmatprep.subr.mxu0 0.0
    %v2164 = vand.u32 %v68, 4294901760
    %2165 = vmatpush1.msra.mxu0 %v2164
    %2166 = vmatprep.subr.mxu0 0.0
    %v2167 = vand.u32 %v69, 4294901760
    %2168 = vmatpush1.msra.mxu0 %v2167
    %2169 = vmatprep.subr.mxu0 0.0
    %v2170 = vand.u32 %v70, 4294901760
    %2171 = vmatpush1.msra.mxu0 %v2170
    %2172 = vmatprep.subr.mxu0 0.0
    %v2173 = vand.u32 %v71, 4294901760
    %2174 = vmatpush1.msra.mxu0 %v2173
    %2175 = vmatprep.subr.mxu0 0.0
    %v2176 = vand.u32 %v72, 4294901760
    %2177 = vmatpush1.msra.mxu0 %v2176
    %2178 = vmatprep.subr.mxu0 0.0
    %v2179 = vand.u32 %v73, 4294901760
    %2180 = vmatpush1.msra.mxu0 %v2179
    %v2181 = vand.u32 %v1602, 4294901760
    %v2182 = vsub.f32 %v1602, %v2181
    %v2183 = vand.u32 %v2182, 4294901760
    %2184 = vmatprep.mubr.f32.mxu0 %v2183
    %v2185 = vand.u32 %v958, 4294901760
    %v2186 = vsub.f32 %v958, %v2185
    %v2187 = vand.u32 %v2186, 4294901760
    %2188 = vmatmul.mubr.f32.gmra.mrb[0].mxu0 %v2187
    %v2189 = vpop.f32.mrb[0].mxu0
    %v2190 = vadd.f32 %v2082, %v2189
    %v2191 = vpop.f32.mrb[0].mxu0
    %2192 = vdwg.mxu0
    %2193 = vmatprep.subr.mxu0 0.0
    %v2194 = vand.u32 %v42, 4294901760
    %v2195 = vsub.f32 %v42, %v2194
    %v2196 = vand.u32 %v2195, 4294901760
    %2197 = vmatpush1.msra.mxu0 %v2196
    %2198 = vmatprep.subr.mxu0 0.0
    %v2199 = vand.u32 %v43, 4294901760
    %v2200 = vsub.f32 %v43, %v2199
    %v2201 = vand.u32 %v2200, 4294901760
    %2202 = vmatpush1.msra.mxu0 %v2201
    %2203 = vmatprep.subr.mxu0 0.0
    %v2204 = vand.u32 %v44, 4294901760
    %v2205 = vsub.f32 %v44, %v2204
    %v2206 = vand.u32 %v2205, 4294901760
    %2207 = vmatpush1.msra.mxu0 %v2206
    %2208 = vmatprep.subr.mxu0 0.0
    %v2209 = vand.u32 %v45, 4294901760
    %v2210 = vsub.f32 %v45, %v2209
    %v2211 = vand.u32 %v2210, 4294901760
    %2212 = vmatpush1.msra.mxu0 %v2211
    %2213 = vmatprep.subr.mxu0 0.0
    %v2214 = vand.u32 %v46, 4294901760
    %v2215 = vsub.f32 %v46, %v2214
    %v2216 = vand.u32 %v2215, 4294901760
    %2217 = vmatpush1.msra.mxu0 %v2216
    %2218 = vmatprep.subr.mxu0 0.0
    %v2219 = vand.u32 %v47, 4294901760
    %v2220 = vsub.f32 %v47, %v2219
    %v2221 = vand.u32 %v2220, 4294901760
    %2222 = vmatpush1.msra.mxu0 %v2221
    %2223 = vmatprep.subr.mxu0 0.0
    %v2224 = vand.u32 %v48, 4294901760
    %v2225 = vsub.f32 %v48, %v2224
    %v2226 = vand.u32 %v2225, 4294901760
    %2227 = vmatpush1.msra.mxu0 %v2226
    %2228 = vmatprep.subr.mxu0 0.0
    %v2229 = vand.u32 %v49, 4294901760
    %v2230 = vsub.f32 %v49, %v2229
    %v2231 = vand.u32 %v2230, 4294901760
    %2232 = vmatpush1.msra.mxu0 %v2231
    %2233 = vmatprep.subr.mxu0 0.0
    %v2234 = vand.u32 %v50, 4294901760
    %v2235 = vsub.f32 %v50, %v2234
    %v2236 = vand.u32 %v2235, 4294901760
    %2237 = vmatpush1.msra.mxu0 %v2236
    %2238 = vmatprep.subr.mxu0 0.0
    %v2239 = vand.u32 %v51, 4294901760
    %v2240 = vsub.f32 %v51, %v2239
    %v2241 = vand.u32 %v2240, 4294901760
    %2242 = vmatpush1.msra.mxu0 %v2241
    %2243 = vmatprep.subr.mxu0 0.0
    %v2244 = vand.u32 %v52, 4294901760
    %v2245 = vsub.f32 %v52, %v2244
    %v2246 = vand.u32 %v2245, 4294901760
    %2247 = vmatpush1.msra.mxu0 %v2246
    %2248 = vmatprep.subr.mxu0 0.0
    %v2249 = vand.u32 %v53, 4294901760
    %v2250 = vsub.f32 %v53, %v2249
    %v2251 = vand.u32 %v2250, 4294901760
    %2252 = vmatpush1.msra.mxu0 %v2251
    %2253 = vmatprep.subr.mxu0 0.0
    %v2254 = vand.u32 %v54, 4294901760
    %v2255 = vsub.f32 %v54, %v2254
    %v2256 = vand.u32 %v2255, 4294901760
    %2257 = vmatpush1.msra.mxu0 %v2256
    %2258 = vmatprep.subr.mxu0 0.0
    %v2259 = vand.u32 %v55, 4294901760
    %v2260 = vsub.f32 %v55, %v2259
    %v2261 = vand.u32 %v2260, 4294901760
    %2262 = vmatpush1.msra.mxu0 %v2261
    %2263 = vmatprep.subr.mxu0 0.0
    %v2264 = vand.u32 %v56, 4294901760
    %v2265 = vsub.f32 %v56, %v2264
    %v2266 = vand.u32 %v2265, 4294901760
    %2267 = vmatpush1.msra.mxu0 %v2266
    %2268 = vmatprep.subr.mxu0 0.0
    %v2269 = vand.u32 %v57, 4294901760
    %v2270 = vsub.f32 %v57, %v2269
    %v2271 = vand.u32 %v2270, 4294901760
    %2272 = vmatpush1.msra.mxu0 %v2271
    %2273 = vmatprep.subr.mxu0 0.0
    %v2274 = vand.u32 %v58, 4294901760
    %v2275 = vsub.f32 %v58, %v2274
    %v2276 = vand.u32 %v2275, 4294901760
    %2277 = vmatpush1.msra.mxu0 %v2276
    %2278 = vmatprep.subr.mxu0 0.0
    %v2279 = vand.u32 %v59, 4294901760
    %v2280 = vsub.f32 %v59, %v2279
    %v2281 = vand.u32 %v2280, 4294901760
    %2282 = vmatpush1.msra.mxu0 %v2281
    %2283 = vmatprep.subr.mxu0 0.0
    %v2284 = vand.u32 %v60, 4294901760
    %v2285 = vsub.f32 %v60, %v2284
    %v2286 = vand.u32 %v2285, 4294901760
    %2287 = vmatpush1.msra.mxu0 %v2286
    %2288 = vmatprep.subr.mxu0 0.0
    %v2289 = vand.u32 %v61, 4294901760
    %v2290 = vsub.f32 %v61, %v2289
    %v2291 = vand.u32 %v2290, 4294901760
    %2292 = vmatpush1.msra.mxu0 %v2291
    %2293 = vmatprep.subr.mxu0 0.0
    %v2294 = vand.u32 %v62, 4294901760
    %v2295 = vsub.f32 %v62, %v2294
    %v2296 = vand.u32 %v2295, 4294901760
    %2297 = vmatpush1.msra.mxu0 %v2296
    %2298 = vmatprep.subr.mxu0 0.0
    %v2299 = vand.u32 %v63, 4294901760
    %v2300 = vsub.f32 %v63, %v2299
    %v2301 = vand.u32 %v2300, 4294901760
    %2302 = vmatpush1.msra.mxu0 %v2301
    %2303 = vmatprep.subr.mxu0 0.0
    %v2304 = vand.u32 %v64, 4294901760
    %v2305 = vsub.f32 %v64, %v2304
    %v2306 = vand.u32 %v2305, 4294901760
    %2307 = vmatpush1.msra.mxu0 %v2306
    %2308 = vmatprep.subr.mxu0 0.0
    %v2309 = vand.u32 %v65, 4294901760
    %v2310 = vsub.f32 %v65, %v2309
    %v2311 = vand.u32 %v2310, 4294901760
    %2312 = vmatpush1.msra.mxu0 %v2311
    %2313 = vmatprep.subr.mxu0 0.0
    %v2314 = vand.u32 %v66, 4294901760
    %v2315 = vsub.f32 %v66, %v2314
    %v2316 = vand.u32 %v2315, 4294901760
    %2317 = vmatpush1.msra.mxu0 %v2316
    %2318 = vmatprep.subr.mxu0 0.0
    %v2319 = vand.u32 %v67, 4294901760
    %v2320 = vsub.f32 %v67, %v2319
    %v2321 = vand.u32 %v2320, 4294901760
    %2322 = vmatpush1.msra.mxu0 %v2321
    %2323 = vmatprep.subr.mxu0 0.0
    %v2324 = vand.u32 %v68, 4294901760
    %v2325 = vsub.f32 %v68, %v2324
    %v2326 = vand.u32 %v2325, 4294901760
    %2327 = vmatpush1.msra.mxu0 %v2326
    %2328 = vmatprep.subr.mxu0 0.0
    %v2329 = vand.u32 %v69, 4294901760
    %v2330 = vsub.f32 %v69, %v2329
    %v2331 = vand.u32 %v2330, 4294901760
    %2332 = vmatpush1.msra.mxu0 %v2331
    %2333 = vmatprep.subr.mxu0 0.0
    %v2334 = vand.u32 %v70, 4294901760
    %v2335 = vsub.f32 %v70, %v2334
    %v2336 = vand.u32 %v2335, 4294901760
    %2337 = vmatpush1.msra.mxu0 %v2336
    %2338 = vmatprep.subr.mxu0 0.0
    %v2339 = vand.u32 %v71, 4294901760
    %v2340 = vsub.f32 %v71, %v2339
    %v2341 = vand.u32 %v2340, 4294901760
    %2342 = vmatpush1.msra.mxu0 %v2341
    %2343 = vmatprep.subr.mxu0 0.0
    %v2344 = vand.u32 %v72, 4294901760
    %v2345 = vsub.f32 %v72, %v2344
    %v2346 = vand.u32 %v2345, 4294901760
    %2347 = vmatpush1.msra.mxu0 %v2346
    %2348 = vmatprep.subr.mxu0 0.0
    %v2349 = vand.u32 %v73, 4294901760
    %v2350 = vsub.f32 %v73, %v2349
    %v2351 = vand.u32 %v2350, 4294901760
    %2352 = vmatpush1.msra.mxu0 %v2351
    %v2353 = vand.u32 %v1602, 4294901760
    %2354 = vmatprep.mubr.f32.mxu0 %v2353
    %v2355 = vand.u32 %v958, 4294901760
    %2356 = vmatmul.mubr.f32.gmra.mrb[0].mxu0 %v2355
    %v2357 = vpop.f32.mrb[0].mxu0
    %v2358 = vadd.f32 %v2190, %v2357
    %v2359 = vpop.f32.mrb[0].mxu0
    %2360 = vdwg.mxu0
    %2361 = vmatprep.subr.mxu0 0.0
    %v2362 = vand.u32 %v42, 4294901760
    %2363 = vmatpush1.msra.mxu0 %v2362
    %2364 = vmatprep.subr.mxu0 0.0
    %v2365 = vand.u32 %v43, 4294901760
    %2366 = vmatpush1.msra.mxu0 %v2365
    %2367 = vmatprep.subr.mxu0 0.0
    %v2368 = vand.u32 %v44, 4294901760
    %2369 = vmatpush1.msra.mxu0 %v2368
    %2370 = vmatprep.subr.mxu0 0.0
    %v2371 = vand.u32 %v45, 4294901760
    %2372 = vmatpush1.msra.mxu0 %v2371
    %2373 = vmatprep.subr.mxu0 0.0
    %v2374 = vand.u32 %v46, 4294901760
    %2375 = vmatpush1.msra.mxu0 %v2374
    %2376 = vmatprep.subr.mxu0 0.0
    %v2377 = vand.u32 %v47, 4294901760
    %2378 = vmatpush1.msra.mxu0 %v2377
    %2379 = vmatprep.subr.mxu0 0.0
    %v2380 = vand.u32 %v48, 4294901760
    %2381 = vmatpush1.msra.mxu0 %v2380
    %2382 = vmatprep.subr.mxu0 0.0
    %v2383 = vand.u32 %v49, 4294901760
    %2384 = vmatpush1.msra.mxu0 %v2383
    %2385 = vmatprep.subr.mxu0 0.0
    %v2386 = vand.u32 %v50, 4294901760
    %2387 = vmatpush1.msra.mxu0 %v2386
    %2388 = vmatprep.subr.mxu0 0.0
    %v2389 = vand.u32 %v51, 4294901760
    %2390 = vmatpush1.msra.mxu0 %v2389
    %2391 = vmatprep.subr.mxu0 0.0
    %v2392 = vand.u32 %v52, 4294901760
    %2393 = vmatpush1.msra.mxu0 %v2392
    %2394 = vmatprep.subr.mxu0 0.0
    %v2395 = vand.u32 %v53, 4294901760
    %2396 = vmatpush1.msra.mxu0 %v2395
    %2397 = vmatprep.subr.mxu0 0.0
    %v2398 = vand.u32 %v54, 4294901760
    %2399 = vmatpush1.msra.mxu0 %v2398
    %2400 = vmatprep.subr.mxu0 0.0
    %v2401 = vand.u32 %v55, 4294901760
    %2402 = vmatpush1.msra.mxu0 %v2401
    %2403 = vmatprep.subr.mxu0 0.0
    %v2404 = vand.u32 %v56, 4294901760
    %2405 = vmatpush1.msra.mxu0 %v2404
    %2406 = vmatprep.subr.mxu0 0.0
    %v2407 = vand.u32 %v57, 4294901760
    %2408 = vmatpush1.msra.mxu0 %v2407
    %2409 = vmatprep.subr.mxu0 0.0
    %v2410 = vand.u32 %v58, 4294901760
    %2411 = vmatpush1.msra.mxu0 %v2410
    %2412 = vmatprep.subr.mxu0 0.0
    %v2413 = vand.u32 %v59, 4294901760
    %2414 = vmatpush1.msra.mxu0 %v2413
    %2415 = vmatprep.subr.mxu0 0.0
    %v2416 = vand.u32 %v60, 4294901760
    %2417 = vmatpush1.msra.mxu0 %v2416
    %2418 = vmatprep.subr.mxu0 0.0
    %v2419 = vand.u32 %v61, 4294901760
    %2420 = vmatpush1.msra.mxu0 %v2419
    %2421 = vmatprep.subr.mxu0 0.0
    %v2422 = vand.u32 %v62, 4294901760
    %2423 = vmatpush1.msra.mxu0 %v2422
    %2424 = vmatprep.subr.mxu0 0.0
    %v2425 = vand.u32 %v63, 4294901760
    %2426 = vmatpush1.msra.mxu0 %v2425
    %2427 = vmatprep.subr.mxu0 0.0
    %v2428 = vand.u32 %v64, 4294901760
    %2429 = vmatpush1.msra.mxu0 %v2428
    %2430 = vmatprep.subr.mxu0 0.0
    %v2431 = vand.u32 %v65, 4294901760
    %2432 = vmatpush1.msra.mxu0 %v2431
    %2433 = vmatprep.subr.mxu0 0.0
    %v2434 = vand.u32 %v66, 4294901760
    %2435 = vmatpush1.msra.mxu0 %v2434
    %2436 = vmatprep.subr.mxu0 0.0
    %v2437 = vand.u32 %v67, 4294901760
    %2438 = vmatpush1.msra.mxu0 %v2437
    %2439 = vmatprep.subr.mxu0 0.0
    %v2440 = vand.u32 %v68, 4294901760
    %2441 = vmatpush1.msra.mxu0 %v2440
    %2442 = vmatprep.subr.mxu0 0.0
    %v2443 = vand.u32 %v69, 4294901760
    %2444 = vmatpush1.msra.mxu0 %v2443
    %2445 = vmatprep.subr.mxu0 0.0
    %v2446 = vand.u32 %v70, 4294901760
    %2447 = vmatpush1.msra.mxu0 %v2446
    %2448 = vmatprep.subr.mxu0 0.0
    %v2449 = vand.u32 %v71, 4294901760
    %2450 = vmatpush1.msra.mxu0 %v2449
    %2451 = vmatprep.subr.mxu0 0.0
    %v2452 = vand.u32 %v72, 4294901760
    %2453 = vmatpush1.msra.mxu0 %v2452
    %2454 = vmatprep.subr.mxu0 0.0
    %v2455 = vand.u32 %v73, 4294901760
    %2456 = vmatpush1.msra.mxu0 %v2455
    %v2457 = vand.u32 %v1602, 4294901760
    %2458 = vmatprep.mubr.f32.mxu0 %v2457
    %v2459 = vand.u32 %v958, 4294901760
    %2460 = vmatmul.mubr.f32.gmra.mrb[0].mxu0 %v2459
    %v2461 = vpop.f32.mrb[0].mxu0
    %v2462 = vadd.f32 %v2358, %v2461
    %v2463 = vpop.f32.mrb[0].mxu0
    %2464 = vdwg.mxu0
    %v2465 = vtanh.pop %v2462
    %v2466 = vmul.f32 %v958, 0.9
    %v2467 = vmul.f32 %v2465, 0.1
    %v2468 = vadd.f32 %v2466, %v2467
    %2469 = vmatprep.subr.mxu0 0.0
    %v2470 = vand.u32 %v74, 4294901760
    %2471 = vmatpush1.msra.mxu0 %v2470
    %2472 = vmatprep.subr.mxu0 0.0
    %v2473 = vand.u32 %v75, 4294901760
    %2474 = vmatpush1.msra.mxu0 %v2473
    %2475 = vmatprep.subr.mxu0 0.0
    %v2476 = vand.u32 %v76, 4294901760
    %2477 = vmatpush1.msra.mxu0 %v2476
    %2478 = vmatprep.subr.mxu0 0.0
    %v2479 = vand.u32 %v77, 4294901760
    %2480 = vmatpush1.msra.mxu0 %v2479
    %2481 = vmatprep.subr.mxu0 0.0
    %v2482 = vand.u32 %v78, 4294901760
    %2483 = vmatpush1.msra.mxu0 %v2482
    %2484 = vmatprep.subr.mxu0 0.0
    %v2485 = vand.u32 %v79, 4294901760
    %2486 = vmatpush1.msra.mxu0 %v2485
    %2487 = vmatprep.subr.mxu0 0.0
    %v2488 = vand.u32 %v80, 4294901760
    %2489 = vmatpush1.msra.mxu0 %v2488
    %2490 = vmatprep.subr.mxu0 0.0
    %v2491 = vand.u32 %v81, 4294901760
    %2492 = vmatpush1.msra.mxu0 %v2491
    %2493 = vmatprep.subr.mxu0 0.0
    %v2494 = vand.u32 %v82, 4294901760
    %2495 = vmatpush1.msra.mxu0 %v2494
    %2496 = vmatprep.subr.mxu0 0.0
    %v2497 = vand.u32 %v83, 4294901760
    %2498 = vmatpush1.msra.mxu0 %v2497
    %2499 = vmatprep.subr.mxu0 0.0
    %v2500 = vand.u32 %v84, 4294901760
    %2501 = vmatpush1.msra.mxu0 %v2500
    %2502 = vmatprep.subr.mxu0 0.0
    %v2503 = vand.u32 %v85, 4294901760
    %2504 = vmatpush1.msra.mxu0 %v2503
    %2505 = vmatprep.subr.mxu0 0.0
    %v2506 = vand.u32 %v86, 4294901760
    %2507 = vmatpush1.msra.mxu0 %v2506
    %2508 = vmatprep.subr.mxu0 0.0
    %v2509 = vand.u32 %v87, 4294901760
    %2510 = vmatpush1.msra.mxu0 %v2509
    %2511 = vmatprep.subr.mxu0 0.0
    %v2512 = vand.u32 %v88, 4294901760
    %2513 = vmatpush1.msra.mxu0 %v2512
    %2514 = vmatprep.subr.mxu0 0.0
    %v2515 = vand.u32 %v89, 4294901760
    %2516 = vmatpush1.msra.mxu0 %v2515
    %2517 = vmatprep.subr.mxu0 0.0
    %2518 = vmatpush1.msra.mxu0 0.0
    %2519 = vmatprep.subr.mxu0 0.0
    %2520 = vmatpush1.msra.mxu0 0.0
    %2521 = vmatprep.subr.mxu0 0.0
    %2522 = vmatpush1.msra.mxu0 0.0
    %2523 = vmatprep.subr.mxu0 0.0
    %2524 = vmatpush1.msra.mxu0 0.0
    %2525 = vmatprep.subr.mxu0 0.0
    %2526 = vmatpush1.msra.mxu0 0.0
    %2527 = vmatprep.subr.mxu0 0.0
    %2528 = vmatpush1.msra.mxu0 0.0
    %2529 = vmatprep.subr.mxu0 0.0
    %2530 = vmatpush1.msra.mxu0 0.0
    %2531 = vmatprep.subr.mxu0 0.0
    %2532 = vmatpush1.msra.mxu0 0.0
    %2533 = vmatprep.subr.mxu0 0.0
    %2534 = vmatpush1.msra.mxu0 0.0
    %2535 = vmatprep.subr.mxu0 0.0
    %2536 = vmatpush1.msra.mxu0 0.0
    %2537 = vmatprep.subr.mxu0 0.0
    %2538 = vmatpush1.msra.mxu0 0.0
    %2539 = vmatprep.subr.mxu0 0.0
    %2540 = vmatpush1.msra.mxu0 0.0
    %2541 = vmatprep.subr.mxu0 0.0
    %2542 = vmatpush1.msra.mxu0 0.0
    %2543 = vmatprep.subr.mxu0 0.0
    %2544 = vmatpush1.msra.mxu0 0.0
    %2545 = vmatprep.subr.mxu0 0.0
    %2546 = vmatpush1.msra.mxu0 0.0
    %2547 = vmatprep.subr.mxu0 0.0
    %2548 = vmatpush1.msra.mxu0 0.0
    %2549 = vmatprep.mubr.f32.mxu0 0.0
    %v2550 = vand.u32 %v2468, 4294901760
    %v2551 = vsub.f32 %v2468, %v2550
    %v2552 = vand.u32 %v2551, 4294901760
    %v2553 = vsub.f32 %v2551, %v2552
    %v2554 = vand.u32 %v2553, 4294901760
    %2555 = vmatmul.mubr.f32.gmra.mrb[0].mxu0 %v2554
    %v2556 = vpop.f32.mrb[0].mxu0
    %v2557 = vadd.f32 %v90, %v2556
    %v2558 = vpop.f32.mrb[0].mxu0
    %2559 = vdwg.mxu0
    %2560 = vmatprep.subr.mxu0 0.0
    %v2561 = vand.u32 %v74, 4294901760
    %v2562 = vsub.f32 %v74, %v2561
    %v2563 = vand.u32 %v2562, 4294901760
    %v2564 = vsub.f32 %v2562, %v2563
    %v2565 = vand.u32 %v2564, 4294901760
    %2566 = vmatpush1.msra.mxu0 %v2565
    %2567 = vmatprep.subr.mxu0 0.0
    %v2568 = vand.u32 %v75, 4294901760
    %v2569 = vsub.f32 %v75, %v2568
    %v2570 = vand.u32 %v2569, 4294901760
    %v2571 = vsub.f32 %v2569, %v2570
    %v2572 = vand.u32 %v2571, 4294901760
    %2573 = vmatpush1.msra.mxu0 %v2572
    %2574 = vmatprep.subr.mxu0 0.0
    %v2575 = vand.u32 %v76, 4294901760
    %v2576 = vsub.f32 %v76, %v2575
    %v2577 = vand.u32 %v2576, 4294901760
    %v2578 = vsub.f32 %v2576, %v2577
    %v2579 = vand.u32 %v2578, 4294901760
    %2580 = vmatpush1.msra.mxu0 %v2579
    %2581 = vmatprep.subr.mxu0 0.0
    %v2582 = vand.u32 %v77, 4294901760
    %v2583 = vsub.f32 %v77, %v2582
    %v2584 = vand.u32 %v2583, 4294901760
    %v2585 = vsub.f32 %v2583, %v2584
    %v2586 = vand.u32 %v2585, 4294901760
    %2587 = vmatpush1.msra.mxu0 %v2586
    %2588 = vmatprep.subr.mxu0 0.0
    %v2589 = vand.u32 %v78, 4294901760
    %v2590 = vsub.f32 %v78, %v2589
    %v2591 = vand.u32 %v2590, 4294901760
    %v2592 = vsub.f32 %v2590, %v2591
    %v2593 = vand.u32 %v2592, 4294901760
    %2594 = vmatpush1.msra.mxu0 %v2593
    %2595 = vmatprep.subr.mxu0 0.0
    %v2596 = vand.u32 %v79, 4294901760
    %v2597 = vsub.f32 %v79, %v2596
    %v2598 = vand.u32 %v2597, 4294901760
    %v2599 = vsub.f32 %v2597, %v2598
    %v2600 = vand.u32 %v2599, 4294901760
    %2601 = vmatpush1.msra.mxu0 %v2600
    %2602 = vmatprep.subr.mxu0 0.0
    %v2603 = vand.u32 %v80, 4294901760
    %v2604 = vsub.f32 %v80, %v2603
    %v2605 = vand.u32 %v2604, 4294901760
    %v2606 = vsub.f32 %v2604, %v2605
    %v2607 = vand.u32 %v2606, 4294901760
    %2608 = vmatpush1.msra.mxu0 %v2607
    %2609 = vmatprep.subr.mxu0 0.0
    %v2610 = vand.u32 %v81, 4294901760
    %v2611 = vsub.f32 %v81, %v2610
    %v2612 = vand.u32 %v2611, 4294901760
    %v2613 = vsub.f32 %v2611, %v2612
    %v2614 = vand.u32 %v2613, 4294901760
    %2615 = vmatpush1.msra.mxu0 %v2614
    %2616 = vmatprep.subr.mxu0 0.0
    %v2617 = vand.u32 %v82, 4294901760
    %v2618 = vsub.f32 %v82, %v2617
    %v2619 = vand.u32 %v2618, 4294901760
    %v2620 = vsub.f32 %v2618, %v2619
    %v2621 = vand.u32 %v2620, 4294901760
    %2622 = vmatpush1.msra.mxu0 %v2621
    %2623 = vmatprep.subr.mxu0 0.0
    %v2624 = vand.u32 %v83, 4294901760
    %v2625 = vsub.f32 %v83, %v2624
    %v2626 = vand.u32 %v2625, 4294901760
    %v2627 = vsub.f32 %v2625, %v2626
    %v2628 = vand.u32 %v2627, 4294901760
    %2629 = vmatpush1.msra.mxu0 %v2628
    %2630 = vmatprep.subr.mxu0 0.0
    %v2631 = vand.u32 %v84, 4294901760
    %v2632 = vsub.f32 %v84, %v2631
    %v2633 = vand.u32 %v2632, 4294901760
    %v2634 = vsub.f32 %v2632, %v2633
    %v2635 = vand.u32 %v2634, 4294901760
    %2636 = vmatpush1.msra.mxu0 %v2635
    %2637 = vmatprep.subr.mxu0 0.0
    %v2638 = vand.u32 %v85, 4294901760
    %v2639 = vsub.f32 %v85, %v2638
    %v2640 = vand.u32 %v2639, 4294901760
    %v2641 = vsub.f32 %v2639, %v2640
    %v2642 = vand.u32 %v2641, 4294901760
    %2643 = vmatpush1.msra.mxu0 %v2642
    %2644 = vmatprep.subr.mxu0 0.0
    %v2645 = vand.u32 %v86, 4294901760
    %v2646 = vsub.f32 %v86, %v2645
    %v2647 = vand.u32 %v2646, 4294901760
    %v2648 = vsub.f32 %v2646, %v2647
    %v2649 = vand.u32 %v2648, 4294901760
    %2650 = vmatpush1.msra.mxu0 %v2649
    %2651 = vmatprep.subr.mxu0 0.0
    %v2652 = vand.u32 %v87, 4294901760
    %v2653 = vsub.f32 %v87, %v2652
    %v2654 = vand.u32 %v2653, 4294901760
    %v2655 = vsub.f32 %v2653, %v2654
    %v2656 = vand.u32 %v2655, 4294901760
    %2657 = vmatpush1.msra.mxu0 %v2656
    %2658 = vmatprep.subr.mxu0 0.0
    %v2659 = vand.u32 %v88, 4294901760
    %v2660 = vsub.f32 %v88, %v2659
    %v2661 = vand.u32 %v2660, 4294901760
    %v2662 = vsub.f32 %v2660, %v2661
    %v2663 = vand.u32 %v2662, 4294901760
    %2664 = vmatpush1.msra.mxu0 %v2663
    %2665 = vmatprep.subr.mxu0 0.0
    %v2666 = vand.u32 %v89, 4294901760
    %v2667 = vsub.f32 %v89, %v2666
    %v2668 = vand.u32 %v2667, 4294901760
    %v2669 = vsub.f32 %v2667, %v2668
    %v2670 = vand.u32 %v2669, 4294901760
    %2671 = vmatpush1.msra.mxu0 %v2670
    %2672 = vmatprep.subr.mxu0 0.0
    %2673 = vmatpush1.msra.mxu0 0.0
    %2674 = vmatprep.subr.mxu0 0.0
    %2675 = vmatpush1.msra.mxu0 0.0
    %2676 = vmatprep.subr.mxu0 0.0
    %2677 = vmatpush1.msra.mxu0 0.0
    %2678 = vmatprep.subr.mxu0 0.0
    %2679 = vmatpush1.msra.mxu0 0.0
    %2680 = vmatprep.subr.mxu0 0.0
    %2681 = vmatpush1.msra.mxu0 0.0
    %2682 = vmatprep.subr.mxu0 0.0
    %2683 = vmatpush1.msra.mxu0 0.0
    %2684 = vmatprep.subr.mxu0 0.0
    %2685 = vmatpush1.msra.mxu0 0.0
    %2686 = vmatprep.subr.mxu0 0.0
    %2687 = vmatpush1.msra.mxu0 0.0
    %2688 = vmatprep.subr.mxu0 0.0
    %2689 = vmatpush1.msra.mxu0 0.0
    %2690 = vmatprep.subr.mxu0 0.0
    %2691 = vmatpush1.msra.mxu0 0.0
    %2692 = vmatprep.subr.mxu0 0.0
    %2693 = vmatpush1.msra.mxu0 0.0
    %2694 = vmatprep.subr.mxu0 0.0
    %2695 = vmatpush1.msra.mxu0 0.0
    %2696 = vmatprep.subr.mxu0 0.0
    %2697 = vmatpush1.msra.mxu0 0.0
    %2698 = vmatprep.subr.mxu0 0.0
    %2699 = vmatpush1.msra.mxu0 0.0
    %2700 = vmatprep.subr.mxu0 0.0
    %2701 = vmatpush1.msra.mxu0 0.0
    %2702 = vmatprep.subr.mxu0 0.0
    %2703 = vmatpush1.msra.mxu0 0.0
    %2704 = vmatprep.mubr.f32.mxu0 0.0
    %v2705 = vand.u32 %v2468, 4294901760
    %2706 = vmatmul.mubr.f32.gmra.mrb[0].mxu0 %v2705
    %v2707 = vpop.f32.mrb[0].mxu0
    %v2708 = vadd.f32 %v2557, %v2707
    %v2709 = vpop.f32.mrb[0].mxu0
    %2710 = vdwg.mxu0
    %2711 = vmatprep.subr.mxu0 0.0
    %v2712 = vand.u32 %v74, 4294901760
    %v2713 = vsub.f32 %v74, %v2712
    %2714 = vmatpush1.msra.mxu0 %v2713
    %2715 = vmatprep.subr.mxu0 0.0
    %v2716 = vand.u32 %v75, 4294901760
    %v2717 = vsub.f32 %v75, %v2716
    %2718 = vmatpush1.msra.mxu0 %v2717
    %2719 = vmatprep.subr.mxu0 0.0
    %v2720 = vand.u32 %v76, 4294901760
    %v2721 = vsub.f32 %v76, %v2720
    %2722 = vmatpush1.msra.mxu0 %v2721
    %2723 = vmatprep.subr.mxu0 0.0
    %v2724 = vand.u32 %v77, 4294901760
    %v2725 = vsub.f32 %v77, %v2724
    %2726 = vmatpush1.msra.mxu0 %v2725
    %2727 = vmatprep.subr.mxu0 0.0
    %v2728 = vand.u32 %v78, 4294901760
    %v2729 = vsub.f32 %v78, %v2728
    %2730 = vmatpush1.msra.mxu0 %v2729
    %2731 = vmatprep.subr.mxu0 0.0
    %v2732 = vand.u32 %v79, 4294901760
    %v2733 = vsub.f32 %v79, %v2732
    %2734 = vmatpush1.msra.mxu0 %v2733
    %2735 = vmatprep.subr.mxu0 0.0
    %v2736 = vand.u32 %v80, 4294901760
    %v2737 = vsub.f32 %v80, %v2736
    %2738 = vmatpush1.msra.mxu0 %v2737
    %2739 = vmatprep.subr.mxu0 0.0
    %v2740 = vand.u32 %v81, 4294901760
    %v2741 = vsub.f32 %v81, %v2740
    %2742 = vmatpush1.msra.mxu0 %v2741
    %2743 = vmatprep.subr.mxu0 0.0
    %v2744 = vand.u32 %v82, 4294901760
    %v2745 = vsub.f32 %v82, %v2744
    %2746 = vmatpush1.msra.mxu0 %v2745
    %2747 = vmatprep.subr.mxu0 0.0
    %v2748 = vand.u32 %v83, 4294901760
    %v2749 = vsub.f32 %v83, %v2748
    %2750 = vmatpush1.msra.mxu0 %v2749
    %2751 = vmatprep.subr.mxu0 0.0
    %v2752 = vand.u32 %v84, 4294901760
    %v2753 = vsub.f32 %v84, %v2752
    %2754 = vmatpush1.msra.mxu0 %v2753
    %2755 = vmatprep.subr.mxu0 0.0
    %v2756 = vand.u32 %v85, 4294901760
    %v2757 = vsub.f32 %v85, %v2756
    %2758 = vmatpush1.msra.mxu0 %v2757
    %2759 = vmatprep.subr.mxu0 0.0
    %v2760 = vand.u32 %v86, 4294901760
    %v2761 = vsub.f32 %v86, %v2760
    %2762 = vmatpush1.msra.mxu0 %v2761
    %2763 = vmatprep.subr.mxu0 0.0
    %v2764 = vand.u32 %v87, 4294901760
    %v2765 = vsub.f32 %v87, %v2764
    %2766 = vmatpush1.msra.mxu0 %v2765
    %2767 = vmatprep.subr.mxu0 0.0
    %v2768 = vand.u32 %v88, 4294901760
    %v2769 = vsub.f32 %v88, %v2768
    %2770 = vmatpush1.msra.mxu0 %v2769
    %2771 = vmatprep.subr.mxu0 0.0
    %v2772 = vand.u32 %v89, 4294901760
    %v2773 = vsub.f32 %v89, %v2772
    %2774 = vmatpush1.msra.mxu0 %v2773
    %2775 = vmatprep.subr.mxu0 0.0
    %2776 = vmatpush1.msra.mxu0 0.0
    %2777 = vmatprep.subr.mxu0 0.0
    %2778 = vmatpush1.msra.mxu0 0.0
    %2779 = vmatprep.subr.mxu0 0.0
    %2780 = vmatpush1.msra.mxu0 0.0
    %2781 = vmatprep.subr.mxu0 0.0
    %2782 = vmatpush1.msra.mxu0 0.0
    %2783 = vmatprep.subr.mxu0 0.0
    %2784 = vmatpush1.msra.mxu0 0.0
    %2785 = vmatprep.subr.mxu0 0.0
    %2786 = vmatpush1.msra.mxu0 0.0
    %2787 = vmatprep.subr.mxu0 0.0
    %2788 = vmatpush1.msra.mxu0 0.0
    %2789 = vmatprep.subr.mxu0 0.0
    %2790 = vmatpush1.msra.mxu0 0.0
    %2791 = vmatprep.subr.mxu0 0.0
    %2792 = vmatpush1.msra.mxu0 0.0
    %2793 = vmatprep.subr.mxu0 0.0
    %2794 = vmatpush1.msra.mxu0 0.0
    %2795 = vmatprep.subr.mxu0 0.0
    %2796 = vmatpush1.msra.mxu0 0.0
    %2797 = vmatprep.subr.mxu0 0.0
    %2798 = vmatpush1.msra.mxu0 0.0
    %2799 = vmatprep.subr.mxu0 0.0
    %2800 = vmatpush1.msra.mxu0 0.0
    %2801 = vmatprep.subr.mxu0 0.0
    %2802 = vmatpush1.msra.mxu0 0.0
    %2803 = vmatprep.subr.mxu0 0.0
    %2804 = vmatpush1.msra.mxu0 0.0
    %2805 = vmatprep.subr.mxu0 0.0
    %2806 = vmatpush1.msra.mxu0 0.0
    %2807 = vmatprep.mubr.f32.mxu0 0.0
    %v2808 = vand.u32 %v2468, 4294901760
    %v2809 = vsub.f32 %v2468, %v2808
    %2810 = vmatmul.mubr.f32.gmra.mrb[0].mxu0 %v2809
    %v2811 = vpop.f32.mrb[0].mxu0
    %v2812 = vadd.f32 %v2708, %v2811
    %v2813 = vpop.f32.mrb[0].mxu0
    %2814 = vdwg.mxu0
    %2815 = vmatprep.subr.mxu0 0.0
    %v2816 = vand.u32 %v74, 4294901760
    %2817 = vmatpush1.msra.mxu0 %v2816
    %2818 = vmatprep.subr.mxu0 0.0
    %v2819 = vand.u32 %v75, 4294901760
    %2820 = vmatpush1.msra.mxu0 %v2819
    %2821 = vmatprep.subr.mxu0 0.0
    %v2822 = vand.u32 %v76, 4294901760
    %2823 = vmatpush1.msra.mxu0 %v2822
    %2824 = vmatprep.subr.mxu0 0.0
    %v2825 = vand.u32 %v77, 4294901760
    %2826 = vmatpush1.msra.mxu0 %v2825
    %2827 = vmatprep.subr.mxu0 0.0
    %v2828 = vand.u32 %v78, 4294901760
    %2829 = vmatpush1.msra.mxu0 %v2828
    %2830 = vmatprep.subr.mxu0 0.0
    %v2831 = vand.u32 %v79, 4294901760
    %2832 = vmatpush1.msra.mxu0 %v2831
    %2833 = vmatprep.subr.mxu0 0.0
    %v2834 = vand.u32 %v80, 4294901760
    %2835 = vmatpush1.msra.mxu0 %v2834
    %2836 = vmatprep.subr.mxu0 0.0
    %v2837 = vand.u32 %v81, 4294901760
    %2838 = vmatpush1.msra.mxu0 %v2837
    %2839 = vmatprep.subr.mxu0 0.0
    %v2840 = vand.u32 %v82, 4294901760
    %2841 = vmatpush1.msra.mxu0 %v2840
    %2842 = vmatprep.subr.mxu0 0.0
    %v2843 = vand.u32 %v83, 4294901760
    %2844 = vmatpush1.msra.mxu0 %v2843
    %2845 = vmatprep.subr.mxu0 0.0
    %v2846 = vand.u32 %v84, 4294901760
    %2847 = vmatpush1.msra.mxu0 %v2846
    %2848 = vmatprep.subr.mxu0 0.0
    %v2849 = vand.u32 %v85, 4294901760
    %2850 = vmatpush1.msra.mxu0 %v2849
    %2851 = vmatprep.subr.mxu0 0.0
    %v2852 = vand.u32 %v86, 4294901760
    %2853 = vmatpush1.msra.mxu0 %v2852
    %2854 = vmatprep.subr.mxu0 0.0
    %v2855 = vand.u32 %v87, 4294901760
    %2856 = vmatpush1.msra.mxu0 %v2855
    %2857 = vmatprep.subr.mxu0 0.0
    %v2858 = vand.u32 %v88, 4294901760
    %2859 = vmatpush1.msra.mxu0 %v2858
    %2860 = vmatprep.subr.mxu0 0.0
    %v2861 = vand.u32 %v89, 4294901760
    %2862 = vmatpush1.msra.mxu0 %v2861
    %2863 = vmatprep.subr.mxu0 0.0
    %2864 = vmatpush1.msra.mxu0 0.0
    %2865 = vmatprep.subr.mxu0 0.0
    %2866 = vmatpush1.msra.mxu0 0.0
    %2867 = vmatprep.subr.mxu0 0.0
    %2868 = vmatpush1.msra.mxu0 0.0
    %2869 = vmatprep.subr.mxu0 0.0
    %2870 = vmatpush1.msra.mxu0 0.0
    %2871 = vmatprep.subr.mxu0 0.0
    %2872 = vmatpush1.msra.mxu0 0.0
    %2873 = vmatprep.subr.mxu0 0.0
    %2874 = vmatpush1.msra.mxu0 0.0
    %2875 = vmatprep.subr.mxu0 0.0
    %2876 = vmatpush1.msra.mxu0 0.0
    %2877 = vmatprep.subr.mxu0 0.0
    %2878 = vmatpush1.msra.mxu0 0.0
    %2879 = vmatprep.subr.mxu0 0.0
    %2880 = vmatpush1.msra.mxu0 0.0
    %2881 = vmatprep.subr.mxu0 0.0
    %2882 = vmatpush1.msra.mxu0 0.0
    %2883 = vmatprep.subr.mxu0 0.0
    %2884 = vmatpush1.msra.mxu0 0.0
    %2885 = vmatprep.subr.mxu0 0.0
    %2886 = vmatpush1.msra.mxu0 0.0
    %2887 = vmatprep.subr.mxu0 0.0
    %2888 = vmatpush1.msra.mxu0 0.0
    %2889 = vmatprep.subr.mxu0 0.0
    %2890 = vmatpush1.msra.mxu0 0.0
    %2891 = vmatprep.subr.mxu0 0.0
    %2892 = vmatpush1.msra.mxu0 0.0
    %2893 = vmatprep.subr.mxu0 0.0
    %2894 = vmatpush1.msra.mxu0 0.0
    %2895 = vmatprep.mubr.f32.mxu0 0.0
    %v2896 = vand.u32 %v2468, 4294901760
    %v2897 = vsub.f32 %v2468, %v2896
    %v2898 = vand.u32 %v2897, 4294901760
    %2899 = vmatmul.mubr.f32.gmra.mrb[0].mxu0 %v2898
    %v2900 = vpop.f32.mrb[0].mxu0
    %v2901 = vadd.f32 %v2812, %v2900
    %v2902 = vpop.f32.mrb[0].mxu0
    %2903 = vdwg.mxu0
    %2904 = vmatprep.subr.mxu0 0.0
    %v2905 = vand.u32 %v74, 4294901760
    %v2906 = vsub.f32 %v74, %v2905
    %v2907 = vand.u32 %v2906, 4294901760
    %2908 = vmatpush1.msra.mxu0 %v2907
    %2909 = vmatprep.subr.mxu0 0.0
    %v2910 = vand.u32 %v75, 4294901760
    %v2911 = vsub.f32 %v75, %v2910
    %v2912 = vand.u32 %v2911, 4294901760
    %2913 = vmatpush1.msra.mxu0 %v2912
    %2914 = vmatprep.subr.mxu0 0.0
    %v2915 = vand.u32 %v76, 4294901760
    %v2916 = vsub.f32 %v76, %v2915
    %v2917 = vand.u32 %v2916, 4294901760
    %2918 = vmatpush1.msra.mxu0 %v2917
    %2919 = vmatprep.subr.mxu0 0.0
    %v2920 = vand.u32 %v77, 4294901760
    %v2921 = vsub.f32 %v77, %v2920
    %v2922 = vand.u32 %v2921, 4294901760
    %2923 = vmatpush1.msra.mxu0 %v2922
    %2924 = vmatprep.subr.mxu0 0.0
    %v2925 = vand.u32 %v78, 4294901760
    %v2926 = vsub.f32 %v78, %v2925
    %v2927 = vand.u32 %v2926, 4294901760
    %2928 = vmatpush1.msra.mxu0 %v2927
    %2929 = vmatprep.subr.mxu0 0.0
    %v2930 = vand.u32 %v79, 4294901760
    %v2931 = vsub.f32 %v79, %v2930
    %v2932 = vand.u32 %v2931, 4294901760
    %2933 = vmatpush1.msra.mxu0 %v2932
    %2934 = vmatprep.subr.mxu0 0.0
    %v2935 = vand.u32 %v80, 4294901760
    %v2936 = vsub.f32 %v80, %v2935
    %v2937 = vand.u32 %v2936, 4294901760
    %2938 = vmatpush1.msra.mxu0 %v2937
    %2939 = vmatprep.subr.mxu0 0.0
    %v2940 = vand.u32 %v81, 4294901760
    %v2941 = vsub.f32 %v81, %v2940
    %v2942 = vand.u32 %v2941, 4294901760
    %2943 = vmatpush1.msra.mxu0 %v2942
    %2944 = vmatprep.subr.mxu0 0.0
    %v2945 = vand.u32 %v82, 4294901760
    %v2946 = vsub.f32 %v82, %v2945
    %v2947 = vand.u32 %v2946, 4294901760
    %2948 = vmatpush1.msra.mxu0 %v2947
    %2949 = vmatprep.subr.mxu0 0.0
    %v2950 = vand.u32 %v83, 4294901760
    %v2951 = vsub.f32 %v83, %v2950
    %v2952 = vand.u32 %v2951, 4294901760
    %2953 = vmatpush1.msra.mxu0 %v2952
    %2954 = vmatprep.subr.mxu0 0.0
    %v2955 = vand.u32 %v84, 4294901760
    %v2956 = vsub.f32 %v84, %v2955
    %v2957 = vand.u32 %v2956, 4294901760
    %2958 = vmatpush1.msra.mxu0 %v2957
    %2959 = vmatprep.subr.mxu0 0.0
    %v2960 = vand.u32 %v85, 4294901760
    %v2961 = vsub.f32 %v85, %v2960
    %v2962 = vand.u32 %v2961, 4294901760
    %2963 = vmatpush1.msra.mxu0 %v2962
    %2964 = vmatprep.subr.mxu0 0.0
    %v2965 = vand.u32 %v86, 4294901760
    %v2966 = vsub.f32 %v86, %v2965
    %v2967 = vand.u32 %v2966, 4294901760
    %2968 = vmatpush1.msra.mxu0 %v2967
    %2969 = vmatprep.subr.mxu0 0.0
    %v2970 = vand.u32 %v87, 4294901760
    %v2971 = vsub.f32 %v87, %v2970
    %v2972 = vand.u32 %v2971, 4294901760
    %2973 = vmatpush1.msra.mxu0 %v2972
    %2974 = vmatprep.subr.mxu0 0.0
    %v2975 = vand.u32 %v88, 4294901760
    %v2976 = vsub.f32 %v88, %v2975
    %v2977 = vand.u32 %v2976, 4294901760
    %2978 = vmatpush1.msra.mxu0 %v2977
    %2979 = vmatprep.subr.mxu0 0.0
    %v2980 = vand.u32 %v89, 4294901760
    %v2981 = vsub.f32 %v89, %v2980
    %v2982 = vand.u32 %v2981, 4294901760
    %2983 = vmatpush1.msra.mxu0 %v2982
    %2984 = vmatprep.subr.mxu0 0.0
    %2985 = vmatpush1.msra.mxu0 0.0
    %2986 = vmatprep.subr.mxu0 0.0
    %2987 = vmatpush1.msra.mxu0 0.0
    %2988 = vmatprep.subr.mxu0 0.0
    %2989 = vmatpush1.msra.mxu0 0.0
    %2990 = vmatprep.subr.mxu0 0.0
    %2991 = vmatpush1.msra.mxu0 0.0
    %2992 = vmatprep.subr.mxu0 0.0
    %2993 = vmatpush1.msra.mxu0 0.0
    %2994 = vmatprep.subr.mxu0 0.0
    %2995 = vmatpush1.msra.mxu0 0.0
    %2996 = vmatprep.subr.mxu0 0.0
    %2997 = vmatpush1.msra.mxu0 0.0
    %2998 = vmatprep.subr.mxu0 0.0
    %2999 = vmatpush1.msra.mxu0 0.0
    %3000 = vmatprep.subr.mxu0 0.0
    %3001 = vmatpush1.msra.mxu0 0.0
    %3002 = vmatprep.subr.mxu0 0.0
    %3003 = vmatpush1.msra.mxu0 0.0
    %3004 = vmatprep.subr.mxu0 0.0
    %3005 = vmatpush1.msra.mxu0 0.0
    %3006 = vmatprep.subr.mxu0 0.0
    %3007 = vmatpush1.msra.mxu0 0.0
    %3008 = vmatprep.subr.mxu0 0.0
    %3009 = vmatpush1.msra.mxu0 0.0
    %3010 = vmatprep.subr.mxu0 0.0
    %3011 = vmatpush1.msra.mxu0 0.0
    %3012 = vmatprep.subr.mxu0 0.0
    %3013 = vmatpush1.msra.mxu0 0.0
    %3014 = vmatprep.subr.mxu0 0.0
    %3015 = vmatpush1.msra.mxu0 0.0
    %3016 = vmatprep.mubr.f32.mxu0 0.0
    %v3017 = vand.u32 %v2468, 4294901760
    %3018 = vmatmul.mubr.f32.gmra.mrb[0].mxu0 %v3017
    %v3019 = vpop.f32.mrb[0].mxu0
    %v3020 = vadd.f32 %v2901, %v3019
    %v3021 = vpop.f32.mrb[0].mxu0
    %3022 = vdwg.mxu0
    %3023 = vmatprep.subr.mxu0 0.0
    %v3024 = vand.u32 %v74, 4294901760
    %3025 = vmatpush1.msra.mxu0 %v3024
    %3026 = vmatprep.subr.mxu0 0.0
    %v3027 = vand.u32 %v75, 4294901760
    %3028 = vmatpush1.msra.mxu0 %v3027
    %3029 = vmatprep.subr.mxu0 0.0
    %v3030 = vand.u32 %v76, 4294901760
    %3031 = vmatpush1.msra.mxu0 %v3030
    %3032 = vmatprep.subr.mxu0 0.0
    %v3033 = vand.u32 %v77, 4294901760
    %3034 = vmatpush1.msra.mxu0 %v3033
    %3035 = vmatprep.subr.mxu0 0.0
    %v3036 = vand.u32 %v78, 4294901760
    %3037 = vmatpush1.msra.mxu0 %v3036
    %3038 = vmatprep.subr.mxu0 0.0
    %v3039 = vand.u32 %v79, 4294901760
    %3040 = vmatpush1.msra.mxu0 %v3039
    %3041 = vmatprep.subr.mxu0 0.0
    %v3042 = vand.u32 %v80, 4294901760
    %3043 = vmatpush1.msra.mxu0 %v3042
    %3044 = vmatprep.subr.mxu0 0.0
    %v3045 = vand.u32 %v81, 4294901760
    %3046 = vmatpush1.msra.mxu0 %v3045
    %3047 = vmatprep.subr.mxu0 0.0
    %v3048 = vand.u32 %v82, 4294901760
    %3049 = vmatpush1.msra.mxu0 %v3048
    %3050 = vmatprep.subr.mxu0 0.0
    %v3051 = vand.u32 %v83, 4294901760
    %3052 = vmatpush1.msra.mxu0 %v3051
    %3053 = vmatprep.subr.mxu0 0.0
    %v3054 = vand.u32 %v84, 4294901760
    %3055 = vmatpush1.msra.mxu0 %v3054
    %3056 = vmatprep.subr.mxu0 0.0
    %v3057 = vand.u32 %v85, 4294901760
    %3058 = vmatpush1.msra.mxu0 %v3057
    %3059 = vmatprep.subr.mxu0 0.0
    %v3060 = vand.u32 %v86, 4294901760
    %3061 = vmatpush1.msra.mxu0 %v3060
    %3062 = vmatprep.subr.mxu0 0.0
    %v3063 = vand.u32 %v87, 4294901760
    %3064 = vmatpush1.msra.mxu0 %v3063
    %3065 = vmatprep.subr.mxu0 0.0
    %v3066 = vand.u32 %v88, 4294901760
    %3067 = vmatpush1.msra.mxu0 %v3066
    %3068 = vmatprep.subr.mxu0 0.0
    %v3069 = vand.u32 %v89, 4294901760
    %3070 = vmatpush1.msra.mxu0 %v3069
    %3071 = vmatprep.subr.mxu0 0.0
    %3072 = vmatpush1.msra.mxu0 0.0
    %3073 = vmatprep.subr.mxu0 0.0
    %3074 = vmatpush1.msra.mxu0 0.0
    %3075 = vmatprep.subr.mxu0 0.0
    %3076 = vmatpush1.msra.mxu0 0.0
    %3077 = vmatprep.subr.mxu0 0.0
    %3078 = vmatpush1.msra.mxu0 0.0
    %3079 = vmatprep.subr.mxu0 0.0
    %3080 = vmatpush1.msra.mxu0 0.0
    %3081 = vmatprep.subr.mxu0 0.0
    %3082 = vmatpush1.msra.mxu0 0.0
    %3083 = vmatprep.subr.mxu0 0.0
    %3084 = vmatpush1.msra.mxu0 0.0
    %3085 = vmatprep.subr.mxu0 0.0
    %3086 = vmatpush1.msra.mxu0 0.0
    %3087 = vmatprep.subr.mxu0 0.0
    %3088 = vmatpush1.msra.mxu0 0.0
    %3089 = vmatprep.subr.mxu0 0.0
    %3090 = vmatpush1.msra.mxu0 0.0
    %3091 = vmatprep.subr.mxu0 0.0
    %3092 = vmatpush1.msra.mxu0 0.0
    %3093 = vmatprep.subr.mxu0 0.0
    %3094 = vmatpush1.msra.mxu0 0.0
    %3095 = vmatprep.subr.mxu0 0.0
    %3096 = vmatpush1.msra.mxu0 0.0
    %3097 = vmatprep.subr.mxu0 0.0
    %3098 = vmatpush1.msra.mxu0 0.0
    %3099 = vmatprep.subr.mxu0 0.0
    %3100 = vmatpush1.msra.mxu0 0.0
    %3101 = vmatprep.subr.mxu0 0.0
    %3102 = vmatpush1.msra.mxu0 0.0
    %3103 = vmatprep.mubr.f32.mxu0 0.0
    %v3104 = vand.u32 %v2468, 4294901760
    %3105 = vmatmul.mubr.f32.gmra.mrb[0].mxu0 %v3104
    %v3106 = vpop.f32.mrb[0].mxu0
    %v3107 = vadd.f32 %v3020, %v3106
    %v3108 = vpop.f32.mrb[0].mxu0
    %3109 = vdwg.mxu0
    %s3110 = scalar_lea.vmem %s5, 8
    %3111 = vst [vmem:[%s3110] sm:$0xff] %v3107
    %s3112 = scalar_lea.vmem %s0, 16
    %v3113 = vld [vmem:[%s3112] sm:$0xff]
    %3114 = vmatprep.subr.mxu0 0.0
    %v3115 = vand.u32 %v42, 4294901760
    %3116 = vmatpush1.msra.mxu0 %v3115
    %3117 = vmatprep.subr.mxu0 0.0
    %v3118 = vand.u32 %v43, 4294901760
    %3119 = vmatpush1.msra.mxu0 %v3118
    %3120 = vmatprep.subr.mxu0 0.0
    %v3121 = vand.u32 %v44, 4294901760
    %3122 = vmatpush1.msra.mxu0 %v3121
    %3123 = vmatprep.subr.mxu0 0.0
    %v3124 = vand.u32 %v45, 4294901760
    %3125 = vmatpush1.msra.mxu0 %v3124
    %3126 = vmatprep.subr.mxu0 0.0
    %v3127 = vand.u32 %v46, 4294901760
    %3128 = vmatpush1.msra.mxu0 %v3127
    %3129 = vmatprep.subr.mxu0 0.0
    %v3130 = vand.u32 %v47, 4294901760
    %3131 = vmatpush1.msra.mxu0 %v3130
    %3132 = vmatprep.subr.mxu0 0.0
    %v3133 = vand.u32 %v48, 4294901760
    %3134 = vmatpush1.msra.mxu0 %v3133
    %3135 = vmatprep.subr.mxu0 0.0
    %v3136 = vand.u32 %v49, 4294901760
    %3137 = vmatpush1.msra.mxu0 %v3136
    %3138 = vmatprep.subr.mxu0 0.0
    %v3139 = vand.u32 %v50, 4294901760
    %3140 = vmatpush1.msra.mxu0 %v3139
    %3141 = vmatprep.subr.mxu0 0.0
    %v3142 = vand.u32 %v51, 4294901760
    %3143 = vmatpush1.msra.mxu0 %v3142
    %3144 = vmatprep.subr.mxu0 0.0
    %v3145 = vand.u32 %v52, 4294901760
    %3146 = vmatpush1.msra.mxu0 %v3145
    %3147 = vmatprep.subr.mxu0 0.0
    %v3148 = vand.u32 %v53, 4294901760
    %3149 = vmatpush1.msra.mxu0 %v3148
    %3150 = vmatprep.subr.mxu0 0.0
    %v3151 = vand.u32 %v54, 4294901760
    %3152 = vmatpush1.msra.mxu0 %v3151
    %3153 = vmatprep.subr.mxu0 0.0
    %v3154 = vand.u32 %v55, 4294901760
    %3155 = vmatpush1.msra.mxu0 %v3154
    %3156 = vmatprep.subr.mxu0 0.0
    %v3157 = vand.u32 %v56, 4294901760
    %3158 = vmatpush1.msra.mxu0 %v3157
    %3159 = vmatprep.subr.mxu0 0.0
    %v3160 = vand.u32 %v57, 4294901760
    %3161 = vmatpush1.msra.mxu0 %v3160
    %3162 = vmatprep.subr.mxu0 0.0
    %v3163 = vand.u32 %v58, 4294901760
    %3164 = vmatpush1.msra.mxu0 %v3163
    %3165 = vmatprep.subr.mxu0 0.0
    %v3166 = vand.u32 %v59, 4294901760
    %3167 = vmatpush1.msra.mxu0 %v3166
    %3168 = vmatprep.subr.mxu0 0.0
    %v3169 = vand.u32 %v60, 4294901760
    %3170 = vmatpush1.msra.mxu0 %v3169
    %3171 = vmatprep.subr.mxu0 0.0
    %v3172 = vand.u32 %v61, 4294901760
    %3173 = vmatpush1.msra.mxu0 %v3172
    %3174 = vmatprep.subr.mxu0 0.0
    %v3175 = vand.u32 %v62, 4294901760
    %3176 = vmatpush1.msra.mxu0 %v3175
    %3177 = vmatprep.subr.mxu0 0.0
    %v3178 = vand.u32 %v63, 4294901760
    %3179 = vmatpush1.msra.mxu0 %v3178
    %3180 = vmatprep.subr.mxu0 0.0
    %v3181 = vand.u32 %v64, 4294901760
    %3182 = vmatpush1.msra.mxu0 %v3181
    %3183 = vmatprep.subr.mxu0 0.0
    %v3184 = vand.u32 %v65, 4294901760
    %3185 = vmatpush1.msra.mxu0 %v3184
    %3186 = vmatprep.subr.mxu0 0.0
    %v3187 = vand.u32 %v66, 4294901760
    %3188 = vmatpush1.msra.mxu0 %v3187
    %3189 = vmatprep.subr.mxu0 0.0
    %v3190 = vand.u32 %v67, 4294901760
    %3191 = vmatpush1.msra.mxu0 %v3190
    %3192 = vmatprep.subr.mxu0 0.0
    %v3193 = vand.u32 %v68, 4294901760
    %3194 = vmatpush1.msra.mxu0 %v3193
    %3195 = vmatprep.subr.mxu0 0.0
    %v3196 = vand.u32 %v69, 4294901760
    %3197 = vmatpush1.msra.mxu0 %v3196
    %3198 = vmatprep.subr.mxu0 0.0
    %v3199 = vand.u32 %v70, 4294901760
    %3200 = vmatpush1.msra.mxu0 %v3199
    %3201 = vmatprep.subr.mxu0 0.0
    %v3202 = vand.u32 %v71, 4294901760
    %3203 = vmatpush1.msra.mxu0 %v3202
    %3204 = vmatprep.subr.mxu0 0.0
    %v3205 = vand.u32 %v72, 4294901760
    %3206 = vmatpush1.msra.mxu0 %v3205
    %3207 = vmatprep.subr.mxu0 0.0
    %v3208 = vand.u32 %v73, 4294901760
    %3209 = vmatpush1.msra.mxu0 %v3208
    %v3210 = vand.u32 %v3113, 4294901760
    %v3211 = vsub.f32 %v3113, %v3210
    %v3212 = vand.u32 %v3211, 4294901760
    %v3213 = vsub.f32 %v3211, %v3212
    %v3214 = vand.u32 %v3213, 4294901760
    %3215 = vmatprep.mubr.f32.mxu0 %v3214
    %v3216 = vand.u32 %v2468, 4294901760
    %v3217 = vsub.f32 %v2468, %v3216
    %v3218 = vand.u32 %v3217, 4294901760
    %v3219 = vsub.f32 %v3217, %v3218
    %v3220 = vand.u32 %v3219, 4294901760
    %3221 = vmatmul.mubr.f32.gmra.mrb[0].mxu0 %v3220
    %v3222 = vpop.f32.mrb[0].mxu0
    %v3223 = vadd.f32 0.0, %v3222
    %v3224 = vpop.f32.mrb[0].mxu0
    %3225 = vdwg.mxu0
    %3226 = vmatprep.subr.mxu0 0.0
    %v3227 = vand.u32 %v42, 4294901760
    %v3228 = vsub.f32 %v42, %v3227
    %v3229 = vand.u32 %v3228, 4294901760
    %v3230 = vsub.f32 %v3228, %v3229
    %v3231 = vand.u32 %v3230, 4294901760
    %3232 = vmatpush1.msra.mxu0 %v3231
    %3233 = vmatprep.subr.mxu0 0.0
    %v3234 = vand.u32 %v43, 4294901760
    %v3235 = vsub.f32 %v43, %v3234
    %v3236 = vand.u32 %v3235, 4294901760
    %v3237 = vsub.f32 %v3235, %v3236
    %v3238 = vand.u32 %v3237, 4294901760
    %3239 = vmatpush1.msra.mxu0 %v3238
    %3240 = vmatprep.subr.mxu0 0.0
    %v3241 = vand.u32 %v44, 4294901760
    %v3242 = vsub.f32 %v44, %v3241
    %v3243 = vand.u32 %v3242, 4294901760
    %v3244 = vsub.f32 %v3242, %v3243
    %v3245 = vand.u32 %v3244, 4294901760
    %3246 = vmatpush1.msra.mxu0 %v3245
    %3247 = vmatprep.subr.mxu0 0.0
    %v3248 = vand.u32 %v45, 4294901760
    %v3249 = vsub.f32 %v45, %v3248
    %v3250 = vand.u32 %v3249, 4294901760
    %v3251 = vsub.f32 %v3249, %v3250
    %v3252 = vand.u32 %v3251, 4294901760
    %3253 = vmatpush1.msra.mxu0 %v3252
    %3254 = vmatprep.subr.mxu0 0.0
    %v3255 = vand.u32 %v46, 4294901760
    %v3256 = vsub.f32 %v46, %v3255
    %v3257 = vand.u32 %v3256, 4294901760
    %v3258 = vsub.f32 %v3256, %v3257
    %v3259 = vand.u32 %v3258, 4294901760
    %3260 = vmatpush1.msra.mxu0 %v3259
    %3261 = vmatprep.subr.mxu0 0.0
    %v3262 = vand.u32 %v47, 4294901760
    %v3263 = vsub.f32 %v47, %v3262
    %v3264 = vand.u32 %v3263, 4294901760
    %v3265 = vsub.f32 %v3263, %v3264
    %v3266 = vand.u32 %v3265, 4294901760
    %3267 = vmatpush1.msra.mxu0 %v3266
    %3268 = vmatprep.subr.mxu0 0.0
    %v3269 = vand.u32 %v48, 4294901760
    %v3270 = vsub.f32 %v48, %v3269
    %v3271 = vand.u32 %v3270, 4294901760
    %v3272 = vsub.f32 %v3270, %v3271
    %v3273 = vand.u32 %v3272, 4294901760
    %3274 = vmatpush1.msra.mxu0 %v3273
    %3275 = vmatprep.subr.mxu0 0.0
    %v3276 = vand.u32 %v49, 4294901760
    %v3277 = vsub.f32 %v49, %v3276
    %v3278 = vand.u32 %v3277, 4294901760
    %v3279 = vsub.f32 %v3277, %v3278
    %v3280 = vand.u32 %v3279, 4294901760
    %3281 = vmatpush1.msra.mxu0 %v3280
    %3282 = vmatprep.subr.mxu0 0.0
    %v3283 = vand.u32 %v50, 4294901760
    %v3284 = vsub.f32 %v50, %v3283
    %v3285 = vand.u32 %v3284, 4294901760
    %v3286 = vsub.f32 %v3284, %v3285
    %v3287 = vand.u32 %v3286, 4294901760
    %3288 = vmatpush1.msra.mxu0 %v3287
    %3289 = vmatprep.subr.mxu0 0.0
    %v3290 = vand.u32 %v51, 4294901760
    %v3291 = vsub.f32 %v51, %v3290
    %v3292 = vand.u32 %v3291, 4294901760
    %v3293 = vsub.f32 %v3291, %v3292
    %v3294 = vand.u32 %v3293, 4294901760
    %3295 = vmatpush1.msra.mxu0 %v3294
    %3296 = vmatprep.subr.mxu0 0.0
    %v3297 = vand.u32 %v52, 4294901760
    %v3298 = vsub.f32 %v52, %v3297
    %v3299 = vand.u32 %v3298, 4294901760
    %v3300 = vsub.f32 %v3298, %v3299
    %v3301 = vand.u32 %v3300, 4294901760
    %3302 = vmatpush1.msra.mxu0 %v3301
    %3303 = vmatprep.subr.mxu0 0.0
    %v3304 = vand.u32 %v53, 4294901760
    %v3305 = vsub.f32 %v53, %v3304
    %v3306 = vand.u32 %v3305, 4294901760
    %v3307 = vsub.f32 %v3305, %v3306
    %v3308 = vand.u32 %v3307, 4294901760
    %3309 = vmatpush1.msra.mxu0 %v3308
    %3310 = vmatprep.subr.mxu0 0.0
    %v3311 = vand.u32 %v54, 4294901760
    %v3312 = vsub.f32 %v54, %v3311
    %v3313 = vand.u32 %v3312, 4294901760
    %v3314 = vsub.f32 %v3312, %v3313
    %v3315 = vand.u32 %v3314, 4294901760
    %3316 = vmatpush1.msra.mxu0 %v3315
    %3317 = vmatprep.subr.mxu0 0.0
    %v3318 = vand.u32 %v55, 4294901760
    %v3319 = vsub.f32 %v55, %v3318
    %v3320 = vand.u32 %v3319, 4294901760
    %v3321 = vsub.f32 %v3319, %v3320
    %v3322 = vand.u32 %v3321, 4294901760
    %3323 = vmatpush1.msra.mxu0 %v3322
    %3324 = vmatprep.subr.mxu0 0.0
    %v3325 = vand.u32 %v56, 4294901760
    %v3326 = vsub.f32 %v56, %v3325
    %v3327 = vand.u32 %v3326, 4294901760
    %v3328 = vsub.f32 %v3326, %v3327
    %v3329 = vand.u32 %v3328, 4294901760
    %3330 = vmatpush1.msra.mxu0 %v3329
    %3331 = vmatprep.subr.mxu0 0.0
    %v3332 = vand.u32 %v57, 4294901760
    %v3333 = vsub.f32 %v57, %v3332
    %v3334 = vand.u32 %v3333, 4294901760
    %v3335 = vsub.f32 %v3333, %v3334
    %v3336 = vand.u32 %v3335, 4294901760
    %3337 = vmatpush1.msra.mxu0 %v3336
    %3338 = vmatprep.subr.mxu0 0.0
    %v3339 = vand.u32 %v58, 4294901760
    %v3340 = vsub.f32 %v58, %v3339
    %v3341 = vand.u32 %v3340, 4294901760
    %v3342 = vsub.f32 %v3340, %v3341
    %v3343 = vand.u32 %v3342, 4294901760
    %3344 = vmatpush1.msra.mxu0 %v3343
    %3345 = vmatprep.subr.mxu0 0.0
    %v3346 = vand.u32 %v59, 4294901760
    %v3347 = vsub.f32 %v59, %v3346
    %v3348 = vand.u32 %v3347, 4294901760
    %v3349 = vsub.f32 %v3347, %v3348
    %v3350 = vand.u32 %v3349, 4294901760
    %3351 = vmatpush1.msra.mxu0 %v3350
    %3352 = vmatprep.subr.mxu0 0.0
    %v3353 = vand.u32 %v60, 4294901760
    %v3354 = vsub.f32 %v60, %v3353
    %v3355 = vand.u32 %v3354, 4294901760
    %v3356 = vsub.f32 %v3354, %v3355
    %v3357 = vand.u32 %v3356, 4294901760
    %3358 = vmatpush1.msra.mxu0 %v3357
    %3359 = vmatprep.subr.mxu0 0.0
    %v3360 = vand.u32 %v61, 4294901760
    %v3361 = vsub.f32 %v61, %v3360
    %v3362 = vand.u32 %v3361, 4294901760
    %v3363 = vsub.f32 %v3361, %v3362
    %v3364 = vand.u32 %v3363, 4294901760
    %3365 = vmatpush1.msra.mxu0 %v3364
    %3366 = vmatprep.subr.mxu0 0.0
    %v3367 = vand.u32 %v62, 4294901760
    %v3368 = vsub.f32 %v62, %v3367
    %v3369 = vand.u32 %v3368, 4294901760
    %v3370 = vsub.f32 %v3368, %v3369
    %v3371 = vand.u32 %v3370, 4294901760
    %3372 = vmatpush1.msra.mxu0 %v3371
    %3373 = vmatprep.subr.mxu0 0.0
    %v3374 = vand.u32 %v63, 4294901760
    %v3375 = vsub.f32 %v63, %v3374
    %v3376 = vand.u32 %v3375, 4294901760
    %v3377 = vsub.f32 %v3375, %v3376
    %v3378 = vand.u32 %v3377, 4294901760
    %3379 = vmatpush1.msra.mxu0 %v3378
    %3380 = vmatprep.subr.mxu0 0.0
    %v3381 = vand.u32 %v64, 4294901760
    %v3382 = vsub.f32 %v64, %v3381
    %v3383 = vand.u32 %v3382, 4294901760
    %v3384 = vsub.f32 %v3382, %v3383
    %v3385 = vand.u32 %v3384, 4294901760
    %3386 = vmatpush1.msra.mxu0 %v3385
    %3387 = vmatprep.subr.mxu0 0.0
    %v3388 = vand.u32 %v65, 4294901760
    %v3389 = vsub.f32 %v65, %v3388
    %v3390 = vand.u32 %v3389, 4294901760
    %v3391 = vsub.f32 %v3389, %v3390
    %v3392 = vand.u32 %v3391, 4294901760
    %3393 = vmatpush1.msra.mxu0 %v3392
    %3394 = vmatprep.subr.mxu0 0.0
    %v3395 = vand.u32 %v66, 4294901760
    %v3396 = vsub.f32 %v66, %v3395
    %v3397 = vand.u32 %v3396, 4294901760
    %v3398 = vsub.f32 %v3396, %v3397
    %v3399 = vand.u32 %v3398, 4294901760
    %3400 = vmatpush1.msra.mxu0 %v3399
    %3401 = vmatprep.subr.mxu0 0.0
    %v3402 = vand.u32 %v67, 4294901760
    %v3403 = vsub.f32 %v67, %v3402
    %v3404 = vand.u32 %v3403, 4294901760
    %v3405 = vsub.f32 %v3403, %v3404
    %v3406 = vand.u32 %v3405, 4294901760
    %3407 = vmatpush1.msra.mxu0 %v3406
    %3408 = vmatprep.subr.mxu0 0.0
    %v3409 = vand.u32 %v68, 4294901760
    %v3410 = vsub.f32 %v68, %v3409
    %v3411 = vand.u32 %v3410, 4294901760
    %v3412 = vsub.f32 %v3410, %v3411
    %v3413 = vand.u32 %v3412, 4294901760
    %3414 = vmatpush1.msra.mxu0 %v3413
    %3415 = vmatprep.subr.mxu0 0.0
    %v3416 = vand.u32 %v69, 4294901760
    %v3417 = vsub.f32 %v69, %v3416
    %v3418 = vand.u32 %v3417, 4294901760
    %v3419 = vsub.f32 %v3417, %v3418
    %v3420 = vand.u32 %v3419, 4294901760
    %3421 = vmatpush1.msra.mxu0 %v3420
    %3422 = vmatprep.subr.mxu0 0.0
    %v3423 = vand.u32 %v70, 4294901760
    %v3424 = vsub.f32 %v70, %v3423
    %v3425 = vand.u32 %v3424, 4294901760
    %v3426 = vsub.f32 %v3424, %v3425
    %v3427 = vand.u32 %v3426, 4294901760
    %3428 = vmatpush1.msra.mxu0 %v3427
    %3429 = vmatprep.subr.mxu0 0.0
    %v3430 = vand.u32 %v71, 4294901760
    %v3431 = vsub.f32 %v71, %v3430
    %v3432 = vand.u32 %v3431, 4294901760
    %v3433 = vsub.f32 %v3431, %v3432
    %v3434 = vand.u32 %v3433, 4294901760
    %3435 = vmatpush1.msra.mxu0 %v3434
    %3436 = vmatprep.subr.mxu0 0.0
    %v3437 = vand.u32 %v72, 4294901760
    %v3438 = vsub.f32 %v72, %v3437
    %v3439 = vand.u32 %v3438, 4294901760
    %v3440 = vsub.f32 %v3438, %v3439
    %v3441 = vand.u32 %v3440, 4294901760
    %3442 = vmatpush1.msra.mxu0 %v3441
    %3443 = vmatprep.subr.mxu0 0.0
    %v3444 = vand.u32 %v73, 4294901760
    %v3445 = vsub.f32 %v73, %v3444
    %v3446 = vand.u32 %v3445, 4294901760
    %v3447 = vsub.f32 %v3445, %v3446
    %v3448 = vand.u32 %v3447, 4294901760
    %3449 = vmatpush1.msra.mxu0 %v3448
    %v3450 = vand.u32 %v3113, 4294901760
    %3451 = vmatprep.mubr.f32.mxu0 %v3450
    %v3452 = vand.u32 %v2468, 4294901760
    %3453 = vmatmul.mubr.f32.gmra.mrb[0].mxu0 %v3452
    %v3454 = vpop.f32.mrb[0].mxu0
    %v3455 = vadd.f32 %v3223, %v3454
    %v3456 = vpop.f32.mrb[0].mxu0
    %3457 = vdwg.mxu0
    %3458 = vmatprep.subr.mxu0 0.0
    %v3459 = vand.u32 %v42, 4294901760
    %v3460 = vsub.f32 %v42, %v3459
    %3461 = vmatpush1.msra.mxu0 %v3460
    %3462 = vmatprep.subr.mxu0 0.0
    %v3463 = vand.u32 %v43, 4294901760
    %v3464 = vsub.f32 %v43, %v3463
    %3465 = vmatpush1.msra.mxu0 %v3464
    %3466 = vmatprep.subr.mxu0 0.0
    %v3467 = vand.u32 %v44, 4294901760
    %v3468 = vsub.f32 %v44, %v3467
    %3469 = vmatpush1.msra.mxu0 %v3468
    %3470 = vmatprep.subr.mxu0 0.0
    %v3471 = vand.u32 %v45, 4294901760
    %v3472 = vsub.f32 %v45, %v3471
    %3473 = vmatpush1.msra.mxu0 %v3472
    %3474 = vmatprep.subr.mxu0 0.0
    %v3475 = vand.u32 %v46, 4294901760
    %v3476 = vsub.f32 %v46, %v3475
    %3477 = vmatpush1.msra.mxu0 %v3476
    %3478 = vmatprep.subr.mxu0 0.0
    %v3479 = vand.u32 %v47, 4294901760
    %v3480 = vsub.f32 %v47, %v3479
    %3481 = vmatpush1.msra.mxu0 %v3480
    %3482 = vmatprep.subr.mxu0 0.0
    %v3483 = vand.u32 %v48, 4294901760
    %v3484 = vsub.f32 %v48, %v3483
    %3485 = vmatpush1.msra.mxu0 %v3484
    %3486 = vmatprep.subr.mxu0 0.0
    %v3487 = vand.u32 %v49, 4294901760
    %v3488 = vsub.f32 %v49, %v3487
    %3489 = vmatpush1.msra.mxu0 %v3488
    %3490 = vmatprep.subr.mxu0 0.0
    %v3491 = vand.u32 %v50, 4294901760
    %v3492 = vsub.f32 %v50, %v3491
    %3493 = vmatpush1.msra.mxu0 %v3492
    %3494 = vmatprep.subr.mxu0 0.0
    %v3495 = vand.u32 %v51, 4294901760
    %v3496 = vsub.f32 %v51, %v3495
    %3497 = vmatpush1.msra.mxu0 %v3496
    %3498 = vmatprep.subr.mxu0 0.0
    %v3499 = vand.u32 %v52, 4294901760
    %v3500 = vsub.f32 %v52, %v3499
    %3501 = vmatpush1.msra.mxu0 %v3500
    %3502 = vmatprep.subr.mxu0 0.0
    %v3503 = vand.u32 %v53, 4294901760
    %v3504 = vsub.f32 %v53, %v3503
    %3505 = vmatpush1.msra.mxu0 %v3504
    %3506 = vmatprep.subr.mxu0 0.0
    %v3507 = vand.u32 %v54, 4294901760
    %v3508 = vsub.f32 %v54, %v3507
    %3509 = vmatpush1.msra.mxu0 %v3508
    %3510 = vmatprep.subr.mxu0 0.0
    %v3511 = vand.u32 %v55, 4294901760
    %v3512 = vsub.f32 %v55, %v3511
    %3513 = vmatpush1.msra.mxu0 %v3512
    %3514 = vmatprep.subr.mxu0 0.0
    %v3515 = vand.u32 %v56, 4294901760
    %v3516 = vsub.f32 %v56, %v3515
    %3517 = vmatpush1.msra.mxu0 %v3516
    %3518 = vmatprep.subr.mxu0 0.0
    %v3519 = vand.u32 %v57, 4294901760
    %v3520 = vsub.f32 %v57, %v3519
    %3521 = vmatpush1.msra.mxu0 %v3520
    %3522 = vmatprep.subr.mxu0 0.0
    %v3523 = vand.u32 %v58, 4294901760
    %v3524 = vsub.f32 %v58, %v3523
    %3525 = vmatpush1.msra.mxu0 %v3524
    %3526 = vmatprep.subr.mxu0 0.0
    %v3527 = vand.u32 %v59, 4294901760
    %v3528 = vsub.f32 %v59, %v3527
    %3529 = vmatpush1.msra.mxu0 %v3528
    %3530 = vmatprep.subr.mxu0 0.0
    %v3531 = vand.u32 %v60, 4294901760
    %v3532 = vsub.f32 %v60, %v3531
    %3533 = vmatpush1.msra.mxu0 %v3532
    %3534 = vmatprep.subr.mxu0 0.0
    %v3535 = vand.u32 %v61, 4294901760
    %v3536 = vsub.f32 %v61, %v3535
    %3537 = vmatpush1.msra.mxu0 %v3536
    %3538 = vmatprep.subr.mxu0 0.0
    %v3539 = vand.u32 %v62, 4294901760
    %v3540 = vsub.f32 %v62, %v3539
    %3541 = vmatpush1.msra.mxu0 %v3540
    %3542 = vmatprep.subr.mxu0 0.0
    %v3543 = vand.u32 %v63, 4294901760
    %v3544 = vsub.f32 %v63, %v3543
    %3545 = vmatpush1.msra.mxu0 %v3544
    %3546 = vmatprep.subr.mxu0 0.0
    %v3547 = vand.u32 %v64, 4294901760
    %v3548 = vsub.f32 %v64, %v3547
    %3549 = vmatpush1.msra.mxu0 %v3548
    %3550 = vmatprep.subr.mxu0 0.0
    %v3551 = vand.u32 %v65, 4294901760
    %v3552 = vsub.f32 %v65, %v3551
    %3553 = vmatpush1.msra.mxu0 %v3552
    %3554 = vmatprep.subr.mxu0 0.0
    %v3555 = vand.u32 %v66, 4294901760
    %v3556 = vsub.f32 %v66, %v3555
    %3557 = vmatpush1.msra.mxu0 %v3556
    %3558 = vmatprep.subr.mxu0 0.0
    %v3559 = vand.u32 %v67, 4294901760
    %v3560 = vsub.f32 %v67, %v3559
    %3561 = vmatpush1.msra.mxu0 %v3560
    %3562 = vmatprep.subr.mxu0 0.0
    %v3563 = vand.u32 %v68, 4294901760
    %v3564 = vsub.f32 %v68, %v3563
    %3565 = vmatpush1.msra.mxu0 %v3564
    %3566 = vmatprep.subr.mxu0 0.0
    %v3567 = vand.u32 %v69, 4294901760
    %v3568 = vsub.f32 %v69, %v3567
    %3569 = vmatpush1.msra.mxu0 %v3568
    %3570 = vmatprep.subr.mxu0 0.0
    %v3571 = vand.u32 %v70, 4294901760
    %v3572 = vsub.f32 %v70, %v3571
    %3573 = vmatpush1.msra.mxu0 %v3572
    %3574 = vmatprep.subr.mxu0 0.0
    %v3575 = vand.u32 %v71, 4294901760
    %v3576 = vsub.f32 %v71, %v3575
    %3577 = vmatpush1.msra.mxu0 %v3576
    %3578 = vmatprep.subr.mxu0 0.0
    %v3579 = vand.u32 %v72, 4294901760
    %v3580 = vsub.f32 %v72, %v3579
    %3581 = vmatpush1.msra.mxu0 %v3580
    %3582 = vmatprep.subr.mxu0 0.0
    %v3583 = vand.u32 %v73, 4294901760
    %v3584 = vsub.f32 %v73, %v3583
    %3585 = vmatpush1.msra.mxu0 %v3584
    %v3586 = vand.u32 %v3113, 4294901760
    %v3587 = vsub.f32 %v3113, %v3586
    %3588 = vmatprep.mubr.f32.mxu0 %v3587
    %v3589 = vand.u32 %v2468, 4294901760
    %v3590 = vsub.f32 %v2468, %v3589
    %3591 = vmatmul.mubr.f32.gmra.mrb[0].mxu0 %v3590
    %v3592 = vpop.f32.mrb[0].mxu0
    %v3593 = vadd.f32 %v3455, %v3592
    %v3594 = vpop.f32.mrb[0].mxu0
    %3595 = vdwg.mxu0
    %3596 = vmatprep.subr.mxu0 0.0
    %v3597 = vand.u32 %v42, 4294901760
    %3598 = vmatpush1.msra.mxu0 %v3597
    %3599 = vmatprep.subr.mxu0 0.0
    %v3600 = vand.u32 %v43, 4294901760
    %3601 = vmatpush1.msra.mxu0 %v3600
    %3602 = vmatprep.subr.mxu0 0.0
    %v3603 = vand.u32 %v44, 4294901760
    %3604 = vmatpush1.msra.mxu0 %v3603
    %3605 = vmatprep.subr.mxu0 0.0
    %v3606 = vand.u32 %v45, 4294901760
    %3607 = vmatpush1.msra.mxu0 %v3606
    %3608 = vmatprep.subr.mxu0 0.0
    %v3609 = vand.u32 %v46, 4294901760
    %3610 = vmatpush1.msra.mxu0 %v3609
    %3611 = vmatprep.subr.mxu0 0.0
    %v3612 = vand.u32 %v47, 4294901760
    %3613 = vmatpush1.msra.mxu0 %v3612
    %3614 = vmatprep.subr.mxu0 0.0
    %v3615 = vand.u32 %v48, 4294901760
    %3616 = vmatpush1.msra.mxu0 %v3615
    %3617 = vmatprep.subr.mxu0 0.0
    %v3618 = vand.u32 %v49, 4294901760
    %3619 = vmatpush1.msra.mxu0 %v3618
    %3620 = vmatprep.subr.mxu0 0.0
    %v3621 = vand.u32 %v50, 4294901760
    %3622 = vmatpush1.msra.mxu0 %v3621
    %3623 = vmatprep.subr.mxu0 0.0
    %v3624 = vand.u32 %v51, 4294901760
    %3625 = vmatpush1.msra.mxu0 %v3624
    %3626 = vmatprep.subr.mxu0 0.0
    %v3627 = vand.u32 %v52, 4294901760
    %3628 = vmatpush1.msra.mxu0 %v3627
    %3629 = vmatprep.subr.mxu0 0.0
    %v3630 = vand.u32 %v53, 4294901760
    %3631 = vmatpush1.msra.mxu0 %v3630
    %3632 = vmatprep.subr.mxu0 0.0
    %v3633 = vand.u32 %v54, 4294901760
    %3634 = vmatpush1.msra.mxu0 %v3633
    %3635 = vmatprep.subr.mxu0 0.0
    %v3636 = vand.u32 %v55, 4294901760
    %3637 = vmatpush1.msra.mxu0 %v3636
    %3638 = vmatprep.subr.mxu0 0.0
    %v3639 = vand.u32 %v56, 4294901760
    %3640 = vmatpush1.msra.mxu0 %v3639
    %3641 = vmatprep.subr.mxu0 0.0
    %v3642 = vand.u32 %v57, 4294901760
    %3643 = vmatpush1.msra.mxu0 %v3642
    %3644 = vmatprep.subr.mxu0 0.0
    %v3645 = vand.u32 %v58, 4294901760
    %3646 = vmatpush1.msra.mxu0 %v3645
    %3647 = vmatprep.subr.mxu0 0.0
    %v3648 = vand.u32 %v59, 4294901760
    %3649 = vmatpush1.msra.mxu0 %v3648
    %3650 = vmatprep.subr.mxu0 0.0
    %v3651 = vand.u32 %v60, 4294901760
    %3652 = vmatpush1.msra.mxu0 %v3651
    %3653 = vmatprep.subr.mxu0 0.0
    %v3654 = vand.u32 %v61, 4294901760
    %3655 = vmatpush1.msra.mxu0 %v3654
    %3656 = vmatprep.subr.mxu0 0.0
    %v3657 = vand.u32 %v62, 4294901760
    %3658 = vmatpush1.msra.mxu0 %v3657
    %3659 = vmatprep.subr.mxu0 0.0
    %v3660 = vand.u32 %v63, 4294901760
    %3661 = vmatpush1.msra.mxu0 %v3660
    %3662 = vmatprep.subr.mxu0 0.0
    %v3663 = vand.u32 %v64, 4294901760
    %3664 = vmatpush1.msra.mxu0 %v3663
    %3665 = vmatprep.subr.mxu0 0.0
    %v3666 = vand.u32 %v65, 4294901760
    %3667 = vmatpush1.msra.mxu0 %v3666
    %3668 = vmatprep.subr.mxu0 0.0
    %v3669 = vand.u32 %v66, 4294901760
    %3670 = vmatpush1.msra.mxu0 %v3669
    %3671 = vmatprep.subr.mxu0 0.0
    %v3672 = vand.u32 %v67, 4294901760
    %3673 = vmatpush1.msra.mxu0 %v3672
    %3674 = vmatprep.subr.mxu0 0.0
    %v3675 = vand.u32 %v68, 4294901760
    %3676 = vmatpush1.msra.mxu0 %v3675
    %3677 = vmatprep.subr.mxu0 0.0
    %v3678 = vand.u32 %v69, 4294901760
    %3679 = vmatpush1.msra.mxu0 %v3678
    %3680 = vmatprep.subr.mxu0 0.0
    %v3681 = vand.u32 %v70, 4294901760
    %3682 = vmatpush1.msra.mxu0 %v3681
    %3683 = vmatprep.subr.mxu0 0.0
    %v3684 = vand.u32 %v71, 4294901760
    %3685 = vmatpush1.msra.mxu0 %v3684
    %3686 = vmatprep.subr.mxu0 0.0
    %v3687 = vand.u32 %v72, 4294901760
    %3688 = vmatpush1.msra.mxu0 %v3687
    %3689 = vmatprep.subr.mxu0 0.0
    %v3690 = vand.u32 %v73, 4294901760
    %3691 = vmatpush1.msra.mxu0 %v3690
    %v3692 = vand.u32 %v3113, 4294901760
    %v3693 = vsub.f32 %v3113, %v3692
    %v3694 = vand.u32 %v3693, 4294901760
    %3695 = vmatprep.mubr.f32.mxu0 %v3694
    %v3696 = vand.u32 %v2468, 4294901760
    %v3697 = vsub.f32 %v2468, %v3696
    %v3698 = vand.u32 %v3697, 4294901760
    %3699 = vmatmul.mubr.f32.gmra.mrb[0].mxu0 %v3698
    %v3700 = vpop.f32.mrb[0].mxu0
    %v3701 = vadd.f32 %v3593, %v3700
    %v3702 = vpop.f32.mrb[0].mxu0
    %3703 = vdwg.mxu0
    %3704 = vmatprep.subr.mxu0 0.0
    %v3705 = vand.u32 %v42, 4294901760
    %v3706 = vsub.f32 %v42, %v3705
    %v3707 = vand.u32 %v3706, 4294901760
    %3708 = vmatpush1.msra.mxu0 %v3707
    %3709 = vmatprep.subr.mxu0 0.0
    %v3710 = vand.u32 %v43, 4294901760
    %v3711 = vsub.f32 %v43, %v3710
    %v3712 = vand.u32 %v3711, 4294901760
    %3713 = vmatpush1.msra.mxu0 %v3712
    %3714 = vmatprep.subr.mxu0 0.0
    %v3715 = vand.u32 %v44, 4294901760
    %v3716 = vsub.f32 %v44, %v3715
    %v3717 = vand.u32 %v3716, 4294901760
    %3718 = vmatpush1.msra.mxu0 %v3717
    %3719 = vmatprep.subr.mxu0 0.0
    %v3720 = vand.u32 %v45, 4294901760
    %v3721 = vsub.f32 %v45, %v3720
    %v3722 = vand.u32 %v3721, 4294901760
    %3723 = vmatpush1.msra.mxu0 %v3722
    %3724 = vmatprep.subr.mxu0 0.0
    %v3725 = vand.u32 %v46, 4294901760
    %v3726 = vsub.f32 %v46, %v3725
    %v3727 = vand.u32 %v3726, 4294901760
    %3728 = vmatpush1.msra.mxu0 %v3727
    %3729 = vmatprep.subr.mxu0 0.0
    %v3730 = vand.u32 %v47, 4294901760
    %v3731 = vsub.f32 %v47, %v3730
    %v3732 = vand.u32 %v3731, 4294901760
    %3733 = vmatpush1.msra.mxu0 %v3732
    %3734 = vmatprep.subr.mxu0 0.0
    %v3735 = vand.u32 %v48, 4294901760
    %v3736 = vsub.f32 %v48, %v3735
    %v3737 = vand.u32 %v3736, 4294901760
    %3738 = vmatpush1.msra.mxu0 %v3737
    %3739 = vmatprep.subr.mxu0 0.0
    %v3740 = vand.u32 %v49, 4294901760
    %v3741 = vsub.f32 %v49, %v3740
    %v3742 = vand.u32 %v3741, 4294901760
    %3743 = vmatpush1.msra.mxu0 %v3742
    %3744 = vmatprep.subr.mxu0 0.0
    %v3745 = vand.u32 %v50, 4294901760
    %v3746 = vsub.f32 %v50, %v3745
    %v3747 = vand.u32 %v3746, 4294901760
    %3748 = vmatpush1.msra.mxu0 %v3747
    %3749 = vmatprep.subr.mxu0 0.0
    %v3750 = vand.u32 %v51, 4294901760
    %v3751 = vsub.f32 %v51, %v3750
    %v3752 = vand.u32 %v3751, 4294901760
    %3753 = vmatpush1.msra.mxu0 %v3752
    %3754 = vmatprep.subr.mxu0 0.0
    %v3755 = vand.u32 %v52, 4294901760
    %v3756 = vsub.f32 %v52, %v3755
    %v3757 = vand.u32 %v3756, 4294901760
    %3758 = vmatpush1.msra.mxu0 %v3757
    %3759 = vmatprep.subr.mxu0 0.0
    %v3760 = vand.u32 %v53, 4294901760
    %v3761 = vsub.f32 %v53, %v3760
    %v3762 = vand.u32 %v3761, 4294901760
    %3763 = vmatpush1.msra.mxu0 %v3762
    %3764 = vmatprep.subr.mxu0 0.0
    %v3765 = vand.u32 %v54, 4294901760
    %v3766 = vsub.f32 %v54, %v3765
    %v3767 = vand.u32 %v3766, 4294901760
    %3768 = vmatpush1.msra.mxu0 %v3767
    %3769 = vmatprep.subr.mxu0 0.0
    %v3770 = vand.u32 %v55, 4294901760
    %v3771 = vsub.f32 %v55, %v3770
    %v3772 = vand.u32 %v3771, 4294901760
    %3773 = vmatpush1.msra.mxu0 %v3772
    %3774 = vmatprep.subr.mxu0 0.0
    %v3775 = vand.u32 %v56, 4294901760
    %v3776 = vsub.f32 %v56, %v3775
    %v3777 = vand.u32 %v3776, 4294901760
    %3778 = vmatpush1.msra.mxu0 %v3777
    %3779 = vmatprep.subr.mxu0 0.0
    %v3780 = vand.u32 %v57, 4294901760
    %v3781 = vsub.f32 %v57, %v3780
    %v3782 = vand.u32 %v3781, 4294901760
    %3783 = vmatpush1.msra.mxu0 %v3782
    %3784 = vmatprep.subr.mxu0 0.0
    %v3785 = vand.u32 %v58, 4294901760
    %v3786 = vsub.f32 %v58, %v3785
    %v3787 = vand.u32 %v3786, 4294901760
    %3788 = vmatpush1.msra.mxu0 %v3787
    %3789 = vmatprep.subr.mxu0 0.0
    %v3790 = vand.u32 %v59, 4294901760
    %v3791 = vsub.f32 %v59, %v3790
    %v3792 = vand.u32 %v3791, 4294901760
    %3793 = vmatpush1.msra.mxu0 %v3792
    %3794 = vmatprep.subr.mxu0 0.0
    %v3795 = vand.u32 %v60, 4294901760
    %v3796 = vsub.f32 %v60, %v3795
    %v3797 = vand.u32 %v3796, 4294901760
    %3798 = vmatpush1.msra.mxu0 %v3797
    %3799 = vmatprep.subr.mxu0 0.0
    %v3800 = vand.u32 %v61, 4294901760
    %v3801 = vsub.f32 %v61, %v3800
    %v3802 = vand.u32 %v3801, 4294901760
    %3803 = vmatpush1.msra.mxu0 %v3802
    %3804 = vmatprep.subr.mxu0 0.0
    %v3805 = vand.u32 %v62, 4294901760
    %v3806 = vsub.f32 %v62, %v3805
    %v3807 = vand.u32 %v3806, 4294901760
    %3808 = vmatpush1.msra.mxu0 %v3807
    %3809 = vmatprep.subr.mxu0 0.0
    %v3810 = vand.u32 %v63, 4294901760
    %v3811 = vsub.f32 %v63, %v3810
    %v3812 = vand.u32 %v3811, 4294901760
    %3813 = vmatpush1.msra.mxu0 %v3812
    %3814 = vmatprep.subr.mxu0 0.0
    %v3815 = vand.u32 %v64, 4294901760
    %v3816 = vsub.f32 %v64, %v3815
    %v3817 = vand.u32 %v3816, 4294901760
    %3818 = vmatpush1.msra.mxu0 %v3817
    %3819 = vmatprep.subr.mxu0 0.0
    %v3820 = vand.u32 %v65, 4294901760
    %v3821 = vsub.f32 %v65, %v3820
    %v3822 = vand.u32 %v3821, 4294901760
    %3823 = vmatpush1.msra.mxu0 %v3822
    %3824 = vmatprep.subr.mxu0 0.0
    %v3825 = vand.u32 %v66, 4294901760
    %v3826 = vsub.f32 %v66, %v3825
    %v3827 = vand.u32 %v3826, 4294901760
    %3828 = vmatpush1.msra.mxu0 %v3827
    %3829 = vmatprep.subr.mxu0 0.0
    %v3830 = vand.u32 %v67, 4294901760
    %v3831 = vsub.f32 %v67, %v3830
    %v3832 = vand.u32 %v3831, 4294901760
    %3833 = vmatpush1.msra.mxu0 %v3832
    %3834 = vmatprep.subr.mxu0 0.0
    %v3835 = vand.u32 %v68, 4294901760
    %v3836 = vsub.f32 %v68, %v3835
    %v3837 = vand.u32 %v3836, 4294901760
    %3838 = vmatpush1.msra.mxu0 %v3837
    %3839 = vmatprep.subr.mxu0 0.0
    %v3840 = vand.u32 %v69, 4294901760
    %v3841 = vsub.f32 %v69, %v3840
    %v3842 = vand.u32 %v3841, 4294901760
    %3843 = vmatpush1.msra.mxu0 %v3842
    %3844 = vmatprep.subr.mxu0 0.0
    %v3845 = vand.u32 %v70, 4294901760
    %v3846 = vsub.f32 %v70, %v3845
    %v3847 = vand.u32 %v3846, 4294901760
    %3848 = vmatpush1.msra.mxu0 %v3847
    %3849 = vmatprep.subr.mxu0 0.0
    %v3850 = vand.u32 %v71, 4294901760
    %v3851 = vsub.f32 %v71, %v3850
    %v3852 = vand.u32 %v3851, 4294901760
    %3853 = vmatpush1.msra.mxu0 %v3852
    %3854 = vmatprep.subr.mxu0 0.0
    %v3855 = vand.u32 %v72, 4294901760
    %v3856 = vsub.f32 %v72, %v3855
    %v3857 = vand.u32 %v3856, 4294901760
    %3858 = vmatpush1.msra.mxu0 %v3857
    %3859 = vmatprep.subr.mxu0 0.0
    %v3860 = vand.u32 %v73, 4294901760
    %v3861 = vsub.f32 %v73, %v3860
    %v3862 = vand.u32 %v3861, 4294901760
    %3863 = vmatpush1.msra.mxu0 %v3862
    %v3864 = vand.u32 %v3113, 4294901760
    %3865 = vmatprep.mubr.f32.mxu0 %v3864
    %v3866 = vand.u32 %v2468, 4294901760
    %3867 = vmatmul.mubr.f32.gmra.mrb[0].mxu0 %v3866
    %v3868 = vpop.f32.mrb[0].mxu0
    %v3869 = vadd.f32 %v3701, %v3868
    %v3870 = vpop.f32.mrb[0].mxu0
    %3871 = vdwg.mxu0
    %3872 = vmatprep.subr.mxu0 0.0
    %v3873 = vand.u32 %v42, 4294901760
    %3874 = vmatpush1.msra.mxu0 %v3873
    %3875 = vmatprep.subr.mxu0 0.0
    %v3876 = vand.u32 %v43, 4294901760
    %3877 = vmatpush1.msra.mxu0 %v3876
    %3878 = vmatprep.subr.mxu0 0.0
    %v3879 = vand.u32 %v44, 4294901760
    %3880 = vmatpush1.msra.mxu0 %v3879
    %3881 = vmatprep.subr.mxu0 0.0
    %v3882 = vand.u32 %v45, 4294901760
    %3883 = vmatpush1.msra.mxu0 %v3882
    %3884 = vmatprep.subr.mxu0 0.0
    %v3885 = vand.u32 %v46, 4294901760
    %3886 = vmatpush1.msra.mxu0 %v3885
    %3887 = vmatprep.subr.mxu0 0.0
    %v3888 = vand.u32 %v47, 4294901760
    %3889 = vmatpush1.msra.mxu0 %v3888
    %3890 = vmatprep.subr.mxu0 0.0
    %v3891 = vand.u32 %v48, 4294901760
    %3892 = vmatpush1.msra.mxu0 %v3891
    %3893 = vmatprep.subr.mxu0 0.0
    %v3894 = vand.u32 %v49, 4294901760
    %3895 = vmatpush1.msra.mxu0 %v3894
    %3896 = vmatprep.subr.mxu0 0.0
    %v3897 = vand.u32 %v50, 4294901760
    %3898 = vmatpush1.msra.mxu0 %v3897
    %3899 = vmatprep.subr.mxu0 0.0
    %v3900 = vand.u32 %v51, 4294901760
    %3901 = vmatpush1.msra.mxu0 %v3900
    %3902 = vmatprep.subr.mxu0 0.0
    %v3903 = vand.u32 %v52, 4294901760
    %3904 = vmatpush1.msra.mxu0 %v3903
    %3905 = vmatprep.subr.mxu0 0.0
    %v3906 = vand.u32 %v53, 4294901760
    %3907 = vmatpush1.msra.mxu0 %v3906
    %3908 = vmatprep.subr.mxu0 0.0
    %v3909 = vand.u32 %v54, 4294901760
    %3910 = vmatpush1.msra.mxu0 %v3909
    %3911 = vmatprep.subr.mxu0 0.0
    %v3912 = vand.u32 %v55, 4294901760
    %3913 = vmatpush1.msra.mxu0 %v3912
    %3914 = vmatprep.subr.mxu0 0.0
    %v3915 = vand.u32 %v56, 4294901760
    %3916 = vmatpush1.msra.mxu0 %v3915
    %3917 = vmatprep.subr.mxu0 0.0
    %v3918 = vand.u32 %v57, 4294901760
    %3919 = vmatpush1.msra.mxu0 %v3918
    %3920 = vmatprep.subr.mxu0 0.0
    %v3921 = vand.u32 %v58, 4294901760
    %3922 = vmatpush1.msra.mxu0 %v3921
    %3923 = vmatprep.subr.mxu0 0.0
    %v3924 = vand.u32 %v59, 4294901760
    %3925 = vmatpush1.msra.mxu0 %v3924
    %3926 = vmatprep.subr.mxu0 0.0
    %v3927 = vand.u32 %v60, 4294901760
    %3928 = vmatpush1.msra.mxu0 %v3927
    %3929 = vmatprep.subr.mxu0 0.0
    %v3930 = vand.u32 %v61, 4294901760
    %3931 = vmatpush1.msra.mxu0 %v3930
    %3932 = vmatprep.subr.mxu0 0.0
    %v3933 = vand.u32 %v62, 4294901760
    %3934 = vmatpush1.msra.mxu0 %v3933
    %3935 = vmatprep.subr.mxu0 0.0
    %v3936 = vand.u32 %v63, 4294901760
    %3937 = vmatpush1.msra.mxu0 %v3936
    %3938 = vmatprep.subr.mxu0 0.0
    %v3939 = vand.u32 %v64, 4294901760
    %3940 = vmatpush1.msra.mxu0 %v3939
    %3941 = vmatprep.subr.mxu0 0.0
    %v3942 = vand.u32 %v65, 4294901760
    %3943 = vmatpush1.msra.mxu0 %v3942
    %3944 = vmatprep.subr.mxu0 0.0
    %v3945 = vand.u32 %v66, 4294901760
    %3946 = vmatpush1.msra.mxu0 %v3945
    %3947 = vmatprep.subr.mxu0 0.0
    %v3948 = vand.u32 %v67, 4294901760
    %3949 = vmatpush1.msra.mxu0 %v3948
    %3950 = vmatprep.subr.mxu0 0.0
    %v3951 = vand.u32 %v68, 4294901760
    %3952 = vmatpush1.msra.mxu0 %v3951
    %3953 = vmatprep.subr.mxu0 0.0
    %v3954 = vand.u32 %v69, 4294901760
    %3955 = vmatpush1.msra.mxu0 %v3954
    %3956 = vmatprep.subr.mxu0 0.0
    %v3957 = vand.u32 %v70, 4294901760
    %3958 = vmatpush1.msra.mxu0 %v3957
    %3959 = vmatprep.subr.mxu0 0.0
    %v3960 = vand.u32 %v71, 4294901760
    %3961 = vmatpush1.msra.mxu0 %v3960
    %3962 = vmatprep.subr.mxu0 0.0
    %v3963 = vand.u32 %v72, 4294901760
    %3964 = vmatpush1.msra.mxu0 %v3963
    %3965 = vmatprep.subr.mxu0 0.0
    %v3966 = vand.u32 %v73, 4294901760
    %3967 = vmatpush1.msra.mxu0 %v3966
    %v3968 = vand.u32 %v3113, 4294901760
    %3969 = vmatprep.mubr.f32.mxu0 %v3968
    %v3970 = vand.u32 %v2468, 4294901760
    %3971 = vmatmul.mubr.f32.gmra.mrb[0].mxu0 %v3970
    %v3972 = vpop.f32.mrb[0].mxu0
    %v3973 = vadd.f32 %v3869, %v3972
    %v3974 = vpop.f32.mrb[0].mxu0
    %3975 = vdwg.mxu0
    %v3976 = vtanh.pop %v3973
    %v3977 = vmul.f32 %v2468, 0.9
    %v3978 = vmul.f32 %v3976, 0.1
    %v3979 = vadd.f32 %v3977, %v3978
    %3980 = vmatprep.subr.mxu0 0.0
    %v3981 = vand.u32 %v74, 4294901760
    %3982 = vmatpush1.msra.mxu0 %v3981
    %3983 = vmatprep.subr.mxu0 0.0
    %v3984 = vand.u32 %v75, 4294901760
    %3985 = vmatpush1.msra.mxu0 %v3984
    %3986 = vmatprep.subr.mxu0 0.0
    %v3987 = vand.u32 %v76, 4294901760
    %3988 = vmatpush1.msra.mxu0 %v3987
    %3989 = vmatprep.subr.mxu0 0.0
    %v3990 = vand.u32 %v77, 4294901760
    %3991 = vmatpush1.msra.mxu0 %v3990
    %3992 = vmatprep.subr.mxu0 0.0
    %v3993 = vand.u32 %v78, 4294901760
    %3994 = vmatpush1.msra.mxu0 %v3993
    %3995 = vmatprep.subr.mxu0 0.0
    %v3996 = vand.u32 %v79, 4294901760
    %3997 = vmatpush1.msra.mxu0 %v3996
    %3998 = vmatprep.subr.mxu0 0.0
    %v3999 = vand.u32 %v80, 4294901760
    %4000 = vmatpush1.msra.mxu0 %v3999
    %4001 = vmatprep.subr.mxu0 0.0
    %v4002 = vand.u32 %v81, 4294901760
    %4003 = vmatpush1.msra.mxu0 %v4002
    %4004 = vmatprep.subr.mxu0 0.0
    %v4005 = vand.u32 %v82, 4294901760
    %4006 = vmatpush1.msra.mxu0 %v4005
    %4007 = vmatprep.subr.mxu0 0.0
    %v4008 = vand.u32 %v83, 4294901760
    %4009 = vmatpush1.msra.mxu0 %v4008
    %4010 = vmatprep.subr.mxu0 0.0
    %v4011 = vand.u32 %v84, 4294901760
    %4012 = vmatpush1.msra.mxu0 %v4011
    %4013 = vmatprep.subr.mxu0 0.0
    %v4014 = vand.u32 %v85, 4294901760
    %4015 = vmatpush1.msra.mxu0 %v4014
    %4016 = vmatprep.subr.mxu0 0.0
    %v4017 = vand.u32 %v86, 4294901760
    %4018 = vmatpush1.msra.mxu0 %v4017
    %4019 = vmatprep.subr.mxu0 0.0
    %v4020 = vand.u32 %v87, 4294901760
    %4021 = vmatpush1.msra.mxu0 %v4020
    %4022 = vmatprep.subr.mxu0 0.0
    %v4023 = vand.u32 %v88, 4294901760
    %4024 = vmatpush1.msra.mxu0 %v4023
    %4025 = vmatprep.subr.mxu0 0.0
    %v4026 = vand.u32 %v89, 4294901760
    %4027 = vmatpush1.msra.mxu0 %v4026
    %4028 = vmatprep.subr.mxu0 0.0
    %4029 = vmatpush1.msra.mxu0 0.0
    %4030 = vmatprep.subr.mxu0 0.0
    %4031 = vmatpush1.msra.mxu0 0.0
    %4032 = vmatprep.subr.mxu0 0.0
    %4033 = vmatpush1.msra.mxu0 0.0
    %4034 = vmatprep.subr.mxu0 0.0
    %4035 = vmatpush1.msra.mxu0 0.0
    %4036 = vmatprep.subr.mxu0 0.0
    %4037 = vmatpush1.msra.mxu0 0.0
    %4038 = vmatprep.subr.mxu0 0.0
    %4039 = vmatpush1.msra.mxu0 0.0
    %4040 = vmatprep.subr.mxu0 0.0
    %4041 = vmatpush1.msra.mxu0 0.0
    %4042 = vmatprep.subr.mxu0 0.0
    %4043 = vmatpush1.msra.mxu0 0.0
    %4044 = vmatprep.subr.mxu0 0.0
    %4045 = vmatpush1.msra.mxu0 0.0
    %4046 = vmatprep.subr.mxu0 0.0
    %4047 = vmatpush1.msra.mxu0 0.0
    %4048 = vmatprep.subr.mxu0 0.0
    %4049 = vmatpush1.msra.mxu0 0.0
    %4050 = vmatprep.subr.mxu0 0.0
    %4051 = vmatpush1.msra.mxu0 0.0
    %4052 = vmatprep.subr.mxu0 0.0
    %4053 = vmatpush1.msra.mxu0 0.0
    %4054 = vmatprep.subr.mxu0 0.0
    %4055 = vmatpush1.msra.mxu0 0.0
    %4056 = vmatprep.subr.mxu0 0.0
    %4057 = vmatpush1.msra.mxu0 0.0
    %4058 = vmatprep.subr.mxu0 0.0
    %4059 = vmatpush1.msra.mxu0 0.0
    %4060 = vmatprep.mubr.f32.mxu0 0.0
    %v4061 = vand.u32 %v3979, 4294901760
    %v4062 = vsub.f32 %v3979, %v4061
    %v4063 = vand.u32 %v4062, 4294901760
    %v4064 = vsub.f32 %v4062, %v4063
    %v4065 = vand.u32 %v4064, 4294901760
    %4066 = vmatmul.mubr.f32.gmra.mrb[0].mxu0 %v4065
    %v4067 = vpop.f32.mrb[0].mxu0
    %v4068 = vadd.f32 %v90, %v4067
    %v4069 = vpop.f32.mrb[0].mxu0
    %4070 = vdwg.mxu0
    %4071 = vmatprep.subr.mxu0 0.0
    %v4072 = vand.u32 %v74, 4294901760
    %v4073 = vsub.f32 %v74, %v4072
    %v4074 = vand.u32 %v4073, 4294901760
    %v4075 = vsub.f32 %v4073, %v4074
    %v4076 = vand.u32 %v4075, 4294901760
    %4077 = vmatpush1.msra.mxu0 %v4076
    %4078 = vmatprep.subr.mxu0 0.0
    %v4079 = vand.u32 %v75, 4294901760
    %v4080 = vsub.f32 %v75, %v4079
    %v4081 = vand.u32 %v4080, 4294901760
    %v4082 = vsub.f32 %v4080, %v4081
    %v4083 = vand.u32 %v4082, 4294901760
    %4084 = vmatpush1.msra.mxu0 %v4083
    %4085 = vmatprep.subr.mxu0 0.0
    %v4086 = vand.u32 %v76, 4294901760
    %v4087 = vsub.f32 %v76, %v4086
    %v4088 = vand.u32 %v4087, 4294901760
    %v4089 = vsub.f32 %v4087, %v4088
    %v4090 = vand.u32 %v4089, 4294901760
    %4091 = vmatpush1.msra.mxu0 %v4090
    %4092 = vmatprep.subr.mxu0 0.0
    %v4093 = vand.u32 %v77, 4294901760
    %v4094 = vsub.f32 %v77, %v4093
    %v4095 = vand.u32 %v4094, 4294901760
    %v4096 = vsub.f32 %v4094, %v4095
    %v4097 = vand.u32 %v4096, 4294901760
    %4098 = vmatpush1.msra.mxu0 %v4097
    %4099 = vmatprep.subr.mxu0 0.0
    %v4100 = vand.u32 %v78, 4294901760
    %v4101 = vsub.f32 %v78, %v4100
    %v4102 = vand.u32 %v4101, 4294901760
    %v4103 = vsub.f32 %v4101, %v4102
    %v4104 = vand.u32 %v4103, 4294901760
    %4105 = vmatpush1.msra.mxu0 %v4104
    %4106 = vmatprep.subr.mxu0 0.0
    %v4107 = vand.u32 %v79, 4294901760
    %v4108 = vsub.f32 %v79, %v4107
    %v4109 = vand.u32 %v4108, 4294901760
    %v4110 = vsub.f32 %v4108, %v4109
    %v4111 = vand.u32 %v4110, 4294901760
    %4112 = vmatpush1.msra.mxu0 %v4111
    %4113 = vmatprep.subr.mxu0 0.0
    %v4114 = vand.u32 %v80, 4294901760
    %v4115 = vsub.f32 %v80, %v4114
    %v4116 = vand.u32 %v4115, 4294901760
    %v4117 = vsub.f32 %v4115, %v4116
    %v4118 = vand.u32 %v4117, 4294901760
    %4119 = vmatpush1.msra.mxu0 %v4118
    %4120 = vmatprep.subr.mxu0 0.0
    %v4121 = vand.u32 %v81, 4294901760
    %v4122 = vsub.f32 %v81, %v4121
    %v4123 = vand.u32 %v4122, 4294901760
    %v4124 = vsub.f32 %v4122, %v4123
    %v4125 = vand.u32 %v4124, 4294901760
    %4126 = vmatpush1.msra.mxu0 %v4125
    %4127 = vmatprep.subr.mxu0 0.0
    %v4128 = vand.u32 %v82, 4294901760
    %v4129 = vsub.f32 %v82, %v4128
    %v4130 = vand.u32 %v4129, 4294901760
    %v4131 = vsub.f32 %v4129, %v4130
    %v4132 = vand.u32 %v4131, 4294901760
    %4133 = vmatpush1.msra.mxu0 %v4132
    %4134 = vmatprep.subr.mxu0 0.0
    %v4135 = vand.u32 %v83, 4294901760
    %v4136 = vsub.f32 %v83, %v4135
    %v4137 = vand.u32 %v4136, 4294901760
    %v4138 = vsub.f32 %v4136, %v4137
    %v4139 = vand.u32 %v4138, 4294901760
    %4140 = vmatpush1.msra.mxu0 %v4139
    %4141 = vmatprep.subr.mxu0 0.0
    %v4142 = vand.u32 %v84, 4294901760
    %v4143 = vsub.f32 %v84, %v4142
    %v4144 = vand.u32 %v4143, 4294901760
    %v4145 = vsub.f32 %v4143, %v4144
    %v4146 = vand.u32 %v4145, 4294901760
    %4147 = vmatpush1.msra.mxu0 %v4146
    %4148 = vmatprep.subr.mxu0 0.0
    %v4149 = vand.u32 %v85, 4294901760
    %v4150 = vsub.f32 %v85, %v4149
    %v4151 = vand.u32 %v4150, 4294901760
    %v4152 = vsub.f32 %v4150, %v4151
    %v4153 = vand.u32 %v4152, 4294901760
    %4154 = vmatpush1.msra.mxu0 %v4153
    %4155 = vmatprep.subr.mxu0 0.0
    %v4156 = vand.u32 %v86, 4294901760
    %v4157 = vsub.f32 %v86, %v4156
    %v4158 = vand.u32 %v4157, 4294901760
    %v4159 = vsub.f32 %v4157, %v4158
    %v4160 = vand.u32 %v4159, 4294901760
    %4161 = vmatpush1.msra.mxu0 %v4160
    %4162 = vmatprep.subr.mxu0 0.0
    %v4163 = vand.u32 %v87, 4294901760
    %v4164 = vsub.f32 %v87, %v4163
    %v4165 = vand.u32 %v4164, 4294901760
    %v4166 = vsub.f32 %v4164, %v4165
    %v4167 = vand.u32 %v4166, 4294901760
    %4168 = vmatpush1.msra.mxu0 %v4167
    %4169 = vmatprep.subr.mxu0 0.0
    %v4170 = vand.u32 %v88, 4294901760
    %v4171 = vsub.f32 %v88, %v4170
    %v4172 = vand.u32 %v4171, 4294901760
    %v4173 = vsub.f32 %v4171, %v4172
    %v4174 = vand.u32 %v4173, 4294901760
    %4175 = vmatpush1.msra.mxu0 %v4174
    %4176 = vmatprep.subr.mxu0 0.0
    %v4177 = vand.u32 %v89, 4294901760
    %v4178 = vsub.f32 %v89, %v4177
    %v4179 = vand.u32 %v4178, 4294901760
    %v4180 = vsub.f32 %v4178, %v4179
    %v4181 = vand.u32 %v4180, 4294901760
    %4182 = vmatpush1.msra.mxu0 %v4181
    %4183 = vmatprep.subr.mxu0 0.0
    %4184 = vmatpush1.msra.mxu0 0.0
    %4185 = vmatprep.subr.mxu0 0.0
    %4186 = vmatpush1.msra.mxu0 0.0
    %4187 = vmatprep.subr.mxu0 0.0
    %4188 = vmatpush1.msra.mxu0 0.0
    %4189 = vmatprep.subr.mxu0 0.0
    %4190 = vmatpush1.msra.mxu0 0.0
    %4191 = vmatprep.subr.mxu0 0.0
    %4192 = vmatpush1.msra.mxu0 0.0
    %4193 = vmatprep.subr.mxu0 0.0
    %4194 = vmatpush1.msra.mxu0 0.0
    %4195 = vmatprep.subr.mxu0 0.0
    %4196 = vmatpush1.msra.mxu0 0.0
    %4197 = vmatprep.subr.mxu0 0.0
    %4198 = vmatpush1.msra.mxu0 0.0
    %4199 = vmatprep.subr.mxu0 0.0
    %4200 = vmatpush1.msra.mxu0 0.0
    %4201 = vmatprep.subr.mxu0 0.0
    %4202 = vmatpush1.msra.mxu0 0.0
    %4203 = vmatprep.subr.mxu0 0.0
    %4204 = vmatpush1.msra.mxu0 0.0
    %4205 = vmatprep.subr.mxu0 0.0
    %4206 = vmatpush1.msra.mxu0 0.0
    %4207 = vmatprep.subr.mxu0 0.0
    %4208 = vmatpush1.msra.mxu0 0.0
    %4209 = vmatprep.subr.mxu0 0.0
    %4210 = vmatpush1.msra.mxu0 0.0
    %4211 = vmatprep.subr.mxu0 0.0
    %4212 = vmatpush1.msra.mxu0 0.0
    %4213 = vmatprep.subr.mxu0 0.0
    %4214 = vmatpush1.msra.mxu0 0.0
    %4215 = vmatprep.mubr.f32.mxu0 0.0
    %v4216 = vand.u32 %v3979, 4294901760
    %4217 = vmatmul.mubr.f32.gmra.mrb[0].mxu0 %v4216
    %v4218 = vpop.f32.mrb[0].mxu0
    %v4219 = vadd.f32 %v4068, %v4218
    %v4220 = vpop.f32.mrb[0].mxu0
    %4221 = vdwg.mxu0
    %4222 = vmatprep.subr.mxu0 0.0
    %v4223 = vand.u32 %v74, 4294901760
    %v4224 = vsub.f32 %v74, %v4223
    %4225 = vmatpush1.msra.mxu0 %v4224
    %4226 = vmatprep.subr.mxu0 0.0
    %v4227 = vand.u32 %v75, 4294901760
    %v4228 = vsub.f32 %v75, %v4227
    %4229 = vmatpush1.msra.mxu0 %v4228
    %4230 = vmatprep.subr.mxu0 0.0
    %v4231 = vand.u32 %v76, 4294901760
    %v4232 = vsub.f32 %v76, %v4231
    %4233 = vmatpush1.msra.mxu0 %v4232
    %4234 = vmatprep.subr.mxu0 0.0
    %v4235 = vand.u32 %v77, 4294901760
    %v4236 = vsub.f32 %v77, %v4235
    %4237 = vmatpush1.msra.mxu0 %v4236
    %4238 = vmatprep.subr.mxu0 0.0
    %v4239 = vand.u32 %v78, 4294901760
    %v4240 = vsub.f32 %v78, %v4239
    %4241 = vmatpush1.msra.mxu0 %v4240
    %4242 = vmatprep.subr.mxu0 0.0
    %v4243 = vand.u32 %v79, 4294901760
    %v4244 = vsub.f32 %v79, %v4243
    %4245 = vmatpush1.msra.mxu0 %v4244
    %4246 = vmatprep.subr.mxu0 0.0
    %v4247 = vand.u32 %v80, 4294901760
    %v4248 = vsub.f32 %v80, %v4247
    %4249 = vmatpush1.msra.mxu0 %v4248
    %4250 = vmatprep.subr.mxu0 0.0
    %v4251 = vand.u32 %v81, 4294901760
    %v4252 = vsub.f32 %v81, %v4251
    %4253 = vmatpush1.msra.mxu0 %v4252
    %4254 = vmatprep.subr.mxu0 0.0
    %v4255 = vand.u32 %v82, 4294901760
    %v4256 = vsub.f32 %v82, %v4255
    %4257 = vmatpush1.msra.mxu0 %v4256
    %4258 = vmatprep.subr.mxu0 0.0
    %v4259 = vand.u32 %v83, 4294901760
    %v4260 = vsub.f32 %v83, %v4259
    %4261 = vmatpush1.msra.mxu0 %v4260
    %4262 = vmatprep.subr.mxu0 0.0
    %v4263 = vand.u32 %v84, 4294901760
    %v4264 = vsub.f32 %v84, %v4263
    %4265 = vmatpush1.msra.mxu0 %v4264
    %4266 = vmatprep.subr.mxu0 0.0
    %v4267 = vand.u32 %v85, 4294901760
    %v4268 = vsub.f32 %v85, %v4267
    %4269 = vmatpush1.msra.mxu0 %v4268
    %4270 = vmatprep.subr.mxu0 0.0
    %v4271 = vand.u32 %v86, 4294901760
    %v4272 = vsub.f32 %v86, %v4271
    %4273 = vmatpush1.msra.mxu0 %v4272
    %4274 = vmatprep.subr.mxu0 0.0
    %v4275 = vand.u32 %v87, 4294901760
    %v4276 = vsub.f32 %v87, %v4275
    %4277 = vmatpush1.msra.mxu0 %v4276
    %4278 = vmatprep.subr.mxu0 0.0
    %v4279 = vand.u32 %v88, 4294901760
    %v4280 = vsub.f32 %v88, %v4279
    %4281 = vmatpush1.msra.mxu0 %v4280
    %4282 = vmatprep.subr.mxu0 0.0
    %v4283 = vand.u32 %v89, 4294901760
    %v4284 = vsub.f32 %v89, %v4283
    %4285 = vmatpush1.msra.mxu0 %v4284
    %4286 = vmatprep.subr.mxu0 0.0
    %4287 = vmatpush1.msra.mxu0 0.0
    %4288 = vmatprep.subr.mxu0 0.0
    %4289 = vmatpush1.msra.mxu0 0.0
    %4290 = vmatprep.subr.mxu0 0.0
    %4291 = vmatpush1.msra.mxu0 0.0
    %4292 = vmatprep.subr.mxu0 0.0
    %4293 = vmatpush1.msra.mxu0 0.0
    %4294 = vmatprep.subr.mxu0 0.0
    %4295 = vmatpush1.msra.mxu0 0.0
    %4296 = vmatprep.subr.mxu0 0.0
    %4297 = vmatpush1.msra.mxu0 0.0
    %4298 = vmatprep.subr.mxu0 0.0
    %4299 = vmatpush1.msra.mxu0 0.0
    %4300 = vmatprep.subr.mxu0 0.0
    %4301 = vmatpush1.msra.mxu0 0.0
    %4302 = vmatprep.subr.mxu0 0.0
    %4303 = vmatpush1.msra.mxu0 0.0
    %4304 = vmatprep.subr.mxu0 0.0
    %4305 = vmatpush1.msra.mxu0 0.0
    %4306 = vmatprep.subr.mxu0 0.0
    %4307 = vmatpush1.msra.mxu0 0.0
    %4308 = vmatprep.subr.mxu0 0.0
    %4309 = vmatpush1.msra.mxu0 0.0
    %4310 = vmatprep.subr.mxu0 0.0
    %4311 = vmatpush1.msra.mxu0 0.0
    %4312 = vmatprep.subr.mxu0 0.0
    %4313 = vmatpush1.msra.mxu0 0.0
    %4314 = vmatprep.subr.mxu0 0.0
    %4315 = vmatpush1.msra.mxu0 0.0
    %4316 = vmatprep.subr.mxu0 0.0
    %4317 = vmatpush1.msra.mxu0 0.0
    %4318 = vmatprep.mubr.f32.mxu0 0.0
    %v4319 = vand.u32 %v3979, 4294901760
    %v4320 = vsub.f32 %v3979, %v4319
    %4321 = vmatmul.mubr.f32.gmra.mrb[0].mxu0 %v4320
    %v4322 = vpop.f32.mrb[0].mxu0
    %v4323 = vadd.f32 %v4219, %v4322
    %v4324 = vpop.f32.mrb[0].mxu0
    %4325 = vdwg.mxu0
    %4326 = vmatprep.subr.mxu0 0.0
    %v4327 = vand.u32 %v74, 4294901760
    %4328 = vmatpush1.msra.mxu0 %v4327
    %4329 = vmatprep.subr.mxu0 0.0
    %v4330 = vand.u32 %v75, 4294901760
    %4331 = vmatpush1.msra.mxu0 %v4330
    %4332 = vmatprep.subr.mxu0 0.0
    %v4333 = vand.u32 %v76, 4294901760
    %4334 = vmatpush1.msra.mxu0 %v4333
    %4335 = vmatprep.subr.mxu0 0.0
    %v4336 = vand.u32 %v77, 4294901760
    %4337 = vmatpush1.msra.mxu0 %v4336
    %4338 = vmatprep.subr.mxu0 0.0
    %v4339 = vand.u32 %v78, 4294901760
    %4340 = vmatpush1.msra.mxu0 %v4339
    %4341 = vmatprep.subr.mxu0 0.0
    %v4342 = vand.u32 %v79, 4294901760
    %4343 = vmatpush1.msra.mxu0 %v4342
    %4344 = vmatprep.subr.mxu0 0.0
    %v4345 = vand.u32 %v80, 4294901760
    %4346 = vmatpush1.msra.mxu0 %v4345
    %4347 = vmatprep.subr.mxu0 0.0
    %v4348 = vand.u32 %v81, 4294901760
    %4349 = vmatpush1.msra.mxu0 %v4348
    %4350 = vmatprep.subr.mxu0 0.0
    %v4351 = vand.u32 %v82, 4294901760
    %4352 = vmatpush1.msra.mxu0 %v4351
    %4353 = vmatprep.subr.mxu0 0.0
    %v4354 = vand.u32 %v83, 4294901760
    %4355 = vmatpush1.msra.mxu0 %v4354
    %4356 = vmatprep.subr.mxu0 0.0
    %v4357 = vand.u32 %v84, 4294901760
    %4358 = vmatpush1.msra.mxu0 %v4357
    %4359 = vmatprep.subr.mxu0 0.0
    %v4360 = vand.u32 %v85, 4294901760
    %4361 = vmatpush1.msra.mxu0 %v4360
    %4362 = vmatprep.subr.mxu0 0.0
    %v4363 = vand.u32 %v86, 4294901760
    %4364 = vmatpush1.msra.mxu0 %v4363
    %4365 = vmatprep.subr.mxu0 0.0
    %v4366 = vand.u32 %v87, 4294901760
    %4367 = vmatpush1.msra.mxu0 %v4366
    %4368 = vmatprep.subr.mxu0 0.0
    %v4369 = vand.u32 %v88, 4294901760
    %4370 = vmatpush1.msra.mxu0 %v4369
    %4371 = vmatprep.subr.mxu0 0.0
    %v4372 = vand.u32 %v89, 4294901760
    %4373 = vmatpush1.msra.mxu0 %v4372
    %4374 = vmatprep.subr.mxu0 0.0
    %4375 = vmatpush1.msra.mxu0 0.0
    %4376 = vmatprep.subr.mxu0 0.0
    %4377 = vmatpush1.msra.mxu0 0.0
    %4378 = vmatprep.subr.mxu0 0.0
    %4379 = vmatpush1.msra.mxu0 0.0
    %4380 = vmatprep.subr.mxu0 0.0
    %4381 = vmatpush1.msra.mxu0 0.0
    %4382 = vmatprep.subr.mxu0 0.0
    %4383 = vmatpush1.msra.mxu0 0.0
    %4384 = vmatprep.subr.mxu0 0.0
    %4385 = vmatpush1.msra.mxu0 0.0
    %4386 = vmatprep.subr.mxu0 0.0
    %4387 = vmatpush1.msra.mxu0 0.0
    %4388 = vmatprep.subr.mxu0 0.0
    %4389 = vmatpush1.msra.mxu0 0.0
    %4390 = vmatprep.subr.mxu0 0.0
    %4391 = vmatpush1.msra.mxu0 0.0
    %4392 = vmatprep.subr.mxu0 0.0
    %4393 = vmatpush1.msra.mxu0 0.0
    %4394 = vmatprep.subr.mxu0 0.0
    %4395 = vmatpush1.msra.mxu0 0.0
    %4396 = vmatprep.subr.mxu0 0.0
    %4397 = vmatpush1.msra.mxu0 0.0
    %4398 = vmatprep.subr.mxu0 0.0
    %4399 = vmatpush1.msra.mxu0 0.0
    %4400 = vmatprep.subr.mxu0 0.0
    %4401 = vmatpush1.msra.mxu0 0.0
    %4402 = vmatprep.subr.mxu0 0.0
    %4403 = vmatpush1.msra.mxu0 0.0
    %4404 = vmatprep.subr.mxu0 0.0
    %4405 = vmatpush1.msra.mxu0 0.0
    %4406 = vmatprep.mubr.f32.mxu0 0.0
    %v4407 = vand.u32 %v3979, 4294901760
    %v4408 = vsub.f32 %v3979, %v4407
    %v4409 = vand.u32 %v4408, 4294901760
    %4410 = vmatmul.mubr.f32.gmra.mrb[0].mxu0 %v4409
    %v4411 = vpop.f32.mrb[0].mxu0
    %v4412 = vadd.f32 %v4323, %v4411
    %v4413 = vpop.f32.mrb[0].mxu0
    %4414 = vdwg.mxu0
    %4415 = vmatprep.subr.mxu0 0.0
    %v4416 = vand.u32 %v74, 4294901760
    %v4417 = vsub.f32 %v74, %v4416
    %v4418 = vand.u32 %v4417, 4294901760
    %4419 = vmatpush1.msra.mxu0 %v4418
    %4420 = vmatprep.subr.mxu0 0.0
    %v4421 = vand.u32 %v75, 4294901760
    %v4422 = vsub.f32 %v75, %v4421
    %v4423 = vand.u32 %v4422, 4294901760
    %4424 = vmatpush1.msra.mxu0 %v4423
    %4425 = vmatprep.subr.mxu0 0.0
    %v4426 = vand.u32 %v76, 4294901760
    %v4427 = vsub.f32 %v76, %v4426
    %v4428 = vand.u32 %v4427, 4294901760
    %4429 = vmatpush1.msra.mxu0 %v4428
    %4430 = vmatprep.subr.mxu0 0.0
    %v4431 = vand.u32 %v77, 4294901760
    %v4432 = vsub.f32 %v77, %v4431
    %v4433 = vand.u32 %v4432, 4294901760
    %4434 = vmatpush1.msra.mxu0 %v4433
    %4435 = vmatprep.subr.mxu0 0.0
    %v4436 = vand.u32 %v78, 4294901760
    %v4437 = vsub.f32 %v78, %v4436
    %v4438 = vand.u32 %v4437, 4294901760
    %4439 = vmatpush1.msra.mxu0 %v4438
    %4440 = vmatprep.subr.mxu0 0.0
    %v4441 = vand.u32 %v79, 4294901760
    %v4442 = vsub.f32 %v79, %v4441
    %v4443 = vand.u32 %v4442, 4294901760
    %4444 = vmatpush1.msra.mxu0 %v4443
    %4445 = vmatprep.subr.mxu0 0.0
    %v4446 = vand.u32 %v80, 4294901760
    %v4447 = vsub.f32 %v80, %v4446
    %v4448 = vand.u32 %v4447, 4294901760
    %4449 = vmatpush1.msra.mxu0 %v4448
    %4450 = vmatprep.subr.mxu0 0.0
    %v4451 = vand.u32 %v81, 4294901760
    %v4452 = vsub.f32 %v81, %v4451
    %v4453 = vand.u32 %v4452, 4294901760
    %4454 = vmatpush1.msra.mxu0 %v4453
    %4455 = vmatprep.subr.mxu0 0.0
    %v4456 = vand.u32 %v82, 4294901760
    %v4457 = vsub.f32 %v82, %v4456
    %v4458 = vand.u32 %v4457, 4294901760
    %4459 = vmatpush1.msra.mxu0 %v4458
    %4460 = vmatprep.subr.mxu0 0.0
    %v4461 = vand.u32 %v83, 4294901760
    %v4462 = vsub.f32 %v83, %v4461
    %v4463 = vand.u32 %v4462, 4294901760
    %4464 = vmatpush1.msra.mxu0 %v4463
    %4465 = vmatprep.subr.mxu0 0.0
    %v4466 = vand.u32 %v84, 4294901760
    %v4467 = vsub.f32 %v84, %v4466
    %v4468 = vand.u32 %v4467, 4294901760
    %4469 = vmatpush1.msra.mxu0 %v4468
    %4470 = vmatprep.subr.mxu0 0.0
    %v4471 = vand.u32 %v85, 4294901760
    %v4472 = vsub.f32 %v85, %v4471
    %v4473 = vand.u32 %v4472, 4294901760
    %4474 = vmatpush1.msra.mxu0 %v4473
    %4475 = vmatprep.subr.mxu0 0.0
    %v4476 = vand.u32 %v86, 4294901760
    %v4477 = vsub.f32 %v86, %v4476
    %v4478 = vand.u32 %v4477, 4294901760
    %4479 = vmatpush1.msra.mxu0 %v4478
    %4480 = vmatprep.subr.mxu0 0.0
    %v4481 = vand.u32 %v87, 4294901760
    %v4482 = vsub.f32 %v87, %v4481
    %v4483 = vand.u32 %v4482, 4294901760
    %4484 = vmatpush1.msra.mxu0 %v4483
    %4485 = vmatprep.subr.mxu0 0.0
    %v4486 = vand.u32 %v88, 4294901760
    %v4487 = vsub.f32 %v88, %v4486
    %v4488 = vand.u32 %v4487, 4294901760
    %4489 = vmatpush1.msra.mxu0 %v4488
    %4490 = vmatprep.subr.mxu0 0.0
    %v4491 = vand.u32 %v89, 4294901760
    %v4492 = vsub.f32 %v89, %v4491
    %v4493 = vand.u32 %v4492, 4294901760
    %4494 = vmatpush1.msra.mxu0 %v4493
    %4495 = vmatprep.subr.mxu0 0.0
    %4496 = vmatpush1.msra.mxu0 0.0
    %4497 = vmatprep.subr.mxu0 0.0
    %4498 = vmatpush1.msra.mxu0 0.0
    %4499 = vmatprep.subr.mxu0 0.0
    %4500 = vmatpush1.msra.mxu0 0.0
    %4501 = vmatprep.subr.mxu0 0.0
    %4502 = vmatpush1.msra.mxu0 0.0
    %4503 = vmatprep.subr.mxu0 0.0
    %4504 = vmatpush1.msra.mxu0 0.0
    %4505 = vmatprep.subr.mxu0 0.0
    %4506 = vmatpush1.msra.mxu0 0.0
    %4507 = vmatprep.subr.mxu0 0.0
    %4508 = vmatpush1.msra.mxu0 0.0
    %4509 = vmatprep.subr.mxu0 0.0
    %4510 = vmatpush1.msra.mxu0 0.0
    %4511 = vmatprep.subr.mxu0 0.0
    %4512 = vmatpush1.msra.mxu0 0.0
    %4513 = vmatprep.subr.mxu0 0.0
    %4514 = vmatpush1.msra.mxu0 0.0
    %4515 = vmatprep.subr.mxu0 0.0
    %4516 = vmatpush1.msra.mxu0 0.0
    %4517 = vmatprep.subr.mxu0 0.0
    %4518 = vmatpush1.msra.mxu0 0.0
    %4519 = vmatprep.subr.mxu0 0.0
    %4520 = vmatpush1.msra.mxu0 0.0
    %4521 = vmatprep.subr.mxu0 0.0
    %4522 = vmatpush1.msra.mxu0 0.0
    %4523 = vmatprep.subr.mxu0 0.0
    %4524 = vmatpush1.msra.mxu0 0.0
    %4525 = vmatprep.subr.mxu0 0.0
    %4526 = vmatpush1.msra.mxu0 0.0
    %4527 = vmatprep.mubr.f32.mxu0 0.0
    %v4528 = vand.u32 %v3979, 4294901760
    %4529 = vmatmul.mubr.f32.gmra.mrb[0].mxu0 %v4528
    %v4530 = vpop.f32.mrb[0].mxu0
    %v4531 = vadd.f32 %v4412, %v4530
    %v4532 = vpop.f32.mrb[0].mxu0
    %4533 = vdwg.mxu0
    %4534 = vmatprep.subr.mxu0 0.0
    %v4535 = vand.u32 %v74, 4294901760
    %4536 = vmatpush1.msra.mxu0 %v4535
    %4537 = vmatprep.subr.mxu0 0.0
    %v4538 = vand.u32 %v75, 4294901760
    %4539 = vmatpush1.msra.mxu0 %v4538
    %4540 = vmatprep.subr.mxu0 0.0
    %v4541 = vand.u32 %v76, 4294901760
    %4542 = vmatpush1.msra.mxu0 %v4541
    %4543 = vmatprep.subr.mxu0 0.0
    %v4544 = vand.u32 %v77, 4294901760
    %4545 = vmatpush1.msra.mxu0 %v4544
    %4546 = vmatprep.subr.mxu0 0.0
    %v4547 = vand.u32 %v78, 4294901760
    %4548 = vmatpush1.msra.mxu0 %v4547
    %4549 = vmatprep.subr.mxu0 0.0
    %v4550 = vand.u32 %v79, 4294901760
    %4551 = vmatpush1.msra.mxu0 %v4550
    %4552 = vmatprep.subr.mxu0 0.0
    %v4553 = vand.u32 %v80, 4294901760
    %4554 = vmatpush1.msra.mxu0 %v4553
    %4555 = vmatprep.subr.mxu0 0.0
    %v4556 = vand.u32 %v81, 4294901760
    %4557 = vmatpush1.msra.mxu0 %v4556
    %4558 = vmatprep.subr.mxu0 0.0
    %v4559 = vand.u32 %v82, 4294901760
    %4560 = vmatpush1.msra.mxu0 %v4559
    %4561 = vmatprep.subr.mxu0 0.0
    %v4562 = vand.u32 %v83, 4294901760
    %4563 = vmatpush1.msra.mxu0 %v4562
    %4564 = vmatprep.subr.mxu0 0.0
    %v4565 = vand.u32 %v84, 4294901760
    %4566 = vmatpush1.msra.mxu0 %v4565
    %4567 = vmatprep.subr.mxu0 0.0
    %v4568 = vand.u32 %v85, 4294901760
    %4569 = vmatpush1.msra.mxu0 %v4568
    %4570 = vmatprep.subr.mxu0 0.0
    %v4571 = vand.u32 %v86, 4294901760
    %4572 = vmatpush1.msra.mxu0 %v4571
    %4573 = vmatprep.subr.mxu0 0.0
    %v4574 = vand.u32 %v87, 4294901760
    %4575 = vmatpush1.msra.mxu0 %v4574
    %4576 = vmatprep.subr.mxu0 0.0
    %v4577 = vand.u32 %v88, 4294901760
    %4578 = vmatpush1.msra.mxu0 %v4577
    %4579 = vmatprep.subr.mxu0 0.0
    %v4580 = vand.u32 %v89, 4294901760
    %4581 = vmatpush1.msra.mxu0 %v4580
    %4582 = vmatprep.subr.mxu0 0.0
    %4583 = vmatpush1.msra.mxu0 0.0
    %4584 = vmatprep.subr.mxu0 0.0
    %4585 = vmatpush1.msra.mxu0 0.0
    %4586 = vmatprep.subr.mxu0 0.0
    %4587 = vmatpush1.msra.mxu0 0.0
    %4588 = vmatprep.subr.mxu0 0.0
    %4589 = vmatpush1.msra.mxu0 0.0
    %4590 = vmatprep.subr.mxu0 0.0
    %4591 = vmatpush1.msra.mxu0 0.0
    %4592 = vmatprep.subr.mxu0 0.0
    %4593 = vmatpush1.msra.mxu0 0.0
    %4594 = vmatprep.subr.mxu0 0.0
    %4595 = vmatpush1.msra.mxu0 0.0
    %4596 = vmatprep.subr.mxu0 0.0
    %4597 = vmatpush1.msra.mxu0 0.0
    %4598 = vmatprep.subr.mxu0 0.0
    %4599 = vmatpush1.msra.mxu0 0.0
    %4600 = vmatprep.subr.mxu0 0.0
    %4601 = vmatpush1.msra.mxu0 0.0
    %4602 = vmatprep.subr.mxu0 0.0
    %4603 = vmatpush1.msra.mxu0 0.0
    %4604 = vmatprep.subr.mxu0 0.0
    %4605 = vmatpush1.msra.mxu0 0.0
    %4606 = vmatprep.subr.mxu0 0.0
    %4607 = vmatpush1.msra.mxu0 0.0
    %4608 = vmatprep.subr.mxu0 0.0
    %4609 = vmatpush1.msra.mxu0 0.0
    %4610 = vmatprep.subr.mxu0 0.0
    %4611 = vmatpush1.msra.mxu0 0.0
    %4612 = vmatprep.subr.mxu0 0.0
    %4613 = vmatpush1.msra.mxu0 0.0
    %4614 = vmatprep.mubr.f32.mxu0 0.0
    %v4615 = vand.u32 %v3979, 4294901760
    %4616 = vmatmul.mubr.f32.gmra.mrb[0].mxu0 %v4615
    %v4617 = vpop.f32.mrb[0].mxu0
    %v4618 = vadd.f32 %v4531, %v4617
    %v4619 = vpop.f32.mrb[0].mxu0
    %4620 = vdwg.mxu0
    %s4621 = scalar_lea.vmem %s5, 16
    %4622 = vst [vmem:[%s4621] sm:$0xff] %v4618
    %s4623 = scalar_lea.vmem %s0, 24
    %v4624 = vld [vmem:[%s4623] sm:$0xff]
    %4625 = vmatprep.subr.mxu0 0.0
    %v4626 = vand.u32 %v42, 4294901760
    %4627 = vmatpush1.msra.mxu0 %v4626
    %4628 = vmatprep.subr.mxu0 0.0
    %v4629 = vand.u32 %v43, 4294901760
    %4630 = vmatpush1.msra.mxu0 %v4629
    %4631 = vmatprep.subr.mxu0 0.0
    %v4632 = vand.u32 %v44, 4294901760
    %4633 = vmatpush1.msra.mxu0 %v4632
    %4634 = vmatprep.subr.mxu0 0.0
    %v4635 = vand.u32 %v45, 4294901760
    %4636 = vmatpush1.msra.mxu0 %v4635
    %4637 = vmatprep.subr.mxu0 0.0
    %v4638 = vand.u32 %v46, 4294901760
    %4639 = vmatpush1.msra.mxu0 %v4638
    %4640 = vmatprep.subr.mxu0 0.0
    %v4641 = vand.u32 %v47, 4294901760
    %4642 = vmatpush1.msra.mxu0 %v4641
    %4643 = vmatprep.subr.mxu0 0.0
    %v4644 = vand.u32 %v48, 4294901760
    %4645 = vmatpush1.msra.mxu0 %v4644
    %4646 = vmatprep.subr.mxu0 0.0
    %v4647 = vand.u32 %v49, 4294901760
    %4648 = vmatpush1.msra.mxu0 %v4647
    %4649 = vmatprep.subr.mxu0 0.0
    %v4650 = vand.u32 %v50, 4294901760
    %4651 = vmatpush1.msra.mxu0 %v4650
    %4652 = vmatprep.subr.mxu0 0.0
    %v4653 = vand.u32 %v51, 4294901760
    %4654 = vmatpush1.msra.mxu0 %v4653
    %4655 = vmatprep.subr.mxu0 0.0
    %v4656 = vand.u32 %v52, 4294901760
    %4657 = vmatpush1.msra.mxu0 %v4656
    %4658 = vmatprep.subr.mxu0 0.0
    %v4659 = vand.u32 %v53, 4294901760
    %4660 = vmatpush1.msra.mxu0 %v4659
    %4661 = vmatprep.subr.mxu0 0.0
    %v4662 = vand.u32 %v54, 4294901760
    %4663 = vmatpush1.msra.mxu0 %v4662
    %4664 = vmatprep.subr.mxu0 0.0
    %v4665 = vand.u32 %v55, 4294901760
    %4666 = vmatpush1.msra.mxu0 %v4665
    %4667 = vmatprep.subr.mxu0 0.0
    %v4668 = vand.u32 %v56, 4294901760
    %4669 = vmatpush1.msra.mxu0 %v4668
    %4670 = vmatprep.subr.mxu0 0.0
    %v4671 = vand.u32 %v57, 4294901760
    %4672 = vmatpush1.msra.mxu0 %v4671
    %4673 = vmatprep.subr.mxu0 0.0
    %v4674 = vand.u32 %v58, 4294901760
    %4675 = vmatpush1.msra.mxu0 %v4674
    %4676 = vmatprep.subr.mxu0 0.0
    %v4677 = vand.u32 %v59, 4294901760
    %4678 = vmatpush1.msra.mxu0 %v4677
    %4679 = vmatprep.subr.mxu0 0.0
    %v4680 = vand.u32 %v60, 4294901760
    %4681 = vmatpush1.msra.mxu0 %v4680
    %4682 = vmatprep.subr.mxu0 0.0
    %v4683 = vand.u32 %v61, 4294901760
    %4684 = vmatpush1.msra.mxu0 %v4683
    %4685 = vmatprep.subr.mxu0 0.0
    %v4686 = vand.u32 %v62, 4294901760
    %4687 = vmatpush1.msra.mxu0 %v4686
    %4688 = vmatprep.subr.mxu0 0.0
    %v4689 = vand.u32 %v63, 4294901760
    %4690 = vmatpush1.msra.mxu0 %v4689
    %4691 = vmatprep.subr.mxu0 0.0
    %v4692 = vand.u32 %v64, 4294901760
    %4693 = vmatpush1.msra.mxu0 %v4692
    %4694 = vmatprep.subr.mxu0 0.0
    %v4695 = vand.u32 %v65, 4294901760
    %4696 = vmatpush1.msra.mxu0 %v4695
    %4697 = vmatprep.subr.mxu0 0.0
    %v4698 = vand.u32 %v66, 4294901760
    %4699 = vmatpush1.msra.mxu0 %v4698
    %4700 = vmatprep.subr.mxu0 0.0
    %v4701 = vand.u32 %v67, 4294901760
    %4702 = vmatpush1.msra.mxu0 %v4701
    %4703 = vmatprep.subr.mxu0 0.0
    %v4704 = vand.u32 %v68, 4294901760
    %4705 = vmatpush1.msra.mxu0 %v4704
    %4706 = vmatprep.subr.mxu0 0.0
    %v4707 = vand.u32 %v69, 4294901760
    %4708 = vmatpush1.msra.mxu0 %v4707
    %4709 = vmatprep.subr.mxu0 0.0
    %v4710 = vand.u32 %v70, 4294901760
    %4711 = vmatpush1.msra.mxu0 %v4710
    %4712 = vmatprep.subr.mxu0 0.0
    %v4713 = vand.u32 %v71, 4294901760
    %4714 = vmatpush1.msra.mxu0 %v4713
    %4715 = vmatprep.subr.mxu0 0.0
    %v4716 = vand.u32 %v72, 4294901760
    %4717 = vmatpush1.msra.mxu0 %v4716
    %4718 = vmatprep.subr.mxu0 0.0
    %v4719 = vand.u32 %v73, 4294901760
    %4720 = vmatpush1.msra.mxu0 %v4719
    %v4721 = vand.u32 %v4624, 4294901760
    %v4722 = vsub.f32 %v4624, %v4721
    %v4723 = vand.u32 %v4722, 4294901760
    %v4724 = vsub.f32 %v4722, %v4723
    %v4725 = vand.u32 %v4724, 4294901760
    %4726 = vmatprep.mubr.f32.mxu0 %v4725
    %v4727 = vand.u32 %v3979, 4294901760
    %v4728 = vsub.f32 %v3979, %v4727
    %v4729 = vand.u32 %v4728, 4294901760
    %v4730 = vsub.f32 %v4728, %v4729
    %v4731 = vand.u32 %v4730, 4294901760
    %4732 = vmatmul.mubr.f32.gmra.mrb[0].mxu0 %v4731
    %v4733 = vpop.f32.mrb[0].mxu0
    %v4734 = vadd.f32 0.0, %v4733
    %v4735 = vpop.f32.mrb[0].mxu0
    %4736 = vdwg.mxu0
    %4737 = vmatprep.subr.mxu0 0.0
    %v4738 = vand.u32 %v42, 4294901760
    %v4739 = vsub.f32 %v42, %v4738
    %v4740 = vand.u32 %v4739, 4294901760
    %v4741 = vsub.f32 %v4739, %v4740
    %v4742 = vand.u32 %v4741, 4294901760
    %4743 = vmatpush1.msra.mxu0 %v4742
    %4744 = vmatprep.subr.mxu0 0.0
    %v4745 = vand.u32 %v43, 4294901760
    %v4746 = vsub.f32 %v43, %v4745
    %v4747 = vand.u32 %v4746, 4294901760
    %v4748 = vsub.f32 %v4746, %v4747
    %v4749 = vand.u32 %v4748, 4294901760
    %4750 = vmatpush1.msra.mxu0 %v4749
    %4751 = vmatprep.subr.mxu0 0.0
    %v4752 = vand.u32 %v44, 4294901760
    %v4753 = vsub.f32 %v44, %v4752
    %v4754 = vand.u32 %v4753, 4294901760
    %v4755 = vsub.f32 %v4753, %v4754
    %v4756 = vand.u32 %v4755, 4294901760
    %4757 = vmatpush1.msra.mxu0 %v4756
    %4758 = vmatprep.subr.mxu0 0.0
    %v4759 = vand.u32 %v45, 4294901760
    %v4760 = vsub.f32 %v45, %v4759
    %v4761 = vand.u32 %v4760, 4294901760
    %v4762 = vsub.f32 %v4760, %v4761
    %v4763 = vand.u32 %v4762, 4294901760
    %4764 = vmatpush1.msra.mxu0 %v4763
    %4765 = vmatprep.subr.mxu0 0.0
    %v4766 = vand.u32 %v46, 4294901760
    %v4767 = vsub.f32 %v46, %v4766
    %v4768 = vand.u32 %v4767, 4294901760
    %v4769 = vsub.f32 %v4767, %v4768
    %v4770 = vand.u32 %v4769, 4294901760
    %4771 = vmatpush1.msra.mxu0 %v4770
    %4772 = vmatprep.subr.mxu0 0.0
    %v4773 = vand.u32 %v47, 4294901760
    %v4774 = vsub.f32 %v47, %v4773
    %v4775 = vand.u32 %v4774, 4294901760
    %v4776 = vsub.f32 %v4774, %v4775
    %v4777 = vand.u32 %v4776, 4294901760
    %4778 = vmatpush1.msra.mxu0 %v4777
    %4779 = vmatprep.subr.mxu0 0.0
    %v4780 = vand.u32 %v48, 4294901760
    %v4781 = vsub.f32 %v48, %v4780
    %v4782 = vand.u32 %v4781, 4294901760
    %v4783 = vsub.f32 %v4781, %v4782
    %v4784 = vand.u32 %v4783, 4294901760
    %4785 = vmatpush1.msra.mxu0 %v4784
    %4786 = vmatprep.subr.mxu0 0.0
    %v4787 = vand.u32 %v49, 4294901760
    %v4788 = vsub.f32 %v49, %v4787
    %v4789 = vand.u32 %v4788, 4294901760
    %v4790 = vsub.f32 %v4788, %v4789
    %v4791 = vand.u32 %v4790, 4294901760
    %4792 = vmatpush1.msra.mxu0 %v4791
    %4793 = vmatprep.subr.mxu0 0.0
    %v4794 = vand.u32 %v50, 4294901760
    %v4795 = vsub.f32 %v50, %v4794
    %v4796 = vand.u32 %v4795, 4294901760
    %v4797 = vsub.f32 %v4795, %v4796
    %v4798 = vand.u32 %v4797, 4294901760
    %4799 = vmatpush1.msra.mxu0 %v4798
    %4800 = vmatprep.subr.mxu0 0.0
    %v4801 = vand.u32 %v51, 4294901760
    %v4802 = vsub.f32 %v51, %v4801
    %v4803 = vand.u32 %v4802, 4294901760
    %v4804 = vsub.f32 %v4802, %v4803
    %v4805 = vand.u32 %v4804, 4294901760
    %4806 = vmatpush1.msra.mxu0 %v4805
    %4807 = vmatprep.subr.mxu0 0.0
    %v4808 = vand.u32 %v52, 4294901760
    %v4809 = vsub.f32 %v52, %v4808
    %v4810 = vand.u32 %v4809, 4294901760
    %v4811 = vsub.f32 %v4809, %v4810
    %v4812 = vand.u32 %v4811, 4294901760
    %4813 = vmatpush1.msra.mxu0 %v4812
    %4814 = vmatprep.subr.mxu0 0.0
    %v4815 = vand.u32 %v53, 4294901760
    %v4816 = vsub.f32 %v53, %v4815
    %v4817 = vand.u32 %v4816, 4294901760
    %v4818 = vsub.f32 %v4816, %v4817
    %v4819 = vand.u32 %v4818, 4294901760
    %4820 = vmatpush1.msra.mxu0 %v4819
    %4821 = vmatprep.subr.mxu0 0.0
    %v4822 = vand.u32 %v54, 4294901760
    %v4823 = vsub.f32 %v54, %v4822
    %v4824 = vand.u32 %v4823, 4294901760
    %v4825 = vsub.f32 %v4823, %v4824
    %v4826 = vand.u32 %v4825, 4294901760
    %4827 = vmatpush1.msra.mxu0 %v4826
    %4828 = vmatprep.subr.mxu0 0.0
    %v4829 = vand.u32 %v55, 4294901760
    %v4830 = vsub.f32 %v55, %v4829
    %v4831 = vand.u32 %v4830, 4294901760
    %v4832 = vsub.f32 %v4830, %v4831
    %v4833 = vand.u32 %v4832, 4294901760
    %4834 = vmatpush1.msra.mxu0 %v4833
    %4835 = vmatprep.subr.mxu0 0.0
    %v4836 = vand.u32 %v56, 4294901760
    %v4837 = vsub.f32 %v56, %v4836
    %v4838 = vand.u32 %v4837, 4294901760
    %v4839 = vsub.f32 %v4837, %v4838
    %v4840 = vand.u32 %v4839, 4294901760
    %4841 = vmatpush1.msra.mxu0 %v4840
    %4842 = vmatprep.subr.mxu0 0.0
    %v4843 = vand.u32 %v57, 4294901760
    %v4844 = vsub.f32 %v57, %v4843
    %v4845 = vand.u32 %v4844, 4294901760
    %v4846 = vsub.f32 %v4844, %v4845
    %v4847 = vand.u32 %v4846, 4294901760
    %4848 = vmatpush1.msra.mxu0 %v4847
    %4849 = vmatprep.subr.mxu0 0.0
    %v4850 = vand.u32 %v58, 4294901760
    %v4851 = vsub.f32 %v58, %v4850
    %v4852 = vand.u32 %v4851, 4294901760
    %v4853 = vsub.f32 %v4851, %v4852
    %v4854 = vand.u32 %v4853, 4294901760
    %4855 = vmatpush1.msra.mxu0 %v4854
    %4856 = vmatprep.subr.mxu0 0.0
    %v4857 = vand.u32 %v59, 4294901760
    %v4858 = vsub.f32 %v59, %v4857
    %v4859 = vand.u32 %v4858, 4294901760
    %v4860 = vsub.f32 %v4858, %v4859
    %v4861 = vand.u32 %v4860, 4294901760
    %4862 = vmatpush1.msra.mxu0 %v4861
    %4863 = vmatprep.subr.mxu0 0.0
    %v4864 = vand.u32 %v60, 4294901760
    %v4865 = vsub.f32 %v60, %v4864
    %v4866 = vand.u32 %v4865, 4294901760
    %v4867 = vsub.f32 %v4865, %v4866
    %v4868 = vand.u32 %v4867, 4294901760
    %4869 = vmatpush1.msra.mxu0 %v4868
    %4870 = vmatprep.subr.mxu0 0.0
    %v4871 = vand.u32 %v61, 4294901760
    %v4872 = vsub.f32 %v61, %v4871
    %v4873 = vand.u32 %v4872, 4294901760
    %v4874 = vsub.f32 %v4872, %v4873
    %v4875 = vand.u32 %v4874, 4294901760
    %4876 = vmatpush1.msra.mxu0 %v4875
    %4877 = vmatprep.subr.mxu0 0.0
    %v4878 = vand.u32 %v62, 4294901760
    %v4879 = vsub.f32 %v62, %v4878
    %v4880 = vand.u32 %v4879, 4294901760
    %v4881 = vsub.f32 %v4879, %v4880
    %v4882 = vand.u32 %v4881, 4294901760
    %4883 = vmatpush1.msra.mxu0 %v4882
    %4884 = vmatprep.subr.mxu0 0.0
    %v4885 = vand.u32 %v63, 4294901760
    %v4886 = vsub.f32 %v63, %v4885
    %v4887 = vand.u32 %v4886, 4294901760
    %v4888 = vsub.f32 %v4886, %v4887
    %v4889 = vand.u32 %v4888, 4294901760
    %4890 = vmatpush1.msra.mxu0 %v4889
    %4891 = vmatprep.subr.mxu0 0.0
    %v4892 = vand.u32 %v64, 4294901760
    %v4893 = vsub.f32 %v64, %v4892
    %v4894 = vand.u32 %v4893, 4294901760
    %v4895 = vsub.f32 %v4893, %v4894
    %v4896 = vand.u32 %v4895, 4294901760
    %4897 = vmatpush1.msra.mxu0 %v4896
    %4898 = vmatprep.subr.mxu0 0.0
    %v4899 = vand.u32 %v65, 4294901760
    %v4900 = vsub.f32 %v65, %v4899
    %v4901 = vand.u32 %v4900, 4294901760
    %v4902 = vsub.f32 %v4900, %v4901
    %v4903 = vand.u32 %v4902, 4294901760
    %4904 = vmatpush1.msra.mxu0 %v4903
    %4905 = vmatprep.subr.mxu0 0.0
    %v4906 = vand.u32 %v66, 4294901760
    %v4907 = vsub.f32 %v66, %v4906
    %v4908 = vand.u32 %v4907, 4294901760
    %v4909 = vsub.f32 %v4907, %v4908
    %v4910 = vand.u32 %v4909, 4294901760
    %4911 = vmatpush1.msra.mxu0 %v4910
    %4912 = vmatprep.subr.mxu0 0.0
    %v4913 = vand.u32 %v67, 4294901760
    %v4914 = vsub.f32 %v67, %v4913
    %v4915 = vand.u32 %v4914, 4294901760
    %v4916 = vsub.f32 %v4914, %v4915
    %v4917 = vand.u32 %v4916, 4294901760
    %4918 = vmatpush1.msra.mxu0 %v4917
    %4919 = vmatprep.subr.mxu0 0.0
    %v4920 = vand.u32 %v68, 4294901760
    %v4921 = vsub.f32 %v68, %v4920
    %v4922 = vand.u32 %v4921, 4294901760
    %v4923 = vsub.f32 %v4921, %v4922
    %v4924 = vand.u32 %v4923, 4294901760
    %4925 = vmatpush1.msra.mxu0 %v4924
    %4926 = vmatprep.subr.mxu0 0.0
    %v4927 = vand.u32 %v69, 4294901760
    %v4928 = vsub.f32 %v69, %v4927
    %v4929 = vand.u32 %v4928, 4294901760
    %v4930 = vsub.f32 %v4928, %v4929
    %v4931 = vand.u32 %v4930, 4294901760
    %4932 = vmatpush1.msra.mxu0 %v4931
    %4933 = vmatprep.subr.mxu0 0.0
    %v4934 = vand.u32 %v70, 4294901760
    %v4935 = vsub.f32 %v70, %v4934
    %v4936 = vand.u32 %v4935, 4294901760
    %v4937 = vsub.f32 %v4935, %v4936
    %v4938 = vand.u32 %v4937, 4294901760
    %4939 = vmatpush1.msra.mxu0 %v4938
    %4940 = vmatprep.subr.mxu0 0.0
    %v4941 = vand.u32 %v71, 4294901760
    %v4942 = vsub.f32 %v71, %v4941
    %v4943 = vand.u32 %v4942, 4294901760
    %v4944 = vsub.f32 %v4942, %v4943
    %v4945 = vand.u32 %v4944, 4294901760
    %4946 = vmatpush1.msra.mxu0 %v4945
    %4947 = vmatprep.subr.mxu0 0.0
    %v4948 = vand.u32 %v72, 4294901760
    %v4949 = vsub.f32 %v72, %v4948
    %v4950 = vand.u32 %v4949, 4294901760
    %v4951 = vsub.f32 %v4949, %v4950
    %v4952 = vand.u32 %v4951, 4294901760
    %4953 = vmatpush1.msra.mxu0 %v4952
    %4954 = vmatprep.subr.mxu0 0.0
    %v4955 = vand.u32 %v73, 4294901760
    %v4956 = vsub.f32 %v73, %v4955
    %v4957 = vand.u32 %v4956, 4294901760
    %v4958 = vsub.f32 %v4956, %v4957
    %v4959 = vand.u32 %v4958, 4294901760
    %4960 = vmatpush1.msra.mxu0 %v4959
    %v4961 = vand.u32 %v4624, 4294901760
    %4962 = vmatprep.mubr.f32.mxu0 %v4961
    %v4963 = vand.u32 %v3979, 4294901760
    %4964 = vmatmul.mubr.f32.gmra.mrb[0].mxu0 %v4963
    %v4965 = vpop.f32.mrb[0].mxu0
    %v4966 = vadd.f32 %v4734, %v4965
    %v4967 = vpop.f32.mrb[0].mxu0
    %4968 = vdwg.mxu0
    %4969 = vmatprep.subr.mxu0 0.0
    %v4970 = vand.u32 %v42, 4294901760
    %v4971 = vsub.f32 %v42, %v4970
    %4972 = vmatpush1.msra.mxu0 %v4971
    %4973 = vmatprep.subr.mxu0 0.0
    %v4974 = vand.u32 %v43, 4294901760
    %v4975 = vsub.f32 %v43, %v4974
    %4976 = vmatpush1.msra.mxu0 %v4975
    %4977 = vmatprep.subr.mxu0 0.0
    %v4978 = vand.u32 %v44, 4294901760
    %v4979 = vsub.f32 %v44, %v4978
    %4980 = vmatpush1.msra.mxu0 %v4979
    %4981 = vmatprep.subr.mxu0 0.0
    %v4982 = vand.u32 %v45, 4294901760
    %v4983 = vsub.f32 %v45, %v4982
    %4984 = vmatpush1.msra.mxu0 %v4983
    %4985 = vmatprep.subr.mxu0 0.0
    %v4986 = vand.u32 %v46, 4294901760
    %v4987 = vsub.f32 %v46, %v4986
    %4988 = vmatpush1.msra.mxu0 %v4987
    %4989 = vmatprep.subr.mxu0 0.0
    %v4990 = vand.u32 %v47, 4294901760
    %v4991 = vsub.f32 %v47, %v4990
    %4992 = vmatpush1.msra.mxu0 %v4991
    %4993 = vmatprep.subr.mxu0 0.0
    %v4994 = vand.u32 %v48, 4294901760
    %v4995 = vsub.f32 %v48, %v4994
    %4996 = vmatpush1.msra.mxu0 %v4995
    %4997 = vmatprep.subr.mxu0 0.0
    %v4998 = vand.u32 %v49, 4294901760
    %v4999 = vsub.f32 %v49, %v4998
    %5000 = vmatpush1.msra.mxu0 %v4999
    %5001 = vmatprep.subr.mxu0 0.0
    %v5002 = vand.u32 %v50, 4294901760
    %v5003 = vsub.f32 %v50, %v5002
    %5004 = vmatpush1.msra.mxu0 %v5003
    %5005 = vmatprep.subr.mxu0 0.0
    %v5006 = vand.u32 %v51, 4294901760
    %v5007 = vsub.f32 %v51, %v5006
    %5008 = vmatpush1.msra.mxu0 %v5007
    %5009 = vmatprep.subr.mxu0 0.0
    %v5010 = vand.u32 %v52, 4294901760
    %v5011 = vsub.f32 %v52, %v5010
    %5012 = vmatpush1.msra.mxu0 %v5011
    %5013 = vmatprep.subr.mxu0 0.0
    %v5014 = vand.u32 %v53, 4294901760
    %v5015 = vsub.f32 %v53, %v5014
    %5016 = vmatpush1.msra.mxu0 %v5015
    %5017 = vmatprep.subr.mxu0 0.0
    %v5018 = vand.u32 %v54, 4294901760
    %v5019 = vsub.f32 %v54, %v5018
    %5020 = vmatpush1.msra.mxu0 %v5019
    %5021 = vmatprep.subr.mxu0 0.0
    %v5022 = vand.u32 %v55, 4294901760
    %v5023 = vsub.f32 %v55, %v5022
    %5024 = vmatpush1.msra.mxu0 %v5023
    %5025 = vmatprep.subr.mxu0 0.0
    %v5026 = vand.u32 %v56, 4294901760
    %v5027 = vsub.f32 %v56, %v5026
    %5028 = vmatpush1.msra.mxu0 %v5027
    %5029 = vmatprep.subr.mxu0 0.0
    %v5030 = vand.u32 %v57, 4294901760
    %v5031 = vsub.f32 %v57, %v5030
    %5032 = vmatpush1.msra.mxu0 %v5031
    %5033 = vmatprep.subr.mxu0 0.0
    %v5034 = vand.u32 %v58, 4294901760
    %v5035 = vsub.f32 %v58, %v5034
    %5036 = vmatpush1.msra.mxu0 %v5035
    %5037 = vmatprep.subr.mxu0 0.0
    %v5038 = vand.u32 %v59, 4294901760
    %v5039 = vsub.f32 %v59, %v5038
    %5040 = vmatpush1.msra.mxu0 %v5039
    %5041 = vmatprep.subr.mxu0 0.0
    %v5042 = vand.u32 %v60, 4294901760
    %v5043 = vsub.f32 %v60, %v5042
    %5044 = vmatpush1.msra.mxu0 %v5043
    %5045 = vmatprep.subr.mxu0 0.0
    %v5046 = vand.u32 %v61, 4294901760
    %v5047 = vsub.f32 %v61, %v5046
    %5048 = vmatpush1.msra.mxu0 %v5047
    %5049 = vmatprep.subr.mxu0 0.0
    %v5050 = vand.u32 %v62, 4294901760
    %v5051 = vsub.f32 %v62, %v5050
    %5052 = vmatpush1.msra.mxu0 %v5051
    %5053 = vmatprep.subr.mxu0 0.0
    %v5054 = vand.u32 %v63, 4294901760
    %v5055 = vsub.f32 %v63, %v5054
    %5056 = vmatpush1.msra.mxu0 %v5055
    %5057 = vmatprep.subr.mxu0 0.0
    %v5058 = vand.u32 %v64, 4294901760
    %v5059 = vsub.f32 %v64, %v5058
    %5060 = vmatpush1.msra.mxu0 %v5059
    %5061 = vmatprep.subr.mxu0 0.0
    %v5062 = vand.u32 %v65, 4294901760
    %v5063 = vsub.f32 %v65, %v5062
    %5064 = vmatpush1.msra.mxu0 %v5063
    %5065 = vmatprep.subr.mxu0 0.0
    %v5066 = vand.u32 %v66, 4294901760
    %v5067 = vsub.f32 %v66, %v5066
    %5068 = vmatpush1.msra.mxu0 %v5067
    %5069 = vmatprep.subr.mxu0 0.0
    %v5070 = vand.u32 %v67, 4294901760
    %v5071 = vsub.f32 %v67, %v5070
    %5072 = vmatpush1.msra.mxu0 %v5071
    %5073 = vmatprep.subr.mxu0 0.0
    %v5074 = vand.u32 %v68, 4294901760
    %v5075 = vsub.f32 %v68, %v5074
    %5076 = vmatpush1.msra.mxu0 %v5075
    %5077 = vmatprep.subr.mxu0 0.0
    %v5078 = vand.u32 %v69, 4294901760
    %v5079 = vsub.f32 %v69, %v5078
    %5080 = vmatpush1.msra.mxu0 %v5079
    %5081 = vmatprep.subr.mxu0 0.0
    %v5082 = vand.u32 %v70, 4294901760
    %v5083 = vsub.f32 %v70, %v5082
    %5084 = vmatpush1.msra.mxu0 %v5083
    %5085 = vmatprep.subr.mxu0 0.0
    %v5086 = vand.u32 %v71, 4294901760
    %v5087 = vsub.f32 %v71, %v5086
    %5088 = vmatpush1.msra.mxu0 %v5087
    %5089 = vmatprep.subr.mxu0 0.0
    %v5090 = vand.u32 %v72, 4294901760
    %v5091 = vsub.f32 %v72, %v5090
    %5092 = vmatpush1.msra.mxu0 %v5091
    %5093 = vmatprep.subr.mxu0 0.0
    %v5094 = vand.u32 %v73, 4294901760
    %v5095 = vsub.f32 %v73, %v5094
    %5096 = vmatpush1.msra.mxu0 %v5095
    %v5097 = vand.u32 %v4624, 4294901760
    %v5098 = vsub.f32 %v4624, %v5097
    %5099 = vmatprep.mubr.f32.mxu0 %v5098
    %v5100 = vand.u32 %v3979, 4294901760
    %v5101 = vsub.f32 %v3979, %v5100
    %5102 = vmatmul.mubr.f32.gmra.mrb[0].mxu0 %v5101
    %v5103 = vpop.f32.mrb[0].mxu0
    %v5104 = vadd.f32 %v4966, %v5103
    %v5105 = vpop.f32.mrb[0].mxu0
    %5106 = vdwg.mxu0
    %5107 = vmatprep.subr.mxu0 0.0
    %v5108 = vand.u32 %v42, 4294901760
    %5109 = vmatpush1.msra.mxu0 %v5108
    %5110 = vmatprep.subr.mxu0 0.0
    %v5111 = vand.u32 %v43, 4294901760
    %5112 = vmatpush1.msra.mxu0 %v5111
    %5113 = vmatprep.subr.mxu0 0.0
    %v5114 = vand.u32 %v44, 4294901760
    %5115 = vmatpush1.msra.mxu0 %v5114
    %5116 = vmatprep.subr.mxu0 0.0
    %v5117 = vand.u32 %v45, 4294901760
    %5118 = vmatpush1.msra.mxu0 %v5117
    %5119 = vmatprep.subr.mxu0 0.0
    %v5120 = vand.u32 %v46, 4294901760
    %5121 = vmatpush1.msra.mxu0 %v5120
    %5122 = vmatprep.subr.mxu0 0.0
    %v5123 = vand.u32 %v47, 4294901760
    %5124 = vmatpush1.msra.mxu0 %v5123
    %5125 = vmatprep.subr.mxu0 0.0
    %v5126 = vand.u32 %v48, 4294901760
    %5127 = vmatpush1.msra.mxu0 %v5126
    %5128 = vmatprep.subr.mxu0 0.0
    %v5129 = vand.u32 %v49, 4294901760
    %5130 = vmatpush1.msra.mxu0 %v5129
    %5131 = vmatprep.subr.mxu0 0.0
    %v5132 = vand.u32 %v50, 4294901760
    %5133 = vmatpush1.msra.mxu0 %v5132
    %5134 = vmatprep.subr.mxu0 0.0
    %v5135 = vand.u32 %v51, 4294901760
    %5136 = vmatpush1.msra.mxu0 %v5135
    %5137 = vmatprep.subr.mxu0 0.0
    %v5138 = vand.u32 %v52, 4294901760
    %5139 = vmatpush1.msra.mxu0 %v5138
    %5140 = vmatprep.subr.mxu0 0.0
    %v5141 = vand.u32 %v53, 4294901760
    %5142 = vmatpush1.msra.mxu0 %v5141
    %5143 = vmatprep.subr.mxu0 0.0
    %v5144 = vand.u32 %v54, 4294901760
    %5145 = vmatpush1.msra.mxu0 %v5144
    %5146 = vmatprep.subr.mxu0 0.0
    %v5147 = vand.u32 %v55, 4294901760
    %5148 = vmatpush1.msra.mxu0 %v5147
    %5149 = vmatprep.subr.mxu0 0.0
    %v5150 = vand.u32 %v56, 4294901760
    %5151 = vmatpush1.msra.mxu0 %v5150
    %5152 = vmatprep.subr.mxu0 0.0
    %v5153 = vand.u32 %v57, 4294901760
    %5154 = vmatpush1.msra.mxu0 %v5153
    %5155 = vmatprep.subr.mxu0 0.0
    %v5156 = vand.u32 %v58, 4294901760
    %5157 = vmatpush1.msra.mxu0 %v5156
    %5158 = vmatprep.subr.mxu0 0.0
    %v5159 = vand.u32 %v59, 4294901760
    %5160 = vmatpush1.msra.mxu0 %v5159
    %5161 = vmatprep.subr.mxu0 0.0
    %v5162 = vand.u32 %v60, 4294901760
    %5163 = vmatpush1.msra.mxu0 %v5162
    %5164 = vmatprep.subr.mxu0 0.0
    %v5165 = vand.u32 %v61, 4294901760
    %5166 = vmatpush1.msra.mxu0 %v5165
    %5167 = vmatprep.subr.mxu0 0.0
    %v5168 = vand.u32 %v62, 4294901760
    %5169 = vmatpush1.msra.mxu0 %v5168
    %5170 = vmatprep.subr.mxu0 0.0
    %v5171 = vand.u32 %v63, 4294901760
    %5172 = vmatpush1.msra.mxu0 %v5171
    %5173 = vmatprep.subr.mxu0 0.0
    %v5174 = vand.u32 %v64, 4294901760
    %5175 = vmatpush1.msra.mxu0 %v5174
    %5176 = vmatprep.subr.mxu0 0.0
    %v5177 = vand.u32 %v65, 4294901760
    %5178 = vmatpush1.msra.mxu0 %v5177
    %5179 = vmatprep.subr.mxu0 0.0
    %v5180 = vand.u32 %v66, 4294901760
    %5181 = vmatpush1.msra.mxu0 %v5180
    %5182 = vmatprep.subr.mxu0 0.0
    %v5183 = vand.u32 %v67, 4294901760
    %5184 = vmatpush1.msra.mxu0 %v5183
    %5185 = vmatprep.subr.mxu0 0.0
    %v5186 = vand.u32 %v68, 4294901760
    %5187 = vmatpush1.msra.mxu0 %v5186
    %5188 = vmatprep.subr.mxu0 0.0
    %v5189 = vand.u32 %v69, 4294901760
    %5190 = vmatpush1.msra.mxu0 %v5189
    %5191 = vmatprep.subr.mxu0 0.0
    %v5192 = vand.u32 %v70, 4294901760
    %5193 = vmatpush1.msra.mxu0 %v5192
    %5194 = vmatprep.subr.mxu0 0.0
    %v5195 = vand.u32 %v71, 4294901760
    %5196 = vmatpush1.msra.mxu0 %v5195
    %5197 = vmatprep.subr.mxu0 0.0
    %v5198 = vand.u32 %v72, 4294901760
    %5199 = vmatpush1.msra.mxu0 %v5198
    %5200 = vmatprep.subr.mxu0 0.0
    %v5201 = vand.u32 %v73, 4294901760
    %5202 = vmatpush1.msra.mxu0 %v5201
    %v5203 = vand.u32 %v4624, 4294901760
    %v5204 = vsub.f32 %v4624, %v5203
    %v5205 = vand.u32 %v5204, 4294901760
    %5206 = vmatprep.mubr.f32.mxu0 %v5205
    %v5207 = vand.u32 %v3979, 4294901760
    %v5208 = vsub.f32 %v3979, %v5207
    %v5209 = vand.u32 %v5208, 4294901760
    %5210 = vmatmul.mubr.f32.gmra.mrb[0].mxu0 %v5209
    %v5211 = vpop.f32.mrb[0].mxu0
    %v5212 = vadd.f32 %v5104, %v5211
    %v5213 = vpop.f32.mrb[0].mxu0
    %5214 = vdwg.mxu0
    %5215 = vmatprep.subr.mxu0 0.0
    %v5216 = vand.u32 %v42, 4294901760
    %v5217 = vsub.f32 %v42, %v5216
    %v5218 = vand.u32 %v5217, 4294901760
    %5219 = vmatpush1.msra.mxu0 %v5218
    %5220 = vmatprep.subr.mxu0 0.0
    %v5221 = vand.u32 %v43, 4294901760
    %v5222 = vsub.f32 %v43, %v5221
    %v5223 = vand.u32 %v5222, 4294901760
    %5224 = vmatpush1.msra.mxu0 %v5223
    %5225 = vmatprep.subr.mxu0 0.0
    %v5226 = vand.u32 %v44, 4294901760
    %v5227 = vsub.f32 %v44, %v5226
    %v5228 = vand.u32 %v5227, 4294901760
    %5229 = vmatpush1.msra.mxu0 %v5228
    %5230 = vmatprep.subr.mxu0 0.0
    %v5231 = vand.u32 %v45, 4294901760
    %v5232 = vsub.f32 %v45, %v5231
    %v5233 = vand.u32 %v5232, 4294901760
    %5234 = vmatpush1.msra.mxu0 %v5233
    %5235 = vmatprep.subr.mxu0 0.0
    %v5236 = vand.u32 %v46, 4294901760
    %v5237 = vsub.f32 %v46, %v5236
    %v5238 = vand.u32 %v5237, 4294901760
    %5239 = vmatpush1.msra.mxu0 %v5238
    %5240 = vmatprep.subr.mxu0 0.0
    %v5241 = vand.u32 %v47, 4294901760
    %v5242 = vsub.f32 %v47, %v5241
    %v5243 = vand.u32 %v5242, 4294901760
    %5244 = vmatpush1.msra.mxu0 %v5243
    %5245 = vmatprep.subr.mxu0 0.0
    %v5246 = vand.u32 %v48, 4294901760
    %v5247 = vsub.f32 %v48, %v5246
    %v5248 = vand.u32 %v5247, 4294901760
    %5249 = vmatpush1.msra.mxu0 %v5248
    %5250 = vmatprep.subr.mxu0 0.0
    %v5251 = vand.u32 %v49, 4294901760
    %v5252 = vsub.f32 %v49, %v5251
    %v5253 = vand.u32 %v5252, 4294901760
    %5254 = vmatpush1.msra.mxu0 %v5253
    %5255 = vmatprep.subr.mxu0 0.0
    %v5256 = vand.u32 %v50, 4294901760
    %v5257 = vsub.f32 %v50, %v5256
    %v5258 = vand.u32 %v5257, 4294901760
    %5259 = vmatpush1.msra.mxu0 %v5258
    %5260 = vmatprep.subr.mxu0 0.0
    %v5261 = vand.u32 %v51, 4294901760
    %v5262 = vsub.f32 %v51, %v5261
    %v5263 = vand.u32 %v5262, 4294901760
    %5264 = vmatpush1.msra.mxu0 %v5263
    %5265 = vmatprep.subr.mxu0 0.0
    %v5266 = vand.u32 %v52, 4294901760
    %v5267 = vsub.f32 %v52, %v5266
    %v5268 = vand.u32 %v5267, 4294901760
    %5269 = vmatpush1.msra.mxu0 %v5268
    %5270 = vmatprep.subr.mxu0 0.0
    %v5271 = vand.u32 %v53, 4294901760
    %v5272 = vsub.f32 %v53, %v5271
    %v5273 = vand.u32 %v5272, 4294901760
    %5274 = vmatpush1.msra.mxu0 %v5273
    %5275 = vmatprep.subr.mxu0 0.0
    %v5276 = vand.u32 %v54, 4294901760
    %v5277 = vsub.f32 %v54, %v5276
    %v5278 = vand.u32 %v5277, 4294901760
    %5279 = vmatpush1.msra.mxu0 %v5278
    %5280 = vmatprep.subr.mxu0 0.0
    %v5281 = vand.u32 %v55, 4294901760
    %v5282 = vsub.f32 %v55, %v5281
    %v5283 = vand.u32 %v5282, 4294901760
    %5284 = vmatpush1.msra.mxu0 %v5283
    %5285 = vmatprep.subr.mxu0 0.0
    %v5286 = vand.u32 %v56, 4294901760
    %v5287 = vsub.f32 %v56, %v5286
    %v5288 = vand.u32 %v5287, 4294901760
    %5289 = vmatpush1.msra.mxu0 %v5288
    %5290 = vmatprep.subr.mxu0 0.0
    %v5291 = vand.u32 %v57, 4294901760
    %v5292 = vsub.f32 %v57, %v5291
    %v5293 = vand.u32 %v5292, 4294901760
    %5294 = vmatpush1.msra.mxu0 %v5293
    %5295 = vmatprep.subr.mxu0 0.0
    %v5296 = vand.u32 %v58, 4294901760
    %v5297 = vsub.f32 %v58, %v5296
    %v5298 = vand.u32 %v5297, 4294901760
    %5299 = vmatpush1.msra.mxu0 %v5298
    %5300 = vmatprep.subr.mxu0 0.0
    %v5301 = vand.u32 %v59, 4294901760
    %v5302 = vsub.f32 %v59, %v5301
    %v5303 = vand.u32 %v5302, 4294901760
    %5304 = vmatpush1.msra.mxu0 %v5303
    %5305 = vmatprep.subr.mxu0 0.0
    %v5306 = vand.u32 %v60, 4294901760
    %v5307 = vsub.f32 %v60, %v5306
    %v5308 = vand.u32 %v5307, 4294901760
    %5309 = vmatpush1.msra.mxu0 %v5308
    %5310 = vmatprep.subr.mxu0 0.0
    %v5311 = vand.u32 %v61, 4294901760
    %v5312 = vsub.f32 %v61, %v5311
    %v5313 = vand.u32 %v5312, 4294901760
    %5314 = vmatpush1.msra.mxu0 %v5313
    %5315 = vmatprep.subr.mxu0 0.0
    %v5316 = vand.u32 %v62, 4294901760
    %v5317 = vsub.f32 %v62, %v5316
    %v5318 = vand.u32 %v5317, 4294901760
    %5319 = vmatpush1.msra.mxu0 %v5318
    %5320 = vmatprep.subr.mxu0 0.0
    %v5321 = vand.u32 %v63, 4294901760
    %v5322 = vsub.f32 %v63, %v5321
    %v5323 = vand.u32 %v5322, 4294901760
    %5324 = vmatpush1.msra.mxu0 %v5323
    %5325 = vmatprep.subr.mxu0 0.0
    %v5326 = vand.u32 %v64, 4294901760
    %v5327 = vsub.f32 %v64, %v5326
    %v5328 = vand.u32 %v5327, 4294901760
    %5329 = vmatpush1.msra.mxu0 %v5328
    %5330 = vmatprep.subr.mxu0 0.0
    %v5331 = vand.u32 %v65, 4294901760
    %v5332 = vsub.f32 %v65, %v5331
    %v5333 = vand.u32 %v5332, 4294901760
    %5334 = vmatpush1.msra.mxu0 %v5333
    %5335 = vmatprep.subr.mxu0 0.0
    %v5336 = vand.u32 %v66, 4294901760
    %v5337 = vsub.f32 %v66, %v5336
    %v5338 = vand.u32 %v5337, 4294901760
    %5339 = vmatpush1.msra.mxu0 %v5338
    %5340 = vmatprep.subr.mxu0 0.0
    %v5341 = vand.u32 %v67, 4294901760
    %v5342 = vsub.f32 %v67, %v5341
    %v5343 = vand.u32 %v5342, 4294901760
    %5344 = vmatpush1.msra.mxu0 %v5343
    %5345 = vmatprep.subr.mxu0 0.0
    %v5346 = vand.u32 %v68, 4294901760
    %v5347 = vsub.f32 %v68, %v5346
    %v5348 = vand.u32 %v5347, 4294901760
    %5349 = vmatpush1.msra.mxu0 %v5348
    %5350 = vmatprep.subr.mxu0 0.0
    %v5351 = vand.u32 %v69, 4294901760
    %v5352 = vsub.f32 %v69, %v5351
    %v5353 = vand.u32 %v5352, 4294901760
    %5354 = vmatpush1.msra.mxu0 %v5353
    %5355 = vmatprep.subr.mxu0 0.0
    %v5356 = vand.u32 %v70, 4294901760
    %v5357 = vsub.f32 %v70, %v5356
    %v5358 = vand.u32 %v5357, 4294901760
    %5359 = vmatpush1.msra.mxu0 %v5358
    %5360 = vmatprep.subr.mxu0 0.0
    %v5361 = vand.u32 %v71, 4294901760
    %v5362 = vsub.f32 %v71, %v5361
    %v5363 = vand.u32 %v5362, 4294901760
    %5364 = vmatpush1.msra.mxu0 %v5363
    %5365 = vmatprep.subr.mxu0 0.0
    %v5366 = vand.u32 %v72, 4294901760
    %v5367 = vsub.f32 %v72, %v5366
    %v5368 = vand.u32 %v5367, 4294901760
    %5369 = vmatpush1.msra.mxu0 %v5368
    %5370 = vmatprep.subr.mxu0 0.0
    %v5371 = vand.u32 %v73, 4294901760
    %v5372 = vsub.f32 %v73, %v5371
    %v5373 = vand.u32 %v5372, 4294901760
    %5374 = vmatpush1.msra.mxu0 %v5373
    %v5375 = vand.u32 %v4624, 4294901760
    %5376 = vmatprep.mubr.f32.mxu0 %v5375
    %v5377 = vand.u32 %v3979, 4294901760
    %5378 = vmatmul.mubr.f32.gmra.mrb[0].mxu0 %v5377
    %v5379 = vpop.f32.mrb[0].mxu0
    %v5380 = vadd.f32 %v5212, %v5379
    %v5381 = vpop.f32.mrb[0].mxu0
    %5382 = vdwg.mxu0
    %5383 = vmatprep.subr.mxu0 0.0
    %v5384 = vand.u32 %v42, 4294901760
    %5385 = vmatpush1.msra.mxu0 %v5384
    %5386 = vmatprep.subr.mxu0 0.0
    %v5387 = vand.u32 %v43, 4294901760
    %5388 = vmatpush1.msra.mxu0 %v5387
    %5389 = vmatprep.subr.mxu0 0.0
    %v5390 = vand.u32 %v44, 4294901760
    %5391 = vmatpush1.msra.mxu0 %v5390
    %5392 = vmatprep.subr.mxu0 0.0
    %v5393 = vand.u32 %v45, 4294901760
    %5394 = vmatpush1.msra.mxu0 %v5393
    %5395 = vmatprep.subr.mxu0 0.0
    %v5396 = vand.u32 %v46, 4294901760
    %5397 = vmatpush1.msra.mxu0 %v5396
    %5398 = vmatprep.subr.mxu0 0.0
    %v5399 = vand.u32 %v47, 4294901760
    %5400 = vmatpush1.msra.mxu0 %v5399
    %5401 = vmatprep.subr.mxu0 0.0
    %v5402 = vand.u32 %v48, 4294901760
    %5403 = vmatpush1.msra.mxu0 %v5402
    %5404 = vmatprep.subr.mxu0 0.0
    %v5405 = vand.u32 %v49, 4294901760
    %5406 = vmatpush1.msra.mxu0 %v5405
    %5407 = vmatprep.subr.mxu0 0.0
    %v5408 = vand.u32 %v50, 4294901760
    %5409 = vmatpush1.msra.mxu0 %v5408
    %5410 = vmatprep.subr.mxu0 0.0
    %v5411 = vand.u32 %v51, 4294901760
    %5412 = vmatpush1.msra.mxu0 %v5411
    %5413 = vmatprep.subr.mxu0 0.0
    %v5414 = vand.u32 %v52, 4294901760
    %5415 = vmatpush1.msra.mxu0 %v5414
    %5416 = vmatprep.subr.mxu0 0.0
    %v5417 = vand.u32 %v53, 4294901760
    %5418 = vmatpush1.msra.mxu0 %v5417
    %5419 = vmatprep.subr.mxu0 0.0
    %v5420 = vand.u32 %v54, 4294901760
    %5421 = vmatpush1.msra.mxu0 %v5420
    %5422 = vmatprep.subr.mxu0 0.0
    %v5423 = vand.u32 %v55, 4294901760
    %5424 = vmatpush1.msra.mxu0 %v5423
    %5425 = vmatprep.subr.mxu0 0.0
    %v5426 = vand.u32 %v56, 4294901760
    %5427 = vmatpush1.msra.mxu0 %v5426
    %5428 = vmatprep.subr.mxu0 0.0
    %v5429 = vand.u32 %v57, 4294901760
    %5430 = vmatpush1.msra.mxu0 %v5429
    %5431 = vmatprep.subr.mxu0 0.0
    %v5432 = vand.u32 %v58, 4294901760
    %5433 = vmatpush1.msra.mxu0 %v5432
    %5434 = vmatprep.subr.mxu0 0.0
    %v5435 = vand.u32 %v59, 4294901760
    %5436 = vmatpush1.msra.mxu0 %v5435
    %5437 = vmatprep.subr.mxu0 0.0
    %v5438 = vand.u32 %v60, 4294901760
    %5439 = vmatpush1.msra.mxu0 %v5438
    %5440 = vmatprep.subr.mxu0 0.0
    %v5441 = vand.u32 %v61, 4294901760
    %5442 = vmatpush1.msra.mxu0 %v5441
    %5443 = vmatprep.subr.mxu0 0.0
    %v5444 = vand.u32 %v62, 4294901760
    %5445 = vmatpush1.msra.mxu0 %v5444
    %5446 = vmatprep.subr.mxu0 0.0
    %v5447 = vand.u32 %v63, 4294901760
    %5448 = vmatpush1.msra.mxu0 %v5447
    %5449 = vmatprep.subr.mxu0 0.0
    %v5450 = vand.u32 %v64, 4294901760
    %5451 = vmatpush1.msra.mxu0 %v5450
    %5452 = vmatprep.subr.mxu0 0.0
    %v5453 = vand.u32 %v65, 4294901760
    %5454 = vmatpush1.msra.mxu0 %v5453
    %5455 = vmatprep.subr.mxu0 0.0
    %v5456 = vand.u32 %v66, 4294901760
    %5457 = vmatpush1.msra.mxu0 %v5456
    %5458 = vmatprep.subr.mxu0 0.0
    %v5459 = vand.u32 %v67, 4294901760
    %5460 = vmatpush1.msra.mxu0 %v5459
    %5461 = vmatprep.subr.mxu0 0.0
    %v5462 = vand.u32 %v68, 4294901760
    %5463 = vmatpush1.msra.mxu0 %v5462
    %5464 = vmatprep.subr.mxu0 0.0
    %v5465 = vand.u32 %v69, 4294901760
    %5466 = vmatpush1.msra.mxu0 %v5465
    %5467 = vmatprep.subr.mxu0 0.0
    %v5468 = vand.u32 %v70, 4294901760
    %5469 = vmatpush1.msra.mxu0 %v5468
    %5470 = vmatprep.subr.mxu0 0.0
    %v5471 = vand.u32 %v71, 4294901760
    %5472 = vmatpush1.msra.mxu0 %v5471
    %5473 = vmatprep.subr.mxu0 0.0
    %v5474 = vand.u32 %v72, 4294901760
    %5475 = vmatpush1.msra.mxu0 %v5474
    %5476 = vmatprep.subr.mxu0 0.0
    %v5477 = vand.u32 %v73, 4294901760
    %5478 = vmatpush1.msra.mxu0 %v5477
    %v5479 = vand.u32 %v4624, 4294901760
    %5480 = vmatprep.mubr.f32.mxu0 %v5479
    %v5481 = vand.u32 %v3979, 4294901760
    %5482 = vmatmul.mubr.f32.gmra.mrb[0].mxu0 %v5481
    %v5483 = vpop.f32.mrb[0].mxu0
    %v5484 = vadd.f32 %v5380, %v5483
    %v5485 = vpop.f32.mrb[0].mxu0
    %5486 = vdwg.mxu0
    %v5487 = vtanh.pop %v5484
    %v5488 = vmul.f32 %v3979, 0.9
    %v5489 = vmul.f32 %v5487, 0.1
    %v5490 = vadd.f32 %v5488, %v5489
    %5491 = vmatprep.subr.mxu0 0.0
    %v5492 = vand.u32 %v74, 4294901760
    %5493 = vmatpush1.msra.mxu0 %v5492
    %5494 = vmatprep.subr.mxu0 0.0
    %v5495 = vand.u32 %v75, 4294901760
    %5496 = vmatpush1.msra.mxu0 %v5495
    %5497 = vmatprep.subr.mxu0 0.0
    %v5498 = vand.u32 %v76, 4294901760
    %5499 = vmatpush1.msra.mxu0 %v5498
    %5500 = vmatprep.subr.mxu0 0.0
    %v5501 = vand.u32 %v77, 4294901760
    %5502 = vmatpush1.msra.mxu0 %v5501
    %5503 = vmatprep.subr.mxu0 0.0
    %v5504 = vand.u32 %v78, 4294901760
    %5505 = vmatpush1.msra.mxu0 %v5504
    %5506 = vmatprep.subr.mxu0 0.0
    %v5507 = vand.u32 %v79, 4294901760
    %5508 = vmatpush1.msra.mxu0 %v5507
    %5509 = vmatprep.subr.mxu0 0.0
    %v5510 = vand.u32 %v80, 4294901760
    %5511 = vmatpush1.msra.mxu0 %v5510
    %5512 = vmatprep.subr.mxu0 0.0
    %v5513 = vand.u32 %v81, 4294901760
    %5514 = vmatpush1.msra.mxu0 %v5513
    %5515 = vmatprep.subr.mxu0 0.0
    %v5516 = vand.u32 %v82, 4294901760
    %5517 = vmatpush1.msra.mxu0 %v5516
    %5518 = vmatprep.subr.mxu0 0.0
    %v5519 = vand.u32 %v83, 4294901760
    %5520 = vmatpush1.msra.mxu0 %v5519
    %5521 = vmatprep.subr.mxu0 0.0
    %v5522 = vand.u32 %v84, 4294901760
    %5523 = vmatpush1.msra.mxu0 %v5522
    %5524 = vmatprep.subr.mxu0 0.0
    %v5525 = vand.u32 %v85, 4294901760
    %5526 = vmatpush1.msra.mxu0 %v5525
    %5527 = vmatprep.subr.mxu0 0.0
    %v5528 = vand.u32 %v86, 4294901760
    %5529 = vmatpush1.msra.mxu0 %v5528
    %5530 = vmatprep.subr.mxu0 0.0
    %v5531 = vand.u32 %v87, 4294901760
    %5532 = vmatpush1.msra.mxu0 %v5531
    %5533 = vmatprep.subr.mxu0 0.0
    %v5534 = vand.u32 %v88, 4294901760
    %5535 = vmatpush1.msra.mxu0 %v5534
    %5536 = vmatprep.subr.mxu0 0.0
    %v5537 = vand.u32 %v89, 4294901760
    %5538 = vmatpush1.msra.mxu0 %v5537
    %5539 = vmatprep.subr.mxu0 0.0
    %5540 = vmatpush1.msra.mxu0 0.0
    %5541 = vmatprep.subr.mxu0 0.0
    %5542 = vmatpush1.msra.mxu0 0.0
    %5543 = vmatprep.subr.mxu0 0.0
    %5544 = vmatpush1.msra.mxu0 0.0
    %5545 = vmatprep.subr.mxu0 0.0
    %5546 = vmatpush1.msra.mxu0 0.0
    %5547 = vmatprep.subr.mxu0 0.0
    %5548 = vmatpush1.msra.mxu0 0.0
    %5549 = vmatprep.subr.mxu0 0.0
    %5550 = vmatpush1.msra.mxu0 0.0
    %5551 = vmatprep.subr.mxu0 0.0
    %5552 = vmatpush1.msra.mxu0 0.0
    %5553 = vmatprep.subr.mxu0 0.0
    %5554 = vmatpush1.msra.mxu0 0.0
    %5555 = vmatprep.subr.mxu0 0.0
    %5556 = vmatpush1.msra.mxu0 0.0
    %5557 = vmatprep.subr.mxu0 0.0
    %5558 = vmatpush1.msra.mxu0 0.0
    %5559 = vmatprep.subr.mxu0 0.0
    %5560 = vmatpush1.msra.mxu0 0.0
    %5561 = vmatprep.subr.mxu0 0.0
    %5562 = vmatpush1.msra.mxu0 0.0
    %5563 = vmatprep.subr.mxu0 0.0
    %5564 = vmatpush1.msra.mxu0 0.0
    %5565 = vmatprep.subr.mxu0 0.0
    %5566 = vmatpush1.msra.mxu0 0.0
    %5567 = vmatprep.subr.mxu0 0.0
    %5568 = vmatpush1.msra.mxu0 0.0
    %5569 = vmatprep.subr.mxu0 0.0
    %5570 = vmatpush1.msra.mxu0 0.0
    %5571 = vmatprep.mubr.f32.mxu0 0.0
    %v5572 = vand.u32 %v5490, 4294901760
    %v5573 = vsub.f32 %v5490, %v5572
    %v5574 = vand.u32 %v5573, 4294901760
    %v5575 = vsub.f32 %v5573, %v5574
    %v5576 = vand.u32 %v5575, 4294901760
    %5577 = vmatmul.mubr.f32.gmra.mrb[0].mxu0 %v5576
    %v5578 = vpop.f32.mrb[0].mxu0
    %v5579 = vadd.f32 %v90, %v5578
    %v5580 = vpop.f32.mrb[0].mxu0
    %5581 = vdwg.mxu0
    %5582 = vmatprep.subr.mxu0 0.0
    %v5583 = vand.u32 %v74, 4294901760
    %v5584 = vsub.f32 %v74, %v5583
    %v5585 = vand.u32 %v5584, 4294901760
    %v5586 = vsub.f32 %v5584, %v5585
    %v5587 = vand.u32 %v5586, 4294901760
    %5588 = vmatpush1.msra.mxu0 %v5587
    %5589 = vmatprep.subr.mxu0 0.0
    %v5590 = vand.u32 %v75, 4294901760
    %v5591 = vsub.f32 %v75, %v5590
    %v5592 = vand.u32 %v5591, 4294901760
    %v5593 = vsub.f32 %v5591, %v5592
    %v5594 = vand.u32 %v5593, 4294901760
    %5595 = vmatpush1.msra.mxu0 %v5594
    %5596 = vmatprep.subr.mxu0 0.0
    %v5597 = vand.u32 %v76, 4294901760
    %v5598 = vsub.f32 %v76, %v5597
    %v5599 = vand.u32 %v5598, 4294901760
    %v5600 = vsub.f32 %v5598, %v5599
    %v5601 = vand.u32 %v5600, 4294901760
    %5602 = vmatpush1.msra.mxu0 %v5601
    %5603 = vmatprep.subr.mxu0 0.0
    %v5604 = vand.u32 %v77, 4294901760
    %v5605 = vsub.f32 %v77, %v5604
    %v5606 = vand.u32 %v5605, 4294901760
    %v5607 = vsub.f32 %v5605, %v5606
    %v5608 = vand.u32 %v5607, 4294901760
    %5609 = vmatpush1.msra.mxu0 %v5608
    %5610 = vmatprep.subr.mxu0 0.0
    %v5611 = vand.u32 %v78, 4294901760
    %v5612 = vsub.f32 %v78, %v5611
    %v5613 = vand.u32 %v5612, 4294901760
    %v5614 = vsub.f32 %v5612, %v5613
    %v5615 = vand.u32 %v5614, 4294901760
    %5616 = vmatpush1.msra.mxu0 %v5615
    %5617 = vmatprep.subr.mxu0 0.0
    %v5618 = vand.u32 %v79, 4294901760
    %v5619 = vsub.f32 %v79, %v5618
    %v5620 = vand.u32 %v5619, 4294901760
    %v5621 = vsub.f32 %v5619, %v5620
    %v5622 = vand.u32 %v5621, 4294901760
    %5623 = vmatpush1.msra.mxu0 %v5622
    %5624 = vmatprep.subr.mxu0 0.0
    %v5625 = vand.u32 %v80, 4294901760
    %v5626 = vsub.f32 %v80, %v5625
    %v5627 = vand.u32 %v5626, 4294901760
    %v5628 = vsub.f32 %v5626, %v5627
    %v5629 = vand.u32 %v5628, 4294901760
    %5630 = vmatpush1.msra.mxu0 %v5629
    %5631 = vmatprep.subr.mxu0 0.0
    %v5632 = vand.u32 %v81, 4294901760
    %v5633 = vsub.f32 %v81, %v5632
    %v5634 = vand.u32 %v5633, 4294901760
    %v5635 = vsub.f32 %v5633, %v5634
    %v5636 = vand.u32 %v5635, 4294901760
    %5637 = vmatpush1.msra.mxu0 %v5636
    %5638 = vmatprep.subr.mxu0 0.0
    %v5639 = vand.u32 %v82, 4294901760
    %v5640 = vsub.f32 %v82, %v5639
    %v5641 = vand.u32 %v5640, 4294901760
    %v5642 = vsub.f32 %v5640, %v5641
    %v5643 = vand.u32 %v5642, 4294901760
    %5644 = vmatpush1.msra.mxu0 %v5643
    %5645 = vmatprep.subr.mxu0 0.0
    %v5646 = vand.u32 %v83, 4294901760
    %v5647 = vsub.f32 %v83, %v5646
    %v5648 = vand.u32 %v5647, 4294901760
    %v5649 = vsub.f32 %v5647, %v5648
    %v5650 = vand.u32 %v5649, 4294901760
    %5651 = vmatpush1.msra.mxu0 %v5650
    %5652 = vmatprep.subr.mxu0 0.0
    %v5653 = vand.u32 %v84, 4294901760
    %v5654 = vsub.f32 %v84, %v5653
    %v5655 = vand.u32 %v5654, 4294901760
    %v5656 = vsub.f32 %v5654, %v5655
    %v5657 = vand.u32 %v5656, 4294901760
    %5658 = vmatpush1.msra.mxu0 %v5657
    %5659 = vmatprep.subr.mxu0 0.0
    %v5660 = vand.u32 %v85, 4294901760
    %v5661 = vsub.f32 %v85, %v5660
    %v5662 = vand.u32 %v5661, 4294901760
    %v5663 = vsub.f32 %v5661, %v5662
    %v5664 = vand.u32 %v5663, 4294901760
    %5665 = vmatpush1.msra.mxu0 %v5664
    %5666 = vmatprep.subr.mxu0 0.0
    %v5667 = vand.u32 %v86, 4294901760
    %v5668 = vsub.f32 %v86, %v5667
    %v5669 = vand.u32 %v5668, 4294901760
    %v5670 = vsub.f32 %v5668, %v5669
    %v5671 = vand.u32 %v5670, 4294901760
    %5672 = vmatpush1.msra.mxu0 %v5671
    %5673 = vmatprep.subr.mxu0 0.0
    %v5674 = vand.u32 %v87, 4294901760
    %v5675 = vsub.f32 %v87, %v5674
    %v5676 = vand.u32 %v5675, 4294901760
    %v5677 = vsub.f32 %v5675, %v5676
    %v5678 = vand.u32 %v5677, 4294901760
    %5679 = vmatpush1.msra.mxu0 %v5678
    %5680 = vmatprep.subr.mxu0 0.0
    %v5681 = vand.u32 %v88, 4294901760
    %v5682 = vsub.f32 %v88, %v5681
    %v5683 = vand.u32 %v5682, 4294901760
    %v5684 = vsub.f32 %v5682, %v5683
    %v5685 = vand.u32 %v5684, 4294901760
    %5686 = vmatpush1.msra.mxu0 %v5685
    %5687 = vmatprep.subr.mxu0 0.0
    %v5688 = vand.u32 %v89, 4294901760
    %v5689 = vsub.f32 %v89, %v5688
    %v5690 = vand.u32 %v5689, 4294901760
    %v5691 = vsub.f32 %v5689, %v5690
    %v5692 = vand.u32 %v5691, 4294901760
    %5693 = vmatpush1.msra.mxu0 %v5692
    %5694 = vmatprep.subr.mxu0 0.0
    %5695 = vmatpush1.msra.mxu0 0.0
    %5696 = vmatprep.subr.mxu0 0.0
    %5697 = vmatpush1.msra.mxu0 0.0
    %5698 = vmatprep.subr.mxu0 0.0
    %5699 = vmatpush1.msra.mxu0 0.0
    %5700 = vmatprep.subr.mxu0 0.0
    %5701 = vmatpush1.msra.mxu0 0.0
    %5702 = vmatprep.subr.mxu0 0.0
    %5703 = vmatpush1.msra.mxu0 0.0
    %5704 = vmatprep.subr.mxu0 0.0
    %5705 = vmatpush1.msra.mxu0 0.0
    %5706 = vmatprep.subr.mxu0 0.0
    %5707 = vmatpush1.msra.mxu0 0.0
    %5708 = vmatprep.subr.mxu0 0.0
    %5709 = vmatpush1.msra.mxu0 0.0
    %5710 = vmatprep.subr.mxu0 0.0
    %5711 = vmatpush1.msra.mxu0 0.0
    %5712 = vmatprep.subr.mxu0 0.0
    %5713 = vmatpush1.msra.mxu0 0.0
    %5714 = vmatprep.subr.mxu0 0.0
    %5715 = vmatpush1.msra.mxu0 0.0
    %5716 = vmatprep.subr.mxu0 0.0
    %5717 = vmatpush1.msra.mxu0 0.0
    %5718 = vmatprep.subr.mxu0 0.0
    %5719 = vmatpush1.msra.mxu0 0.0
    %5720 = vmatprep.subr.mxu0 0.0
    %5721 = vmatpush1.msra.mxu0 0.0
    %5722 = vmatprep.subr.mxu0 0.0
    %5723 = vmatpush1.msra.mxu0 0.0
    %5724 = vmatprep.subr.mxu0 0.0
    %5725 = vmatpush1.msra.mxu0 0.0
    %5726 = vmatprep.mubr.f32.mxu0 0.0
    %v5727 = vand.u32 %v5490, 4294901760
    %5728 = vmatmul.mubr.f32.gmra.mrb[0].mxu0 %v5727
    %v5729 = vpop.f32.mrb[0].mxu0
    %v5730 = vadd.f32 %v5579, %v5729
    %v5731 = vpop.f32.mrb[0].mxu0
    %5732 = vdwg.mxu0
    %5733 = vmatprep.subr.mxu0 0.0
    %v5734 = vand.u32 %v74, 4294901760
    %v5735 = vsub.f32 %v74, %v5734
    %5736 = vmatpush1.msra.mxu0 %v5735
    %5737 = vmatprep.subr.mxu0 0.0
    %v5738 = vand.u32 %v75, 4294901760
    %v5739 = vsub.f32 %v75, %v5738
    %5740 = vmatpush1.msra.mxu0 %v5739
    %5741 = vmatprep.subr.mxu0 0.0
    %v5742 = vand.u32 %v76, 4294901760
    %v5743 = vsub.f32 %v76, %v5742
    %5744 = vmatpush1.msra.mxu0 %v5743
    %5745 = vmatprep.subr.mxu0 0.0
    %v5746 = vand.u32 %v77, 4294901760
    %v5747 = vsub.f32 %v77, %v5746
    %5748 = vmatpush1.msra.mxu0 %v5747
    %5749 = vmatprep.subr.mxu0 0.0
    %v5750 = vand.u32 %v78, 4294901760
    %v5751 = vsub.f32 %v78, %v5750
    %5752 = vmatpush1.msra.mxu0 %v5751
    %5753 = vmatprep.subr.mxu0 0.0
    %v5754 = vand.u32 %v79, 4294901760
    %v5755 = vsub.f32 %v79, %v5754
    %5756 = vmatpush1.msra.mxu0 %v5755
    %5757 = vmatprep.subr.mxu0 0.0
    %v5758 = vand.u32 %v80, 4294901760
    %v5759 = vsub.f32 %v80, %v5758
    %5760 = vmatpush1.msra.mxu0 %v5759
    %5761 = vmatprep.subr.mxu0 0.0
    %v5762 = vand.u32 %v81, 4294901760
    %v5763 = vsub.f32 %v81, %v5762
    %5764 = vmatpush1.msra.mxu0 %v5763
    %5765 = vmatprep.subr.mxu0 0.0
    %v5766 = vand.u32 %v82, 4294901760
    %v5767 = vsub.f32 %v82, %v5766
    %5768 = vmatpush1.msra.mxu0 %v5767
    %5769 = vmatprep.subr.mxu0 0.0
    %v5770 = vand.u32 %v83, 4294901760
    %v5771 = vsub.f32 %v83, %v5770
    %5772 = vmatpush1.msra.mxu0 %v5771
    %5773 = vmatprep.subr.mxu0 0.0
    %v5774 = vand.u32 %v84, 4294901760
    %v5775 = vsub.f32 %v84, %v5774
    %5776 = vmatpush1.msra.mxu0 %v5775
    %5777 = vmatprep.subr.mxu0 0.0
    %v5778 = vand.u32 %v85, 4294901760
    %v5779 = vsub.f32 %v85, %v5778
    %5780 = vmatpush1.msra.mxu0 %v5779
    %5781 = vmatprep.subr.mxu0 0.0
    %v5782 = vand.u32 %v86, 4294901760
    %v5783 = vsub.f32 %v86, %v5782
    %5784 = vmatpush1.msra.mxu0 %v5783
    %5785 = vmatprep.subr.mxu0 0.0
    %v5786 = vand.u32 %v87, 4294901760
    %v5787 = vsub.f32 %v87, %v5786
    %5788 = vmatpush1.msra.mxu0 %v5787
    %5789 = vmatprep.subr.mxu0 0.0
    %v5790 = vand.u32 %v88, 4294901760
    %v5791 = vsub.f32 %v88, %v5790
    %5792 = vmatpush1.msra.mxu0 %v5791
    %5793 = vmatprep.subr.mxu0 0.0
    %v5794 = vand.u32 %v89, 4294901760
    %v5795 = vsub.f32 %v89, %v5794
    %5796 = vmatpush1.msra.mxu0 %v5795
    %5797 = vmatprep.subr.mxu0 0.0
    %5798 = vmatpush1.msra.mxu0 0.0
    %5799 = vmatprep.subr.mxu0 0.0
    %5800 = vmatpush1.msra.mxu0 0.0
    %5801 = vmatprep.subr.mxu0 0.0
    %5802 = vmatpush1.msra.mxu0 0.0
    %5803 = vmatprep.subr.mxu0 0.0
    %5804 = vmatpush1.msra.mxu0 0.0
    %5805 = vmatprep.subr.mxu0 0.0
    %5806 = vmatpush1.msra.mxu0 0.0
    %5807 = vmatprep.subr.mxu0 0.0
    %5808 = vmatpush1.msra.mxu0 0.0
    %5809 = vmatprep.subr.mxu0 0.0
    %5810 = vmatpush1.msra.mxu0 0.0
    %5811 = vmatprep.subr.mxu0 0.0
    %5812 = vmatpush1.msra.mxu0 0.0
    %5813 = vmatprep.subr.mxu0 0.0
    %5814 = vmatpush1.msra.mxu0 0.0
    %5815 = vmatprep.subr.mxu0 0.0
    %5816 = vmatpush1.msra.mxu0 0.0
    %5817 = vmatprep.subr.mxu0 0.0
    %5818 = vmatpush1.msra.mxu0 0.0
    %5819 = vmatprep.subr.mxu0 0.0
    %5820 = vmatpush1.msra.mxu0 0.0
    %5821 = vmatprep.subr.mxu0 0.0
    %5822 = vmatpush1.msra.mxu0 0.0
    %5823 = vmatprep.subr.mxu0 0.0
    %5824 = vmatpush1.msra.mxu0 0.0
    %5825 = vmatprep.subr.mxu0 0.0
    %5826 = vmatpush1.msra.mxu0 0.0
    %5827 = vmatprep.subr.mxu0 0.0
    %5828 = vmatpush1.msra.mxu0 0.0
    %5829 = vmatprep.mubr.f32.mxu0 0.0
    %v5830 = vand.u32 %v5490, 4294901760
    %v5831 = vsub.f32 %v5490, %v5830
    %5832 = vmatmul.mubr.f32.gmra.mrb[0].mxu0 %v5831
    %v5833 = vpop.f32.mrb[0].mxu0
    %v5834 = vadd.f32 %v5730, %v5833
    %v5835 = vpop.f32.mrb[0].mxu0
    %5836 = vdwg.mxu0
    %5837 = vmatprep.subr.mxu0 0.0
    %v5838 = vand.u32 %v74, 4294901760
    %5839 = vmatpush1.msra.mxu0 %v5838
    %5840 = vmatprep.subr.mxu0 0.0
    %v5841 = vand.u32 %v75, 4294901760
    %5842 = vmatpush1.msra.mxu0 %v5841
    %5843 = vmatprep.subr.mxu0 0.0
    %v5844 = vand.u32 %v76, 4294901760
    %5845 = vmatpush1.msra.mxu0 %v5844
    %5846 = vmatprep.subr.mxu0 0.0
    %v5847 = vand.u32 %v77, 4294901760
    %5848 = vmatpush1.msra.mxu0 %v5847
    %5849 = vmatprep.subr.mxu0 0.0
    %v5850 = vand.u32 %v78, 4294901760
    %5851 = vmatpush1.msra.mxu0 %v5850
    %5852 = vmatprep.subr.mxu0 0.0
    %v5853 = vand.u32 %v79, 4294901760
    %5854 = vmatpush1.msra.mxu0 %v5853
    %5855 = vmatprep.subr.mxu0 0.0
    %v5856 = vand.u32 %v80, 4294901760
    %5857 = vmatpush1.msra.mxu0 %v5856
    %5858 = vmatprep.subr.mxu0 0.0
    %v5859 = vand.u32 %v81, 4294901760
    %5860 = vmatpush1.msra.mxu0 %v5859
    %5861 = vmatprep.subr.mxu0 0.0
    %v5862 = vand.u32 %v82, 4294901760
    %5863 = vmatpush1.msra.mxu0 %v5862
    %5864 = vmatprep.subr.mxu0 0.0
    %v5865 = vand.u32 %v83, 4294901760
    %5866 = vmatpush1.msra.mxu0 %v5865
    %5867 = vmatprep.subr.mxu0 0.0
    %v5868 = vand.u32 %v84, 4294901760
    %5869 = vmatpush1.msra.mxu0 %v5868
    %5870 = vmatprep.subr.mxu0 0.0
    %v5871 = vand.u32 %v85, 4294901760
    %5872 = vmatpush1.msra.mxu0 %v5871
    %5873 = vmatprep.subr.mxu0 0.0
    %v5874 = vand.u32 %v86, 4294901760
    %5875 = vmatpush1.msra.mxu0 %v5874
    %5876 = vmatprep.subr.mxu0 0.0
    %v5877 = vand.u32 %v87, 4294901760
    %5878 = vmatpush1.msra.mxu0 %v5877
    %5879 = vmatprep.subr.mxu0 0.0
    %v5880 = vand.u32 %v88, 4294901760
    %5881 = vmatpush1.msra.mxu0 %v5880
    %5882 = vmatprep.subr.mxu0 0.0
    %v5883 = vand.u32 %v89, 4294901760
    %5884 = vmatpush1.msra.mxu0 %v5883
    %5885 = vmatprep.subr.mxu0 0.0
    %5886 = vmatpush1.msra.mxu0 0.0
    %5887 = vmatprep.subr.mxu0 0.0
    %5888 = vmatpush1.msra.mxu0 0.0
    %5889 = vmatprep.subr.mxu0 0.0
    %5890 = vmatpush1.msra.mxu0 0.0
    %5891 = vmatprep.subr.mxu0 0.0
    %5892 = vmatpush1.msra.mxu0 0.0
    %5893 = vmatprep.subr.mxu0 0.0
    %5894 = vmatpush1.msra.mxu0 0.0
    %5895 = vmatprep.subr.mxu0 0.0
    %5896 = vmatpush1.msra.mxu0 0.0
    %5897 = vmatprep.subr.mxu0 0.0
    %5898 = vmatpush1.msra.mxu0 0.0
    %5899 = vmatprep.subr.mxu0 0.0
    %5900 = vmatpush1.msra.mxu0 0.0
    %5901 = vmatprep.subr.mxu0 0.0
    %5902 = vmatpush1.msra.mxu0 0.0
    %5903 = vmatprep.subr.mxu0 0.0
    %5904 = vmatpush1.msra.mxu0 0.0
    %5905 = vmatprep.subr.mxu0 0.0
    %5906 = vmatpush1.msra.mxu0 0.0
    %5907 = vmatprep.subr.mxu0 0.0
    %5908 = vmatpush1.msra.mxu0 0.0
    %5909 = vmatprep.subr.mxu0 0.0
    %5910 = vmatpush1.msra.mxu0 0.0
    %5911 = vmatprep.subr.mxu0 0.0
    %5912 = vmatpush1.msra.mxu0 0.0
    %5913 = vmatprep.subr.mxu0 0.0
    %5914 = vmatpush1.msra.mxu0 0.0
    %5915 = vmatprep.subr.mxu0 0.0
    %5916 = vmatpush1.msra.mxu0 0.0
    %5917 = vmatprep.mubr.f32.mxu0 0.0
    %v5918 = vand.u32 %v5490, 4294901760
    %v5919 = vsub.f32 %v5490, %v5918
    %v5920 = vand.u32 %v5919, 4294901760
    %5921 = vmatmul.mubr.f32.gmra.mrb[0].mxu0 %v5920
    %v5922 = vpop.f32.mrb[0].mxu0
    %v5923 = vadd.f32 %v5834, %v5922
    %v5924 = vpop.f32.mrb[0].mxu0
    %5925 = vdwg.mxu0
    %5926 = vmatprep.subr.mxu0 0.0
    %v5927 = vand.u32 %v74, 4294901760
    %v5928 = vsub.f32 %v74, %v5927
    %v5929 = vand.u32 %v5928, 4294901760
    %5930 = vmatpush1.msra.mxu0 %v5929
    %5931 = vmatprep.subr.mxu0 0.0
    %v5932 = vand.u32 %v75, 4294901760
    %v5933 = vsub.f32 %v75, %v5932
    %v5934 = vand.u32 %v5933, 4294901760
    %5935 = vmatpush1.msra.mxu0 %v5934
    %5936 = vmatprep.subr.mxu0 0.0
    %v5937 = vand.u32 %v76, 4294901760
    %v5938 = vsub.f32 %v76, %v5937
    %v5939 = vand.u32 %v5938, 4294901760
    %5940 = vmatpush1.msra.mxu0 %v5939
    %5941 = vmatprep.subr.mxu0 0.0
    %v5942 = vand.u32 %v77, 4294901760
    %v5943 = vsub.f32 %v77, %v5942
    %v5944 = vand.u32 %v5943, 4294901760
    %5945 = vmatpush1.msra.mxu0 %v5944
    %5946 = vmatprep.subr.mxu0 0.0
    %v5947 = vand.u32 %v78, 4294901760
    %v5948 = vsub.f32 %v78, %v5947
    %v5949 = vand.u32 %v5948, 4294901760
    %5950 = vmatpush1.msra.mxu0 %v5949
    %5951 = vmatprep.subr.mxu0 0.0
    %v5952 = vand.u32 %v79, 4294901760
    %v5953 = vsub.f32 %v79, %v5952
    %v5954 = vand.u32 %v5953, 4294901760
    %5955 = vmatpush1.msra.mxu0 %v5954
    %5956 = vmatprep.subr.mxu0 0.0
    %v5957 = vand.u32 %v80, 4294901760
    %v5958 = vsub.f32 %v80, %v5957
    %v5959 = vand.u32 %v5958, 4294901760
    %5960 = vmatpush1.msra.mxu0 %v5959
    %5961 = vmatprep.subr.mxu0 0.0
    %v5962 = vand.u32 %v81, 4294901760
    %v5963 = vsub.f32 %v81, %v5962
    %v5964 = vand.u32 %v5963, 4294901760
    %5965 = vmatpush1.msra.mxu0 %v5964
    %5966 = vmatprep.subr.mxu0 0.0
    %v5967 = vand.u32 %v82, 4294901760
    %v5968 = vsub.f32 %v82, %v5967
    %v5969 = vand.u32 %v5968, 4294901760
    %5970 = vmatpush1.msra.mxu0 %v5969
    %5971 = vmatprep.subr.mxu0 0.0
    %v5972 = vand.u32 %v83, 4294901760
    %v5973 = vsub.f32 %v83, %v5972
    %v5974 = vand.u32 %v5973, 4294901760
    %5975 = vmatpush1.msra.mxu0 %v5974
    %5976 = vmatprep.subr.mxu0 0.0
    %v5977 = vand.u32 %v84, 4294901760
    %v5978 = vsub.f32 %v84, %v5977
    %v5979 = vand.u32 %v5978, 4294901760
    %5980 = vmatpush1.msra.mxu0 %v5979
    %5981 = vmatprep.subr.mxu0 0.0
    %v5982 = vand.u32 %v85, 4294901760
    %v5983 = vsub.f32 %v85, %v5982
    %v5984 = vand.u32 %v5983, 4294901760
    %5985 = vmatpush1.msra.mxu0 %v5984
    %5986 = vmatprep.subr.mxu0 0.0
    %v5987 = vand.u32 %v86, 4294901760
    %v5988 = vsub.f32 %v86, %v5987
    %v5989 = vand.u32 %v5988, 4294901760
    %5990 = vmatpush1.msra.mxu0 %v5989
    %5991 = vmatprep.subr.mxu0 0.0
    %v5992 = vand.u32 %v87, 4294901760
    %v5993 = vsub.f32 %v87, %v5992
    %v5994 = vand.u32 %v5993, 4294901760
    %5995 = vmatpush1.msra.mxu0 %v5994
    %5996 = vmatprep.subr.mxu0 0.0
    %v5997 = vand.u32 %v88, 4294901760
    %v5998 = vsub.f32 %v88, %v5997
    %v5999 = vand.u32 %v5998, 4294901760
    %6000 = vmatpush1.msra.mxu0 %v5999
    %6001 = vmatprep.subr.mxu0 0.0
    %v6002 = vand.u32 %v89, 4294901760
    %v6003 = vsub.f32 %v89, %v6002
    %v6004 = vand.u32 %v6003, 4294901760
    %6005 = vmatpush1.msra.mxu0 %v6004
    %6006 = vmatprep.subr.mxu0 0.0
    %6007 = vmatpush1.msra.mxu0 0.0
    %6008 = vmatprep.subr.mxu0 0.0
    %6009 = vmatpush1.msra.mxu0 0.0
    %6010 = vmatprep.subr.mxu0 0.0
    %6011 = vmatpush1.msra.mxu0 0.0
    %6012 = vmatprep.subr.mxu0 0.0
    %6013 = vmatpush1.msra.mxu0 0.0
    %6014 = vmatprep.subr.mxu0 0.0
    %6015 = vmatpush1.msra.mxu0 0.0
    %6016 = vmatprep.subr.mxu0 0.0
    %6017 = vmatpush1.msra.mxu0 0.0
    %6018 = vmatprep.subr.mxu0 0.0
    %6019 = vmatpush1.msra.mxu0 0.0
    %6020 = vmatprep.subr.mxu0 0.0
    %6021 = vmatpush1.msra.mxu0 0.0
    %6022 = vmatprep.subr.mxu0 0.0
    %6023 = vmatpush1.msra.mxu0 0.0
    %6024 = vmatprep.subr.mxu0 0.0
    %6025 = vmatpush1.msra.mxu0 0.0
    %6026 = vmatprep.subr.mxu0 0.0
    %6027 = vmatpush1.msra.mxu0 0.0
    %6028 = vmatprep.subr.mxu0 0.0
    %6029 = vmatpush1.msra.mxu0 0.0
    %6030 = vmatprep.subr.mxu0 0.0
    %6031 = vmatpush1.msra.mxu0 0.0
    %6032 = vmatprep.subr.mxu0 0.0
    %6033 = vmatpush1.msra.mxu0 0.0
    %6034 = vmatprep.subr.mxu0 0.0
    %6035 = vmatpush1.msra.mxu0 0.0
    %6036 = vmatprep.subr.mxu0 0.0
    %6037 = vmatpush1.msra.mxu0 0.0
    %6038 = vmatprep.mubr.f32.mxu0 0.0
    %v6039 = vand.u32 %v5490, 4294901760
    %6040 = vmatmul.mubr.f32.gmra.mrb[0].mxu0 %v6039
    %v6041 = vpop.f32.mrb[0].mxu0
    %v6042 = vadd.f32 %v5923, %v6041
    %v6043 = vpop.f32.mrb[0].mxu0
    %6044 = vdwg.mxu0
    %6045 = vmatprep.subr.mxu0 0.0
    %v6046 = vand.u32 %v74, 4294901760
    %6047 = vmatpush1.msra.mxu0 %v6046
    %6048 = vmatprep.subr.mxu0 0.0
    %v6049 = vand.u32 %v75, 4294901760
    %6050 = vmatpush1.msra.mxu0 %v6049
    %6051 = vmatprep.subr.mxu0 0.0
    %v6052 = vand.u32 %v76, 4294901760
    %6053 = vmatpush1.msra.mxu0 %v6052
    %6054 = vmatprep.subr.mxu0 0.0
    %v6055 = vand.u32 %v77, 4294901760
    %6056 = vmatpush1.msra.mxu0 %v6055
    %6057 = vmatprep.subr.mxu0 0.0
    %v6058 = vand.u32 %v78, 4294901760
    %6059 = vmatpush1.msra.mxu0 %v6058
    %6060 = vmatprep.subr.mxu0 0.0
    %v6061 = vand.u32 %v79, 4294901760
    %6062 = vmatpush1.msra.mxu0 %v6061
    %6063 = vmatprep.subr.mxu0 0.0
    %v6064 = vand.u32 %v80, 4294901760
    %6065 = vmatpush1.msra.mxu0 %v6064
    %6066 = vmatprep.subr.mxu0 0.0
    %v6067 = vand.u32 %v81, 4294901760
    %6068 = vmatpush1.msra.mxu0 %v6067
    %6069 = vmatprep.subr.mxu0 0.0
    %v6070 = vand.u32 %v82, 4294901760
    %6071 = vmatpush1.msra.mxu0 %v6070
    %6072 = vmatprep.subr.mxu0 0.0
    %v6073 = vand.u32 %v83, 4294901760
    %6074 = vmatpush1.msra.mxu0 %v6073
    %6075 = vmatprep.subr.mxu0 0.0
    %v6076 = vand.u32 %v84, 4294901760
    %6077 = vmatpush1.msra.mxu0 %v6076
    %6078 = vmatprep.subr.mxu0 0.0
    %v6079 = vand.u32 %v85, 4294901760
    %6080 = vmatpush1.msra.mxu0 %v6079
    %6081 = vmatprep.subr.mxu0 0.0
    %v6082 = vand.u32 %v86, 4294901760
    %6083 = vmatpush1.msra.mxu0 %v6082
    %6084 = vmatprep.subr.mxu0 0.0
    %v6085 = vand.u32 %v87, 4294901760
    %6086 = vmatpush1.msra.mxu0 %v6085
    %6087 = vmatprep.subr.mxu0 0.0
    %v6088 = vand.u32 %v88, 4294901760
    %6089 = vmatpush1.msra.mxu0 %v6088
    %6090 = vmatprep.subr.mxu0 0.0
    %v6091 = vand.u32 %v89, 4294901760
    %6092 = vmatpush1.msra.mxu0 %v6091
    %6093 = vmatprep.subr.mxu0 0.0
    %6094 = vmatpush1.msra.mxu0 0.0
    %6095 = vmatprep.subr.mxu0 0.0
    %6096 = vmatpush1.msra.mxu0 0.0
    %6097 = vmatprep.subr.mxu0 0.0
    %6098 = vmatpush1.msra.mxu0 0.0
    %6099 = vmatprep.subr.mxu0 0.0
    %6100 = vmatpush1.msra.mxu0 0.0
    %6101 = vmatprep.subr.mxu0 0.0
    %6102 = vmatpush1.msra.mxu0 0.0
    %6103 = vmatprep.subr.mxu0 0.0
    %6104 = vmatpush1.msra.mxu0 0.0
    %6105 = vmatprep.subr.mxu0 0.0
    %6106 = vmatpush1.msra.mxu0 0.0
    %6107 = vmatprep.subr.mxu0 0.0
    %6108 = vmatpush1.msra.mxu0 0.0
    %6109 = vmatprep.subr.mxu0 0.0
    %6110 = vmatpush1.msra.mxu0 0.0
    %6111 = vmatprep.subr.mxu0 0.0
    %6112 = vmatpush1.msra.mxu0 0.0
    %6113 = vmatprep.subr.mxu0 0.0
    %6114 = vmatpush1.msra.mxu0 0.0
    %6115 = vmatprep.subr.mxu0 0.0
    %6116 = vmatpush1.msra.mxu0 0.0
    %6117 = vmatprep.subr.mxu0 0.0
    %6118 = vmatpush1.msra.mxu0 0.0
    %6119 = vmatprep.subr.mxu0 0.0
    %6120 = vmatpush1.msra.mxu0 0.0
    %6121 = vmatprep.subr.mxu0 0.0
    %6122 = vmatpush1.msra.mxu0 0.0
    %6123 = vmatprep.subr.mxu0 0.0
    %6124 = vmatpush1.msra.mxu0 0.0
    %6125 = vmatprep.mubr.f32.mxu0 0.0
    %v6126 = vand.u32 %v5490, 4294901760
    %6127 = vmatmul.mubr.f32.gmra.mrb[0].mxu0 %v6126
    %v6128 = vpop.f32.mrb[0].mxu0
    %v6129 = vadd.f32 %v6042, %v6128
    %v6130 = vpop.f32.mrb[0].mxu0
    %6131 = vdwg.mxu0
    %s6132 = scalar_lea.vmem %s5, 24
    %6133 = vst [vmem:[%s6132] sm:$0xff] %v6129
    %s6134 = scalar_lea.vmem %s0, 32
    %v6135 = vld [vmem:[%s6134] sm:$0xff]
    %6136 = vmatprep.subr.mxu0 0.0
    %v6137 = vand.u32 %v42, 4294901760
    %6138 = vmatpush1.msra.mxu0 %v6137
    %6139 = vmatprep.subr.mxu0 0.0
    %v6140 = vand.u32 %v43, 4294901760
    %6141 = vmatpush1.msra.mxu0 %v6140
    %6142 = vmatprep.subr.mxu0 0.0
    %v6143 = vand.u32 %v44, 4294901760
    %6144 = vmatpush1.msra.mxu0 %v6143
    %6145 = vmatprep.subr.mxu0 0.0
    %v6146 = vand.u32 %v45, 4294901760
    %6147 = vmatpush1.msra.mxu0 %v6146
    %6148 = vmatprep.subr.mxu0 0.0
    %v6149 = vand.u32 %v46, 4294901760
    %6150 = vmatpush1.msra.mxu0 %v6149
    %6151 = vmatprep.subr.mxu0 0.0
    %v6152 = vand.u32 %v47, 4294901760
    %6153 = vmatpush1.msra.mxu0 %v6152
    %6154 = vmatprep.subr.mxu0 0.0
    %v6155 = vand.u32 %v48, 4294901760
    %6156 = vmatpush1.msra.mxu0 %v6155
    %6157 = vmatprep.subr.mxu0 0.0
    %v6158 = vand.u32 %v49, 4294901760
    %6159 = vmatpush1.msra.mxu0 %v6158
    %6160 = vmatprep.subr.mxu0 0.0
    %v6161 = vand.u32 %v50, 4294901760
    %6162 = vmatpush1.msra.mxu0 %v6161
    %6163 = vmatprep.subr.mxu0 0.0
    %v6164 = vand.u32 %v51, 4294901760
    %6165 = vmatpush1.msra.mxu0 %v6164
    %6166 = vmatprep.subr.mxu0 0.0
    %v6167 = vand.u32 %v52, 4294901760
    %6168 = vmatpush1.msra.mxu0 %v6167
    %6169 = vmatprep.subr.mxu0 0.0
    %v6170 = vand.u32 %v53, 4294901760
    %6171 = vmatpush1.msra.mxu0 %v6170
    %6172 = vmatprep.subr.mxu0 0.0
    %v6173 = vand.u32 %v54, 4294901760
    %6174 = vmatpush1.msra.mxu0 %v6173
    %6175 = vmatprep.subr.mxu0 0.0
    %v6176 = vand.u32 %v55, 4294901760
    %6177 = vmatpush1.msra.mxu0 %v6176
    %6178 = vmatprep.subr.mxu0 0.0
    %v6179 = vand.u32 %v56, 4294901760
    %6180 = vmatpush1.msra.mxu0 %v6179
    %6181 = vmatprep.subr.mxu0 0.0
    %v6182 = vand.u32 %v57, 4294901760
    %6183 = vmatpush1.msra.mxu0 %v6182
    %6184 = vmatprep.subr.mxu0 0.0
    %v6185 = vand.u32 %v58, 4294901760
    %6186 = vmatpush1.msra.mxu0 %v6185
    %6187 = vmatprep.subr.mxu0 0.0
    %v6188 = vand.u32 %v59, 4294901760
    %6189 = vmatpush1.msra.mxu0 %v6188
    %6190 = vmatprep.subr.mxu0 0.0
    %v6191 = vand.u32 %v60, 4294901760
    %6192 = vmatpush1.msra.mxu0 %v6191
    %6193 = vmatprep.subr.mxu0 0.0
    %v6194 = vand.u32 %v61, 4294901760
    %6195 = vmatpush1.msra.mxu0 %v6194
    %6196 = vmatprep.subr.mxu0 0.0
    %v6197 = vand.u32 %v62, 4294901760
    %6198 = vmatpush1.msra.mxu0 %v6197
    %6199 = vmatprep.subr.mxu0 0.0
    %v6200 = vand.u32 %v63, 4294901760
    %6201 = vmatpush1.msra.mxu0 %v6200
    %6202 = vmatprep.subr.mxu0 0.0
    %v6203 = vand.u32 %v64, 4294901760
    %6204 = vmatpush1.msra.mxu0 %v6203
    %6205 = vmatprep.subr.mxu0 0.0
    %v6206 = vand.u32 %v65, 4294901760
    %6207 = vmatpush1.msra.mxu0 %v6206
    %6208 = vmatprep.subr.mxu0 0.0
    %v6209 = vand.u32 %v66, 4294901760
    %6210 = vmatpush1.msra.mxu0 %v6209
    %6211 = vmatprep.subr.mxu0 0.0
    %v6212 = vand.u32 %v67, 4294901760
    %6213 = vmatpush1.msra.mxu0 %v6212
    %6214 = vmatprep.subr.mxu0 0.0
    %v6215 = vand.u32 %v68, 4294901760
    %6216 = vmatpush1.msra.mxu0 %v6215
    %6217 = vmatprep.subr.mxu0 0.0
    %v6218 = vand.u32 %v69, 4294901760
    %6219 = vmatpush1.msra.mxu0 %v6218
    %6220 = vmatprep.subr.mxu0 0.0
    %v6221 = vand.u32 %v70, 4294901760
    %6222 = vmatpush1.msra.mxu0 %v6221
    %6223 = vmatprep.subr.mxu0 0.0
    %v6224 = vand.u32 %v71, 4294901760
    %6225 = vmatpush1.msra.mxu0 %v6224
    %6226 = vmatprep.subr.mxu0 0.0
    %v6227 = vand.u32 %v72, 4294901760
    %6228 = vmatpush1.msra.mxu0 %v6227
    %6229 = vmatprep.subr.mxu0 0.0
    %v6230 = vand.u32 %v73, 4294901760
    %6231 = vmatpush1.msra.mxu0 %v6230
    %v6232 = vand.u32 %v6135, 4294901760
    %v6233 = vsub.f32 %v6135, %v6232
    %v6234 = vand.u32 %v6233, 4294901760
    %v6235 = vsub.f32 %v6233, %v6234
    %v6236 = vand.u32 %v6235, 4294901760
    %6237 = vmatprep.mubr.f32.mxu0 %v6236
    %v6238 = vand.u32 %v5490, 4294901760
    %v6239 = vsub.f32 %v5490, %v6238
    %v6240 = vand.u32 %v6239, 4294901760
    %v6241 = vsub.f32 %v6239, %v6240
    %v6242 = vand.u32 %v6241, 4294901760
    %6243 = vmatmul.mubr.f32.gmra.mrb[0].mxu0 %v6242
    %v6244 = vpop.f32.mrb[0].mxu0
    %v6245 = vadd.f32 0.0, %v6244
    %v6246 = vpop.f32.mrb[0].mxu0
    %6247 = vdwg.mxu0
    %6248 = vmatprep.subr.mxu0 0.0
    %v6249 = vand.u32 %v42, 4294901760
    %v6250 = vsub.f32 %v42, %v6249
    %v6251 = vand.u32 %v6250, 4294901760
    %v6252 = vsub.f32 %v6250, %v6251
    %v6253 = vand.u32 %v6252, 4294901760
    %6254 = vmatpush1.msra.mxu0 %v6253
    %6255 = vmatprep.subr.mxu0 0.0
    %v6256 = vand.u32 %v43, 4294901760
    %v6257 = vsub.f32 %v43, %v6256
    %v6258 = vand.u32 %v6257, 4294901760
    %v6259 = vsub.f32 %v6257, %v6258
    %v6260 = vand.u32 %v6259, 4294901760
    %6261 = vmatpush1.msra.mxu0 %v6260
    %6262 = vmatprep.subr.mxu0 0.0
    %v6263 = vand.u32 %v44, 4294901760
    %v6264 = vsub.f32 %v44, %v6263
    %v6265 = vand.u32 %v6264, 4294901760
    %v6266 = vsub.f32 %v6264, %v6265
    %v6267 = vand.u32 %v6266, 4294901760
    %6268 = vmatpush1.msra.mxu0 %v6267
    %6269 = vmatprep.subr.mxu0 0.0
    %v6270 = vand.u32 %v45, 4294901760
    %v6271 = vsub.f32 %v45, %v6270
    %v6272 = vand.u32 %v6271, 4294901760
    %v6273 = vsub.f32 %v6271, %v6272
    %v6274 = vand.u32 %v6273, 4294901760
    %6275 = vmatpush1.msra.mxu0 %v6274
    %6276 = vmatprep.subr.mxu0 0.0
    %v6277 = vand.u32 %v46, 4294901760
    %v6278 = vsub.f32 %v46, %v6277
    %v6279 = vand.u32 %v6278, 4294901760
    %v6280 = vsub.f32 %v6278, %v6279
    %v6281 = vand.u32 %v6280, 4294901760
    %6282 = vmatpush1.msra.mxu0 %v6281
    %6283 = vmatprep.subr.mxu0 0.0
    %v6284 = vand.u32 %v47, 4294901760
    %v6285 = vsub.f32 %v47, %v6284
    %v6286 = vand.u32 %v6285, 4294901760
    %v6287 = vsub.f32 %v6285, %v6286
    %v6288 = vand.u32 %v6287, 4294901760
    %6289 = vmatpush1.msra.mxu0 %v6288
    %6290 = vmatprep.subr.mxu0 0.0
    %v6291 = vand.u32 %v48, 4294901760
    %v6292 = vsub.f32 %v48, %v6291
    %v6293 = vand.u32 %v6292, 4294901760
    %v6294 = vsub.f32 %v6292, %v6293
    %v6295 = vand.u32 %v6294, 4294901760
    %6296 = vmatpush1.msra.mxu0 %v6295
    %6297 = vmatprep.subr.mxu0 0.0
    %v6298 = vand.u32 %v49, 4294901760
    %v6299 = vsub.f32 %v49, %v6298
    %v6300 = vand.u32 %v6299, 4294901760
    %v6301 = vsub.f32 %v6299, %v6300
    %v6302 = vand.u32 %v6301, 4294901760
    %6303 = vmatpush1.msra.mxu0 %v6302
    %6304 = vmatprep.subr.mxu0 0.0
    %v6305 = vand.u32 %v50, 4294901760
    %v6306 = vsub.f32 %v50, %v6305
    %v6307 = vand.u32 %v6306, 4294901760
    %v6308 = vsub.f32 %v6306, %v6307
    %v6309 = vand.u32 %v6308, 4294901760
    %6310 = vmatpush1.msra.mxu0 %v6309
    %6311 = vmatprep.subr.mxu0 0.0
    %v6312 = vand.u32 %v51, 4294901760
    %v6313 = vsub.f32 %v51, %v6312
    %v6314 = vand.u32 %v6313, 4294901760
    %v6315 = vsub.f32 %v6313, %v6314
    %v6316 = vand.u32 %v6315, 4294901760
    %6317 = vmatpush1.msra.mxu0 %v6316
    %6318 = vmatprep.subr.mxu0 0.0
    %v6319 = vand.u32 %v52, 4294901760
    %v6320 = vsub.f32 %v52, %v6319
    %v6321 = vand.u32 %v6320, 4294901760
    %v6322 = vsub.f32 %v6320, %v6321
    %v6323 = vand.u32 %v6322, 4294901760
    %6324 = vmatpush1.msra.mxu0 %v6323
    %6325 = vmatprep.subr.mxu0 0.0
    %v6326 = vand.u32 %v53, 4294901760
    %v6327 = vsub.f32 %v53, %v6326
    %v6328 = vand.u32 %v6327, 4294901760
    %v6329 = vsub.f32 %v6327, %v6328
    %v6330 = vand.u32 %v6329, 4294901760
    %6331 = vmatpush1.msra.mxu0 %v6330
    %6332 = vmatprep.subr.mxu0 0.0
    %v6333 = vand.u32 %v54, 4294901760
    %v6334 = vsub.f32 %v54, %v6333
    %v6335 = vand.u32 %v6334, 4294901760
    %v6336 = vsub.f32 %v6334, %v6335
    %v6337 = vand.u32 %v6336, 4294901760
    %6338 = vmatpush1.msra.mxu0 %v6337
    %6339 = vmatprep.subr.mxu0 0.0
    %v6340 = vand.u32 %v55, 4294901760
    %v6341 = vsub.f32 %v55, %v6340
    %v6342 = vand.u32 %v6341, 4294901760
    %v6343 = vsub.f32 %v6341, %v6342
    %v6344 = vand.u32 %v6343, 4294901760
    %6345 = vmatpush1.msra.mxu0 %v6344
    %6346 = vmatprep.subr.mxu0 0.0
    %v6347 = vand.u32 %v56, 4294901760
    %v6348 = vsub.f32 %v56, %v6347
    %v6349 = vand.u32 %v6348, 4294901760
    %v6350 = vsub.f32 %v6348, %v6349
    %v6351 = vand.u32 %v6350, 4294901760
    %6352 = vmatpush1.msra.mxu0 %v6351
    %6353 = vmatprep.subr.mxu0 0.0
    %v6354 = vand.u32 %v57, 4294901760
    %v6355 = vsub.f32 %v57, %v6354
    %v6356 = vand.u32 %v6355, 4294901760
    %v6357 = vsub.f32 %v6355, %v6356
    %v6358 = vand.u32 %v6357, 4294901760
    %6359 = vmatpush1.msra.mxu0 %v6358
    %6360 = vmatprep.subr.mxu0 0.0
    %v6361 = vand.u32 %v58, 4294901760
    %v6362 = vsub.f32 %v58, %v6361
    %v6363 = vand.u32 %v6362, 4294901760
    %v6364 = vsub.f32 %v6362, %v6363
    %v6365 = vand.u32 %v6364, 4294901760
    %6366 = vmatpush1.msra.mxu0 %v6365
    %6367 = vmatprep.subr.mxu0 0.0
    %v6368 = vand.u32 %v59, 4294901760
    %v6369 = vsub.f32 %v59, %v6368
    %v6370 = vand.u32 %v6369, 4294901760
    %v6371 = vsub.f32 %v6369, %v6370
    %v6372 = vand.u32 %v6371, 4294901760
    %6373 = vmatpush1.msra.mxu0 %v6372
    %6374 = vmatprep.subr.mxu0 0.0
    %v6375 = vand.u32 %v60, 4294901760
    %v6376 = vsub.f32 %v60, %v6375
    %v6377 = vand.u32 %v6376, 4294901760
    %v6378 = vsub.f32 %v6376, %v6377
    %v6379 = vand.u32 %v6378, 4294901760
    %6380 = vmatpush1.msra.mxu0 %v6379
    %6381 = vmatprep.subr.mxu0 0.0
    %v6382 = vand.u32 %v61, 4294901760
    %v6383 = vsub.f32 %v61, %v6382
    %v6384 = vand.u32 %v6383, 4294901760
    %v6385 = vsub.f32 %v6383, %v6384
    %v6386 = vand.u32 %v6385, 4294901760
    %6387 = vmatpush1.msra.mxu0 %v6386
    %6388 = vmatprep.subr.mxu0 0.0
    %v6389 = vand.u32 %v62, 4294901760
    %v6390 = vsub.f32 %v62, %v6389
    %v6391 = vand.u32 %v6390, 4294901760
    %v6392 = vsub.f32 %v6390, %v6391
    %v6393 = vand.u32 %v6392, 4294901760
    %6394 = vmatpush1.msra.mxu0 %v6393
    %6395 = vmatprep.subr.mxu0 0.0
    %v6396 = vand.u32 %v63, 4294901760
    %v6397 = vsub.f32 %v63, %v6396
    %v6398 = vand.u32 %v6397, 4294901760
    %v6399 = vsub.f32 %v6397, %v6398
    %v6400 = vand.u32 %v6399, 4294901760
    %6401 = vmatpush1.msra.mxu0 %v6400
    %6402 = vmatprep.subr.mxu0 0.0
    %v6403 = vand.u32 %v64, 4294901760
    %v6404 = vsub.f32 %v64, %v6403
    %v6405 = vand.u32 %v6404, 4294901760
    %v6406 = vsub.f32 %v6404, %v6405
    %v6407 = vand.u32 %v6406, 4294901760
    %6408 = vmatpush1.msra.mxu0 %v6407
    %6409 = vmatprep.subr.mxu0 0.0
    %v6410 = vand.u32 %v65, 4294901760
    %v6411 = vsub.f32 %v65, %v6410
    %v6412 = vand.u32 %v6411, 4294901760
    %v6413 = vsub.f32 %v6411, %v6412
    %v6414 = vand.u32 %v6413, 4294901760
    %6415 = vmatpush1.msra.mxu0 %v6414
    %6416 = vmatprep.subr.mxu0 0.0
    %v6417 = vand.u32 %v66, 4294901760
    %v6418 = vsub.f32 %v66, %v6417
    %v6419 = vand.u32 %v6418, 4294901760
    %v6420 = vsub.f32 %v6418, %v6419
    %v6421 = vand.u32 %v6420, 4294901760
    %6422 = vmatpush1.msra.mxu0 %v6421
    %6423 = vmatprep.subr.mxu0 0.0
    %v6424 = vand.u32 %v67, 4294901760
    %v6425 = vsub.f32 %v67, %v6424
    %v6426 = vand.u32 %v6425, 4294901760
    %v6427 = vsub.f32 %v6425, %v6426
    %v6428 = vand.u32 %v6427, 4294901760
    %6429 = vmatpush1.msra.mxu0 %v6428
    %6430 = vmatprep.subr.mxu0 0.0
    %v6431 = vand.u32 %v68, 4294901760
    %v6432 = vsub.f32 %v68, %v6431
    %v6433 = vand.u32 %v6432, 4294901760
    %v6434 = vsub.f32 %v6432, %v6433
    %v6435 = vand.u32 %v6434, 4294901760
    %6436 = vmatpush1.msra.mxu0 %v6435
    %6437 = vmatprep.subr.mxu0 0.0
    %v6438 = vand.u32 %v69, 4294901760
    %v6439 = vsub.f32 %v69, %v6438
    %v6440 = vand.u32 %v6439, 4294901760
    %v6441 = vsub.f32 %v6439, %v6440
    %v6442 = vand.u32 %v6441, 4294901760
    %6443 = vmatpush1.msra.mxu0 %v6442
    %6444 = vmatprep.subr.mxu0 0.0
    %v6445 = vand.u32 %v70, 4294901760
    %v6446 = vsub.f32 %v70, %v6445
    %v6447 = vand.u32 %v6446, 4294901760
    %v6448 = vsub.f32 %v6446, %v6447
    %v6449 = vand.u32 %v6448, 4294901760
    %6450 = vmatpush1.msra.mxu0 %v6449
    %6451 = vmatprep.subr.mxu0 0.0
    %v6452 = vand.u32 %v71, 4294901760
    %v6453 = vsub.f32 %v71, %v6452
    %v6454 = vand.u32 %v6453, 4294901760
    %v6455 = vsub.f32 %v6453, %v6454
    %v6456 = vand.u32 %v6455, 4294901760
    %6457 = vmatpush1.msra.mxu0 %v6456
    %6458 = vmatprep.subr.mxu0 0.0
    %v6459 = vand.u32 %v72, 4294901760
    %v6460 = vsub.f32 %v72, %v6459
    %v6461 = vand.u32 %v6460, 4294901760
    %v6462 = vsub.f32 %v6460, %v6461
    %v6463 = vand.u32 %v6462, 4294901760
    %6464 = vmatpush1.msra.mxu0 %v6463
    %6465 = vmatprep.subr.mxu0 0.0
    %v6466 = vand.u32 %v73, 4294901760
    %v6467 = vsub.f32 %v73, %v6466
    %v6468 = vand.u32 %v6467, 4294901760
    %v6469 = vsub.f32 %v6467, %v6468
    %v6470 = vand.u32 %v6469, 4294901760
    %6471 = vmatpush1.msra.mxu0 %v6470
    %v6472 = vand.u32 %v6135, 4294901760
    %6473 = vmatprep.mubr.f32.mxu0 %v6472
    %v6474 = vand.u32 %v5490, 4294901760
    %6475 = vmatmul.mubr.f32.gmra.mrb[0].mxu0 %v6474
    %v6476 = vpop.f32.mrb[0].mxu0
    %v6477 = vadd.f32 %v6245, %v6476
    %v6478 = vpop.f32.mrb[0].mxu0
    %6479 = vdwg.mxu0
    %6480 = vmatprep.subr.mxu0 0.0
    %v6481 = vand.u32 %v42, 4294901760
    %v6482 = vsub.f32 %v42, %v6481
    %6483 = vmatpush1.msra.mxu0 %v6482
    %6484 = vmatprep.subr.mxu0 0.0
    %v6485 = vand.u32 %v43, 4294901760
    %v6486 = vsub.f32 %v43, %v6485
    %6487 = vmatpush1.msra.mxu0 %v6486
    %6488 = vmatprep.subr.mxu0 0.0
    %v6489 = vand.u32 %v44, 4294901760
    %v6490 = vsub.f32 %v44, %v6489
    %6491 = vmatpush1.msra.mxu0 %v6490
    %6492 = vmatprep.subr.mxu0 0.0
    %v6493 = vand.u32 %v45, 4294901760
    %v6494 = vsub.f32 %v45, %v6493
    %6495 = vmatpush1.msra.mxu0 %v6494
    %6496 = vmatprep.subr.mxu0 0.0
    %v6497 = vand.u32 %v46, 4294901760
    %v6498 = vsub.f32 %v46, %v6497
    %6499 = vmatpush1.msra.mxu0 %v6498
    %6500 = vmatprep.subr.mxu0 0.0
    %v6501 = vand.u32 %v47, 4294901760
    %v6502 = vsub.f32 %v47, %v6501
    %6503 = vmatpush1.msra.mxu0 %v6502
    %6504 = vmatprep.subr.mxu0 0.0
    %v6505 = vand.u32 %v48, 4294901760
    %v6506 = vsub.f32 %v48, %v6505
    %6507 = vmatpush1.msra.mxu0 %v6506
    %6508 = vmatprep.subr.mxu0 0.0
    %v6509 = vand.u32 %v49, 4294901760
    %v6510 = vsub.f32 %v49, %v6509
    %6511 = vmatpush1.msra.mxu0 %v6510
    %6512 = vmatprep.subr.mxu0 0.0
    %v6513 = vand.u32 %v50, 4294901760
    %v6514 = vsub.f32 %v50, %v6513
    %6515 = vmatpush1.msra.mxu0 %v6514
    %6516 = vmatprep.subr.mxu0 0.0
    %v6517 = vand.u32 %v51, 4294901760
    %v6518 = vsub.f32 %v51, %v6517
    %6519 = vmatpush1.msra.mxu0 %v6518
    %6520 = vmatprep.subr.mxu0 0.0
    %v6521 = vand.u32 %v52, 4294901760
    %v6522 = vsub.f32 %v52, %v6521
    %6523 = vmatpush1.msra.mxu0 %v6522
    %6524 = vmatprep.subr.mxu0 0.0
    %v6525 = vand.u32 %v53, 4294901760
    %v6526 = vsub.f32 %v53, %v6525
    %6527 = vmatpush1.msra.mxu0 %v6526
    %6528 = vmatprep.subr.mxu0 0.0
    %v6529 = vand.u32 %v54, 4294901760
    %v6530 = vsub.f32 %v54, %v6529
    %6531 = vmatpush1.msra.mxu0 %v6530
    %6532 = vmatprep.subr.mxu0 0.0
    %v6533 = vand.u32 %v55, 4294901760
    %v6534 = vsub.f32 %v55, %v6533
    %6535 = vmatpush1.msra.mxu0 %v6534
    %6536 = vmatprep.subr.mxu0 0.0
    %v6537 = vand.u32 %v56, 4294901760
    %v6538 = vsub.f32 %v56, %v6537
    %6539 = vmatpush1.msra.mxu0 %v6538
    %6540 = vmatprep.subr.mxu0 0.0
    %v6541 = vand.u32 %v57, 4294901760
    %v6542 = vsub.f32 %v57, %v6541
    %6543 = vmatpush1.msra.mxu0 %v6542
    %6544 = vmatprep.subr.mxu0 0.0
    %v6545 = vand.u32 %v58, 4294901760
    %v6546 = vsub.f32 %v58, %v6545
    %6547 = vmatpush1.msra.mxu0 %v6546
    %6548 = vmatprep.subr.mxu0 0.0
    %v6549 = vand.u32 %v59, 4294901760
    %v6550 = vsub.f32 %v59, %v6549
    %6551 = vmatpush1.msra.mxu0 %v6550
    %6552 = vmatprep.subr.mxu0 0.0
    %v6553 = vand.u32 %v60, 4294901760
    %v6554 = vsub.f32 %v60, %v6553
    %6555 = vmatpush1.msra.mxu0 %v6554
    %6556 = vmatprep.subr.mxu0 0.0
    %v6557 = vand.u32 %v61, 4294901760
    %v6558 = vsub.f32 %v61, %v6557
    %6559 = vmatpush1.msra.mxu0 %v6558
    %6560 = vmatprep.subr.mxu0 0.0
    %v6561 = vand.u32 %v62, 4294901760
    %v6562 = vsub.f32 %v62, %v6561
    %6563 = vmatpush1.msra.mxu0 %v6562
    %6564 = vmatprep.subr.mxu0 0.0
    %v6565 = vand.u32 %v63, 4294901760
    %v6566 = vsub.f32 %v63, %v6565
    %6567 = vmatpush1.msra.mxu0 %v6566
    %6568 = vmatprep.subr.mxu0 0.0
    %v6569 = vand.u32 %v64, 4294901760
    %v6570 = vsub.f32 %v64, %v6569
    %6571 = vmatpush1.msra.mxu0 %v6570
    %6572 = vmatprep.subr.mxu0 0.0
    %v6573 = vand.u32 %v65, 4294901760
    %v6574 = vsub.f32 %v65, %v6573
    %6575 = vmatpush1.msra.mxu0 %v6574
    %6576 = vmatprep.subr.mxu0 0.0
    %v6577 = vand.u32 %v66, 4294901760
    %v6578 = vsub.f32 %v66, %v6577
    %6579 = vmatpush1.msra.mxu0 %v6578
    %6580 = vmatprep.subr.mxu0 0.0
    %v6581 = vand.u32 %v67, 4294901760
    %v6582 = vsub.f32 %v67, %v6581
    %6583 = vmatpush1.msra.mxu0 %v6582
    %6584 = vmatprep.subr.mxu0 0.0
    %v6585 = vand.u32 %v68, 4294901760
    %v6586 = vsub.f32 %v68, %v6585
    %6587 = vmatpush1.msra.mxu0 %v6586
    %6588 = vmatprep.subr.mxu0 0.0
    %v6589 = vand.u32 %v69, 4294901760
    %v6590 = vsub.f32 %v69, %v6589
    %6591 = vmatpush1.msra.mxu0 %v6590
    %6592 = vmatprep.subr.mxu0 0.0
    %v6593 = vand.u32 %v70, 4294901760
    %v6594 = vsub.f32 %v70, %v6593
    %6595 = vmatpush1.msra.mxu0 %v6594
    %6596 = vmatprep.subr.mxu0 0.0
    %v6597 = vand.u32 %v71, 4294901760
    %v6598 = vsub.f32 %v71, %v6597
    %6599 = vmatpush1.msra.mxu0 %v6598
    %6600 = vmatprep.subr.mxu0 0.0
    %v6601 = vand.u32 %v72, 4294901760
    %v6602 = vsub.f32 %v72, %v6601
    %6603 = vmatpush1.msra.mxu0 %v6602
    %6604 = vmatprep.subr.mxu0 0.0
    %v6605 = vand.u32 %v73, 4294901760
    %v6606 = vsub.f32 %v73, %v6605
    %6607 = vmatpush1.msra.mxu0 %v6606
    %v6608 = vand.u32 %v6135, 4294901760
    %v6609 = vsub.f32 %v6135, %v6608
    %6610 = vmatprep.mubr.f32.mxu0 %v6609
    %v6611 = vand.u32 %v5490, 4294901760
    %v6612 = vsub.f32 %v5490, %v6611
    %6613 = vmatmul.mubr.f32.gmra.mrb[0].mxu0 %v6612
    %v6614 = vpop.f32.mrb[0].mxu0
    %v6615 = vadd.f32 %v6477, %v6614
    %v6616 = vpop.f32.mrb[0].mxu0
    %6617 = vdwg.mxu0
    %6618 = vmatprep.subr.mxu0 0.0
    %v6619 = vand.u32 %v42, 4294901760
    %6620 = vmatpush1.msra.mxu0 %v6619
    %6621 = vmatprep.subr.mxu0 0.0
    %v6622 = vand.u32 %v43, 4294901760
    %6623 = vmatpush1.msra.mxu0 %v6622
    %6624 = vmatprep.subr.mxu0 0.0
    %v6625 = vand.u32 %v44, 4294901760
    %6626 = vmatpush1.msra.mxu0 %v6625
    %6627 = vmatprep.subr.mxu0 0.0
    %v6628 = vand.u32 %v45, 4294901760
    %6629 = vmatpush1.msra.mxu0 %v6628
    %6630 = vmatprep.subr.mxu0 0.0
    %v6631 = vand.u32 %v46, 4294901760
    %6632 = vmatpush1.msra.mxu0 %v6631
    %6633 = vmatprep.subr.mxu0 0.0
    %v6634 = vand.u32 %v47, 4294901760
    %6635 = vmatpush1.msra.mxu0 %v6634
    %6636 = vmatprep.subr.mxu0 0.0
    %v6637 = vand.u32 %v48, 4294901760
    %6638 = vmatpush1.msra.mxu0 %v6637
    %6639 = vmatprep.subr.mxu0 0.0
    %v6640 = vand.u32 %v49, 4294901760
    %6641 = vmatpush1.msra.mxu0 %v6640
    %6642 = vmatprep.subr.mxu0 0.0
    %v6643 = vand.u32 %v50, 4294901760
    %6644 = vmatpush1.msra.mxu0 %v6643
    %6645 = vmatprep.subr.mxu0 0.0
    %v6646 = vand.u32 %v51, 4294901760
    %6647 = vmatpush1.msra.mxu0 %v6646
    %6648 = vmatprep.subr.mxu0 0.0
    %v6649 = vand.u32 %v52, 4294901760
    %6650 = vmatpush1.msra.mxu0 %v6649
    %6651 = vmatprep.subr.mxu0 0.0
    %v6652 = vand.u32 %v53, 4294901760
    %6653 = vmatpush1.msra.mxu0 %v6652
    %6654 = vmatprep.subr.mxu0 0.0
    %v6655 = vand.u32 %v54, 4294901760
    %6656 = vmatpush1.msra.mxu0 %v6655
    %6657 = vmatprep.subr.mxu0 0.0
    %v6658 = vand.u32 %v55, 4294901760
    %6659 = vmatpush1.msra.mxu0 %v6658
    %6660 = vmatprep.subr.mxu0 0.0
    %v6661 = vand.u32 %v56, 4294901760
    %6662 = vmatpush1.msra.mxu0 %v6661
    %6663 = vmatprep.subr.mxu0 0.0
    %v6664 = vand.u32 %v57, 4294901760
    %6665 = vmatpush1.msra.mxu0 %v6664
    %6666 = vmatprep.subr.mxu0 0.0
    %v6667 = vand.u32 %v58, 4294901760
    %6668 = vmatpush1.msra.mxu0 %v6667
    %6669 = vmatprep.subr.mxu0 0.0
    %v6670 = vand.u32 %v59, 4294901760
    %6671 = vmatpush1.msra.mxu0 %v6670
    %6672 = vmatprep.subr.mxu0 0.0
    %v6673 = vand.u32 %v60, 4294901760
    %6674 = vmatpush1.msra.mxu0 %v6673
    %6675 = vmatprep.subr.mxu0 0.0
    %v6676 = vand.u32 %v61, 4294901760
    %6677 = vmatpush1.msra.mxu0 %v6676
    %6678 = vmatprep.subr.mxu0 0.0
    %v6679 = vand.u32 %v62, 4294901760
    %6680 = vmatpush1.msra.mxu0 %v6679
    %6681 = vmatprep.subr.mxu0 0.0
    %v6682 = vand.u32 %v63, 4294901760
    %6683 = vmatpush1.msra.mxu0 %v6682
    %6684 = vmatprep.subr.mxu0 0.0
    %v6685 = vand.u32 %v64, 4294901760
    %6686 = vmatpush1.msra.mxu0 %v6685
    %6687 = vmatprep.subr.mxu0 0.0
    %v6688 = vand.u32 %v65, 4294901760
    %6689 = vmatpush1.msra.mxu0 %v6688
    %6690 = vmatprep.subr.mxu0 0.0
    %v6691 = vand.u32 %v66, 4294901760
    %6692 = vmatpush1.msra.mxu0 %v6691
    %6693 = vmatprep.subr.mxu0 0.0
    %v6694 = vand.u32 %v67, 4294901760
    %6695 = vmatpush1.msra.mxu0 %v6694
    %6696 = vmatprep.subr.mxu0 0.0
    %v6697 = vand.u32 %v68, 4294901760
    %6698 = vmatpush1.msra.mxu0 %v6697
    %6699 = vmatprep.subr.mxu0 0.0
    %v6700 = vand.u32 %v69, 4294901760
    %6701 = vmatpush1.msra.mxu0 %v6700
    %6702 = vmatprep.subr.mxu0 0.0
    %v6703 = vand.u32 %v70, 4294901760
    %6704 = vmatpush1.msra.mxu0 %v6703
    %6705 = vmatprep.subr.mxu0 0.0
    %v6706 = vand.u32 %v71, 4294901760
    %6707 = vmatpush1.msra.mxu0 %v6706
    %6708 = vmatprep.subr.mxu0 0.0
    %v6709 = vand.u32 %v72, 4294901760
    %6710 = vmatpush1.msra.mxu0 %v6709
    %6711 = vmatprep.subr.mxu0 0.0
    %v6712 = vand.u32 %v73, 4294901760
    %6713 = vmatpush1.msra.mxu0 %v6712
    %v6714 = vand.u32 %v6135, 4294901760
    %v6715 = vsub.f32 %v6135, %v6714
    %v6716 = vand.u32 %v6715, 4294901760
    %6717 = vmatprep.mubr.f32.mxu0 %v6716
    %v6718 = vand.u32 %v5490, 4294901760
    %v6719 = vsub.f32 %v5490, %v6718
    %v6720 = vand.u32 %v6719, 4294901760
    %6721 = vmatmul.mubr.f32.gmra.mrb[0].mxu0 %v6720
    %v6722 = vpop.f32.mrb[0].mxu0
    %v6723 = vadd.f32 %v6615, %v6722
    %v6724 = vpop.f32.mrb[0].mxu0
    %6725 = vdwg.mxu0
    %6726 = vmatprep.subr.mxu0 0.0
    %v6727 = vand.u32 %v42, 4294901760
    %v6728 = vsub.f32 %v42, %v6727
    %v6729 = vand.u32 %v6728, 4294901760
    %6730 = vmatpush1.msra.mxu0 %v6729
    %6731 = vmatprep.subr.mxu0 0.0
    %v6732 = vand.u32 %v43, 4294901760
    %v6733 = vsub.f32 %v43, %v6732
    %v6734 = vand.u32 %v6733, 4294901760
    %6735 = vmatpush1.msra.mxu0 %v6734
    %6736 = vmatprep.subr.mxu0 0.0
    %v6737 = vand.u32 %v44, 4294901760
    %v6738 = vsub.f32 %v44, %v6737
    %v6739 = vand.u32 %v6738, 4294901760
    %6740 = vmatpush1.msra.mxu0 %v6739
    %6741 = vmatprep.subr.mxu0 0.0
    %v6742 = vand.u32 %v45, 4294901760
    %v6743 = vsub.f32 %v45, %v6742
    %v6744 = vand.u32 %v6743, 4294901760
    %6745 = vmatpush1.msra.mxu0 %v6744
    %6746 = vmatprep.subr.mxu0 0.0
    %v6747 = vand.u32 %v46, 4294901760
    %v6748 = vsub.f32 %v46, %v6747
    %v6749 = vand.u32 %v6748, 4294901760
    %6750 = vmatpush1.msra.mxu0 %v6749
    %6751 = vmatprep.subr.mxu0 0.0
    %v6752 = vand.u32 %v47, 4294901760
    %v6753 = vsub.f32 %v47, %v6752
    %v6754 = vand.u32 %v6753, 4294901760
    %6755 = vmatpush1.msra.mxu0 %v6754
    %6756 = vmatprep.subr.mxu0 0.0
    %v6757 = vand.u32 %v48, 4294901760
    %v6758 = vsub.f32 %v48, %v6757
    %v6759 = vand.u32 %v6758, 4294901760
    %6760 = vmatpush1.msra.mxu0 %v6759
    %6761 = vmatprep.subr.mxu0 0.0
    %v6762 = vand.u32 %v49, 4294901760
    %v6763 = vsub.f32 %v49, %v6762
    %v6764 = vand.u32 %v6763, 4294901760
    %6765 = vmatpush1.msra.mxu0 %v6764
    %6766 = vmatprep.subr.mxu0 0.0
    %v6767 = vand.u32 %v50, 4294901760
    %v6768 = vsub.f32 %v50, %v6767
    %v6769 = vand.u32 %v6768, 4294901760
    %6770 = vmatpush1.msra.mxu0 %v6769
    %6771 = vmatprep.subr.mxu0 0.0
    %v6772 = vand.u32 %v51, 4294901760
    %v6773 = vsub.f32 %v51, %v6772
    %v6774 = vand.u32 %v6773, 4294901760
    %6775 = vmatpush1.msra.mxu0 %v6774
    %6776 = vmatprep.subr.mxu0 0.0
    %v6777 = vand.u32 %v52, 4294901760
    %v6778 = vsub.f32 %v52, %v6777
    %v6779 = vand.u32 %v6778, 4294901760
    %6780 = vmatpush1.msra.mxu0 %v6779
    %6781 = vmatprep.subr.mxu0 0.0
    %v6782 = vand.u32 %v53, 4294901760
    %v6783 = vsub.f32 %v53, %v6782
    %v6784 = vand.u32 %v6783, 4294901760
    %6785 = vmatpush1.msra.mxu0 %v6784
    %6786 = vmatprep.subr.mxu0 0.0
    %v6787 = vand.u32 %v54, 4294901760
    %v6788 = vsub.f32 %v54, %v6787
    %v6789 = vand.u32 %v6788, 4294901760
    %6790 = vmatpush1.msra.mxu0 %v6789
    %6791 = vmatprep.subr.mxu0 0.0
    %v6792 = vand.u32 %v55, 4294901760
    %v6793 = vsub.f32 %v55, %v6792
    %v6794 = vand.u32 %v6793, 4294901760
    %6795 = vmatpush1.msra.mxu0 %v6794
    %6796 = vmatprep.subr.mxu0 0.0
    %v6797 = vand.u32 %v56, 4294901760
    %v6798 = vsub.f32 %v56, %v6797
    %v6799 = vand.u32 %v6798, 4294901760
    %6800 = vmatpush1.msra.mxu0 %v6799
    %6801 = vmatprep.subr.mxu0 0.0
    %v6802 = vand.u32 %v57, 4294901760
    %v6803 = vsub.f32 %v57, %v6802
    %v6804 = vand.u32 %v6803, 4294901760
    %6805 = vmatpush1.msra.mxu0 %v6804
    %6806 = vmatprep.subr.mxu0 0.0
    %v6807 = vand.u32 %v58, 4294901760
    %v6808 = vsub.f32 %v58, %v6807
    %v6809 = vand.u32 %v6808, 4294901760
    %6810 = vmatpush1.msra.mxu0 %v6809
    %6811 = vmatprep.subr.mxu0 0.0
    %v6812 = vand.u32 %v59, 4294901760
    %v6813 = vsub.f32 %v59, %v6812
    %v6814 = vand.u32 %v6813, 4294901760
    %6815 = vmatpush1.msra.mxu0 %v6814
    %6816 = vmatprep.subr.mxu0 0.0
    %v6817 = vand.u32 %v60, 4294901760
    %v6818 = vsub.f32 %v60, %v6817
    %v6819 = vand.u32 %v6818, 4294901760
    %6820 = vmatpush1.msra.mxu0 %v6819
    %6821 = vmatprep.subr.mxu0 0.0
    %v6822 = vand.u32 %v61, 4294901760
    %v6823 = vsub.f32 %v61, %v6822
    %v6824 = vand.u32 %v6823, 4294901760
    %6825 = vmatpush1.msra.mxu0 %v6824
    %6826 = vmatprep.subr.mxu0 0.0
    %v6827 = vand.u32 %v62, 4294901760
    %v6828 = vsub.f32 %v62, %v6827
    %v6829 = vand.u32 %v6828, 4294901760
    %6830 = vmatpush1.msra.mxu0 %v6829
    %6831 = vmatprep.subr.mxu0 0.0
    %v6832 = vand.u32 %v63, 4294901760
    %v6833 = vsub.f32 %v63, %v6832
    %v6834 = vand.u32 %v6833, 4294901760
    %6835 = vmatpush1.msra.mxu0 %v6834
    %6836 = vmatprep.subr.mxu0 0.0
    %v6837 = vand.u32 %v64, 4294901760
    %v6838 = vsub.f32 %v64, %v6837
    %v6839 = vand.u32 %v6838, 4294901760
    %6840 = vmatpush1.msra.mxu0 %v6839
    %6841 = vmatprep.subr.mxu0 0.0
    %v6842 = vand.u32 %v65, 4294901760
    %v6843 = vsub.f32 %v65, %v6842
    %v6844 = vand.u32 %v6843, 4294901760
    %6845 = vmatpush1.msra.mxu0 %v6844
    %6846 = vmatprep.subr.mxu0 0.0
    %v6847 = vand.u32 %v66, 4294901760
    %v6848 = vsub.f32 %v66, %v6847
    %v6849 = vand.u32 %v6848, 4294901760
    %6850 = vmatpush1.msra.mxu0 %v6849
    %6851 = vmatprep.subr.mxu0 0.0
    %v6852 = vand.u32 %v67, 4294901760
    %v6853 = vsub.f32 %v67, %v6852
    %v6854 = vand.u32 %v6853, 4294901760
    %6855 = vmatpush1.msra.mxu0 %v6854
    %6856 = vmatprep.subr.mxu0 0.0
    %v6857 = vand.u32 %v68, 4294901760
    %v6858 = vsub.f32 %v68, %v6857
    %v6859 = vand.u32 %v6858, 4294901760
    %6860 = vmatpush1.msra.mxu0 %v6859
    %6861 = vmatprep.subr.mxu0 0.0
    %v6862 = vand.u32 %v69, 4294901760
    %v6863 = vsub.f32 %v69, %v6862
    %v6864 = vand.u32 %v6863, 4294901760
    %6865 = vmatpush1.msra.mxu0 %v6864
    %6866 = vmatprep.subr.mxu0 0.0
    %v6867 = vand.u32 %v70, 4294901760
    %v6868 = vsub.f32 %v70, %v6867
    %v6869 = vand.u32 %v6868, 4294901760
    %6870 = vmatpush1.msra.mxu0 %v6869
    %6871 = vmatprep.subr.mxu0 0.0
    %v6872 = vand.u32 %v71, 4294901760
    %v6873 = vsub.f32 %v71, %v6872
    %v6874 = vand.u32 %v6873, 4294901760
    %6875 = vmatpush1.msra.mxu0 %v6874
    %6876 = vmatprep.subr.mxu0 0.0
    %v6877 = vand.u32 %v72, 4294901760
    %v6878 = vsub.f32 %v72, %v6877
    %v6879 = vand.u32 %v6878, 4294901760
    %6880 = vmatpush1.msra.mxu0 %v6879
    %6881 = vmatprep.subr.mxu0 0.0
    %v6882 = vand.u32 %v73, 4294901760
    %v6883 = vsub.f32 %v73, %v6882
    %v6884 = vand.u32 %v6883, 4294901760
    %6885 = vmatpush1.msra.mxu0 %v6884
    %v6886 = vand.u32 %v6135, 4294901760
    %6887 = vmatprep.mubr.f32.mxu0 %v6886
    %v6888 = vand.u32 %v5490, 4294901760
    %6889 = vmatmul.mubr.f32.gmra.mrb[0].mxu0 %v6888
    %v6890 = vpop.f32.mrb[0].mxu0
    %v6891 = vadd.f32 %v6723, %v6890
    %v6892 = vpop.f32.mrb[0].mxu0
    %6893 = vdwg.mxu0
    %6894 = vmatprep.subr.mxu0 0.0
    %v6895 = vand.u32 %v42, 4294901760
    %6896 = vmatpush1.msra.mxu0 %v6895
    %6897 = vmatprep.subr.mxu0 0.0
    %v6898 = vand.u32 %v43, 4294901760
    %6899 = vmatpush1.msra.mxu0 %v6898
    %6900 = vmatprep.subr.mxu0 0.0
    %v6901 = vand.u32 %v44, 4294901760
    %6902 = vmatpush1.msra.mxu0 %v6901
    %6903 = vmatprep.subr.mxu0 0.0
    %v6904 = vand.u32 %v45, 4294901760
    %6905 = vmatpush1.msra.mxu0 %v6904
    %6906 = vmatprep.subr.mxu0 0.0
    %v6907 = vand.u32 %v46, 4294901760
    %6908 = vmatpush1.msra.mxu0 %v6907
    %6909 = vmatprep.subr.mxu0 0.0
    %v6910 = vand.u32 %v47, 4294901760
    %6911 = vmatpush1.msra.mxu0 %v6910
    %6912 = vmatprep.subr.mxu0 0.0
    %v6913 = vand.u32 %v48, 4294901760
    %6914 = vmatpush1.msra.mxu0 %v6913
    %6915 = vmatprep.subr.mxu0 0.0
    %v6916 = vand.u32 %v49, 4294901760
    %6917 = vmatpush1.msra.mxu0 %v6916
    %6918 = vmatprep.subr.mxu0 0.0
    %v6919 = vand.u32 %v50, 4294901760
    %6920 = vmatpush1.msra.mxu0 %v6919
    %6921 = vmatprep.subr.mxu0 0.0
    %v6922 = vand.u32 %v51, 4294901760
    %6923 = vmatpush1.msra.mxu0 %v6922
    %6924 = vmatprep.subr.mxu0 0.0
    %v6925 = vand.u32 %v52, 4294901760
    %6926 = vmatpush1.msra.mxu0 %v6925
    %6927 = vmatprep.subr.mxu0 0.0
    %v6928 = vand.u32 %v53, 4294901760
    %6929 = vmatpush1.msra.mxu0 %v6928
    %6930 = vmatprep.subr.mxu0 0.0
    %v6931 = vand.u32 %v54, 4294901760
    %6932 = vmatpush1.msra.mxu0 %v6931
    %6933 = vmatprep.subr.mxu0 0.0
    %v6934 = vand.u32 %v55, 4294901760
    %6935 = vmatpush1.msra.mxu0 %v6934
    %6936 = vmatprep.subr.mxu0 0.0
    %v6937 = vand.u32 %v56, 4294901760
    %6938 = vmatpush1.msra.mxu0 %v6937
    %6939 = vmatprep.subr.mxu0 0.0
    %v6940 = vand.u32 %v57, 4294901760
    %6941 = vmatpush1.msra.mxu0 %v6940
    %6942 = vmatprep.subr.mxu0 0.0
    %v6943 = vand.u32 %v58, 4294901760
    %6944 = vmatpush1.msra.mxu0 %v6943
    %6945 = vmatprep.subr.mxu0 0.0
    %v6946 = vand.u32 %v59, 4294901760
    %6947 = vmatpush1.msra.mxu0 %v6946
    %6948 = vmatprep.subr.mxu0 0.0
    %v6949 = vand.u32 %v60, 4294901760
    %6950 = vmatpush1.msra.mxu0 %v6949
    %6951 = vmatprep.subr.mxu0 0.0
    %v6952 = vand.u32 %v61, 4294901760
    %6953 = vmatpush1.msra.mxu0 %v6952
    %6954 = vmatprep.subr.mxu0 0.0
    %v6955 = vand.u32 %v62, 4294901760
    %6956 = vmatpush1.msra.mxu0 %v6955
    %6957 = vmatprep.subr.mxu0 0.0
    %v6958 = vand.u32 %v63, 4294901760
    %6959 = vmatpush1.msra.mxu0 %v6958
    %6960 = vmatprep.subr.mxu0 0.0
    %v6961 = vand.u32 %v64, 4294901760
    %6962 = vmatpush1.msra.mxu0 %v6961
    %6963 = vmatprep.subr.mxu0 0.0
    %v6964 = vand.u32 %v65, 4294901760
    %6965 = vmatpush1.msra.mxu0 %v6964
    %6966 = vmatprep.subr.mxu0 0.0
    %v6967 = vand.u32 %v66, 4294901760
    %6968 = vmatpush1.msra.mxu0 %v6967
    %6969 = vmatprep.subr.mxu0 0.0
    %v6970 = vand.u32 %v67, 4294901760
    %6971 = vmatpush1.msra.mxu0 %v6970
    %6972 = vmatprep.subr.mxu0 0.0
    %v6973 = vand.u32 %v68, 4294901760
    %6974 = vmatpush1.msra.mxu0 %v6973
    %6975 = vmatprep.subr.mxu0 0.0
    %v6976 = vand.u32 %v69, 4294901760
    %6977 = vmatpush1.msra.mxu0 %v6976
    %6978 = vmatprep.subr.mxu0 0.0
    %v6979 = vand.u32 %v70, 4294901760
    %6980 = vmatpush1.msra.mxu0 %v6979
    %6981 = vmatprep.subr.mxu0 0.0
    %v6982 = vand.u32 %v71, 4294901760
    %6983 = vmatpush1.msra.mxu0 %v6982
    %6984 = vmatprep.subr.mxu0 0.0
    %v6985 = vand.u32 %v72, 4294901760
    %6986 = vmatpush1.msra.mxu0 %v6985
    %6987 = vmatprep.subr.mxu0 0.0
    %v6988 = vand.u32 %v73, 4294901760
    %6989 = vmatpush1.msra.mxu0 %v6988
    %v6990 = vand.u32 %v6135, 4294901760
    %6991 = vmatprep.mubr.f32.mxu0 %v6990
    %v6992 = vand.u32 %v5490, 4294901760
    %6993 = vmatmul.mubr.f32.gmra.mrb[0].mxu0 %v6992
    %v6994 = vpop.f32.mrb[0].mxu0
    %v6995 = vadd.f32 %v6891, %v6994
    %v6996 = vpop.f32.mrb[0].mxu0
    %6997 = vdwg.mxu0
    %v6998 = vtanh.pop %v6995
    %v6999 = vmul.f32 %v5490, 0.9
    %v7000 = vmul.f32 %v6998, 0.1
    %v7001 = vadd.f32 %v6999, %v7000
    %7002 = vmatprep.subr.mxu0 0.0
    %v7003 = vand.u32 %v74, 4294901760
    %7004 = vmatpush1.msra.mxu0 %v7003
    %7005 = vmatprep.subr.mxu0 0.0
    %v7006 = vand.u32 %v75, 4294901760
    %7007 = vmatpush1.msra.mxu0 %v7006
    %7008 = vmatprep.subr.mxu0 0.0
    %v7009 = vand.u32 %v76, 4294901760
    %7010 = vmatpush1.msra.mxu0 %v7009
    %7011 = vmatprep.subr.mxu0 0.0
    %v7012 = vand.u32 %v77, 4294901760
    %7013 = vmatpush1.msra.mxu0 %v7012
    %7014 = vmatprep.subr.mxu0 0.0
    %v7015 = vand.u32 %v78, 4294901760
    %7016 = vmatpush1.msra.mxu0 %v7015
    %7017 = vmatprep.subr.mxu0 0.0
    %v7018 = vand.u32 %v79, 4294901760
    %7019 = vmatpush1.msra.mxu0 %v7018
    %7020 = vmatprep.subr.mxu0 0.0
    %v7021 = vand.u32 %v80, 4294901760
    %7022 = vmatpush1.msra.mxu0 %v7021
    %7023 = vmatprep.subr.mxu0 0.0
    %v7024 = vand.u32 %v81, 4294901760
    %7025 = vmatpush1.msra.mxu0 %v7024
    %7026 = vmatprep.subr.mxu0 0.0
    %v7027 = vand.u32 %v82, 4294901760
    %7028 = vmatpush1.msra.mxu0 %v7027
    %7029 = vmatprep.subr.mxu0 0.0
    %v7030 = vand.u32 %v83, 4294901760
    %7031 = vmatpush1.msra.mxu0 %v7030
    %7032 = vmatprep.subr.mxu0 0.0
    %v7033 = vand.u32 %v84, 4294901760
    %7034 = vmatpush1.msra.mxu0 %v7033
    %7035 = vmatprep.subr.mxu0 0.0
    %v7036 = vand.u32 %v85, 4294901760
    %7037 = vmatpush1.msra.mxu0 %v7036
    %7038 = vmatprep.subr.mxu0 0.0
    %v7039 = vand.u32 %v86, 4294901760
    %7040 = vmatpush1.msra.mxu0 %v7039
    %7041 = vmatprep.subr.mxu0 0.0
    %v7042 = vand.u32 %v87, 4294901760
    %7043 = vmatpush1.msra.mxu0 %v7042
    %7044 = vmatprep.subr.mxu0 0.0
    %v7045 = vand.u32 %v88, 4294901760
    %7046 = vmatpush1.msra.mxu0 %v7045
    %7047 = vmatprep.subr.mxu0 0.0
    %v7048 = vand.u32 %v89, 4294901760
    %7049 = vmatpush1.msra.mxu0 %v7048
    %7050 = vmatprep.subr.mxu0 0.0
    %7051 = vmatpush1.msra.mxu0 0.0
    %7052 = vmatprep.subr.mxu0 0.0
    %7053 = vmatpush1.msra.mxu0 0.0
    %7054 = vmatprep.subr.mxu0 0.0
    %7055 = vmatpush1.msra.mxu0 0.0
    %7056 = vmatprep.subr.mxu0 0.0
    %7057 = vmatpush1.msra.mxu0 0.0
    %7058 = vmatprep.subr.mxu0 0.0
    %7059 = vmatpush1.msra.mxu0 0.0
    %7060 = vmatprep.subr.mxu0 0.0
    %7061 = vmatpush1.msra.mxu0 0.0
    %7062 = vmatprep.subr.mxu0 0.0
    %7063 = vmatpush1.msra.mxu0 0.0
    %7064 = vmatprep.subr.mxu0 0.0
    %7065 = vmatpush1.msra.mxu0 0.0
    %7066 = vmatprep.subr.mxu0 0.0
    %7067 = vmatpush1.msra.mxu0 0.0
    %7068 = vmatprep.subr.mxu0 0.0
    %7069 = vmatpush1.msra.mxu0 0.0
    %7070 = vmatprep.subr.mxu0 0.0
    %7071 = vmatpush1.msra.mxu0 0.0
    %7072 = vmatprep.subr.mxu0 0.0
    %7073 = vmatpush1.msra.mxu0 0.0
    %7074 = vmatprep.subr.mxu0 0.0
    %7075 = vmatpush1.msra.mxu0 0.0
    %7076 = vmatprep.subr.mxu0 0.0
    %7077 = vmatpush1.msra.mxu0 0.0
    %7078 = vmatprep.subr.mxu0 0.0
    %7079 = vmatpush1.msra.mxu0 0.0
    %7080 = vmatprep.subr.mxu0 0.0
    %7081 = vmatpush1.msra.mxu0 0.0
    %7082 = vmatprep.mubr.f32.mxu0 0.0
    %v7083 = vand.u32 %v7001, 4294901760
    %v7084 = vsub.f32 %v7001, %v7083
    %v7085 = vand.u32 %v7084, 4294901760
    %v7086 = vsub.f32 %v7084, %v7085
    %v7087 = vand.u32 %v7086, 4294901760
    %7088 = vmatmul.mubr.f32.gmra.mrb[0].mxu0 %v7087
    %v7089 = vpop.f32.mrb[0].mxu0
    %v7090 = vadd.f32 %v90, %v7089
    %v7091 = vpop.f32.mrb[0].mxu0
    %7092 = vdwg.mxu0
    %7093 = vmatprep.subr.mxu0 0.0
    %v7094 = vand.u32 %v74, 4294901760
    %v7095 = vsub.f32 %v74, %v7094
    %v7096 = vand.u32 %v7095, 4294901760
    %v7097 = vsub.f32 %v7095, %v7096
    %v7098 = vand.u32 %v7097, 4294901760
    %7099 = vmatpush1.msra.mxu0 %v7098
    %7100 = vmatprep.subr.mxu0 0.0
    %v7101 = vand.u32 %v75, 4294901760
    %v7102 = vsub.f32 %v75, %v7101
    %v7103 = vand.u32 %v7102, 4294901760
    %v7104 = vsub.f32 %v7102, %v7103
    %v7105 = vand.u32 %v7104, 4294901760
    %7106 = vmatpush1.msra.mxu0 %v7105
    %7107 = vmatprep.subr.mxu0 0.0
    %v7108 = vand.u32 %v76, 4294901760
    %v7109 = vsub.f32 %v76, %v7108
    %v7110 = vand.u32 %v7109, 4294901760
    %v7111 = vsub.f32 %v7109, %v7110
    %v7112 = vand.u32 %v7111, 4294901760
    %7113 = vmatpush1.msra.mxu0 %v7112
    %7114 = vmatprep.subr.mxu0 0.0
    %v7115 = vand.u32 %v77, 4294901760
    %v7116 = vsub.f32 %v77, %v7115
    %v7117 = vand.u32 %v7116, 4294901760
    %v7118 = vsub.f32 %v7116, %v7117
    %v7119 = vand.u32 %v7118, 4294901760
    %7120 = vmatpush1.msra.mxu0 %v7119
    %7121 = vmatprep.subr.mxu0 0.0
    %v7122 = vand.u32 %v78, 4294901760
    %v7123 = vsub.f32 %v78, %v7122
    %v7124 = vand.u32 %v7123, 4294901760
    %v7125 = vsub.f32 %v7123, %v7124
    %v7126 = vand.u32 %v7125, 4294901760
    %7127 = vmatpush1.msra.mxu0 %v7126
    %7128 = vmatprep.subr.mxu0 0.0
    %v7129 = vand.u32 %v79, 4294901760
    %v7130 = vsub.f32 %v79, %v7129
    %v7131 = vand.u32 %v7130, 4294901760
    %v7132 = vsub.f32 %v7130, %v7131
    %v7133 = vand.u32 %v7132, 4294901760
    %7134 = vmatpush1.msra.mxu0 %v7133
    %7135 = vmatprep.subr.mxu0 0.0
    %v7136 = vand.u32 %v80, 4294901760
    %v7137 = vsub.f32 %v80, %v7136
    %v7138 = vand.u32 %v7137, 4294901760
    %v7139 = vsub.f32 %v7137, %v7138
    %v7140 = vand.u32 %v7139, 4294901760
    %7141 = vmatpush1.msra.mxu0 %v7140
    %7142 = vmatprep.subr.mxu0 0.0
    %v7143 = vand.u32 %v81, 4294901760
    %v7144 = vsub.f32 %v81, %v7143
    %v7145 = vand.u32 %v7144, 4294901760
    %v7146 = vsub.f32 %v7144, %v7145
    %v7147 = vand.u32 %v7146, 4294901760
    %7148 = vmatpush1.msra.mxu0 %v7147
    %7149 = vmatprep.subr.mxu0 0.0
    %v7150 = vand.u32 %v82, 4294901760
    %v7151 = vsub.f32 %v82, %v7150
    %v7152 = vand.u32 %v7151, 4294901760
    %v7153 = vsub.f32 %v7151, %v7152
    %v7154 = vand.u32 %v7153, 4294901760
    %7155 = vmatpush1.msra.mxu0 %v7154
    %7156 = vmatprep.subr.mxu0 0.0
    %v7157 = vand.u32 %v83, 4294901760
    %v7158 = vsub.f32 %v83, %v7157
    %v7159 = vand.u32 %v7158, 4294901760
    %v7160 = vsub.f32 %v7158, %v7159
    %v7161 = vand.u32 %v7160, 4294901760
    %7162 = vmatpush1.msra.mxu0 %v7161
    %7163 = vmatprep.subr.mxu0 0.0
    %v7164 = vand.u32 %v84, 4294901760
    %v7165 = vsub.f32 %v84, %v7164
    %v7166 = vand.u32 %v7165, 4294901760
    %v7167 = vsub.f32 %v7165, %v7166
    %v7168 = vand.u32 %v7167, 4294901760
    %7169 = vmatpush1.msra.mxu0 %v7168
    %7170 = vmatprep.subr.mxu0 0.0
    %v7171 = vand.u32 %v85, 4294901760
    %v7172 = vsub.f32 %v85, %v7171
    %v7173 = vand.u32 %v7172, 4294901760
    %v7174 = vsub.f32 %v7172, %v7173
    %v7175 = vand.u32 %v7174, 4294901760
    %7176 = vmatpush1.msra.mxu0 %v7175
    %7177 = vmatprep.subr.mxu0 0.0
    %v7178 = vand.u32 %v86, 4294901760
    %v7179 = vsub.f32 %v86, %v7178
    %v7180 = vand.u32 %v7179, 4294901760
    %v7181 = vsub.f32 %v7179, %v7180
    %v7182 = vand.u32 %v7181, 4294901760
    %7183 = vmatpush1.msra.mxu0 %v7182
    %7184 = vmatprep.subr.mxu0 0.0
    %v7185 = vand.u32 %v87, 4294901760
    %v7186 = vsub.f32 %v87, %v7185
    %v7187 = vand.u32 %v7186, 4294901760
    %v7188 = vsub.f32 %v7186, %v7187
    %v7189 = vand.u32 %v7188, 4294901760
    %7190 = vmatpush1.msra.mxu0 %v7189
    %7191 = vmatprep.subr.mxu0 0.0
    %v7192 = vand.u32 %v88, 4294901760
    %v7193 = vsub.f32 %v88, %v7192
    %v7194 = vand.u32 %v7193, 4294901760
    %v7195 = vsub.f32 %v7193, %v7194
    %v7196 = vand.u32 %v7195, 4294901760
    %7197 = vmatpush1.msra.mxu0 %v7196
    %7198 = vmatprep.subr.mxu0 0.0
    %v7199 = vand.u32 %v89, 4294901760
    %v7200 = vsub.f32 %v89, %v7199
    %v7201 = vand.u32 %v7200, 4294901760
    %v7202 = vsub.f32 %v7200, %v7201
    %v7203 = vand.u32 %v7202, 4294901760
    %7204 = vmatpush1.msra.mxu0 %v7203
    %7205 = vmatprep.subr.mxu0 0.0
    %7206 = vmatpush1.msra.mxu0 0.0
    %7207 = vmatprep.subr.mxu0 0.0
    %7208 = vmatpush1.msra.mxu0 0.0
    %7209 = vmatprep.subr.mxu0 0.0
    %7210 = vmatpush1.msra.mxu0 0.0
    %7211 = vmatprep.subr.mxu0 0.0
    %7212 = vmatpush1.msra.mxu0 0.0
    %7213 = vmatprep.subr.mxu0 0.0
    %7214 = vmatpush1.msra.mxu0 0.0
    %7215 = vmatprep.subr.mxu0 0.0
    %7216 = vmatpush1.msra.mxu0 0.0
    %7217 = vmatprep.subr.mxu0 0.0
    %7218 = vmatpush1.msra.mxu0 0.0
    %7219 = vmatprep.subr.mxu0 0.0
    %7220 = vmatpush1.msra.mxu0 0.0
    %7221 = vmatprep.subr.mxu0 0.0
    %7222 = vmatpush1.msra.mxu0 0.0
    %7223 = vmatprep.subr.mxu0 0.0
    %7224 = vmatpush1.msra.mxu0 0.0
    %7225 = vmatprep.subr.mxu0 0.0
    %7226 = vmatpush1.msra.mxu0 0.0
    %7227 = vmatprep.subr.mxu0 0.0
    %7228 = vmatpush1.msra.mxu0 0.0
    %7229 = vmatprep.subr.mxu0 0.0
    %7230 = vmatpush1.msra.mxu0 0.0
    %7231 = vmatprep.subr.mxu0 0.0
    %7232 = vmatpush1.msra.mxu0 0.0
    %7233 = vmatprep.subr.mxu0 0.0
    %7234 = vmatpush1.msra.mxu0 0.0
    %7235 = vmatprep.subr.mxu0 0.0
    %7236 = vmatpush1.msra.mxu0 0.0
    %7237 = vmatprep.mubr.f32.mxu0 0.0
    %v7238 = vand.u32 %v7001, 4294901760
    %7239 = vmatmul.mubr.f32.gmra.mrb[0].mxu0 %v7238
    %v7240 = vpop.f32.mrb[0].mxu0
    %v7241 = vadd.f32 %v7090, %v7240
    %v7242 = vpop.f32.mrb[0].mxu0
    %7243 = vdwg.mxu0
    %7244 = vmatprep.subr.mxu0 0.0
    %v7245 = vand.u32 %v74, 4294901760
    %v7246 = vsub.f32 %v74, %v7245
    %7247 = vmatpush1.msra.mxu0 %v7246
    %7248 = vmatprep.subr.mxu0 0.0
    %v7249 = vand.u32 %v75, 4294901760
    %v7250 = vsub.f32 %v75, %v7249
    %7251 = vmatpush1.msra.mxu0 %v7250
    %7252 = vmatprep.subr.mxu0 0.0
    %v7253 = vand.u32 %v76, 4294901760
    %v7254 = vsub.f32 %v76, %v7253
    %7255 = vmatpush1.msra.mxu0 %v7254
    %7256 = vmatprep.subr.mxu0 0.0
    %v7257 = vand.u32 %v77, 4294901760
    %v7258 = vsub.f32 %v77, %v7257
    %7259 = vmatpush1.msra.mxu0 %v7258
    %7260 = vmatprep.subr.mxu0 0.0
    %v7261 = vand.u32 %v78, 4294901760
    %v7262 = vsub.f32 %v78, %v7261
    %7263 = vmatpush1.msra.mxu0 %v7262
    %7264 = vmatprep.subr.mxu0 0.0
    %v7265 = vand.u32 %v79, 4294901760
    %v7266 = vsub.f32 %v79, %v7265
    %7267 = vmatpush1.msra.mxu0 %v7266
    %7268 = vmatprep.subr.mxu0 0.0
    %v7269 = vand.u32 %v80, 4294901760
    %v7270 = vsub.f32 %v80, %v7269
    %7271 = vmatpush1.msra.mxu0 %v7270
    %7272 = vmatprep.subr.mxu0 0.0
    %v7273 = vand.u32 %v81, 4294901760
    %v7274 = vsub.f32 %v81, %v7273
    %7275 = vmatpush1.msra.mxu0 %v7274
    %7276 = vmatprep.subr.mxu0 0.0
    %v7277 = vand.u32 %v82, 4294901760
    %v7278 = vsub.f32 %v82, %v7277
    %7279 = vmatpush1.msra.mxu0 %v7278
    %7280 = vmatprep.subr.mxu0 0.0
    %v7281 = vand.u32 %v83, 4294901760
    %v7282 = vsub.f32 %v83, %v7281
    %7283 = vmatpush1.msra.mxu0 %v7282
    %7284 = vmatprep.subr.mxu0 0.0
    %v7285 = vand.u32 %v84, 4294901760
    %v7286 = vsub.f32 %v84, %v7285
    %7287 = vmatpush1.msra.mxu0 %v7286
    %7288 = vmatprep.subr.mxu0 0.0
    %v7289 = vand.u32 %v85, 4294901760
    %v7290 = vsub.f32 %v85, %v7289
    %7291 = vmatpush1.msra.mxu0 %v7290
    %7292 = vmatprep.subr.mxu0 0.0
    %v7293 = vand.u32 %v86, 4294901760
    %v7294 = vsub.f32 %v86, %v7293
    %7295 = vmatpush1.msra.mxu0 %v7294
    %7296 = vmatprep.subr.mxu0 0.0
    %v7297 = vand.u32 %v87, 4294901760
    %v7298 = vsub.f32 %v87, %v7297
    %7299 = vmatpush1.msra.mxu0 %v7298
    %7300 = vmatprep.subr.mxu0 0.0
    %v7301 = vand.u32 %v88, 4294901760
    %v7302 = vsub.f32 %v88, %v7301
    %7303 = vmatpush1.msra.mxu0 %v7302
    %7304 = vmatprep.subr.mxu0 0.0
    %v7305 = vand.u32 %v89, 4294901760
    %v7306 = vsub.f32 %v89, %v7305
    %7307 = vmatpush1.msra.mxu0 %v7306
    %7308 = vmatprep.subr.mxu0 0.0
    %7309 = vmatpush1.msra.mxu0 0.0
    %7310 = vmatprep.subr.mxu0 0.0
    %7311 = vmatpush1.msra.mxu0 0.0
    %7312 = vmatprep.subr.mxu0 0.0
    %7313 = vmatpush1.msra.mxu0 0.0
    %7314 = vmatprep.subr.mxu0 0.0
    %7315 = vmatpush1.msra.mxu0 0.0
    %7316 = vmatprep.subr.mxu0 0.0
    %7317 = vmatpush1.msra.mxu0 0.0
    %7318 = vmatprep.subr.mxu0 0.0
    %7319 = vmatpush1.msra.mxu0 0.0
    %7320 = vmatprep.subr.mxu0 0.0
    %7321 = vmatpush1.msra.mxu0 0.0
    %7322 = vmatprep.subr.mxu0 0.0
    %7323 = vmatpush1.msra.mxu0 0.0
    %7324 = vmatprep.subr.mxu0 0.0
    %7325 = vmatpush1.msra.mxu0 0.0
    %7326 = vmatprep.subr.mxu0 0.0
    %7327 = vmatpush1.msra.mxu0 0.0
    %7328 = vmatprep.subr.mxu0 0.0
    %7329 = vmatpush1.msra.mxu0 0.0
    %7330 = vmatprep.subr.mxu0 0.0
    %7331 = vmatpush1.msra.mxu0 0.0
    %7332 = vmatprep.subr.mxu0 0.0
    %7333 = vmatpush1.msra.mxu0 0.0
    %7334 = vmatprep.subr.mxu0 0.0
    %7335 = vmatpush1.msra.mxu0 0.0
    %7336 = vmatprep.subr.mxu0 0.0
    %7337 = vmatpush1.msra.mxu0 0.0
    %7338 = vmatprep.subr.mxu0 0.0
    %7339 = vmatpush1.msra.mxu0 0.0
    %7340 = vmatprep.mubr.f32.mxu0 0.0
    %v7341 = vand.u32 %v7001, 4294901760
    %v7342 = vsub.f32 %v7001, %v7341
    %7343 = vmatmul.mubr.f32.gmra.mrb[0].mxu0 %v7342
    %v7344 = vpop.f32.mrb[0].mxu0
    %v7345 = vadd.f32 %v7241, %v7344
    %v7346 = vpop.f32.mrb[0].mxu0
    %7347 = vdwg.mxu0
    %7348 = vmatprep.subr.mxu0 0.0
    %v7349 = vand.u32 %v74, 4294901760
    %7350 = vmatpush1.msra.mxu0 %v7349
    %7351 = vmatprep.subr.mxu0 0.0
    %v7352 = vand.u32 %v75, 4294901760
    %7353 = vmatpush1.msra.mxu0 %v7352
    %7354 = vmatprep.subr.mxu0 0.0
    %v7355 = vand.u32 %v76, 4294901760
    %7356 = vmatpush1.msra.mxu0 %v7355
    %7357 = vmatprep.subr.mxu0 0.0
    %v7358 = vand.u32 %v77, 4294901760
    %7359 = vmatpush1.msra.mxu0 %v7358
    %7360 = vmatprep.subr.mxu0 0.0
    %v7361 = vand.u32 %v78, 4294901760
    %7362 = vmatpush1.msra.mxu0 %v7361
    %7363 = vmatprep.subr.mxu0 0.0
    %v7364 = vand.u32 %v79, 4294901760
    %7365 = vmatpush1.msra.mxu0 %v7364
    %7366 = vmatprep.subr.mxu0 0.0
    %v7367 = vand.u32 %v80, 4294901760
    %7368 = vmatpush1.msra.mxu0 %v7367
    %7369 = vmatprep.subr.mxu0 0.0
    %v7370 = vand.u32 %v81, 4294901760
    %7371 = vmatpush1.msra.mxu0 %v7370
    %7372 = vmatprep.subr.mxu0 0.0
    %v7373 = vand.u32 %v82, 4294901760
    %7374 = vmatpush1.msra.mxu0 %v7373
    %7375 = vmatprep.subr.mxu0 0.0
    %v7376 = vand.u32 %v83, 4294901760
    %7377 = vmatpush1.msra.mxu0 %v7376
    %7378 = vmatprep.subr.mxu0 0.0
    %v7379 = vand.u32 %v84, 4294901760
    %7380 = vmatpush1.msra.mxu0 %v7379
    %7381 = vmatprep.subr.mxu0 0.0
    %v7382 = vand.u32 %v85, 4294901760
    %7383 = vmatpush1.msra.mxu0 %v7382
    %7384 = vmatprep.subr.mxu0 0.0
    %v7385 = vand.u32 %v86, 4294901760
    %7386 = vmatpush1.msra.mxu0 %v7385
    %7387 = vmatprep.subr.mxu0 0.0
    %v7388 = vand.u32 %v87, 4294901760
    %7389 = vmatpush1.msra.mxu0 %v7388
    %7390 = vmatprep.subr.mxu0 0.0
    %v7391 = vand.u32 %v88, 4294901760
    %7392 = vmatpush1.msra.mxu0 %v7391
    %7393 = vmatprep.subr.mxu0 0.0
    %v7394 = vand.u32 %v89, 4294901760
    %7395 = vmatpush1.msra.mxu0 %v7394
    %7396 = vmatprep.subr.mxu0 0.0
    %7397 = vmatpush1.msra.mxu0 0.0
    %7398 = vmatprep.subr.mxu0 0.0
    %7399 = vmatpush1.msra.mxu0 0.0
    %7400 = vmatprep.subr.mxu0 0.0
    %7401 = vmatpush1.msra.mxu0 0.0
    %7402 = vmatprep.subr.mxu0 0.0
    %7403 = vmatpush1.msra.mxu0 0.0
    %7404 = vmatprep.subr.mxu0 0.0
    %7405 = vmatpush1.msra.mxu0 0.0
    %7406 = vmatprep.subr.mxu0 0.0
    %7407 = vmatpush1.msra.mxu0 0.0
    %7408 = vmatprep.subr.mxu0 0.0
    %7409 = vmatpush1.msra.mxu0 0.0
    %7410 = vmatprep.subr.mxu0 0.0
    %7411 = vmatpush1.msra.mxu0 0.0
    %7412 = vmatprep.subr.mxu0 0.0
    %7413 = vmatpush1.msra.mxu0 0.0
    %7414 = vmatprep.subr.mxu0 0.0
    %7415 = vmatpush1.msra.mxu0 0.0
    %7416 = vmatprep.subr.mxu0 0.0
    %7417 = vmatpush1.msra.mxu0 0.0
    %7418 = vmatprep.subr.mxu0 0.0
    %7419 = vmatpush1.msra.mxu0 0.0
    %7420 = vmatprep.subr.mxu0 0.0
    %7421 = vmatpush1.msra.mxu0 0.0
    %7422 = vmatprep.subr.mxu0 0.0
    %7423 = vmatpush1.msra.mxu0 0.0
    %7424 = vmatprep.subr.mxu0 0.0
    %7425 = vmatpush1.msra.mxu0 0.0
    %7426 = vmatprep.subr.mxu0 0.0
    %7427 = vmatpush1.msra.mxu0 0.0
    %7428 = vmatprep.mubr.f32.mxu0 0.0
    %v7429 = vand.u32 %v7001, 4294901760
    %v7430 = vsub.f32 %v7001, %v7429
    %v7431 = vand.u32 %v7430, 4294901760
    %7432 = vmatmul.mubr.f32.gmra.mrb[0].mxu0 %v7431
    %v7433 = vpop.f32.mrb[0].mxu0
    %v7434 = vadd.f32 %v7345, %v7433
    %v7435 = vpop.f32.mrb[0].mxu0
    %7436 = vdwg.mxu0
    %7437 = vmatprep.subr.mxu0 0.0
    %v7438 = vand.u32 %v74, 4294901760
    %v7439 = vsub.f32 %v74, %v7438
    %v7440 = vand.u32 %v7439, 4294901760
    %7441 = vmatpush1.msra.mxu0 %v7440
    %7442 = vmatprep.subr.mxu0 0.0
    %v7443 = vand.u32 %v75, 4294901760
    %v7444 = vsub.f32 %v75, %v7443
    %v7445 = vand.u32 %v7444, 4294901760
    %7446 = vmatpush1.msra.mxu0 %v7445
    %7447 = vmatprep.subr.mxu0 0.0
    %v7448 = vand.u32 %v76, 4294901760
    %v7449 = vsub.f32 %v76, %v7448
    %v7450 = vand.u32 %v7449, 4294901760
    %7451 = vmatpush1.msra.mxu0 %v7450
    %7452 = vmatprep.subr.mxu0 0.0
    %v7453 = vand.u32 %v77, 4294901760
    %v7454 = vsub.f32 %v77, %v7453
    %v7455 = vand.u32 %v7454, 4294901760
    %7456 = vmatpush1.msra.mxu0 %v7455
    %7457 = vmatprep.subr.mxu0 0.0
    %v7458 = vand.u32 %v78, 4294901760
    %v7459 = vsub.f32 %v78, %v7458
    %v7460 = vand.u32 %v7459, 4294901760
    %7461 = vmatpush1.msra.mxu0 %v7460
    %7462 = vmatprep.subr.mxu0 0.0
    %v7463 = vand.u32 %v79, 4294901760
    %v7464 = vsub.f32 %v79, %v7463
    %v7465 = vand.u32 %v7464, 4294901760
    %7466 = vmatpush1.msra.mxu0 %v7465
    %7467 = vmatprep.subr.mxu0 0.0
    %v7468 = vand.u32 %v80, 4294901760
    %v7469 = vsub.f32 %v80, %v7468
    %v7470 = vand.u32 %v7469, 4294901760
    %7471 = vmatpush1.msra.mxu0 %v7470
    %7472 = vmatprep.subr.mxu0 0.0
    %v7473 = vand.u32 %v81, 4294901760
    %v7474 = vsub.f32 %v81, %v7473
    %v7475 = vand.u32 %v7474, 4294901760
    %7476 = vmatpush1.msra.mxu0 %v7475
    %7477 = vmatprep.subr.mxu0 0.0
    %v7478 = vand.u32 %v82, 4294901760
    %v7479 = vsub.f32 %v82, %v7478
    %v7480 = vand.u32 %v7479, 4294901760
    %7481 = vmatpush1.msra.mxu0 %v7480
    %7482 = vmatprep.subr.mxu0 0.0
    %v7483 = vand.u32 %v83, 4294901760
    %v7484 = vsub.f32 %v83, %v7483
    %v7485 = vand.u32 %v7484, 4294901760
    %7486 = vmatpush1.msra.mxu0 %v7485
    %7487 = vmatprep.subr.mxu0 0.0
    %v7488 = vand.u32 %v84, 4294901760
    %v7489 = vsub.f32 %v84, %v7488
    %v7490 = vand.u32 %v7489, 4294901760
    %7491 = vmatpush1.msra.mxu0 %v7490
    %7492 = vmatprep.subr.mxu0 0.0
    %v7493 = vand.u32 %v85, 4294901760
    %v7494 = vsub.f32 %v85, %v7493
    %v7495 = vand.u32 %v7494, 4294901760
    %7496 = vmatpush1.msra.mxu0 %v7495
    %7497 = vmatprep.subr.mxu0 0.0
    %v7498 = vand.u32 %v86, 4294901760
    %v7499 = vsub.f32 %v86, %v7498
    %v7500 = vand.u32 %v7499, 4294901760
    %7501 = vmatpush1.msra.mxu0 %v7500
    %7502 = vmatprep.subr.mxu0 0.0
    %v7503 = vand.u32 %v87, 4294901760
    %v7504 = vsub.f32 %v87, %v7503
    %v7505 = vand.u32 %v7504, 4294901760
    %7506 = vmatpush1.msra.mxu0 %v7505
    %7507 = vmatprep.subr.mxu0 0.0
    %v7508 = vand.u32 %v88, 4294901760
    %v7509 = vsub.f32 %v88, %v7508
    %v7510 = vand.u32 %v7509, 4294901760
    %7511 = vmatpush1.msra.mxu0 %v7510
    %7512 = vmatprep.subr.mxu0 0.0
    %v7513 = vand.u32 %v89, 4294901760
    %v7514 = vsub.f32 %v89, %v7513
    %v7515 = vand.u32 %v7514, 4294901760
    %7516 = vmatpush1.msra.mxu0 %v7515
    %7517 = vmatprep.subr.mxu0 0.0
    %7518 = vmatpush1.msra.mxu0 0.0
    %7519 = vmatprep.subr.mxu0 0.0
    %7520 = vmatpush1.msra.mxu0 0.0
    %7521 = vmatprep.subr.mxu0 0.0
    %7522 = vmatpush1.msra.mxu0 0.0
    %7523 = vmatprep.subr.mxu0 0.0
    %7524 = vmatpush1.msra.mxu0 0.0
    %7525 = vmatprep.subr.mxu0 0.0
    %7526 = vmatpush1.msra.mxu0 0.0
    %7527 = vmatprep.subr.mxu0 0.0
    %7528 = vmatpush1.msra.mxu0 0.0
    %7529 = vmatprep.subr.mxu0 0.0
    %7530 = vmatpush1.msra.mxu0 0.0
    %7531 = vmatprep.subr.mxu0 0.0
    %7532 = vmatpush1.msra.mxu0 0.0
    %7533 = vmatprep.subr.mxu0 0.0
    %7534 = vmatpush1.msra.mxu0 0.0
    %7535 = vmatprep.subr.mxu0 0.0
    %7536 = vmatpush1.msra.mxu0 0.0
    %7537 = vmatprep.subr.mxu0 0.0
    %7538 = vmatpush1.msra.mxu0 0.0
    %7539 = vmatprep.subr.mxu0 0.0
    %7540 = vmatpush1.msra.mxu0 0.0
    %7541 = vmatprep.subr.mxu0 0.0
    %7542 = vmatpush1.msra.mxu0 0.0
    %7543 = vmatprep.subr.mxu0 0.0
    %7544 = vmatpush1.msra.mxu0 0.0
    %7545 = vmatprep.subr.mxu0 0.0
    %7546 = vmatpush1.msra.mxu0 0.0
    %7547 = vmatprep.subr.mxu0 0.0
    %7548 = vmatpush1.msra.mxu0 0.0
    %7549 = vmatprep.mubr.f32.mxu0 0.0
    %v7550 = vand.u32 %v7001, 4294901760
    %7551 = vmatmul.mubr.f32.gmra.mrb[0].mxu0 %v7550
    %v7552 = vpop.f32.mrb[0].mxu0
    %v7553 = vadd.f32 %v7434, %v7552
    %v7554 = vpop.f32.mrb[0].mxu0
    %7555 = vdwg.mxu0
    %7556 = vmatprep.subr.mxu0 0.0
    %v7557 = vand.u32 %v74, 4294901760
    %7558 = vmatpush1.msra.mxu0 %v7557
    %7559 = vmatprep.subr.mxu0 0.0
    %v7560 = vand.u32 %v75, 4294901760
    %7561 = vmatpush1.msra.mxu0 %v7560
    %7562 = vmatprep.subr.mxu0 0.0
    %v7563 = vand.u32 %v76, 4294901760
    %7564 = vmatpush1.msra.mxu0 %v7563
    %7565 = vmatprep.subr.mxu0 0.0
    %v7566 = vand.u32 %v77, 4294901760
    %7567 = vmatpush1.msra.mxu0 %v7566
    %7568 = vmatprep.subr.mxu0 0.0
    %v7569 = vand.u32 %v78, 4294901760
    %7570 = vmatpush1.msra.mxu0 %v7569
    %7571 = vmatprep.subr.mxu0 0.0
    %v7572 = vand.u32 %v79, 4294901760
    %7573 = vmatpush1.msra.mxu0 %v7572
    %7574 = vmatprep.subr.mxu0 0.0
    %v7575 = vand.u32 %v80, 4294901760
    %7576 = vmatpush1.msra.mxu0 %v7575
    %7577 = vmatprep.subr.mxu0 0.0
    %v7578 = vand.u32 %v81, 4294901760
    %7579 = vmatpush1.msra.mxu0 %v7578
    %7580 = vmatprep.subr.mxu0 0.0
    %v7581 = vand.u32 %v82, 4294901760
    %7582 = vmatpush1.msra.mxu0 %v7581
    %7583 = vmatprep.subr.mxu0 0.0
    %v7584 = vand.u32 %v83, 4294901760
    %7585 = vmatpush1.msra.mxu0 %v7584
    %7586 = vmatprep.subr.mxu0 0.0
    %v7587 = vand.u32 %v84, 4294901760
    %7588 = vmatpush1.msra.mxu0 %v7587
    %7589 = vmatprep.subr.mxu0 0.0
    %v7590 = vand.u32 %v85, 4294901760
    %7591 = vmatpush1.msra.mxu0 %v7590
    %7592 = vmatprep.subr.mxu0 0.0
    %v7593 = vand.u32 %v86, 4294901760
    %7594 = vmatpush1.msra.mxu0 %v7593
    %7595 = vmatprep.subr.mxu0 0.0
    %v7596 = vand.u32 %v87, 4294901760
    %7597 = vmatpush1.msra.mxu0 %v7596
    %7598 = vmatprep.subr.mxu0 0.0
    %v7599 = vand.u32 %v88, 4294901760
    %7600 = vmatpush1.msra.mxu0 %v7599
    %7601 = vmatprep.subr.mxu0 0.0
    %v7602 = vand.u32 %v89, 4294901760
    %7603 = vmatpush1.msra.mxu0 %v7602
    %7604 = vmatprep.subr.mxu0 0.0
    %7605 = vmatpush1.msra.mxu0 0.0
    %7606 = vmatprep.subr.mxu0 0.0
    %7607 = vmatpush1.msra.mxu0 0.0
    %7608 = vmatprep.subr.mxu0 0.0
    %7609 = vmatpush1.msra.mxu0 0.0
    %7610 = vmatprep.subr.mxu0 0.0
    %7611 = vmatpush1.msra.mxu0 0.0
    %7612 = vmatprep.subr.mxu0 0.0
    %7613 = vmatpush1.msra.mxu0 0.0
    %7614 = vmatprep.subr.mxu0 0.0
    %7615 = vmatpush1.msra.mxu0 0.0
    %7616 = vmatprep.subr.mxu0 0.0
    %7617 = vmatpush1.msra.mxu0 0.0
    %7618 = vmatprep.subr.mxu0 0.0
    %7619 = vmatpush1.msra.mxu0 0.0
    %7620 = vmatprep.subr.mxu0 0.0
    %7621 = vmatpush1.msra.mxu0 0.0
    %7622 = vmatprep.subr.mxu0 0.0
    %7623 = vmatpush1.msra.mxu0 0.0
    %7624 = vmatprep.subr.mxu0 0.0
    %7625 = vmatpush1.msra.mxu0 0.0
    %7626 = vmatprep.subr.mxu0 0.0
    %7627 = vmatpush1.msra.mxu0 0.0
    %7628 = vmatprep.subr.mxu0 0.0
    %7629 = vmatpush1.msra.mxu0 0.0
    %7630 = vmatprep.subr.mxu0 0.0
    %7631 = vmatpush1.msra.mxu0 0.0
    %7632 = vmatprep.subr.mxu0 0.0
    %7633 = vmatpush1.msra.mxu0 0.0
    %7634 = vmatprep.subr.mxu0 0.0
    %7635 = vmatpush1.msra.mxu0 0.0
    %7636 = vmatprep.mubr.f32.mxu0 0.0
    %v7637 = vand.u32 %v7001, 4294901760
    %7638 = vmatmul.mubr.f32.gmra.mrb[0].mxu0 %v7637
    %v7639 = vpop.f32.mrb[0].mxu0
    %v7640 = vadd.f32 %v7553, %v7639
    %v7641 = vpop.f32.mrb[0].mxu0
    %7642 = vdwg.mxu0
    %s7643 = scalar_lea.vmem %s5, 32
    %7644 = vst [vmem:[%s7643] sm:$0xff] %v7640
    %s7645 = scalar_lea.vmem %s0, 40
    %v7646 = vld [vmem:[%s7645] sm:$0xff]
    %7647 = vmatprep.subr.mxu0 0.0
    %v7648 = vand.u32 %v42, 4294901760
    %7649 = vmatpush1.msra.mxu0 %v7648
    %7650 = vmatprep.subr.mxu0 0.0
    %v7651 = vand.u32 %v43, 4294901760
    %7652 = vmatpush1.msra.mxu0 %v7651
    %7653 = vmatprep.subr.mxu0 0.0
    %v7654 = vand.u32 %v44, 4294901760
    %7655 = vmatpush1.msra.mxu0 %v7654
    %7656 = vmatprep.subr.mxu0 0.0
    %v7657 = vand.u32 %v45, 4294901760
    %7658 = vmatpush1.msra.mxu0 %v7657
    %7659 = vmatprep.subr.mxu0 0.0
    %v7660 = vand.u32 %v46, 4294901760
    %7661 = vmatpush1.msra.mxu0 %v7660
    %7662 = vmatprep.subr.mxu0 0.0
    %v7663 = vand.u32 %v47, 4294901760
    %7664 = vmatpush1.msra.mxu0 %v7663
    %7665 = vmatprep.subr.mxu0 0.0
    %v7666 = vand.u32 %v48, 4294901760
    %7667 = vmatpush1.msra.mxu0 %v7666
    %7668 = vmatprep.subr.mxu0 0.0
    %v7669 = vand.u32 %v49, 4294901760
    %7670 = vmatpush1.msra.mxu0 %v7669
    %7671 = vmatprep.subr.mxu0 0.0
    %v7672 = vand.u32 %v50, 4294901760
    %7673 = vmatpush1.msra.mxu0 %v7672
    %7674 = vmatprep.subr.mxu0 0.0
    %v7675 = vand.u32 %v51, 4294901760
    %7676 = vmatpush1.msra.mxu0 %v7675
    %7677 = vmatprep.subr.mxu0 0.0
    %v7678 = vand.u32 %v52, 4294901760
    %7679 = vmatpush1.msra.mxu0 %v7678
    %7680 = vmatprep.subr.mxu0 0.0
    %v7681 = vand.u32 %v53, 4294901760
    %7682 = vmatpush1.msra.mxu0 %v7681
    %7683 = vmatprep.subr.mxu0 0.0
    %v7684 = vand.u32 %v54, 4294901760
    %7685 = vmatpush1.msra.mxu0 %v7684
    %7686 = vmatprep.subr.mxu0 0.0
    %v7687 = vand.u32 %v55, 4294901760
    %7688 = vmatpush1.msra.mxu0 %v7687
    %7689 = vmatprep.subr.mxu0 0.0
    %v7690 = vand.u32 %v56, 4294901760
    %7691 = vmatpush1.msra.mxu0 %v7690
    %7692 = vmatprep.subr.mxu0 0.0
    %v7693 = vand.u32 %v57, 4294901760
    %7694 = vmatpush1.msra.mxu0 %v7693
    %7695 = vmatprep.subr.mxu0 0.0
    %v7696 = vand.u32 %v58, 4294901760
    %7697 = vmatpush1.msra.mxu0 %v7696
    %7698 = vmatprep.subr.mxu0 0.0
    %v7699 = vand.u32 %v59, 4294901760
    %7700 = vmatpush1.msra.mxu0 %v7699
    %7701 = vmatprep.subr.mxu0 0.0
    %v7702 = vand.u32 %v60, 4294901760
    %7703 = vmatpush1.msra.mxu0 %v7702
    %7704 = vmatprep.subr.mxu0 0.0
    %v7705 = vand.u32 %v61, 4294901760
    %7706 = vmatpush1.msra.mxu0 %v7705
    %7707 = vmatprep.subr.mxu0 0.0
    %v7708 = vand.u32 %v62, 4294901760
    %7709 = vmatpush1.msra.mxu0 %v7708
    %7710 = vmatprep.subr.mxu0 0.0
    %v7711 = vand.u32 %v63, 4294901760
    %7712 = vmatpush1.msra.mxu0 %v7711
    %7713 = vmatprep.subr.mxu0 0.0
    %v7714 = vand.u32 %v64, 4294901760
    %7715 = vmatpush1.msra.mxu0 %v7714
    %7716 = vmatprep.subr.mxu0 0.0
    %v7717 = vand.u32 %v65, 4294901760
    %7718 = vmatpush1.msra.mxu0 %v7717
    %7719 = vmatprep.subr.mxu0 0.0
    %v7720 = vand.u32 %v66, 4294901760
    %7721 = vmatpush1.msra.mxu0 %v7720
    %7722 = vmatprep.subr.mxu0 0.0
    %v7723 = vand.u32 %v67, 4294901760
    %7724 = vmatpush1.msra.mxu0 %v7723
    %7725 = vmatprep.subr.mxu0 0.0
    %v7726 = vand.u32 %v68, 4294901760
    %7727 = vmatpush1.msra.mxu0 %v7726
    %7728 = vmatprep.subr.mxu0 0.0
    %v7729 = vand.u32 %v69, 4294901760
    %7730 = vmatpush1.msra.mxu0 %v7729
    %7731 = vmatprep.subr.mxu0 0.0
    %v7732 = vand.u32 %v70, 4294901760
    %7733 = vmatpush1.msra.mxu0 %v7732
    %7734 = vmatprep.subr.mxu0 0.0
    %v7735 = vand.u32 %v71, 4294901760
    %7736 = vmatpush1.msra.mxu0 %v7735
    %7737 = vmatprep.subr.mxu0 0.0
    %v7738 = vand.u32 %v72, 4294901760
    %7739 = vmatpush1.msra.mxu0 %v7738
    %7740 = vmatprep.subr.mxu0 0.0
    %v7741 = vand.u32 %v73, 4294901760
    %7742 = vmatpush1.msra.mxu0 %v7741
    %v7743 = vand.u32 %v7646, 4294901760
    %v7744 = vsub.f32 %v7646, %v7743
    %v7745 = vand.u32 %v7744, 4294901760
    %v7746 = vsub.f32 %v7744, %v7745
    %v7747 = vand.u32 %v7746, 4294901760
    %7748 = vmatprep.mubr.f32.mxu0 %v7747
    %v7749 = vand.u32 %v7001, 4294901760
    %v7750 = vsub.f32 %v7001, %v7749
    %v7751 = vand.u32 %v7750, 4294901760
    %v7752 = vsub.f32 %v7750, %v7751
    %v7753 = vand.u32 %v7752, 4294901760
    %7754 = vmatmul.mubr.f32.gmra.mrb[0].mxu0 %v7753
    %v7755 = vpop.f32.mrb[0].mxu0
    %v7756 = vadd.f32 0.0, %v7755
    %v7757 = vpop.f32.mrb[0].mxu0
    %7758 = vdwg.mxu0
    %7759 = vmatprep.subr.mxu0 0.0
    %v7760 = vand.u32 %v42, 4294901760
    %v7761 = vsub.f32 %v42, %v7760
    %v7762 = vand.u32 %v7761, 4294901760
    %v7763 = vsub.f32 %v7761, %v7762
    %v7764 = vand.u32 %v7763, 4294901760
    %7765 = vmatpush1.msra.mxu0 %v7764
    %7766 = vmatprep.subr.mxu0 0.0
    %v7767 = vand.u32 %v43, 4294901760
    %v7768 = vsub.f32 %v43, %v7767
    %v7769 = vand.u32 %v7768, 4294901760
    %v7770 = vsub.f32 %v7768, %v7769
    %v7771 = vand.u32 %v7770, 4294901760
    %7772 = vmatpush1.msra.mxu0 %v7771
    %7773 = vmatprep.subr.mxu0 0.0
    %v7774 = vand.u32 %v44, 4294901760
    %v7775 = vsub.f32 %v44, %v7774
    %v7776 = vand.u32 %v7775, 4294901760
    %v7777 = vsub.f32 %v7775, %v7776
    %v7778 = vand.u32 %v7777, 4294901760
    %7779 = vmatpush1.msra.mxu0 %v7778
    %7780 = vmatprep.subr.mxu0 0.0
    %v7781 = vand.u32 %v45, 4294901760
    %v7782 = vsub.f32 %v45, %v7781
    %v7783 = vand.u32 %v7782, 4294901760
    %v7784 = vsub.f32 %v7782, %v7783
    %v7785 = vand.u32 %v7784, 4294901760
    %7786 = vmatpush1.msra.mxu0 %v7785
    %7787 = vmatprep.subr.mxu0 0.0
    %v7788 = vand.u32 %v46, 4294901760
    %v7789 = vsub.f32 %v46, %v7788
    %v7790 = vand.u32 %v7789, 4294901760
    %v7791 = vsub.f32 %v7789, %v7790
    %v7792 = vand.u32 %v7791, 4294901760
    %7793 = vmatpush1.msra.mxu0 %v7792
    %7794 = vmatprep.subr.mxu0 0.0
    %v7795 = vand.u32 %v47, 4294901760
    %v7796 = vsub.f32 %v47, %v7795
    %v7797 = vand.u32 %v7796, 4294901760
    %v7798 = vsub.f32 %v7796, %v7797
    %v7799 = vand.u32 %v7798, 4294901760
    %7800 = vmatpush1.msra.mxu0 %v7799
    %7801 = vmatprep.subr.mxu0 0.0
    %v7802 = vand.u32 %v48, 4294901760
    %v7803 = vsub.f32 %v48, %v7802
    %v7804 = vand.u32 %v7803, 4294901760
    %v7805 = vsub.f32 %v7803, %v7804
    %v7806 = vand.u32 %v7805, 4294901760
    %7807 = vmatpush1.msra.mxu0 %v7806
    %7808 = vmatprep.subr.mxu0 0.0
    %v7809 = vand.u32 %v49, 4294901760
    %v7810 = vsub.f32 %v49, %v7809
    %v7811 = vand.u32 %v7810, 4294901760
    %v7812 = vsub.f32 %v7810, %v7811
    %v7813 = vand.u32 %v7812, 4294901760
    %7814 = vmatpush1.msra.mxu0 %v7813
    %7815 = vmatprep.subr.mxu0 0.0
    %v7816 = vand.u32 %v50, 4294901760
    %v7817 = vsub.f32 %v50, %v7816
    %v7818 = vand.u32 %v7817, 4294901760
    %v7819 = vsub.f32 %v7817, %v7818
    %v7820 = vand.u32 %v7819, 4294901760
    %7821 = vmatpush1.msra.mxu0 %v7820
    %7822 = vmatprep.subr.mxu0 0.0
    %v7823 = vand.u32 %v51, 4294901760
    %v7824 = vsub.f32 %v51, %v7823
    %v7825 = vand.u32 %v7824, 4294901760
    %v7826 = vsub.f32 %v7824, %v7825
    %v7827 = vand.u32 %v7826, 4294901760
    %7828 = vmatpush1.msra.mxu0 %v7827
    %7829 = vmatprep.subr.mxu0 0.0
    %v7830 = vand.u32 %v52, 4294901760
    %v7831 = vsub.f32 %v52, %v7830
    %v7832 = vand.u32 %v7831, 4294901760
    %v7833 = vsub.f32 %v7831, %v7832
    %v7834 = vand.u32 %v7833, 4294901760
    %7835 = vmatpush1.msra.mxu0 %v7834
    %7836 = vmatprep.subr.mxu0 0.0
    %v7837 = vand.u32 %v53, 4294901760
    %v7838 = vsub.f32 %v53, %v7837
    %v7839 = vand.u32 %v7838, 4294901760
    %v7840 = vsub.f32 %v7838, %v7839
    %v7841 = vand.u32 %v7840, 4294901760
    %7842 = vmatpush1.msra.mxu0 %v7841
    %7843 = vmatprep.subr.mxu0 0.0
    %v7844 = vand.u32 %v54, 4294901760
    %v7845 = vsub.f32 %v54, %v7844
    %v7846 = vand.u32 %v7845, 4294901760
    %v7847 = vsub.f32 %v7845, %v7846
    %v7848 = vand.u32 %v7847, 4294901760
    %7849 = vmatpush1.msra.mxu0 %v7848
    %7850 = vmatprep.subr.mxu0 0.0
    %v7851 = vand.u32 %v55, 4294901760
    %v7852 = vsub.f32 %v55, %v7851
    %v7853 = vand.u32 %v7852, 4294901760
    %v7854 = vsub.f32 %v7852, %v7853
    %v7855 = vand.u32 %v7854, 4294901760
    %7856 = vmatpush1.msra.mxu0 %v7855
    %7857 = vmatprep.subr.mxu0 0.0
    %v7858 = vand.u32 %v56, 4294901760
    %v7859 = vsub.f32 %v56, %v7858
    %v7860 = vand.u32 %v7859, 4294901760
    %v7861 = vsub.f32 %v7859, %v7860
    %v7862 = vand.u32 %v7861, 4294901760
    %7863 = vmatpush1.msra.mxu0 %v7862
    %7864 = vmatprep.subr.mxu0 0.0
    %v7865 = vand.u32 %v57, 4294901760
    %v7866 = vsub.f32 %v57, %v7865
    %v7867 = vand.u32 %v7866, 4294901760
    %v7868 = vsub.f32 %v7866, %v7867
    %v7869 = vand.u32 %v7868, 4294901760
    %7870 = vmatpush1.msra.mxu0 %v7869
    %7871 = vmatprep.subr.mxu0 0.0
    %v7872 = vand.u32 %v58, 4294901760
    %v7873 = vsub.f32 %v58, %v7872
    %v7874 = vand.u32 %v7873, 4294901760
    %v7875 = vsub.f32 %v7873, %v7874
    %v7876 = vand.u32 %v7875, 4294901760
    %7877 = vmatpush1.msra.mxu0 %v7876
    %7878 = vmatprep.subr.mxu0 0.0
    %v7879 = vand.u32 %v59, 4294901760
    %v7880 = vsub.f32 %v59, %v7879
    %v7881 = vand.u32 %v7880, 4294901760
    %v7882 = vsub.f32 %v7880, %v7881
    %v7883 = vand.u32 %v7882, 4294901760
    %7884 = vmatpush1.msra.mxu0 %v7883
    %7885 = vmatprep.subr.mxu0 0.0
    %v7886 = vand.u32 %v60, 4294901760
    %v7887 = vsub.f32 %v60, %v7886
    %v7888 = vand.u32 %v7887, 4294901760
    %v7889 = vsub.f32 %v7887, %v7888
    %v7890 = vand.u32 %v7889, 4294901760
    %7891 = vmatpush1.msra.mxu0 %v7890
    %7892 = vmatprep.subr.mxu0 0.0
    %v7893 = vand.u32 %v61, 4294901760
    %v7894 = vsub.f32 %v61, %v7893
    %v7895 = vand.u32 %v7894, 4294901760
    %v7896 = vsub.f32 %v7894, %v7895
    %v7897 = vand.u32 %v7896, 4294901760
    %7898 = vmatpush1.msra.mxu0 %v7897
    %7899 = vmatprep.subr.mxu0 0.0
    %v7900 = vand.u32 %v62, 4294901760
    %v7901 = vsub.f32 %v62, %v7900
    %v7902 = vand.u32 %v7901, 4294901760
    %v7903 = vsub.f32 %v7901, %v7902
    %v7904 = vand.u32 %v7903, 4294901760
    %7905 = vmatpush1.msra.mxu0 %v7904
    %7906 = vmatprep.subr.mxu0 0.0
    %v7907 = vand.u32 %v63, 4294901760
    %v7908 = vsub.f32 %v63, %v7907
    %v7909 = vand.u32 %v7908, 4294901760
    %v7910 = vsub.f32 %v7908, %v7909
    %v7911 = vand.u32 %v7910, 4294901760
    %7912 = vmatpush1.msra.mxu0 %v7911
    %7913 = vmatprep.subr.mxu0 0.0
    %v7914 = vand.u32 %v64, 4294901760
    %v7915 = vsub.f32 %v64, %v7914
    %v7916 = vand.u32 %v7915, 4294901760
    %v7917 = vsub.f32 %v7915, %v7916
    %v7918 = vand.u32 %v7917, 4294901760
    %7919 = vmatpush1.msra.mxu0 %v7918
    %7920 = vmatprep.subr.mxu0 0.0
    %v7921 = vand.u32 %v65, 4294901760
    %v7922 = vsub.f32 %v65, %v7921
    %v7923 = vand.u32 %v7922, 4294901760
    %v7924 = vsub.f32 %v7922, %v7923
    %v7925 = vand.u32 %v7924, 4294901760
    %7926 = vmatpush1.msra.mxu0 %v7925
    %7927 = vmatprep.subr.mxu0 0.0
    %v7928 = vand.u32 %v66, 4294901760
    %v7929 = vsub.f32 %v66, %v7928
    %v7930 = vand.u32 %v7929, 4294901760
    %v7931 = vsub.f32 %v7929, %v7930
    %v7932 = vand.u32 %v7931, 4294901760
    %7933 = vmatpush1.msra.mxu0 %v7932
    %7934 = vmatprep.subr.mxu0 0.0
    %v7935 = vand.u32 %v67, 4294901760
    %v7936 = vsub.f32 %v67, %v7935
    %v7937 = vand.u32 %v7936, 4294901760
    %v7938 = vsub.f32 %v7936, %v7937
    %v7939 = vand.u32 %v7938, 4294901760
    %7940 = vmatpush1.msra.mxu0 %v7939
    %7941 = vmatprep.subr.mxu0 0.0
    %v7942 = vand.u32 %v68, 4294901760
    %v7943 = vsub.f32 %v68, %v7942
    %v7944 = vand.u32 %v7943, 4294901760
    %v7945 = vsub.f32 %v7943, %v7944
    %v7946 = vand.u32 %v7945, 4294901760
    %7947 = vmatpush1.msra.mxu0 %v7946
    %7948 = vmatprep.subr.mxu0 0.0
    %v7949 = vand.u32 %v69, 4294901760
    %v7950 = vsub.f32 %v69, %v7949
    %v7951 = vand.u32 %v7950, 4294901760
    %v7952 = vsub.f32 %v7950, %v7951
    %v7953 = vand.u32 %v7952, 4294901760
    %7954 = vmatpush1.msra.mxu0 %v7953
    %7955 = vmatprep.subr.mxu0 0.0
    %v7956 = vand.u32 %v70, 4294901760
    %v7957 = vsub.f32 %v70, %v7956
    %v7958 = vand.u32 %v7957, 4294901760
    %v7959 = vsub.f32 %v7957, %v7958
    %v7960 = vand.u32 %v7959, 4294901760
    %7961 = vmatpush1.msra.mxu0 %v7960
    %7962 = vmatprep.subr.mxu0 0.0
    %v7963 = vand.u32 %v71, 4294901760
    %v7964 = vsub.f32 %v71, %v7963
    %v7965 = vand.u32 %v7964, 4294901760
    %v7966 = vsub.f32 %v7964, %v7965
    %v7967 = vand.u32 %v7966, 4294901760
    %7968 = vmatpush1.msra.mxu0 %v7967
    %7969 = vmatprep.subr.mxu0 0.0
    %v7970 = vand.u32 %v72, 4294901760
    %v7971 = vsub.f32 %v72, %v7970
    %v7972 = vand.u32 %v7971, 4294901760
    %v7973 = vsub.f32 %v7971, %v7972
    %v7974 = vand.u32 %v7973, 4294901760
    %7975 = vmatpush1.msra.mxu0 %v7974
    %7976 = vmatprep.subr.mxu0 0.0
    %v7977 = vand.u32 %v73, 4294901760
    %v7978 = vsub.f32 %v73, %v7977
    %v7979 = vand.u32 %v7978, 4294901760
    %v7980 = vsub.f32 %v7978, %v7979
    %v7981 = vand.u32 %v7980, 4294901760
    %7982 = vmatpush1.msra.mxu0 %v7981
    %v7983 = vand.u32 %v7646, 4294901760
    %7984 = vmatprep.mubr.f32.mxu0 %v7983
    %v7985 = vand.u32 %v7001, 4294901760
    %7986 = vmatmul.mubr.f32.gmra.mrb[0].mxu0 %v7985
    %v7987 = vpop.f32.mrb[0].mxu0
    %v7988 = vadd.f32 %v7756, %v7987
    %v7989 = vpop.f32.mrb[0].mxu0
    %7990 = vdwg.mxu0
    %7991 = vmatprep.subr.mxu0 0.0
    %v7992 = vand.u32 %v42, 4294901760
    %v7993 = vsub.f32 %v42, %v7992
    %7994 = vmatpush1.msra.mxu0 %v7993
    %7995 = vmatprep.subr.mxu0 0.0
    %v7996 = vand.u32 %v43, 4294901760
    %v7997 = vsub.f32 %v43, %v7996
    %7998 = vmatpush1.msra.mxu0 %v7997
    %7999 = vmatprep.subr.mxu0 0.0
    %v8000 = vand.u32 %v44, 4294901760
    %v8001 = vsub.f32 %v44, %v8000
    %8002 = vmatpush1.msra.mxu0 %v8001
    %8003 = vmatprep.subr.mxu0 0.0
    %v8004 = vand.u32 %v45, 4294901760
    %v8005 = vsub.f32 %v45, %v8004
    %8006 = vmatpush1.msra.mxu0 %v8005
    %8007 = vmatprep.subr.mxu0 0.0
    %v8008 = vand.u32 %v46, 4294901760
    %v8009 = vsub.f32 %v46, %v8008
    %8010 = vmatpush1.msra.mxu0 %v8009
    %8011 = vmatprep.subr.mxu0 0.0
    %v8012 = vand.u32 %v47, 4294901760
    %v8013 = vsub.f32 %v47, %v8012
    %8014 = vmatpush1.msra.mxu0 %v8013
    %8015 = vmatprep.subr.mxu0 0.0
    %v8016 = vand.u32 %v48, 4294901760
    %v8017 = vsub.f32 %v48, %v8016
    %8018 = vmatpush1.msra.mxu0 %v8017
    %8019 = vmatprep.subr.mxu0 0.0
    %v8020 = vand.u32 %v49, 4294901760
    %v8021 = vsub.f32 %v49, %v8020
    %8022 = vmatpush1.msra.mxu0 %v8021
    %8023 = vmatprep.subr.mxu0 0.0
    %v8024 = vand.u32 %v50, 4294901760
    %v8025 = vsub.f32 %v50, %v8024
    %8026 = vmatpush1.msra.mxu0 %v8025
    %8027 = vmatprep.subr.mxu0 0.0
    %v8028 = vand.u32 %v51, 4294901760
    %v8029 = vsub.f32 %v51, %v8028
    %8030 = vmatpush1.msra.mxu0 %v8029
    %8031 = vmatprep.subr.mxu0 0.0
    %v8032 = vand.u32 %v52, 4294901760
    %v8033 = vsub.f32 %v52, %v8032
    %8034 = vmatpush1.msra.mxu0 %v8033
    %8035 = vmatprep.subr.mxu0 0.0
    %v8036 = vand.u32 %v53, 4294901760
    %v8037 = vsub.f32 %v53, %v8036
    %8038 = vmatpush1.msra.mxu0 %v8037
    %8039 = vmatprep.subr.mxu0 0.0
    %v8040 = vand.u32 %v54, 4294901760
    %v8041 = vsub.f32 %v54, %v8040
    %8042 = vmatpush1.msra.mxu0 %v8041
    %8043 = vmatprep.subr.mxu0 0.0
    %v8044 = vand.u32 %v55, 4294901760
    %v8045 = vsub.f32 %v55, %v8044
    %8046 = vmatpush1.msra.mxu0 %v8045
    %8047 = vmatprep.subr.mxu0 0.0
    %v8048 = vand.u32 %v56, 4294901760
    %v8049 = vsub.f32 %v56, %v8048
    %8050 = vmatpush1.msra.mxu0 %v8049
    %8051 = vmatprep.subr.mxu0 0.0
    %v8052 = vand.u32 %v57, 4294901760
    %v8053 = vsub.f32 %v57, %v8052
    %8054 = vmatpush1.msra.mxu0 %v8053
    %8055 = vmatprep.subr.mxu0 0.0
    %v8056 = vand.u32 %v58, 4294901760
    %v8057 = vsub.f32 %v58, %v8056
    %8058 = vmatpush1.msra.mxu0 %v8057
    %8059 = vmatprep.subr.mxu0 0.0
    %v8060 = vand.u32 %v59, 4294901760
    %v8061 = vsub.f32 %v59, %v8060
    %8062 = vmatpush1.msra.mxu0 %v8061
    %8063 = vmatprep.subr.mxu0 0.0
    %v8064 = vand.u32 %v60, 4294901760
    %v8065 = vsub.f32 %v60, %v8064
    %8066 = vmatpush1.msra.mxu0 %v8065
    %8067 = vmatprep.subr.mxu0 0.0
    %v8068 = vand.u32 %v61, 4294901760
    %v8069 = vsub.f32 %v61, %v8068
    %8070 = vmatpush1.msra.mxu0 %v8069
    %8071 = vmatprep.subr.mxu0 0.0
    %v8072 = vand.u32 %v62, 4294901760
    %v8073 = vsub.f32 %v62, %v8072
    %8074 = vmatpush1.msra.mxu0 %v8073
    %8075 = vmatprep.subr.mxu0 0.0
    %v8076 = vand.u32 %v63, 4294901760
    %v8077 = vsub.f32 %v63, %v8076
    %8078 = vmatpush1.msra.mxu0 %v8077
    %8079 = vmatprep.subr.mxu0 0.0
    %v8080 = vand.u32 %v64, 4294901760
    %v8081 = vsub.f32 %v64, %v8080
    %8082 = vmatpush1.msra.mxu0 %v8081
    %8083 = vmatprep.subr.mxu0 0.0
    %v8084 = vand.u32 %v65, 4294901760
    %v8085 = vsub.f32 %v65, %v8084
    %8086 = vmatpush1.msra.mxu0 %v8085
    %8087 = vmatprep.subr.mxu0 0.0
    %v8088 = vand.u32 %v66, 4294901760
    %v8089 = vsub.f32 %v66, %v8088
    %8090 = vmatpush1.msra.mxu0 %v8089
    %8091 = vmatprep.subr.mxu0 0.0
    %v8092 = vand.u32 %v67, 4294901760
    %v8093 = vsub.f32 %v67, %v8092
    %8094 = vmatpush1.msra.mxu0 %v8093
    %8095 = vmatprep.subr.mxu0 0.0
    %v8096 = vand.u32 %v68, 4294901760
    %v8097 = vsub.f32 %v68, %v8096
    %8098 = vmatpush1.msra.mxu0 %v8097
    %8099 = vmatprep.subr.mxu0 0.0
    %v8100 = vand.u32 %v69, 4294901760
    %v8101 = vsub.f32 %v69, %v8100
    %8102 = vmatpush1.msra.mxu0 %v8101
    %8103 = vmatprep.subr.mxu0 0.0
    %v8104 = vand.u32 %v70, 4294901760
    %v8105 = vsub.f32 %v70, %v8104
    %8106 = vmatpush1.msra.mxu0 %v8105
    %8107 = vmatprep.subr.mxu0 0.0
    %v8108 = vand.u32 %v71, 4294901760
    %v8109 = vsub.f32 %v71, %v8108
    %8110 = vmatpush1.msra.mxu0 %v8109
    %8111 = vmatprep.subr.mxu0 0.0
    %v8112 = vand.u32 %v72, 4294901760
    %v8113 = vsub.f32 %v72, %v8112
    %8114 = vmatpush1.msra.mxu0 %v8113
    %8115 = vmatprep.subr.mxu0 0.0
    %v8116 = vand.u32 %v73, 4294901760
    %v8117 = vsub.f32 %v73, %v8116
    %8118 = vmatpush1.msra.mxu0 %v8117
    %v8119 = vand.u32 %v7646, 4294901760
    %v8120 = vsub.f32 %v7646, %v8119
    %8121 = vmatprep.mubr.f32.mxu0 %v8120
    %v8122 = vand.u32 %v7001, 4294901760
    %v8123 = vsub.f32 %v7001, %v8122
    %8124 = vmatmul.mubr.f32.gmra.mrb[0].mxu0 %v8123
    %v8125 = vpop.f32.mrb[0].mxu0
    %v8126 = vadd.f32 %v7988, %v8125
    %v8127 = vpop.f32.mrb[0].mxu0
    %8128 = vdwg.mxu0
    %8129 = vmatprep.subr.mxu0 0.0
    %v8130 = vand.u32 %v42, 4294901760
    %8131 = vmatpush1.msra.mxu0 %v8130
    %8132 = vmatprep.subr.mxu0 0.0
    %v8133 = vand.u32 %v43, 4294901760
    %8134 = vmatpush1.msra.mxu0 %v8133
    %8135 = vmatprep.subr.mxu0 0.0
    %v8136 = vand.u32 %v44, 4294901760
    %8137 = vmatpush1.msra.mxu0 %v8136
    %8138 = vmatprep.subr.mxu0 0.0
    %v8139 = vand.u32 %v45, 4294901760
    %8140 = vmatpush1.msra.mxu0 %v8139
    %8141 = vmatprep.subr.mxu0 0.0
    %v8142 = vand.u32 %v46, 4294901760
    %8143 = vmatpush1.msra.mxu0 %v8142
    %8144 = vmatprep.subr.mxu0 0.0
    %v8145 = vand.u32 %v47, 4294901760
    %8146 = vmatpush1.msra.mxu0 %v8145
    %8147 = vmatprep.subr.mxu0 0.0
    %v8148 = vand.u32 %v48, 4294901760
    %8149 = vmatpush1.msra.mxu0 %v8148
    %8150 = vmatprep.subr.mxu0 0.0
    %v8151 = vand.u32 %v49, 4294901760
    %8152 = vmatpush1.msra.mxu0 %v8151
    %8153 = vmatprep.subr.mxu0 0.0
    %v8154 = vand.u32 %v50, 4294901760
    %8155 = vmatpush1.msra.mxu0 %v8154
    %8156 = vmatprep.subr.mxu0 0.0
    %v8157 = vand.u32 %v51, 4294901760
    %8158 = vmatpush1.msra.mxu0 %v8157
    %8159 = vmatprep.subr.mxu0 0.0
    %v8160 = vand.u32 %v52, 4294901760
    %8161 = vmatpush1.msra.mxu0 %v8160
    %8162 = vmatprep.subr.mxu0 0.0
    %v8163 = vand.u32 %v53, 4294901760
    %8164 = vmatpush1.msra.mxu0 %v8163
    %8165 = vmatprep.subr.mxu0 0.0
    %v8166 = vand.u32 %v54, 4294901760
    %8167 = vmatpush1.msra.mxu0 %v8166
    %8168 = vmatprep.subr.mxu0 0.0
    %v8169 = vand.u32 %v55, 4294901760
    %8170 = vmatpush1.msra.mxu0 %v8169
    %8171 = vmatprep.subr.mxu0 0.0
    %v8172 = vand.u32 %v56, 4294901760
    %8173 = vmatpush1.msra.mxu0 %v8172
    %8174 = vmatprep.subr.mxu0 0.0
    %v8175 = vand.u32 %v57, 4294901760
    %8176 = vmatpush1.msra.mxu0 %v8175
    %8177 = vmatprep.subr.mxu0 0.0
    %v8178 = vand.u32 %v58, 4294901760
    %8179 = vmatpush1.msra.mxu0 %v8178
    %8180 = vmatprep.subr.mxu0 0.0
    %v8181 = vand.u32 %v59, 4294901760
    %8182 = vmatpush1.msra.mxu0 %v8181
    %8183 = vmatprep.subr.mxu0 0.0
    %v8184 = vand.u32 %v60, 4294901760
    %8185 = vmatpush1.msra.mxu0 %v8184
    %8186 = vmatprep.subr.mxu0 0.0
    %v8187 = vand.u32 %v61, 4294901760
    %8188 = vmatpush1.msra.mxu0 %v8187
    %8189 = vmatprep.subr.mxu0 0.0
    %v8190 = vand.u32 %v62, 4294901760
    %8191 = vmatpush1.msra.mxu0 %v8190
    %8192 = vmatprep.subr.mxu0 0.0
    %v8193 = vand.u32 %v63, 4294901760
    %8194 = vmatpush1.msra.mxu0 %v8193
    %8195 = vmatprep.subr.mxu0 0.0
    %v8196 = vand.u32 %v64, 4294901760
    %8197 = vmatpush1.msra.mxu0 %v8196
    %8198 = vmatprep.subr.mxu0 0.0
    %v8199 = vand.u32 %v65, 4294901760
    %8200 = vmatpush1.msra.mxu0 %v8199
    %8201 = vmatprep.subr.mxu0 0.0
    %v8202 = vand.u32 %v66, 4294901760
    %8203 = vmatpush1.msra.mxu0 %v8202
    %8204 = vmatprep.subr.mxu0 0.0
    %v8205 = vand.u32 %v67, 4294901760
    %8206 = vmatpush1.msra.mxu0 %v8205
    %8207 = vmatprep.subr.mxu0 0.0
    %v8208 = vand.u32 %v68, 4294901760
    %8209 = vmatpush1.msra.mxu0 %v8208
    %8210 = vmatprep.subr.mxu0 0.0
    %v8211 = vand.u32 %v69, 4294901760
    %8212 = vmatpush1.msra.mxu0 %v8211
    %8213 = vmatprep.subr.mxu0 0.0
    %v8214 = vand.u32 %v70, 4294901760
    %8215 = vmatpush1.msra.mxu0 %v8214
    %8216 = vmatprep.subr.mxu0 0.0
    %v8217 = vand.u32 %v71, 4294901760
    %8218 = vmatpush1.msra.mxu0 %v8217
    %8219 = vmatprep.subr.mxu0 0.0
    %v8220 = vand.u32 %v72, 4294901760
    %8221 = vmatpush1.msra.mxu0 %v8220
    %8222 = vmatprep.subr.mxu0 0.0
    %v8223 = vand.u32 %v73, 4294901760
    %8224 = vmatpush1.msra.mxu0 %v8223
    %v8225 = vand.u32 %v7646, 4294901760
    %v8226 = vsub.f32 %v7646, %v8225
    %v8227 = vand.u32 %v8226, 4294901760
    %8228 = vmatprep.mubr.f32.mxu0 %v8227
    %v8229 = vand.u32 %v7001, 4294901760
    %v8230 = vsub.f32 %v7001, %v8229
    %v8231 = vand.u32 %v8230, 4294901760
    %8232 = vmatmul.mubr.f32.gmra.mrb[0].mxu0 %v8231
    %v8233 = vpop.f32.mrb[0].mxu0
    %v8234 = vadd.f32 %v8126, %v8233
    %v8235 = vpop.f32.mrb[0].mxu0
    %8236 = vdwg.mxu0
    %8237 = vmatprep.subr.mxu0 0.0
    %v8238 = vand.u32 %v42, 4294901760
    %v8239 = vsub.f32 %v42, %v8238
    %v8240 = vand.u32 %v8239, 4294901760
    %8241 = vmatpush1.msra.mxu0 %v8240
    %8242 = vmatprep.subr.mxu0 0.0
    %v8243 = vand.u32 %v43, 4294901760
    %v8244 = vsub.f32 %v43, %v8243
    %v8245 = vand.u32 %v8244, 4294901760
    %8246 = vmatpush1.msra.mxu0 %v8245
    %8247 = vmatprep.subr.mxu0 0.0
    %v8248 = vand.u32 %v44, 4294901760
    %v8249 = vsub.f32 %v44, %v8248
    %v8250 = vand.u32 %v8249, 4294901760
    %8251 = vmatpush1.msra.mxu0 %v8250
    %8252 = vmatprep.subr.mxu0 0.0
    %v8253 = vand.u32 %v45, 4294901760
    %v8254 = vsub.f32 %v45, %v8253
    %v8255 = vand.u32 %v8254, 4294901760
    %8256 = vmatpush1.msra.mxu0 %v8255
    %8257 = vmatprep.subr.mxu0 0.0
    %v8258 = vand.u32 %v46, 4294901760
    %v8259 = vsub.f32 %v46, %v8258
    %v8260 = vand.u32 %v8259, 4294901760
    %8261 = vmatpush1.msra.mxu0 %v8260
    %8262 = vmatprep.subr.mxu0 0.0
    %v8263 = vand.u32 %v47, 4294901760
    %v8264 = vsub.f32 %v47, %v8263
    %v8265 = vand.u32 %v8264, 4294901760
    %8266 = vmatpush1.msra.mxu0 %v8265
    %8267 = vmatprep.subr.mxu0 0.0
    %v8268 = vand.u32 %v48, 4294901760
    %v8269 = vsub.f32 %v48, %v8268
    %v8270 = vand.u32 %v8269, 4294901760
    %8271 = vmatpush1.msra.mxu0 %v8270
    %8272 = vmatprep.subr.mxu0 0.0
    %v8273 = vand.u32 %v49, 4294901760
    %v8274 = vsub.f32 %v49, %v8273
    %v8275 = vand.u32 %v8274, 4294901760
    %8276 = vmatpush1.msra.mxu0 %v8275
    %8277 = vmatprep.subr.mxu0 0.0
    %v8278 = vand.u32 %v50, 4294901760
    %v8279 = vsub.f32 %v50, %v8278
    %v8280 = vand.u32 %v8279, 4294901760
    %8281 = vmatpush1.msra.mxu0 %v8280
    %8282 = vmatprep.subr.mxu0 0.0
    %v8283 = vand.u32 %v51, 4294901760
    %v8284 = vsub.f32 %v51, %v8283
    %v8285 = vand.u32 %v8284, 4294901760
    %8286 = vmatpush1.msra.mxu0 %v8285
    %8287 = vmatprep.subr.mxu0 0.0
    %v8288 = vand.u32 %v52, 4294901760
    %v8289 = vsub.f32 %v52, %v8288
    %v8290 = vand.u32 %v8289, 4294901760
    %8291 = vmatpush1.msra.mxu0 %v8290
    %8292 = vmatprep.subr.mxu0 0.0
    %v8293 = vand.u32 %v53, 4294901760
    %v8294 = vsub.f32 %v53, %v8293
    %v8295 = vand.u32 %v8294, 4294901760
    %8296 = vmatpush1.msra.mxu0 %v8295
    %8297 = vmatprep.subr.mxu0 0.0
    %v8298 = vand.u32 %v54, 4294901760
    %v8299 = vsub.f32 %v54, %v8298
    %v8300 = vand.u32 %v8299, 4294901760
    %8301 = vmatpush1.msra.mxu0 %v8300
    %8302 = vmatprep.subr.mxu0 0.0
    %v8303 = vand.u32 %v55, 4294901760
    %v8304 = vsub.f32 %v55, %v8303
    %v8305 = vand.u32 %v8304, 4294901760
    %8306 = vmatpush1.msra.mxu0 %v8305
    %8307 = vmatprep.subr.mxu0 0.0
    %v8308 = vand.u32 %v56, 4294901760
    %v8309 = vsub.f32 %v56, %v8308
    %v8310 = vand.u32 %v8309, 4294901760
    %8311 = vmatpush1.msra.mxu0 %v8310
    %8312 = vmatprep.subr.mxu0 0.0
    %v8313 = vand.u32 %v57, 4294901760
    %v8314 = vsub.f32 %v57, %v8313
    %v8315 = vand.u32 %v8314, 4294901760
    %8316 = vmatpush1.msra.mxu0 %v8315
    %8317 = vmatprep.subr.mxu0 0.0
    %v8318 = vand.u32 %v58, 4294901760
    %v8319 = vsub.f32 %v58, %v8318
    %v8320 = vand.u32 %v8319, 4294901760
    %8321 = vmatpush1.msra.mxu0 %v8320
    %8322 = vmatprep.subr.mxu0 0.0
    %v8323 = vand.u32 %v59, 4294901760
    %v8324 = vsub.f32 %v59, %v8323
    %v8325 = vand.u32 %v8324, 4294901760
    %8326 = vmatpush1.msra.mxu0 %v8325
    %8327 = vmatprep.subr.mxu0 0.0
    %v8328 = vand.u32 %v60, 4294901760
    %v8329 = vsub.f32 %v60, %v8328
    %v8330 = vand.u32 %v8329, 4294901760
    %8331 = vmatpush1.msra.mxu0 %v8330
    %8332 = vmatprep.subr.mxu0 0.0
    %v8333 = vand.u32 %v61, 4294901760
    %v8334 = vsub.f32 %v61, %v8333
    %v8335 = vand.u32 %v8334, 4294901760
    %8336 = vmatpush1.msra.mxu0 %v8335
    %8337 = vmatprep.subr.mxu0 0.0
    %v8338 = vand.u32 %v62, 4294901760
    %v8339 = vsub.f32 %v62, %v8338
    %v8340 = vand.u32 %v8339, 4294901760
    %8341 = vmatpush1.msra.mxu0 %v8340
    %8342 = vmatprep.subr.mxu0 0.0
    %v8343 = vand.u32 %v63, 4294901760
    %v8344 = vsub.f32 %v63, %v8343
    %v8345 = vand.u32 %v8344, 4294901760
    %8346 = vmatpush1.msra.mxu0 %v8345
    %8347 = vmatprep.subr.mxu0 0.0
    %v8348 = vand.u32 %v64, 4294901760
    %v8349 = vsub.f32 %v64, %v8348
    %v8350 = vand.u32 %v8349, 4294901760
    %8351 = vmatpush1.msra.mxu0 %v8350
    %8352 = vmatprep.subr.mxu0 0.0
    %v8353 = vand.u32 %v65, 4294901760
    %v8354 = vsub.f32 %v65, %v8353
    %v8355 = vand.u32 %v8354, 4294901760
    %8356 = vmatpush1.msra.mxu0 %v8355
    %8357 = vmatprep.subr.mxu0 0.0
    %v8358 = vand.u32 %v66, 4294901760
    %v8359 = vsub.f32 %v66, %v8358
    %v8360 = vand.u32 %v8359, 4294901760
    %8361 = vmatpush1.msra.mxu0 %v8360
    %8362 = vmatprep.subr.mxu0 0.0
    %v8363 = vand.u32 %v67, 4294901760
    %v8364 = vsub.f32 %v67, %v8363
    %v8365 = vand.u32 %v8364, 4294901760
    %8366 = vmatpush1.msra.mxu0 %v8365
    %8367 = vmatprep.subr.mxu0 0.0
    %v8368 = vand.u32 %v68, 4294901760
    %v8369 = vsub.f32 %v68, %v8368
    %v8370 = vand.u32 %v8369, 4294901760
    %8371 = vmatpush1.msra.mxu0 %v8370
    %8372 = vmatprep.subr.mxu0 0.0
    %v8373 = vand.u32 %v69, 4294901760
    %v8374 = vsub.f32 %v69, %v8373
    %v8375 = vand.u32 %v8374, 4294901760
    %8376 = vmatpush1.msra.mxu0 %v8375
    %8377 = vmatprep.subr.mxu0 0.0
    %v8378 = vand.u32 %v70, 4294901760
    %v8379 = vsub.f32 %v70, %v8378
    %v8380 = vand.u32 %v8379, 4294901760
    %8381 = vmatpush1.msra.mxu0 %v8380
    %8382 = vmatprep.subr.mxu0 0.0
    %v8383 = vand.u32 %v71, 4294901760
    %v8384 = vsub.f32 %v71, %v8383
    %v8385 = vand.u32 %v8384, 4294901760
    %8386 = vmatpush1.msra.mxu0 %v8385
    %8387 = vmatprep.subr.mxu0 0.0
    %v8388 = vand.u32 %v72, 4294901760
    %v8389 = vsub.f32 %v72, %v8388
    %v8390 = vand.u32 %v8389, 4294901760
    %8391 = vmatpush1.msra.mxu0 %v8390
    %8392 = vmatprep.subr.mxu0 0.0
    %v8393 = vand.u32 %v73, 4294901760
    %v8394 = vsub.f32 %v73, %v8393
    %v8395 = vand.u32 %v8394, 4294901760
    %8396 = vmatpush1.msra.mxu0 %v8395
    %v8397 = vand.u32 %v7646, 4294901760
    %8398 = vmatprep.mubr.f32.mxu0 %v8397
    %v8399 = vand.u32 %v7001, 4294901760
    %8400 = vmatmul.mubr.f32.gmra.mrb[0].mxu0 %v8399
    %v8401 = vpop.f32.mrb[0].mxu0
    %v8402 = vadd.f32 %v8234, %v8401
    %v8403 = vpop.f32.mrb[0].mxu0
    %8404 = vdwg.mxu0
    %8405 = vmatprep.subr.mxu0 0.0
    %v8406 = vand.u32 %v42, 4294901760
    %8407 = vmatpush1.msra.mxu0 %v8406
    %8408 = vmatprep.subr.mxu0 0.0
    %v8409 = vand.u32 %v43, 4294901760
    %8410 = vmatpush1.msra.mxu0 %v8409
    %8411 = vmatprep.subr.mxu0 0.0
    %v8412 = vand.u32 %v44, 4294901760
    %8413 = vmatpush1.msra.mxu0 %v8412
    %8414 = vmatprep.subr.mxu0 0.0
    %v8415 = vand.u32 %v45, 4294901760
    %8416 = vmatpush1.msra.mxu0 %v8415
    %8417 = vmatprep.subr.mxu0 0.0
    %v8418 = vand.u32 %v46, 4294901760
    %8419 = vmatpush1.msra.mxu0 %v8418
    %8420 = vmatprep.subr.mxu0 0.0
    %v8421 = vand.u32 %v47, 4294901760
    %8422 = vmatpush1.msra.mxu0 %v8421
    %8423 = vmatprep.subr.mxu0 0.0
    %v8424 = vand.u32 %v48, 4294901760
    %8425 = vmatpush1.msra.mxu0 %v8424
    %8426 = vmatprep.subr.mxu0 0.0
    %v8427 = vand.u32 %v49, 4294901760
    %8428 = vmatpush1.msra.mxu0 %v8427
    %8429 = vmatprep.subr.mxu0 0.0
    %v8430 = vand.u32 %v50, 4294901760
    %8431 = vmatpush1.msra.mxu0 %v8430
    %8432 = vmatprep.subr.mxu0 0.0
    %v8433 = vand.u32 %v51, 4294901760
    %8434 = vmatpush1.msra.mxu0 %v8433
    %8435 = vmatprep.subr.mxu0 0.0
    %v8436 = vand.u32 %v52, 4294901760
    %8437 = vmatpush1.msra.mxu0 %v8436
    %8438 = vmatprep.subr.mxu0 0.0
    %v8439 = vand.u32 %v53, 4294901760
    %8440 = vmatpush1.msra.mxu0 %v8439
    %8441 = vmatprep.subr.mxu0 0.0
    %v8442 = vand.u32 %v54, 4294901760
    %8443 = vmatpush1.msra.mxu0 %v8442
    %8444 = vmatprep.subr.mxu0 0.0
    %v8445 = vand.u32 %v55, 4294901760
    %8446 = vmatpush1.msra.mxu0 %v8445
    %8447 = vmatprep.subr.mxu0 0.0
    %v8448 = vand.u32 %v56, 4294901760
    %8449 = vmatpush1.msra.mxu0 %v8448
    %8450 = vmatprep.subr.mxu0 0.0
    %v8451 = vand.u32 %v57, 4294901760
    %8452 = vmatpush1.msra.mxu0 %v8451
    %8453 = vmatprep.subr.mxu0 0.0
    %v8454 = vand.u32 %v58, 4294901760
    %8455 = vmatpush1.msra.mxu0 %v8454
    %8456 = vmatprep.subr.mxu0 0.0
    %v8457 = vand.u32 %v59, 4294901760
    %8458 = vmatpush1.msra.mxu0 %v8457
    %8459 = vmatprep.subr.mxu0 0.0
    %v8460 = vand.u32 %v60, 4294901760
    %8461 = vmatpush1.msra.mxu0 %v8460
    %8462 = vmatprep.subr.mxu0 0.0
    %v8463 = vand.u32 %v61, 4294901760
    %8464 = vmatpush1.msra.mxu0 %v8463
    %8465 = vmatprep.subr.mxu0 0.0
    %v8466 = vand.u32 %v62, 4294901760
    %8467 = vmatpush1.msra.mxu0 %v8466
    %8468 = vmatprep.subr.mxu0 0.0
    %v8469 = vand.u32 %v63, 4294901760
    %8470 = vmatpush1.msra.mxu0 %v8469
    %8471 = vmatprep.subr.mxu0 0.0
    %v8472 = vand.u32 %v64, 4294901760
    %8473 = vmatpush1.msra.mxu0 %v8472
    %8474 = vmatprep.subr.mxu0 0.0
    %v8475 = vand.u32 %v65, 4294901760
    %8476 = vmatpush1.msra.mxu0 %v8475
    %8477 = vmatprep.subr.mxu0 0.0
    %v8478 = vand.u32 %v66, 4294901760
    %8479 = vmatpush1.msra.mxu0 %v8478
    %8480 = vmatprep.subr.mxu0 0.0
    %v8481 = vand.u32 %v67, 4294901760
    %8482 = vmatpush1.msra.mxu0 %v8481
    %8483 = vmatprep.subr.mxu0 0.0
    %v8484 = vand.u32 %v68, 4294901760
    %8485 = vmatpush1.msra.mxu0 %v8484
    %8486 = vmatprep.subr.mxu0 0.0
    %v8487 = vand.u32 %v69, 4294901760
    %8488 = vmatpush1.msra.mxu0 %v8487
    %8489 = vmatprep.subr.mxu0 0.0
    %v8490 = vand.u32 %v70, 4294901760
    %8491 = vmatpush1.msra.mxu0 %v8490
    %8492 = vmatprep.subr.mxu0 0.0
    %v8493 = vand.u32 %v71, 4294901760
    %8494 = vmatpush1.msra.mxu0 %v8493
    %8495 = vmatprep.subr.mxu0 0.0
    %v8496 = vand.u32 %v72, 4294901760
    %8497 = vmatpush1.msra.mxu0 %v8496
    %8498 = vmatprep.subr.mxu0 0.0
    %v8499 = vand.u32 %v73, 4294901760
    %8500 = vmatpush1.msra.mxu0 %v8499
    %v8501 = vand.u32 %v7646, 4294901760
    %8502 = vmatprep.mubr.f32.mxu0 %v8501
    %v8503 = vand.u32 %v7001, 4294901760
    %8504 = vmatmul.mubr.f32.gmra.mrb[0].mxu0 %v8503
    %v8505 = vpop.f32.mrb[0].mxu0
    %v8506 = vadd.f32 %v8402, %v8505
    %v8507 = vpop.f32.mrb[0].mxu0
    %8508 = vdwg.mxu0
    %v8509 = vtanh.pop %v8506
    %v8510 = vmul.f32 %v7001, 0.9
    %v8511 = vmul.f32 %v8509, 0.1
    %v8512 = vadd.f32 %v8510, %v8511
    %8513 = vmatprep.subr.mxu0 0.0
    %v8514 = vand.u32 %v74, 4294901760
    %8515 = vmatpush1.msra.mxu0 %v8514
    %8516 = vmatprep.subr.mxu0 0.0
    %v8517 = vand.u32 %v75, 4294901760
    %8518 = vmatpush1.msra.mxu0 %v8517
    %8519 = vmatprep.subr.mxu0 0.0
    %v8520 = vand.u32 %v76, 4294901760
    %8521 = vmatpush1.msra.mxu0 %v8520
    %8522 = vmatprep.subr.mxu0 0.0
    %v8523 = vand.u32 %v77, 4294901760
    %8524 = vmatpush1.msra.mxu0 %v8523
    %8525 = vmatprep.subr.mxu0 0.0
    %v8526 = vand.u32 %v78, 4294901760
    %8527 = vmatpush1.msra.mxu0 %v8526
    %8528 = vmatprep.subr.mxu0 0.0
    %v8529 = vand.u32 %v79, 4294901760
    %8530 = vmatpush1.msra.mxu0 %v8529
    %8531 = vmatprep.subr.mxu0 0.0
    %v8532 = vand.u32 %v80, 4294901760
    %8533 = vmatpush1.msra.mxu0 %v8532
    %8534 = vmatprep.subr.mxu0 0.0
    %v8535 = vand.u32 %v81, 4294901760
    %8536 = vmatpush1.msra.mxu0 %v8535
    %8537 = vmatprep.subr.mxu0 0.0
    %v8538 = vand.u32 %v82, 4294901760
    %8539 = vmatpush1.msra.mxu0 %v8538
    %8540 = vmatprep.subr.mxu0 0.0
    %v8541 = vand.u32 %v83, 4294901760
    %8542 = vmatpush1.msra.mxu0 %v8541
    %8543 = vmatprep.subr.mxu0 0.0
    %v8544 = vand.u32 %v84, 4294901760
    %8545 = vmatpush1.msra.mxu0 %v8544
    %8546 = vmatprep.subr.mxu0 0.0
    %v8547 = vand.u32 %v85, 4294901760
    %8548 = vmatpush1.msra.mxu0 %v8547
    %8549 = vmatprep.subr.mxu0 0.0
    %v8550 = vand.u32 %v86, 4294901760
    %8551 = vmatpush1.msra.mxu0 %v8550
    %8552 = vmatprep.subr.mxu0 0.0
    %v8553 = vand.u32 %v87, 4294901760
    %8554 = vmatpush1.msra.mxu0 %v8553
    %8555 = vmatprep.subr.mxu0 0.0
    %v8556 = vand.u32 %v88, 4294901760
    %8557 = vmatpush1.msra.mxu0 %v8556
    %8558 = vmatprep.subr.mxu0 0.0
    %v8559 = vand.u32 %v89, 4294901760
    %8560 = vmatpush1.msra.mxu0 %v8559
    %8561 = vmatprep.subr.mxu0 0.0
    %8562 = vmatpush1.msra.mxu0 0.0
    %8563 = vmatprep.subr.mxu0 0.0
    %8564 = vmatpush1.msra.mxu0 0.0
    %8565 = vmatprep.subr.mxu0 0.0
    %8566 = vmatpush1.msra.mxu0 0.0
    %8567 = vmatprep.subr.mxu0 0.0
    %8568 = vmatpush1.msra.mxu0 0.0
    %8569 = vmatprep.subr.mxu0 0.0
    %8570 = vmatpush1.msra.mxu0 0.0
    %8571 = vmatprep.subr.mxu0 0.0
    %8572 = vmatpush1.msra.mxu0 0.0
    %8573 = vmatprep.subr.mxu0 0.0
    %8574 = vmatpush1.msra.mxu0 0.0
    %8575 = vmatprep.subr.mxu0 0.0
    %8576 = vmatpush1.msra.mxu0 0.0
    %8577 = vmatprep.subr.mxu0 0.0
    %8578 = vmatpush1.msra.mxu0 0.0
    %8579 = vmatprep.subr.mxu0 0.0
    %8580 = vmatpush1.msra.mxu0 0.0
    %8581 = vmatprep.subr.mxu0 0.0
    %8582 = vmatpush1.msra.mxu0 0.0
    %8583 = vmatprep.subr.mxu0 0.0
    %8584 = vmatpush1.msra.mxu0 0.0
    %8585 = vmatprep.subr.mxu0 0.0
    %8586 = vmatpush1.msra.mxu0 0.0
    %8587 = vmatprep.subr.mxu0 0.0
    %8588 = vmatpush1.msra.mxu0 0.0
    %8589 = vmatprep.subr.mxu0 0.0
    %8590 = vmatpush1.msra.mxu0 0.0
    %8591 = vmatprep.subr.mxu0 0.0
    %8592 = vmatpush1.msra.mxu0 0.0
    %8593 = vmatprep.mubr.f32.mxu0 0.0
    %v8594 = vand.u32 %v8512, 4294901760
    %v8595 = vsub.f32 %v8512, %v8594
    %v8596 = vand.u32 %v8595, 4294901760
    %v8597 = vsub.f32 %v8595, %v8596
    %v8598 = vand.u32 %v8597, 4294901760
    %8599 = vmatmul.mubr.f32.gmra.mrb[0].mxu0 %v8598
    %v8600 = vpop.f32.mrb[0].mxu0
    %v8601 = vadd.f32 %v90, %v8600
    %v8602 = vpop.f32.mrb[0].mxu0
    %8603 = vdwg.mxu0
    %8604 = vmatprep.subr.mxu0 0.0
    %v8605 = vand.u32 %v74, 4294901760
    %v8606 = vsub.f32 %v74, %v8605
    %v8607 = vand.u32 %v8606, 4294901760
    %v8608 = vsub.f32 %v8606, %v8607
    %v8609 = vand.u32 %v8608, 4294901760
    %8610 = vmatpush1.msra.mxu0 %v8609
    %8611 = vmatprep.subr.mxu0 0.0
    %v8612 = vand.u32 %v75, 4294901760
    %v8613 = vsub.f32 %v75, %v8612
    %v8614 = vand.u32 %v8613, 4294901760
    %v8615 = vsub.f32 %v8613, %v8614
    %v8616 = vand.u32 %v8615, 4294901760
    %8617 = vmatpush1.msra.mxu0 %v8616
    %8618 = vmatprep.subr.mxu0 0.0
    %v8619 = vand.u32 %v76, 4294901760
    %v8620 = vsub.f32 %v76, %v8619
    %v8621 = vand.u32 %v8620, 4294901760
    %v8622 = vsub.f32 %v8620, %v8621
    %v8623 = vand.u32 %v8622, 4294901760
    %8624 = vmatpush1.msra.mxu0 %v8623
    %8625 = vmatprep.subr.mxu0 0.0
    %v8626 = vand.u32 %v77, 4294901760
    %v8627 = vsub.f32 %v77, %v8626
    %v8628 = vand.u32 %v8627, 4294901760
    %v8629 = vsub.f32 %v8627, %v8628
    %v8630 = vand.u32 %v8629, 4294901760
    %8631 = vmatpush1.msra.mxu0 %v8630
    %8632 = vmatprep.subr.mxu0 0.0
    %v8633 = vand.u32 %v78, 4294901760
    %v8634 = vsub.f32 %v78, %v8633
    %v8635 = vand.u32 %v8634, 4294901760
    %v8636 = vsub.f32 %v8634, %v8635
    %v8637 = vand.u32 %v8636, 4294901760
    %8638 = vmatpush1.msra.mxu0 %v8637
    %8639 = vmatprep.subr.mxu0 0.0
    %v8640 = vand.u32 %v79, 4294901760
    %v8641 = vsub.f32 %v79, %v8640
    %v8642 = vand.u32 %v8641, 4294901760
    %v8643 = vsub.f32 %v8641, %v8642
    %v8644 = vand.u32 %v8643, 4294901760
    %8645 = vmatpush1.msra.mxu0 %v8644
    %8646 = vmatprep.subr.mxu0 0.0
    %v8647 = vand.u32 %v80, 4294901760
    %v8648 = vsub.f32 %v80, %v8647
    %v8649 = vand.u32 %v8648, 4294901760
    %v8650 = vsub.f32 %v8648, %v8649
    %v8651 = vand.u32 %v8650, 4294901760
    %8652 = vmatpush1.msra.mxu0 %v8651
    %8653 = vmatprep.subr.mxu0 0.0
    %v8654 = vand.u32 %v81, 4294901760
    %v8655 = vsub.f32 %v81, %v8654
    %v8656 = vand.u32 %v8655, 4294901760
    %v8657 = vsub.f32 %v8655, %v8656
    %v8658 = vand.u32 %v8657, 4294901760
    %8659 = vmatpush1.msra.mxu0 %v8658
    %8660 = vmatprep.subr.mxu0 0.0
    %v8661 = vand.u32 %v82, 4294901760
    %v8662 = vsub.f32 %v82, %v8661
    %v8663 = vand.u32 %v8662, 4294901760
    %v8664 = vsub.f32 %v8662, %v8663
    %v8665 = vand.u32 %v8664, 4294901760
    %8666 = vmatpush1.msra.mxu0 %v8665
    %8667 = vmatprep.subr.mxu0 0.0
    %v8668 = vand.u32 %v83, 4294901760
    %v8669 = vsub.f32 %v83, %v8668
    %v8670 = vand.u32 %v8669, 4294901760
    %v8671 = vsub.f32 %v8669, %v8670
    %v8672 = vand.u32 %v8671, 4294901760
    %8673 = vmatpush1.msra.mxu0 %v8672
    %8674 = vmatprep.subr.mxu0 0.0
    %v8675 = vand.u32 %v84, 4294901760
    %v8676 = vsub.f32 %v84, %v8675
    %v8677 = vand.u32 %v8676, 4294901760
    %v8678 = vsub.f32 %v8676, %v8677
    %v8679 = vand.u32 %v8678, 4294901760
    %8680 = vmatpush1.msra.mxu0 %v8679
    %8681 = vmatprep.subr.mxu0 0.0
    %v8682 = vand.u32 %v85, 4294901760
    %v8683 = vsub.f32 %v85, %v8682
    %v8684 = vand.u32 %v8683, 4294901760
    %v8685 = vsub.f32 %v8683, %v8684
    %v8686 = vand.u32 %v8685, 4294901760
    %8687 = vmatpush1.msra.mxu0 %v8686
    %8688 = vmatprep.subr.mxu0 0.0
    %v8689 = vand.u32 %v86, 4294901760
    %v8690 = vsub.f32 %v86, %v8689
    %v8691 = vand.u32 %v8690, 4294901760
    %v8692 = vsub.f32 %v8690, %v8691
    %v8693 = vand.u32 %v8692, 4294901760
    %8694 = vmatpush1.msra.mxu0 %v8693
    %8695 = vmatprep.subr.mxu0 0.0
    %v8696 = vand.u32 %v87, 4294901760
    %v8697 = vsub.f32 %v87, %v8696
    %v8698 = vand.u32 %v8697, 4294901760
    %v8699 = vsub.f32 %v8697, %v8698
    %v8700 = vand.u32 %v8699, 4294901760
    %8701 = vmatpush1.msra.mxu0 %v8700
    %8702 = vmatprep.subr.mxu0 0.0
    %v8703 = vand.u32 %v88, 4294901760
    %v8704 = vsub.f32 %v88, %v8703
    %v8705 = vand.u32 %v8704, 4294901760
    %v8706 = vsub.f32 %v8704, %v8705
    %v8707 = vand.u32 %v8706, 4294901760
    %8708 = vmatpush1.msra.mxu0 %v8707
    %8709 = vmatprep.subr.mxu0 0.0
    %v8710 = vand.u32 %v89, 4294901760
    %v8711 = vsub.f32 %v89, %v8710
    %v8712 = vand.u32 %v8711, 4294901760
    %v8713 = vsub.f32 %v8711, %v8712
    %v8714 = vand.u32 %v8713, 4294901760
    %8715 = vmatpush1.msra.mxu0 %v8714
    %8716 = vmatprep.subr.mxu0 0.0
    %8717 = vmatpush1.msra.mxu0 0.0
    %8718 = vmatprep.subr.mxu0 0.0
    %8719 = vmatpush1.msra.mxu0 0.0
    %8720 = vmatprep.subr.mxu0 0.0
    %8721 = vmatpush1.msra.mxu0 0.0
    %8722 = vmatprep.subr.mxu0 0.0
    %8723 = vmatpush1.msra.mxu0 0.0
    %8724 = vmatprep.subr.mxu0 0.0
    %8725 = vmatpush1.msra.mxu0 0.0
    %8726 = vmatprep.subr.mxu0 0.0
    %8727 = vmatpush1.msra.mxu0 0.0
    %8728 = vmatprep.subr.mxu0 0.0
    %8729 = vmatpush1.msra.mxu0 0.0
    %8730 = vmatprep.subr.mxu0 0.0
    %8731 = vmatpush1.msra.mxu0 0.0
    %8732 = vmatprep.subr.mxu0 0.0
    %8733 = vmatpush1.msra.mxu0 0.0
    %8734 = vmatprep.subr.mxu0 0.0
    %8735 = vmatpush1.msra.mxu0 0.0
    %8736 = vmatprep.subr.mxu0 0.0
    %8737 = vmatpush1.msra.mxu0 0.0
    %8738 = vmatprep.subr.mxu0 0.0
    %8739 = vmatpush1.msra.mxu0 0.0
    %8740 = vmatprep.subr.mxu0 0.0
    %8741 = vmatpush1.msra.mxu0 0.0
    %8742 = vmatprep.subr.mxu0 0.0
    %8743 = vmatpush1.msra.mxu0 0.0
    %8744 = vmatprep.subr.mxu0 0.0
    %8745 = vmatpush1.msra.mxu0 0.0
    %8746 = vmatprep.subr.mxu0 0.0
    %8747 = vmatpush1.msra.mxu0 0.0
    %8748 = vmatprep.mubr.f32.mxu0 0.0
    %v8749 = vand.u32 %v8512, 4294901760
    %8750 = vmatmul.mubr.f32.gmra.mrb[0].mxu0 %v8749
    %v8751 = vpop.f32.mrb[0].mxu0
    %v8752 = vadd.f32 %v8601, %v8751
    %v8753 = vpop.f32.mrb[0].mxu0
    %8754 = vdwg.mxu0
    %8755 = vmatprep.subr.mxu0 0.0
    %v8756 = vand.u32 %v74, 4294901760
    %v8757 = vsub.f32 %v74, %v8756
    %8758 = vmatpush1.msra.mxu0 %v8757
    %8759 = vmatprep.subr.mxu0 0.0
    %v8760 = vand.u32 %v75, 4294901760
    %v8761 = vsub.f32 %v75, %v8760
    %8762 = vmatpush1.msra.mxu0 %v8761
    %8763 = vmatprep.subr.mxu0 0.0
    %v8764 = vand.u32 %v76, 4294901760
    %v8765 = vsub.f32 %v76, %v8764
    %8766 = vmatpush1.msra.mxu0 %v8765
    %8767 = vmatprep.subr.mxu0 0.0
    %v8768 = vand.u32 %v77, 4294901760
    %v8769 = vsub.f32 %v77, %v8768
    %8770 = vmatpush1.msra.mxu0 %v8769
    %8771 = vmatprep.subr.mxu0 0.0
    %v8772 = vand.u32 %v78, 4294901760
    %v8773 = vsub.f32 %v78, %v8772
    %8774 = vmatpush1.msra.mxu0 %v8773
    %8775 = vmatprep.subr.mxu0 0.0
    %v8776 = vand.u32 %v79, 4294901760
    %v8777 = vsub.f32 %v79, %v8776
    %8778 = vmatpush1.msra.mxu0 %v8777
    %8779 = vmatprep.subr.mxu0 0.0
    %v8780 = vand.u32 %v80, 4294901760
    %v8781 = vsub.f32 %v80, %v8780
    %8782 = vmatpush1.msra.mxu0 %v8781
    %8783 = vmatprep.subr.mxu0 0.0
    %v8784 = vand.u32 %v81, 4294901760
    %v8785 = vsub.f32 %v81, %v8784
    %8786 = vmatpush1.msra.mxu0 %v8785
    %8787 = vmatprep.subr.mxu0 0.0
    %v8788 = vand.u32 %v82, 4294901760
    %v8789 = vsub.f32 %v82, %v8788
    %8790 = vmatpush1.msra.mxu0 %v8789
    %8791 = vmatprep.subr.mxu0 0.0
    %v8792 = vand.u32 %v83, 4294901760
    %v8793 = vsub.f32 %v83, %v8792
    %8794 = vmatpush1.msra.mxu0 %v8793
    %8795 = vmatprep.subr.mxu0 0.0
    %v8796 = vand.u32 %v84, 4294901760
    %v8797 = vsub.f32 %v84, %v8796
    %8798 = vmatpush1.msra.mxu0 %v8797
    %8799 = vmatprep.subr.mxu0 0.0
    %v8800 = vand.u32 %v85, 4294901760
    %v8801 = vsub.f32 %v85, %v8800
    %8802 = vmatpush1.msra.mxu0 %v8801
    %8803 = vmatprep.subr.mxu0 0.0
    %v8804 = vand.u32 %v86, 4294901760
    %v8805 = vsub.f32 %v86, %v8804
    %8806 = vmatpush1.msra.mxu0 %v8805
    %8807 = vmatprep.subr.mxu0 0.0
    %v8808 = vand.u32 %v87, 4294901760
    %v8809 = vsub.f32 %v87, %v8808
    %8810 = vmatpush1.msra.mxu0 %v8809
    %8811 = vmatprep.subr.mxu0 0.0
    %v8812 = vand.u32 %v88, 4294901760
    %v8813 = vsub.f32 %v88, %v8812
    %8814 = vmatpush1.msra.mxu0 %v8813
    %8815 = vmatprep.subr.mxu0 0.0
    %v8816 = vand.u32 %v89, 4294901760
    %v8817 = vsub.f32 %v89, %v8816
    %8818 = vmatpush1.msra.mxu0 %v8817
    %8819 = vmatprep.subr.mxu0 0.0
    %8820 = vmatpush1.msra.mxu0 0.0
    %8821 = vmatprep.subr.mxu0 0.0
    %8822 = vmatpush1.msra.mxu0 0.0
    %8823 = vmatprep.subr.mxu0 0.0
    %8824 = vmatpush1.msra.mxu0 0.0
    %8825 = vmatprep.subr.mxu0 0.0
    %8826 = vmatpush1.msra.mxu0 0.0
    %8827 = vmatprep.subr.mxu0 0.0
    %8828 = vmatpush1.msra.mxu0 0.0
    %8829 = vmatprep.subr.mxu0 0.0
    %8830 = vmatpush1.msra.mxu0 0.0
    %8831 = vmatprep.subr.mxu0 0.0
    %8832 = vmatpush1.msra.mxu0 0.0
    %8833 = vmatprep.subr.mxu0 0.0
    %8834 = vmatpush1.msra.mxu0 0.0
    %8835 = vmatprep.subr.mxu0 0.0
    %8836 = vmatpush1.msra.mxu0 0.0
    %8837 = vmatprep.subr.mxu0 0.0
    %8838 = vmatpush1.msra.mxu0 0.0
    %8839 = vmatprep.subr.mxu0 0.0
    %8840 = vmatpush1.msra.mxu0 0.0
    %8841 = vmatprep.subr.mxu0 0.0
    %8842 = vmatpush1.msra.mxu0 0.0
    %8843 = vmatprep.subr.mxu0 0.0
    %8844 = vmatpush1.msra.mxu0 0.0
    %8845 = vmatprep.subr.mxu0 0.0
    %8846 = vmatpush1.msra.mxu0 0.0
    %8847 = vmatprep.subr.mxu0 0.0
    %8848 = vmatpush1.msra.mxu0 0.0
    %8849 = vmatprep.subr.mxu0 0.0
    %8850 = vmatpush1.msra.mxu0 0.0
    %8851 = vmatprep.mubr.f32.mxu0 0.0
    %v8852 = vand.u32 %v8512, 4294901760
    %v8853 = vsub.f32 %v8512, %v8852
    %8854 = vmatmul.mubr.f32.gmra.mrb[0].mxu0 %v8853
    %v8855 = vpop.f32.mrb[0].mxu0
    %v8856 = vadd.f32 %v8752, %v8855
    %v8857 = vpop.f32.mrb[0].mxu0
    %8858 = vdwg.mxu0
    %8859 = vmatprep.subr.mxu0 0.0
    %v8860 = vand.u32 %v74, 4294901760
    %8861 = vmatpush1.msra.mxu0 %v8860
    %8862 = vmatprep.subr.mxu0 0.0
    %v8863 = vand.u32 %v75, 4294901760
    %8864 = vmatpush1.msra.mxu0 %v8863
    %8865 = vmatprep.subr.mxu0 0.0
    %v8866 = vand.u32 %v76, 4294901760
    %8867 = vmatpush1.msra.mxu0 %v8866
    %8868 = vmatprep.subr.mxu0 0.0
    %v8869 = vand.u32 %v77, 4294901760
    %8870 = vmatpush1.msra.mxu0 %v8869
    %8871 = vmatprep.subr.mxu0 0.0
    %v8872 = vand.u32 %v78, 4294901760
    %8873 = vmatpush1.msra.mxu0 %v8872
    %8874 = vmatprep.subr.mxu0 0.0
    %v8875 = vand.u32 %v79, 4294901760
    %8876 = vmatpush1.msra.mxu0 %v8875
    %8877 = vmatprep.subr.mxu0 0.0
    %v8878 = vand.u32 %v80, 4294901760
    %8879 = vmatpush1.msra.mxu0 %v8878
    %8880 = vmatprep.subr.mxu0 0.0
    %v8881 = vand.u32 %v81, 4294901760
    %8882 = vmatpush1.msra.mxu0 %v8881
    %8883 = vmatprep.subr.mxu0 0.0
    %v8884 = vand.u32 %v82, 4294901760
    %8885 = vmatpush1.msra.mxu0 %v8884
    %8886 = vmatprep.subr.mxu0 0.0
    %v8887 = vand.u32 %v83, 4294901760
    %8888 = vmatpush1.msra.mxu0 %v8887
    %8889 = vmatprep.subr.mxu0 0.0
    %v8890 = vand.u32 %v84, 4294901760
    %8891 = vmatpush1.msra.mxu0 %v8890
    %8892 = vmatprep.subr.mxu0 0.0
    %v8893 = vand.u32 %v85, 4294901760
    %8894 = vmatpush1.msra.mxu0 %v8893
    %8895 = vmatprep.subr.mxu0 0.0
    %v8896 = vand.u32 %v86, 4294901760
    %8897 = vmatpush1.msra.mxu0 %v8896
    %8898 = vmatprep.subr.mxu0 0.0
    %v8899 = vand.u32 %v87, 4294901760
    %8900 = vmatpush1.msra.mxu0 %v8899
    %8901 = vmatprep.subr.mxu0 0.0
    %v8902 = vand.u32 %v88, 4294901760
    %8903 = vmatpush1.msra.mxu0 %v8902
    %8904 = vmatprep.subr.mxu0 0.0
    %v8905 = vand.u32 %v89, 4294901760
    %8906 = vmatpush1.msra.mxu0 %v8905
    %8907 = vmatprep.subr.mxu0 0.0
    %8908 = vmatpush1.msra.mxu0 0.0
    %8909 = vmatprep.subr.mxu0 0.0
    %8910 = vmatpush1.msra.mxu0 0.0
    %8911 = vmatprep.subr.mxu0 0.0
    %8912 = vmatpush1.msra.mxu0 0.0
    %8913 = vmatprep.subr.mxu0 0.0
    %8914 = vmatpush1.msra.mxu0 0.0
    %8915 = vmatprep.subr.mxu0 0.0
    %8916 = vmatpush1.msra.mxu0 0.0
    %8917 = vmatprep.subr.mxu0 0.0
    %8918 = vmatpush1.msra.mxu0 0.0
    %8919 = vmatprep.subr.mxu0 0.0
    %8920 = vmatpush1.msra.mxu0 0.0
    %8921 = vmatprep.subr.mxu0 0.0
    %8922 = vmatpush1.msra.mxu0 0.0
    %8923 = vmatprep.subr.mxu0 0.0
    %8924 = vmatpush1.msra.mxu0 0.0
    %8925 = vmatprep.subr.mxu0 0.0
    %8926 = vmatpush1.msra.mxu0 0.0
    %8927 = vmatprep.subr.mxu0 0.0
    %8928 = vmatpush1.msra.mxu0 0.0
    %8929 = vmatprep.subr.mxu0 0.0
    %8930 = vmatpush1.msra.mxu0 0.0
    %8931 = vmatprep.subr.mxu0 0.0
    %8932 = vmatpush1.msra.mxu0 0.0
    %8933 = vmatprep.subr.mxu0 0.0
    %8934 = vmatpush1.msra.mxu0 0.0
    %8935 = vmatprep.subr.mxu0 0.0
    %8936 = vmatpush1.msra.mxu0 0.0
    %8937 = vmatprep.subr.mxu0 0.0
    %8938 = vmatpush1.msra.mxu0 0.0
    %8939 = vmatprep.mubr.f32.mxu0 0.0
    %v8940 = vand.u32 %v8512, 4294901760
    %v8941 = vsub.f32 %v8512, %v8940
    %v8942 = vand.u32 %v8941, 4294901760
    %8943 = vmatmul.mubr.f32.gmra.mrb[0].mxu0 %v8942
    %v8944 = vpop.f32.mrb[0].mxu0
    %v8945 = vadd.f32 %v8856, %v8944
    %v8946 = vpop.f32.mrb[0].mxu0
    %8947 = vdwg.mxu0
    %8948 = vmatprep.subr.mxu0 0.0
    %v8949 = vand.u32 %v74, 4294901760
    %v8950 = vsub.f32 %v74, %v8949
    %v8951 = vand.u32 %v8950, 4294901760
    %8952 = vmatpush1.msra.mxu0 %v8951
    %8953 = vmatprep.subr.mxu0 0.0
    %v8954 = vand.u32 %v75, 4294901760
    %v8955 = vsub.f32 %v75, %v8954
    %v8956 = vand.u32 %v8955, 4294901760
    %8957 = vmatpush1.msra.mxu0 %v8956
    %8958 = vmatprep.subr.mxu0 0.0
    %v8959 = vand.u32 %v76, 4294901760
    %v8960 = vsub.f32 %v76, %v8959
    %v8961 = vand.u32 %v8960, 4294901760
    %8962 = vmatpush1.msra.mxu0 %v8961
    %8963 = vmatprep.subr.mxu0 0.0
    %v8964 = vand.u32 %v77, 4294901760
    %v8965 = vsub.f32 %v77, %v8964
    %v8966 = vand.u32 %v8965, 4294901760
    %8967 = vmatpush1.msra.mxu0 %v8966
    %8968 = vmatprep.subr.mxu0 0.0
    %v8969 = vand.u32 %v78, 4294901760
    %v8970 = vsub.f32 %v78, %v8969
    %v8971 = vand.u32 %v8970, 4294901760
    %8972 = vmatpush1.msra.mxu0 %v8971
    %8973 = vmatprep.subr.mxu0 0.0
    %v8974 = vand.u32 %v79, 4294901760
    %v8975 = vsub.f32 %v79, %v8974
    %v8976 = vand.u32 %v8975, 4294901760
    %8977 = vmatpush1.msra.mxu0 %v8976
    %8978 = vmatprep.subr.mxu0 0.0
    %v8979 = vand.u32 %v80, 4294901760
    %v8980 = vsub.f32 %v80, %v8979
    %v8981 = vand.u32 %v8980, 4294901760
    %8982 = vmatpush1.msra.mxu0 %v8981
    %8983 = vmatprep.subr.mxu0 0.0
    %v8984 = vand.u32 %v81, 4294901760
    %v8985 = vsub.f32 %v81, %v8984
    %v8986 = vand.u32 %v8985, 4294901760
    %8987 = vmatpush1.msra.mxu0 %v8986
    %8988 = vmatprep.subr.mxu0 0.0
    %v8989 = vand.u32 %v82, 4294901760
    %v8990 = vsub.f32 %v82, %v8989
    %v8991 = vand.u32 %v8990, 4294901760
    %8992 = vmatpush1.msra.mxu0 %v8991
    %8993 = vmatprep.subr.mxu0 0.0
    %v8994 = vand.u32 %v83, 4294901760
    %v8995 = vsub.f32 %v83, %v8994
    %v8996 = vand.u32 %v8995, 4294901760
    %8997 = vmatpush1.msra.mxu0 %v8996
    %8998 = vmatprep.subr.mxu0 0.0
    %v8999 = vand.u32 %v84, 4294901760
    %v9000 = vsub.f32 %v84, %v8999
    %v9001 = vand.u32 %v9000, 4294901760
    %9002 = vmatpush1.msra.mxu0 %v9001
    %9003 = vmatprep.subr.mxu0 0.0
    %v9004 = vand.u32 %v85, 4294901760
    %v9005 = vsub.f32 %v85, %v9004
    %v9006 = vand.u32 %v9005, 4294901760
    %9007 = vmatpush1.msra.mxu0 %v9006
    %9008 = vmatprep.subr.mxu0 0.0
    %v9009 = vand.u32 %v86, 4294901760
    %v9010 = vsub.f32 %v86, %v9009
    %v9011 = vand.u32 %v9010, 4294901760
    %9012 = vmatpush1.msra.mxu0 %v9011
    %9013 = vmatprep.subr.mxu0 0.0
    %v9014 = vand.u32 %v87, 4294901760
    %v9015 = vsub.f32 %v87, %v9014
    %v9016 = vand.u32 %v9015, 4294901760
    %9017 = vmatpush1.msra.mxu0 %v9016
    %9018 = vmatprep.subr.mxu0 0.0
    %v9019 = vand.u32 %v88, 4294901760
    %v9020 = vsub.f32 %v88, %v9019
    %v9021 = vand.u32 %v9020, 4294901760
    %9022 = vmatpush1.msra.mxu0 %v9021
    %9023 = vmatprep.subr.mxu0 0.0
    %v9024 = vand.u32 %v89, 4294901760
    %v9025 = vsub.f32 %v89, %v9024
    %v9026 = vand.u32 %v9025, 4294901760
    %9027 = vmatpush1.msra.mxu0 %v9026
    %9028 = vmatprep.subr.mxu0 0.0
    %9029 = vmatpush1.msra.mxu0 0.0
    %9030 = vmatprep.subr.mxu0 0.0
    %9031 = vmatpush1.msra.mxu0 0.0
    %9032 = vmatprep.subr.mxu0 0.0
    %9033 = vmatpush1.msra.mxu0 0.0
    %9034 = vmatprep.subr.mxu0 0.0
    %9035 = vmatpush1.msra.mxu0 0.0
    %9036 = vmatprep.subr.mxu0 0.0
    %9037 = vmatpush1.msra.mxu0 0.0
    %9038 = vmatprep.subr.mxu0 0.0
    %9039 = vmatpush1.msra.mxu0 0.0
    %9040 = vmatprep.subr.mxu0 0.0
    %9041 = vmatpush1.msra.mxu0 0.0
    %9042 = vmatprep.subr.mxu0 0.0
    %9043 = vmatpush1.msra.mxu0 0.0
    %9044 = vmatprep.subr.mxu0 0.0
    %9045 = vmatpush1.msra.mxu0 0.0
    %9046 = vmatprep.subr.mxu0 0.0
    %9047 = vmatpush1.msra.mxu0 0.0
    %9048 = vmatprep.subr.mxu0 0.0
    %9049 = vmatpush1.msra.mxu0 0.0
    %9050 = vmatprep.subr.mxu0 0.0
    %9051 = vmatpush1.msra.mxu0 0.0
    %9052 = vmatprep.subr.mxu0 0.0
    %9053 = vmatpush1.msra.mxu0 0.0
    %9054 = vmatprep.subr.mxu0 0.0
    %9055 = vmatpush1.msra.mxu0 0.0
    %9056 = vmatprep.subr.mxu0 0.0
    %9057 = vmatpush1.msra.mxu0 0.0
    %9058 = vmatprep.subr.mxu0 0.0
    %9059 = vmatpush1.msra.mxu0 0.0
    %9060 = vmatprep.mubr.f32.mxu0 0.0
    %v9061 = vand.u32 %v8512, 4294901760
    %9062 = vmatmul.mubr.f32.gmra.mrb[0].mxu0 %v9061
    %v9063 = vpop.f32.mrb[0].mxu0
    %v9064 = vadd.f32 %v8945, %v9063
    %v9065 = vpop.f32.mrb[0].mxu0
    %9066 = vdwg.mxu0
    %9067 = vmatprep.subr.mxu0 0.0
    %v9068 = vand.u32 %v74, 4294901760
    %9069 = vmatpush1.msra.mxu0 %v9068
    %9070 = vmatprep.subr.mxu0 0.0
    %v9071 = vand.u32 %v75, 4294901760
    %9072 = vmatpush1.msra.mxu0 %v9071
    %9073 = vmatprep.subr.mxu0 0.0
    %v9074 = vand.u32 %v76, 4294901760
    %9075 = vmatpush1.msra.mxu0 %v9074
    %9076 = vmatprep.subr.mxu0 0.0
    %v9077 = vand.u32 %v77, 4294901760
    %9078 = vmatpush1.msra.mxu0 %v9077
    %9079 = vmatprep.subr.mxu0 0.0
    %v9080 = vand.u32 %v78, 4294901760
    %9081 = vmatpush1.msra.mxu0 %v9080
    %9082 = vmatprep.subr.mxu0 0.0
    %v9083 = vand.u32 %v79, 4294901760
    %9084 = vmatpush1.msra.mxu0 %v9083
    %9085 = vmatprep.subr.mxu0 0.0
    %v9086 = vand.u32 %v80, 4294901760
    %9087 = vmatpush1.msra.mxu0 %v9086
    %9088 = vmatprep.subr.mxu0 0.0
    %v9089 = vand.u32 %v81, 4294901760
    %9090 = vmatpush1.msra.mxu0 %v9089
    %9091 = vmatprep.subr.mxu0 0.0
    %v9092 = vand.u32 %v82, 4294901760
    %9093 = vmatpush1.msra.mxu0 %v9092
    %9094 = vmatprep.subr.mxu0 0.0
    %v9095 = vand.u32 %v83, 4294901760
    %9096 = vmatpush1.msra.mxu0 %v9095
    %9097 = vmatprep.subr.mxu0 0.0
    %v9098 = vand.u32 %v84, 4294901760
    %9099 = vmatpush1.msra.mxu0 %v9098
    %9100 = vmatprep.subr.mxu0 0.0
    %v9101 = vand.u32 %v85, 4294901760
    %9102 = vmatpush1.msra.mxu0 %v9101
    %9103 = vmatprep.subr.mxu0 0.0
    %v9104 = vand.u32 %v86, 4294901760
    %9105 = vmatpush1.msra.mxu0 %v9104
    %9106 = vmatprep.subr.mxu0 0.0
    %v9107 = vand.u32 %v87, 4294901760
    %9108 = vmatpush1.msra.mxu0 %v9107
    %9109 = vmatprep.subr.mxu0 0.0
    %v9110 = vand.u32 %v88, 4294901760
    %9111 = vmatpush1.msra.mxu0 %v9110
    %9112 = vmatprep.subr.mxu0 0.0
    %v9113 = vand.u32 %v89, 4294901760
    %9114 = vmatpush1.msra.mxu0 %v9113
    %9115 = vmatprep.subr.mxu0 0.0
    %9116 = vmatpush1.msra.mxu0 0.0
    %9117 = vmatprep.subr.mxu0 0.0
    %9118 = vmatpush1.msra.mxu0 0.0
    %9119 = vmatprep.subr.mxu0 0.0
    %9120 = vmatpush1.msra.mxu0 0.0
    %9121 = vmatprep.subr.mxu0 0.0
    %9122 = vmatpush1.msra.mxu0 0.0
    %9123 = vmatprep.subr.mxu0 0.0
    %9124 = vmatpush1.msra.mxu0 0.0
    %9125 = vmatprep.subr.mxu0 0.0
    %9126 = vmatpush1.msra.mxu0 0.0
    %9127 = vmatprep.subr.mxu0 0.0
    %9128 = vmatpush1.msra.mxu0 0.0
    %9129 = vmatprep.subr.mxu0 0.0
    %9130 = vmatpush1.msra.mxu0 0.0
    %9131 = vmatprep.subr.mxu0 0.0
    %9132 = vmatpush1.msra.mxu0 0.0
    %9133 = vmatprep.subr.mxu0 0.0
    %9134 = vmatpush1.msra.mxu0 0.0
    %9135 = vmatprep.subr.mxu0 0.0
    %9136 = vmatpush1.msra.mxu0 0.0
    %9137 = vmatprep.subr.mxu0 0.0
    %9138 = vmatpush1.msra.mxu0 0.0
    %9139 = vmatprep.subr.mxu0 0.0
    %9140 = vmatpush1.msra.mxu0 0.0
    %9141 = vmatprep.subr.mxu0 0.0
    %9142 = vmatpush1.msra.mxu0 0.0
    %9143 = vmatprep.subr.mxu0 0.0
    %9144 = vmatpush1.msra.mxu0 0.0
    %9145 = vmatprep.subr.mxu0 0.0
    %9146 = vmatpush1.msra.mxu0 0.0
    %9147 = vmatprep.mubr.f32.mxu0 0.0
    %v9148 = vand.u32 %v8512, 4294901760
    %9149 = vmatmul.mubr.f32.gmra.mrb[0].mxu0 %v9148
    %v9150 = vpop.f32.mrb[0].mxu0
    %v9151 = vadd.f32 %v9064, %v9150
    %v9152 = vpop.f32.mrb[0].mxu0
    %9153 = vdwg.mxu0
    %s9154 = scalar_lea.vmem %s5, 40
    %9155 = vst [vmem:[%s9154] sm:$0xff] %v9151
    %s9156 = scalar_lea.vmem %s0, 48
    %v9157 = vld [vmem:[%s9156] sm:$0xff]
    %9158 = vmatprep.subr.mxu0 0.0
    %v9159 = vand.u32 %v42, 4294901760
    %9160 = vmatpush1.msra.mxu0 %v9159
    %9161 = vmatprep.subr.mxu0 0.0
    %v9162 = vand.u32 %v43, 4294901760
    %9163 = vmatpush1.msra.mxu0 %v9162
    %9164 = vmatprep.subr.mxu0 0.0
    %v9165 = vand.u32 %v44, 4294901760
    %9166 = vmatpush1.msra.mxu0 %v9165
    %9167 = vmatprep.subr.mxu0 0.0
    %v9168 = vand.u32 %v45, 4294901760
    %9169 = vmatpush1.msra.mxu0 %v9168
    %9170 = vmatprep.subr.mxu0 0.0
    %v9171 = vand.u32 %v46, 4294901760
    %9172 = vmatpush1.msra.mxu0 %v9171
    %9173 = vmatprep.subr.mxu0 0.0
    %v9174 = vand.u32 %v47, 4294901760
    %9175 = vmatpush1.msra.mxu0 %v9174
    %9176 = vmatprep.subr.mxu0 0.0
    %v9177 = vand.u32 %v48, 4294901760
    %9178 = vmatpush1.msra.mxu0 %v9177
    %9179 = vmatprep.subr.mxu0 0.0
    %v9180 = vand.u32 %v49, 4294901760
    %9181 = vmatpush1.msra.mxu0 %v9180
    %9182 = vmatprep.subr.mxu0 0.0
    %v9183 = vand.u32 %v50, 4294901760
    %9184 = vmatpush1.msra.mxu0 %v9183
    %9185 = vmatprep.subr.mxu0 0.0
    %v9186 = vand.u32 %v51, 4294901760
    %9187 = vmatpush1.msra.mxu0 %v9186
    %9188 = vmatprep.subr.mxu0 0.0
    %v9189 = vand.u32 %v52, 4294901760
    %9190 = vmatpush1.msra.mxu0 %v9189
    %9191 = vmatprep.subr.mxu0 0.0
    %v9192 = vand.u32 %v53, 4294901760
    %9193 = vmatpush1.msra.mxu0 %v9192
    %9194 = vmatprep.subr.mxu0 0.0
    %v9195 = vand.u32 %v54, 4294901760
    %9196 = vmatpush1.msra.mxu0 %v9195
    %9197 = vmatprep.subr.mxu0 0.0
    %v9198 = vand.u32 %v55, 4294901760
    %9199 = vmatpush1.msra.mxu0 %v9198
    %9200 = vmatprep.subr.mxu0 0.0
    %v9201 = vand.u32 %v56, 4294901760
    %9202 = vmatpush1.msra.mxu0 %v9201
    %9203 = vmatprep.subr.mxu0 0.0
    %v9204 = vand.u32 %v57, 4294901760
    %9205 = vmatpush1.msra.mxu0 %v9204
    %9206 = vmatprep.subr.mxu0 0.0
    %v9207 = vand.u32 %v58, 4294901760
    %9208 = vmatpush1.msra.mxu0 %v9207
    %9209 = vmatprep.subr.mxu0 0.0
    %v9210 = vand.u32 %v59, 4294901760
    %9211 = vmatpush1.msra.mxu0 %v9210
    %9212 = vmatprep.subr.mxu0 0.0
    %v9213 = vand.u32 %v60, 4294901760
    %9214 = vmatpush1.msra.mxu0 %v9213
    %9215 = vmatprep.subr.mxu0 0.0
    %v9216 = vand.u32 %v61, 4294901760
    %9217 = vmatpush1.msra.mxu0 %v9216
    %9218 = vmatprep.subr.mxu0 0.0
    %v9219 = vand.u32 %v62, 4294901760
    %9220 = vmatpush1.msra.mxu0 %v9219
    %9221 = vmatprep.subr.mxu0 0.0
    %v9222 = vand.u32 %v63, 4294901760
    %9223 = vmatpush1.msra.mxu0 %v9222
    %9224 = vmatprep.subr.mxu0 0.0
    %v9225 = vand.u32 %v64, 4294901760
    %9226 = vmatpush1.msra.mxu0 %v9225
    %9227 = vmatprep.subr.mxu0 0.0
    %v9228 = vand.u32 %v65, 4294901760
    %9229 = vmatpush1.msra.mxu0 %v9228
    %9230 = vmatprep.subr.mxu0 0.0
    %v9231 = vand.u32 %v66, 4294901760
    %9232 = vmatpush1.msra.mxu0 %v9231
    %9233 = vmatprep.subr.mxu0 0.0
    %v9234 = vand.u32 %v67, 4294901760
    %9235 = vmatpush1.msra.mxu0 %v9234
    %9236 = vmatprep.subr.mxu0 0.0
    %v9237 = vand.u32 %v68, 4294901760
    %9238 = vmatpush1.msra.mxu0 %v9237
    %9239 = vmatprep.subr.mxu0 0.0
    %v9240 = vand.u32 %v69, 4294901760
    %9241 = vmatpush1.msra.mxu0 %v9240
    %9242 = vmatprep.subr.mxu0 0.0
    %v9243 = vand.u32 %v70, 4294901760
    %9244 = vmatpush1.msra.mxu0 %v9243
    %9245 = vmatprep.subr.mxu0 0.0
    %v9246 = vand.u32 %v71, 4294901760
    %9247 = vmatpush1.msra.mxu0 %v9246
    %9248 = vmatprep.subr.mxu0 0.0
    %v9249 = vand.u32 %v72, 4294901760
    %9250 = vmatpush1.msra.mxu0 %v9249
    %9251 = vmatprep.subr.mxu0 0.0
    %v9252 = vand.u32 %v73, 4294901760
    %9253 = vmatpush1.msra.mxu0 %v9252
    %v9254 = vand.u32 %v9157, 4294901760
    %v9255 = vsub.f32 %v9157, %v9254
    %v9256 = vand.u32 %v9255, 4294901760
    %v9257 = vsub.f32 %v9255, %v9256
    %v9258 = vand.u32 %v9257, 4294901760
    %9259 = vmatprep.mubr.f32.mxu0 %v9258
    %v9260 = vand.u32 %v8512, 4294901760
    %v9261 = vsub.f32 %v8512, %v9260
    %v9262 = vand.u32 %v9261, 4294901760
    %v9263 = vsub.f32 %v9261, %v9262
    %v9264 = vand.u32 %v9263, 4294901760
    %9265 = vmatmul.mubr.f32.gmra.mrb[0].mxu0 %v9264
    %v9266 = vpop.f32.mrb[0].mxu0
    %v9267 = vadd.f32 0.0, %v9266
    %v9268 = vpop.f32.mrb[0].mxu0
    %9269 = vdwg.mxu0
    %9270 = vmatprep.subr.mxu0 0.0
    %v9271 = vand.u32 %v42, 4294901760
    %v9272 = vsub.f32 %v42, %v9271
    %v9273 = vand.u32 %v9272, 4294901760
    %v9274 = vsub.f32 %v9272, %v9273
    %v9275 = vand.u32 %v9274, 4294901760
    %9276 = vmatpush1.msra.mxu0 %v9275
    %9277 = vmatprep.subr.mxu0 0.0
    %v9278 = vand.u32 %v43, 4294901760
    %v9279 = vsub.f32 %v43, %v9278
    %v9280 = vand.u32 %v9279, 4294901760
    %v9281 = vsub.f32 %v9279, %v9280
    %v9282 = vand.u32 %v9281, 4294901760
    %9283 = vmatpush1.msra.mxu0 %v9282
    %9284 = vmatprep.subr.mxu0 0.0
    %v9285 = vand.u32 %v44, 4294901760
    %v9286 = vsub.f32 %v44, %v9285
    %v9287 = vand.u32 %v9286, 4294901760
    %v9288 = vsub.f32 %v9286, %v9287
    %v9289 = vand.u32 %v9288, 4294901760
    %9290 = vmatpush1.msra.mxu0 %v9289
    %9291 = vmatprep.subr.mxu0 0.0
    %v9292 = vand.u32 %v45, 4294901760
    %v9293 = vsub.f32 %v45, %v9292
    %v9294 = vand.u32 %v9293, 4294901760
    %v9295 = vsub.f32 %v9293, %v9294
    %v9296 = vand.u32 %v9295, 4294901760
    %9297 = vmatpush1.msra.mxu0 %v9296
    %9298 = vmatprep.subr.mxu0 0.0
    %v9299 = vand.u32 %v46, 4294901760
    %v9300 = vsub.f32 %v46, %v9299
    %v9301 = vand.u32 %v9300, 4294901760
    %v9302 = vsub.f32 %v9300, %v9301
    %v9303 = vand.u32 %v9302, 4294901760
    %9304 = vmatpush1.msra.mxu0 %v9303
    %9305 = vmatprep.subr.mxu0 0.0
    %v9306 = vand.u32 %v47, 4294901760
    %v9307 = vsub.f32 %v47, %v9306
    %v9308 = vand.u32 %v9307, 4294901760
    %v9309 = vsub.f32 %v9307, %v9308
    %v9310 = vand.u32 %v9309, 4294901760
    %9311 = vmatpush1.msra.mxu0 %v9310
    %9312 = vmatprep.subr.mxu0 0.0
    %v9313 = vand.u32 %v48, 4294901760
    %v9314 = vsub.f32 %v48, %v9313
    %v9315 = vand.u32 %v9314, 4294901760
    %v9316 = vsub.f32 %v9314, %v9315
    %v9317 = vand.u32 %v9316, 4294901760
    %9318 = vmatpush1.msra.mxu0 %v9317
    %9319 = vmatprep.subr.mxu0 0.0
    %v9320 = vand.u32 %v49, 4294901760
    %v9321 = vsub.f32 %v49, %v9320
    %v9322 = vand.u32 %v9321, 4294901760
    %v9323 = vsub.f32 %v9321, %v9322
    %v9324 = vand.u32 %v9323, 4294901760
    %9325 = vmatpush1.msra.mxu0 %v9324
    %9326 = vmatprep.subr.mxu0 0.0
    %v9327 = vand.u32 %v50, 4294901760
    %v9328 = vsub.f32 %v50, %v9327
    %v9329 = vand.u32 %v9328, 4294901760
    %v9330 = vsub.f32 %v9328, %v9329
    %v9331 = vand.u32 %v9330, 4294901760
    %9332 = vmatpush1.msra.mxu0 %v9331
    %9333 = vmatprep.subr.mxu0 0.0
    %v9334 = vand.u32 %v51, 4294901760
    %v9335 = vsub.f32 %v51, %v9334
    %v9336 = vand.u32 %v9335, 4294901760
    %v9337 = vsub.f32 %v9335, %v9336
    %v9338 = vand.u32 %v9337, 4294901760
    %9339 = vmatpush1.msra.mxu0 %v9338
    %9340 = vmatprep.subr.mxu0 0.0
    %v9341 = vand.u32 %v52, 4294901760
    %v9342 = vsub.f32 %v52, %v9341
    %v9343 = vand.u32 %v9342, 4294901760
    %v9344 = vsub.f32 %v9342, %v9343
    %v9345 = vand.u32 %v9344, 4294901760
    %9346 = vmatpush1.msra.mxu0 %v9345
    %9347 = vmatprep.subr.mxu0 0.0
    %v9348 = vand.u32 %v53, 4294901760
    %v9349 = vsub.f32 %v53, %v9348
    %v9350 = vand.u32 %v9349, 4294901760
    %v9351 = vsub.f32 %v9349, %v9350
    %v9352 = vand.u32 %v9351, 4294901760
    %9353 = vmatpush1.msra.mxu0 %v9352
    %9354 = vmatprep.subr.mxu0 0.0
    %v9355 = vand.u32 %v54, 4294901760
    %v9356 = vsub.f32 %v54, %v9355
    %v9357 = vand.u32 %v9356, 4294901760
    %v9358 = vsub.f32 %v9356, %v9357
    %v9359 = vand.u32 %v9358, 4294901760
    %9360 = vmatpush1.msra.mxu0 %v9359
    %9361 = vmatprep.subr.mxu0 0.0
    %v9362 = vand.u32 %v55, 4294901760
    %v9363 = vsub.f32 %v55, %v9362
    %v9364 = vand.u32 %v9363, 4294901760
    %v9365 = vsub.f32 %v9363, %v9364
    %v9366 = vand.u32 %v9365, 4294901760
    %9367 = vmatpush1.msra.mxu0 %v9366
    %9368 = vmatprep.subr.mxu0 0.0
    %v9369 = vand.u32 %v56, 4294901760
    %v9370 = vsub.f32 %v56, %v9369
    %v9371 = vand.u32 %v9370, 4294901760
    %v9372 = vsub.f32 %v9370, %v9371
    %v9373 = vand.u32 %v9372, 4294901760
    %9374 = vmatpush1.msra.mxu0 %v9373
    %9375 = vmatprep.subr.mxu0 0.0
    %v9376 = vand.u32 %v57, 4294901760
    %v9377 = vsub.f32 %v57, %v9376
    %v9378 = vand.u32 %v9377, 4294901760
    %v9379 = vsub.f32 %v9377, %v9378
    %v9380 = vand.u32 %v9379, 4294901760
    %9381 = vmatpush1.msra.mxu0 %v9380
    %9382 = vmatprep.subr.mxu0 0.0
    %v9383 = vand.u32 %v58, 4294901760
    %v9384 = vsub.f32 %v58, %v9383
    %v9385 = vand.u32 %v9384, 4294901760
    %v9386 = vsub.f32 %v9384, %v9385
    %v9387 = vand.u32 %v9386, 4294901760
    %9388 = vmatpush1.msra.mxu0 %v9387
    %9389 = vmatprep.subr.mxu0 0.0
    %v9390 = vand.u32 %v59, 4294901760
    %v9391 = vsub.f32 %v59, %v9390
    %v9392 = vand.u32 %v9391, 4294901760
    %v9393 = vsub.f32 %v9391, %v9392
    %v9394 = vand.u32 %v9393, 4294901760
    %9395 = vmatpush1.msra.mxu0 %v9394
    %9396 = vmatprep.subr.mxu0 0.0
    %v9397 = vand.u32 %v60, 4294901760
    %v9398 = vsub.f32 %v60, %v9397
    %v9399 = vand.u32 %v9398, 4294901760
    %v9400 = vsub.f32 %v9398, %v9399
    %v9401 = vand.u32 %v9400, 4294901760
    %9402 = vmatpush1.msra.mxu0 %v9401
    %9403 = vmatprep.subr.mxu0 0.0
    %v9404 = vand.u32 %v61, 4294901760
    %v9405 = vsub.f32 %v61, %v9404
    %v9406 = vand.u32 %v9405, 4294901760
    %v9407 = vsub.f32 %v9405, %v9406
    %v9408 = vand.u32 %v9407, 4294901760
    %9409 = vmatpush1.msra.mxu0 %v9408
    %9410 = vmatprep.subr.mxu0 0.0
    %v9411 = vand.u32 %v62, 4294901760
    %v9412 = vsub.f32 %v62, %v9411
    %v9413 = vand.u32 %v9412, 4294901760
    %v9414 = vsub.f32 %v9412, %v9413
    %v9415 = vand.u32 %v9414, 4294901760
    %9416 = vmatpush1.msra.mxu0 %v9415
    %9417 = vmatprep.subr.mxu0 0.0
    %v9418 = vand.u32 %v63, 4294901760
    %v9419 = vsub.f32 %v63, %v9418
    %v9420 = vand.u32 %v9419, 4294901760
    %v9421 = vsub.f32 %v9419, %v9420
    %v9422 = vand.u32 %v9421, 4294901760
    %9423 = vmatpush1.msra.mxu0 %v9422
    %9424 = vmatprep.subr.mxu0 0.0
    %v9425 = vand.u32 %v64, 4294901760
    %v9426 = vsub.f32 %v64, %v9425
    %v9427 = vand.u32 %v9426, 4294901760
    %v9428 = vsub.f32 %v9426, %v9427
    %v9429 = vand.u32 %v9428, 4294901760
    %9430 = vmatpush1.msra.mxu0 %v9429
    %9431 = vmatprep.subr.mxu0 0.0
    %v9432 = vand.u32 %v65, 4294901760
    %v9433 = vsub.f32 %v65, %v9432
    %v9434 = vand.u32 %v9433, 4294901760
    %v9435 = vsub.f32 %v9433, %v9434
    %v9436 = vand.u32 %v9435, 4294901760
    %9437 = vmatpush1.msra.mxu0 %v9436
    %9438 = vmatprep.subr.mxu0 0.0
    %v9439 = vand.u32 %v66, 4294901760
    %v9440 = vsub.f32 %v66, %v9439
    %v9441 = vand.u32 %v9440, 4294901760
    %v9442 = vsub.f32 %v9440, %v9441
    %v9443 = vand.u32 %v9442, 4294901760
    %9444 = vmatpush1.msra.mxu0 %v9443
    %9445 = vmatprep.subr.mxu0 0.0
    %v9446 = vand.u32 %v67, 4294901760
    %v9447 = vsub.f32 %v67, %v9446
    %v9448 = vand.u32 %v9447, 4294901760
    %v9449 = vsub.f32 %v9447, %v9448
    %v9450 = vand.u32 %v9449, 4294901760
    %9451 = vmatpush1.msra.mxu0 %v9450
    %9452 = vmatprep.subr.mxu0 0.0
    %v9453 = vand.u32 %v68, 4294901760
    %v9454 = vsub.f32 %v68, %v9453
    %v9455 = vand.u32 %v9454, 4294901760
    %v9456 = vsub.f32 %v9454, %v9455
    %v9457 = vand.u32 %v9456, 4294901760
    %9458 = vmatpush1.msra.mxu0 %v9457
    %9459 = vmatprep.subr.mxu0 0.0
    %v9460 = vand.u32 %v69, 4294901760
    %v9461 = vsub.f32 %v69, %v9460
    %v9462 = vand.u32 %v9461, 4294901760
    %v9463 = vsub.f32 %v9461, %v9462
    %v9464 = vand.u32 %v9463, 4294901760
    %9465 = vmatpush1.msra.mxu0 %v9464
    %9466 = vmatprep.subr.mxu0 0.0
    %v9467 = vand.u32 %v70, 4294901760
    %v9468 = vsub.f32 %v70, %v9467
    %v9469 = vand.u32 %v9468, 4294901760
    %v9470 = vsub.f32 %v9468, %v9469
    %v9471 = vand.u32 %v9470, 4294901760
    %9472 = vmatpush1.msra.mxu0 %v9471
    %9473 = vmatprep.subr.mxu0 0.0
    %v9474 = vand.u32 %v71, 4294901760
    %v9475 = vsub.f32 %v71, %v9474
    %v9476 = vand.u32 %v9475, 4294901760
    %v9477 = vsub.f32 %v9475, %v9476
    %v9478 = vand.u32 %v9477, 4294901760
    %9479 = vmatpush1.msra.mxu0 %v9478
    %9480 = vmatprep.subr.mxu0 0.0
    %v9481 = vand.u32 %v72, 4294901760
    %v9482 = vsub.f32 %v72, %v9481
    %v9483 = vand.u32 %v9482, 4294901760
    %v9484 = vsub.f32 %v9482, %v9483
    %v9485 = vand.u32 %v9484, 4294901760
    %9486 = vmatpush1.msra.mxu0 %v9485
    %9487 = vmatprep.subr.mxu0 0.0
    %v9488 = vand.u32 %v73, 4294901760
    %v9489 = vsub.f32 %v73, %v9488
    %v9490 = vand.u32 %v9489, 4294901760
    %v9491 = vsub.f32 %v9489, %v9490
    %v9492 = vand.u32 %v9491, 4294901760
    %9493 = vmatpush1.msra.mxu0 %v9492
    %v9494 = vand.u32 %v9157, 4294901760
    %9495 = vmatprep.mubr.f32.mxu0 %v9494
    %v9496 = vand.u32 %v8512, 4294901760
    %9497 = vmatmul.mubr.f32.gmra.mrb[0].mxu0 %v9496
    %v9498 = vpop.f32.mrb[0].mxu0
    %v9499 = vadd.f32 %v9267, %v9498
    %v9500 = vpop.f32.mrb[0].mxu0
    %9501 = vdwg.mxu0
    %9502 = vmatprep.subr.mxu0 0.0
    %v9503 = vand.u32 %v42, 4294901760
    %v9504 = vsub.f32 %v42, %v9503
    %9505 = vmatpush1.msra.mxu0 %v9504
    %9506 = vmatprep.subr.mxu0 0.0
    %v9507 = vand.u32 %v43, 4294901760
    %v9508 = vsub.f32 %v43, %v9507
    %9509 = vmatpush1.msra.mxu0 %v9508
    %9510 = vmatprep.subr.mxu0 0.0
    %v9511 = vand.u32 %v44, 4294901760
    %v9512 = vsub.f32 %v44, %v9511
    %9513 = vmatpush1.msra.mxu0 %v9512
    %9514 = vmatprep.subr.mxu0 0.0
    %v9515 = vand.u32 %v45, 4294901760
    %v9516 = vsub.f32 %v45, %v9515
    %9517 = vmatpush1.msra.mxu0 %v9516
    %9518 = vmatprep.subr.mxu0 0.0
    %v9519 = vand.u32 %v46, 4294901760
    %v9520 = vsub.f32 %v46, %v9519
    %9521 = vmatpush1.msra.mxu0 %v9520
    %9522 = vmatprep.subr.mxu0 0.0
    %v9523 = vand.u32 %v47, 4294901760
    %v9524 = vsub.f32 %v47, %v9523
    %9525 = vmatpush1.msra.mxu0 %v9524
    %9526 = vmatprep.subr.mxu0 0.0
    %v9527 = vand.u32 %v48, 4294901760
    %v9528 = vsub.f32 %v48, %v9527
    %9529 = vmatpush1.msra.mxu0 %v9528
    %9530 = vmatprep.subr.mxu0 0.0
    %v9531 = vand.u32 %v49, 4294901760
    %v9532 = vsub.f32 %v49, %v9531
    %9533 = vmatpush1.msra.mxu0 %v9532
    %9534 = vmatprep.subr.mxu0 0.0
    %v9535 = vand.u32 %v50, 4294901760
    %v9536 = vsub.f32 %v50, %v9535
    %9537 = vmatpush1.msra.mxu0 %v9536
    %9538 = vmatprep.subr.mxu0 0.0
    %v9539 = vand.u32 %v51, 4294901760
    %v9540 = vsub.f32 %v51, %v9539
    %9541 = vmatpush1.msra.mxu0 %v9540
    %9542 = vmatprep.subr.mxu0 0.0
    %v9543 = vand.u32 %v52, 4294901760
    %v9544 = vsub.f32 %v52, %v9543
    %9545 = vmatpush1.msra.mxu0 %v9544
    %9546 = vmatprep.subr.mxu0 0.0
    %v9547 = vand.u32 %v53, 4294901760
    %v9548 = vsub.f32 %v53, %v9547
    %9549 = vmatpush1.msra.mxu0 %v9548
    %9550 = vmatprep.subr.mxu0 0.0
    %v9551 = vand.u32 %v54, 4294901760
    %v9552 = vsub.f32 %v54, %v9551
    %9553 = vmatpush1.msra.mxu0 %v9552
    %9554 = vmatprep.subr.mxu0 0.0
    %v9555 = vand.u32 %v55, 4294901760
    %v9556 = vsub.f32 %v55, %v9555
    %9557 = vmatpush1.msra.mxu0 %v9556
    %9558 = vmatprep.subr.mxu0 0.0
    %v9559 = vand.u32 %v56, 4294901760
    %v9560 = vsub.f32 %v56, %v9559
    %9561 = vmatpush1.msra.mxu0 %v9560
    %9562 = vmatprep.subr.mxu0 0.0
    %v9563 = vand.u32 %v57, 4294901760
    %v9564 = vsub.f32 %v57, %v9563
    %9565 = vmatpush1.msra.mxu0 %v9564
    %9566 = vmatprep.subr.mxu0 0.0
    %v9567 = vand.u32 %v58, 4294901760
    %v9568 = vsub.f32 %v58, %v9567
    %9569 = vmatpush1.msra.mxu0 %v9568
    %9570 = vmatprep.subr.mxu0 0.0
    %v9571 = vand.u32 %v59, 4294901760
    %v9572 = vsub.f32 %v59, %v9571
    %9573 = vmatpush1.msra.mxu0 %v9572
    %9574 = vmatprep.subr.mxu0 0.0
    %v9575 = vand.u32 %v60, 4294901760
    %v9576 = vsub.f32 %v60, %v9575
    %9577 = vmatpush1.msra.mxu0 %v9576
    %9578 = vmatprep.subr.mxu0 0.0
    %v9579 = vand.u32 %v61, 4294901760
    %v9580 = vsub.f32 %v61, %v9579
    %9581 = vmatpush1.msra.mxu0 %v9580
    %9582 = vmatprep.subr.mxu0 0.0
    %v9583 = vand.u32 %v62, 4294901760
    %v9584 = vsub.f32 %v62, %v9583
    %9585 = vmatpush1.msra.mxu0 %v9584
    %9586 = vmatprep.subr.mxu0 0.0
    %v9587 = vand.u32 %v63, 4294901760
    %v9588 = vsub.f32 %v63, %v9587
    %9589 = vmatpush1.msra.mxu0 %v9588
    %9590 = vmatprep.subr.mxu0 0.0
    %v9591 = vand.u32 %v64, 4294901760
    %v9592 = vsub.f32 %v64, %v9591
    %9593 = vmatpush1.msra.mxu0 %v9592
    %9594 = vmatprep.subr.mxu0 0.0
    %v9595 = vand.u32 %v65, 4294901760
    %v9596 = vsub.f32 %v65, %v9595
    %9597 = vmatpush1.msra.mxu0 %v9596
    %9598 = vmatprep.subr.mxu0 0.0
    %v9599 = vand.u32 %v66, 4294901760
    %v9600 = vsub.f32 %v66, %v9599
    %9601 = vmatpush1.msra.mxu0 %v9600
    %9602 = vmatprep.subr.mxu0 0.0
    %v9603 = vand.u32 %v67, 4294901760
    %v9604 = vsub.f32 %v67, %v9603
    %9605 = vmatpush1.msra.mxu0 %v9604
    %9606 = vmatprep.subr.mxu0 0.0
    %v9607 = vand.u32 %v68, 4294901760
    %v9608 = vsub.f32 %v68, %v9607
    %9609 = vmatpush1.msra.mxu0 %v9608
    %9610 = vmatprep.subr.mxu0 0.0
    %v9611 = vand.u32 %v69, 4294901760
    %v9612 = vsub.f32 %v69, %v9611
    %9613 = vmatpush1.msra.mxu0 %v9612
    %9614 = vmatprep.subr.mxu0 0.0
    %v9615 = vand.u32 %v70, 4294901760
    %v9616 = vsub.f32 %v70, %v9615
    %9617 = vmatpush1.msra.mxu0 %v9616
    %9618 = vmatprep.subr.mxu0 0.0
    %v9619 = vand.u32 %v71, 4294901760
    %v9620 = vsub.f32 %v71, %v9619
    %9621 = vmatpush1.msra.mxu0 %v9620
    %9622 = vmatprep.subr.mxu0 0.0
    %v9623 = vand.u32 %v72, 4294901760
    %v9624 = vsub.f32 %v72, %v9623
    %9625 = vmatpush1.msra.mxu0 %v9624
    %9626 = vmatprep.subr.mxu0 0.0
    %v9627 = vand.u32 %v73, 4294901760
    %v9628 = vsub.f32 %v73, %v9627
    %9629 = vmatpush1.msra.mxu0 %v9628
    %v9630 = vand.u32 %v9157, 4294901760
    %v9631 = vsub.f32 %v9157, %v9630
    %9632 = vmatprep.mubr.f32.mxu0 %v9631
    %v9633 = vand.u32 %v8512, 4294901760
    %v9634 = vsub.f32 %v8512, %v9633
    %9635 = vmatmul.mubr.f32.gmra.mrb[0].mxu0 %v9634
    %v9636 = vpop.f32.mrb[0].mxu0
    %v9637 = vadd.f32 %v9499, %v9636
    %v9638 = vpop.f32.mrb[0].mxu0
    %9639 = vdwg.mxu0
    %9640 = vmatprep.subr.mxu0 0.0
    %v9641 = vand.u32 %v42, 4294901760
    %9642 = vmatpush1.msra.mxu0 %v9641
    %9643 = vmatprep.subr.mxu0 0.0
    %v9644 = vand.u32 %v43, 4294901760
    %9645 = vmatpush1.msra.mxu0 %v9644
    %9646 = vmatprep.subr.mxu0 0.0
    %v9647 = vand.u32 %v44, 4294901760
    %9648 = vmatpush1.msra.mxu0 %v9647
    %9649 = vmatprep.subr.mxu0 0.0
    %v9650 = vand.u32 %v45, 4294901760
    %9651 = vmatpush1.msra.mxu0 %v9650
    %9652 = vmatprep.subr.mxu0 0.0
    %v9653 = vand.u32 %v46, 4294901760
    %9654 = vmatpush1.msra.mxu0 %v9653
    %9655 = vmatprep.subr.mxu0 0.0
    %v9656 = vand.u32 %v47, 4294901760
    %9657 = vmatpush1.msra.mxu0 %v9656
    %9658 = vmatprep.subr.mxu0 0.0
    %v9659 = vand.u32 %v48, 4294901760
    %9660 = vmatpush1.msra.mxu0 %v9659
    %9661 = vmatprep.subr.mxu0 0.0
    %v9662 = vand.u32 %v49, 4294901760
    %9663 = vmatpush1.msra.mxu0 %v9662
    %9664 = vmatprep.subr.mxu0 0.0
    %v9665 = vand.u32 %v50, 4294901760
    %9666 = vmatpush1.msra.mxu0 %v9665
    %9667 = vmatprep.subr.mxu0 0.0
    %v9668 = vand.u32 %v51, 4294901760
    %9669 = vmatpush1.msra.mxu0 %v9668
    %9670 = vmatprep.subr.mxu0 0.0
    %v9671 = vand.u32 %v52, 4294901760
    %9672 = vmatpush1.msra.mxu0 %v9671
    %9673 = vmatprep.subr.mxu0 0.0
    %v9674 = vand.u32 %v53, 4294901760
    %9675 = vmatpush1.msra.mxu0 %v9674
    %9676 = vmatprep.subr.mxu0 0.0
    %v9677 = vand.u32 %v54, 4294901760
    %9678 = vmatpush1.msra.mxu0 %v9677
    %9679 = vmatprep.subr.mxu0 0.0
    %v9680 = vand.u32 %v55, 4294901760
    %9681 = vmatpush1.msra.mxu0 %v9680
    %9682 = vmatprep.subr.mxu0 0.0
    %v9683 = vand.u32 %v56, 4294901760
    %9684 = vmatpush1.msra.mxu0 %v9683
    %9685 = vmatprep.subr.mxu0 0.0
    %v9686 = vand.u32 %v57, 4294901760
    %9687 = vmatpush1.msra.mxu0 %v9686
    %9688 = vmatprep.subr.mxu0 0.0
    %v9689 = vand.u32 %v58, 4294901760
    %9690 = vmatpush1.msra.mxu0 %v9689
    %9691 = vmatprep.subr.mxu0 0.0
    %v9692 = vand.u32 %v59, 4294901760
    %9693 = vmatpush1.msra.mxu0 %v9692
    %9694 = vmatprep.subr.mxu0 0.0
    %v9695 = vand.u32 %v60, 4294901760
    %9696 = vmatpush1.msra.mxu0 %v9695
    %9697 = vmatprep.subr.mxu0 0.0
    %v9698 = vand.u32 %v61, 4294901760
    %9699 = vmatpush1.msra.mxu0 %v9698
    %9700 = vmatprep.subr.mxu0 0.0
    %v9701 = vand.u32 %v62, 4294901760
    %9702 = vmatpush1.msra.mxu0 %v9701
    %9703 = vmatprep.subr.mxu0 0.0
    %v9704 = vand.u32 %v63, 4294901760
    %9705 = vmatpush1.msra.mxu0 %v9704
    %9706 = vmatprep.subr.mxu0 0.0
    %v9707 = vand.u32 %v64, 4294901760
    %9708 = vmatpush1.msra.mxu0 %v9707
    %9709 = vmatprep.subr.mxu0 0.0
    %v9710 = vand.u32 %v65, 4294901760
    %9711 = vmatpush1.msra.mxu0 %v9710
    %9712 = vmatprep.subr.mxu0 0.0
    %v9713 = vand.u32 %v66, 4294901760
    %9714 = vmatpush1.msra.mxu0 %v9713
    %9715 = vmatprep.subr.mxu0 0.0
    %v9716 = vand.u32 %v67, 4294901760
    %9717 = vmatpush1.msra.mxu0 %v9716
    %9718 = vmatprep.subr.mxu0 0.0
    %v9719 = vand.u32 %v68, 4294901760
    %9720 = vmatpush1.msra.mxu0 %v9719
    %9721 = vmatprep.subr.mxu0 0.0
    %v9722 = vand.u32 %v69, 4294901760
    %9723 = vmatpush1.msra.mxu0 %v9722
    %9724 = vmatprep.subr.mxu0 0.0
    %v9725 = vand.u32 %v70, 4294901760
    %9726 = vmatpush1.msra.mxu0 %v9725
    %9727 = vmatprep.subr.mxu0 0.0
    %v9728 = vand.u32 %v71, 4294901760
    %9729 = vmatpush1.msra.mxu0 %v9728
    %9730 = vmatprep.subr.mxu0 0.0
    %v9731 = vand.u32 %v72, 4294901760
    %9732 = vmatpush1.msra.mxu0 %v9731
    %9733 = vmatprep.subr.mxu0 0.0
    %v9734 = vand.u32 %v73, 4294901760
    %9735 = vmatpush1.msra.mxu0 %v9734
    %v9736 = vand.u32 %v9157, 4294901760
    %v9737 = vsub.f32 %v9157, %v9736
    %v9738 = vand.u32 %v9737, 4294901760
    %9739 = vmatprep.mubr.f32.mxu0 %v9738
    %v9740 = vand.u32 %v8512, 4294901760
    %v9741 = vsub.f32 %v8512, %v9740
    %v9742 = vand.u32 %v9741, 4294901760
    %9743 = vmatmul.mubr.f32.gmra.mrb[0].mxu0 %v9742
    %v9744 = vpop.f32.mrb[0].mxu0
    %v9745 = vadd.f32 %v9637, %v9744
    %v9746 = vpop.f32.mrb[0].mxu0
    %9747 = vdwg.mxu0
    %9748 = vmatprep.subr.mxu0 0.0
    %v9749 = vand.u32 %v42, 4294901760
    %v9750 = vsub.f32 %v42, %v9749
    %v9751 = vand.u32 %v9750, 4294901760
    %9752 = vmatpush1.msra.mxu0 %v9751
    %9753 = vmatprep.subr.mxu0 0.0
    %v9754 = vand.u32 %v43, 4294901760
    %v9755 = vsub.f32 %v43, %v9754
    %v9756 = vand.u32 %v9755, 4294901760
    %9757 = vmatpush1.msra.mxu0 %v9756
    %9758 = vmatprep.subr.mxu0 0.0
    %v9759 = vand.u32 %v44, 4294901760
    %v9760 = vsub.f32 %v44, %v9759
    %v9761 = vand.u32 %v9760, 4294901760
    %9762 = vmatpush1.msra.mxu0 %v9761
    %9763 = vmatprep.subr.mxu0 0.0
    %v9764 = vand.u32 %v45, 4294901760
    %v9765 = vsub.f32 %v45, %v9764
    %v9766 = vand.u32 %v9765, 4294901760
    %9767 = vmatpush1.msra.mxu0 %v9766
    %9768 = vmatprep.subr.mxu0 0.0
    %v9769 = vand.u32 %v46, 4294901760
    %v9770 = vsub.f32 %v46, %v9769
    %v9771 = vand.u32 %v9770, 4294901760
    %9772 = vmatpush1.msra.mxu0 %v9771
    %9773 = vmatprep.subr.mxu0 0.0
    %v9774 = vand.u32 %v47, 4294901760
    %v9775 = vsub.f32 %v47, %v9774
    %v9776 = vand.u32 %v9775, 4294901760
    %9777 = vmatpush1.msra.mxu0 %v9776
    %9778 = vmatprep.subr.mxu0 0.0
    %v9779 = vand.u32 %v48, 4294901760
    %v9780 = vsub.f32 %v48, %v9779
    %v9781 = vand.u32 %v9780, 4294901760
    %9782 = vmatpush1.msra.mxu0 %v9781
    %9783 = vmatprep.subr.mxu0 0.0
    %v9784 = vand.u32 %v49, 4294901760
    %v9785 = vsub.f32 %v49, %v9784
    %v9786 = vand.u32 %v9785, 4294901760
    %9787 = vmatpush1.msra.mxu0 %v9786
    %9788 = vmatprep.subr.mxu0 0.0
    %v9789 = vand.u32 %v50, 4294901760
    %v9790 = vsub.f32 %v50, %v9789
    %v9791 = vand.u32 %v9790, 4294901760
    %9792 = vmatpush1.msra.mxu0 %v9791
    %9793 = vmatprep.subr.mxu0 0.0
    %v9794 = vand.u32 %v51, 4294901760
    %v9795 = vsub.f32 %v51, %v9794
    %v9796 = vand.u32 %v9795, 4294901760
    %9797 = vmatpush1.msra.mxu0 %v9796
    %9798 = vmatprep.subr.mxu0 0.0
    %v9799 = vand.u32 %v52, 4294901760
    %v9800 = vsub.f32 %v52, %v9799
    %v9801 = vand.u32 %v9800, 4294901760
    %9802 = vmatpush1.msra.mxu0 %v9801
    %9803 = vmatprep.subr.mxu0 0.0
    %v9804 = vand.u32 %v53, 4294901760
    %v9805 = vsub.f32 %v53, %v9804
    %v9806 = vand.u32 %v9805, 4294901760
    %9807 = vmatpush1.msra.mxu0 %v9806
    %9808 = vmatprep.subr.mxu0 0.0
    %v9809 = vand.u32 %v54, 4294901760
    %v9810 = vsub.f32 %v54, %v9809
    %v9811 = vand.u32 %v9810, 4294901760
    %9812 = vmatpush1.msra.mxu0 %v9811
    %9813 = vmatprep.subr.mxu0 0.0
    %v9814 = vand.u32 %v55, 4294901760
    %v9815 = vsub.f32 %v55, %v9814
    %v9816 = vand.u32 %v9815, 4294901760
    %9817 = vmatpush1.msra.mxu0 %v9816
    %9818 = vmatprep.subr.mxu0 0.0
    %v9819 = vand.u32 %v56, 4294901760
    %v9820 = vsub.f32 %v56, %v9819
    %v9821 = vand.u32 %v9820, 4294901760
    %9822 = vmatpush1.msra.mxu0 %v9821
    %9823 = vmatprep.subr.mxu0 0.0
    %v9824 = vand.u32 %v57, 4294901760
    %v9825 = vsub.f32 %v57, %v9824
    %v9826 = vand.u32 %v9825, 4294901760
    %9827 = vmatpush1.msra.mxu0 %v9826
    %9828 = vmatprep.subr.mxu0 0.0
    %v9829 = vand.u32 %v58, 4294901760
    %v9830 = vsub.f32 %v58, %v9829
    %v9831 = vand.u32 %v9830, 4294901760
    %9832 = vmatpush1.msra.mxu0 %v9831
    %9833 = vmatprep.subr.mxu0 0.0
    %v9834 = vand.u32 %v59, 4294901760
    %v9835 = vsub.f32 %v59, %v9834
    %v9836 = vand.u32 %v9835, 4294901760
    %9837 = vmatpush1.msra.mxu0 %v9836
    %9838 = vmatprep.subr.mxu0 0.0
    %v9839 = vand.u32 %v60, 4294901760
    %v9840 = vsub.f32 %v60, %v9839
    %v9841 = vand.u32 %v9840, 4294901760
    %9842 = vmatpush1.msra.mxu0 %v9841
    %9843 = vmatprep.subr.mxu0 0.0
    %v9844 = vand.u32 %v61, 4294901760
    %v9845 = vsub.f32 %v61, %v9844
    %v9846 = vand.u32 %v9845, 4294901760
    %9847 = vmatpush1.msra.mxu0 %v9846
    %9848 = vmatprep.subr.mxu0 0.0
    %v9849 = vand.u32 %v62, 4294901760
    %v9850 = vsub.f32 %v62, %v9849
    %v9851 = vand.u32 %v9850, 4294901760
    %9852 = vmatpush1.msra.mxu0 %v9851
    %9853 = vmatprep.subr.mxu0 0.0
    %v9854 = vand.u32 %v63, 4294901760
    %v9855 = vsub.f32 %v63, %v9854
    %v9856 = vand.u32 %v9855, 4294901760
    %9857 = vmatpush1.msra.mxu0 %v9856
    %9858 = vmatprep.subr.mxu0 0.0
    %v9859 = vand.u32 %v64, 4294901760
    %v9860 = vsub.f32 %v64, %v9859
    %v9861 = vand.u32 %v9860, 4294901760
    %9862 = vmatpush1.msra.mxu0 %v9861
    %9863 = vmatprep.subr.mxu0 0.0
    %v9864 = vand.u32 %v65, 4294901760
    %v9865 = vsub.f32 %v65, %v9864
    %v9866 = vand.u32 %v9865, 4294901760
    %9867 = vmatpush1.msra.mxu0 %v9866
    %9868 = vmatprep.subr.mxu0 0.0
    %v9869 = vand.u32 %v66, 4294901760
    %v9870 = vsub.f32 %v66, %v9869
    %v9871 = vand.u32 %v9870, 4294901760
    %9872 = vmatpush1.msra.mxu0 %v9871
    %9873 = vmatprep.subr.mxu0 0.0
    %v9874 = vand.u32 %v67, 4294901760
    %v9875 = vsub.f32 %v67, %v9874
    %v9876 = vand.u32 %v9875, 4294901760
    %9877 = vmatpush1.msra.mxu0 %v9876
    %9878 = vmatprep.subr.mxu0 0.0
    %v9879 = vand.u32 %v68, 4294901760
    %v9880 = vsub.f32 %v68, %v9879
    %v9881 = vand.u32 %v9880, 4294901760
    %9882 = vmatpush1.msra.mxu0 %v9881
    %9883 = vmatprep.subr.mxu0 0.0
    %v9884 = vand.u32 %v69, 4294901760
    %v9885 = vsub.f32 %v69, %v9884
    %v9886 = vand.u32 %v9885, 4294901760
    %9887 = vmatpush1.msra.mxu0 %v9886
    %9888 = vmatprep.subr.mxu0 0.0
    %v9889 = vand.u32 %v70, 4294901760
    %v9890 = vsub.f32 %v70, %v9889
    %v9891 = vand.u32 %v9890, 4294901760
    %9892 = vmatpush1.msra.mxu0 %v9891
    %9893 = vmatprep.subr.mxu0 0.0
    %v9894 = vand.u32 %v71, 4294901760
    %v9895 = vsub.f32 %v71, %v9894
    %v9896 = vand.u32 %v9895, 4294901760
    %9897 = vmatpush1.msra.mxu0 %v9896
    %9898 = vmatprep.subr.mxu0 0.0
    %v9899 = vand.u32 %v72, 4294901760
    %v9900 = vsub.f32 %v72, %v9899
    %v9901 = vand.u32 %v9900, 4294901760
    %9902 = vmatpush1.msra.mxu0 %v9901
    %9903 = vmatprep.subr.mxu0 0.0
    %v9904 = vand.u32 %v73, 4294901760
    %v9905 = vsub.f32 %v73, %v9904
    %v9906 = vand.u32 %v9905, 4294901760
    %9907 = vmatpush1.msra.mxu0 %v9906
    %v9908 = vand.u32 %v9157, 4294901760
    %9909 = vmatprep.mubr.f32.mxu0 %v9908
    %v9910 = vand.u32 %v8512, 4294901760
    %9911 = vmatmul.mubr.f32.gmra.mrb[0].mxu0 %v9910
    %v9912 = vpop.f32.mrb[0].mxu0
    %v9913 = vadd.f32 %v9745, %v9912
    %v9914 = vpop.f32.mrb[0].mxu0
    %9915 = vdwg.mxu0
    %9916 = vmatprep.subr.mxu0 0.0
    %v9917 = vand.u32 %v42, 4294901760
    %9918 = vmatpush1.msra.mxu0 %v9917
    %9919 = vmatprep.subr.mxu0 0.0
    %v9920 = vand.u32 %v43, 4294901760
    %9921 = vmatpush1.msra.mxu0 %v9920
    %9922 = vmatprep.subr.mxu0 0.0
    %v9923 = vand.u32 %v44, 4294901760
    %9924 = vmatpush1.msra.mxu0 %v9923
    %9925 = vmatprep.subr.mxu0 0.0
    %v9926 = vand.u32 %v45, 4294901760
    %9927 = vmatpush1.msra.mxu0 %v9926
    %9928 = vmatprep.subr.mxu0 0.0
    %v9929 = vand.u32 %v46, 4294901760
    %9930 = vmatpush1.msra.mxu0 %v9929
    %9931 = vmatprep.subr.mxu0 0.0
    %v9932 = vand.u32 %v47, 4294901760
    %9933 = vmatpush1.msra.mxu0 %v9932
    %9934 = vmatprep.subr.mxu0 0.0
    %v9935 = vand.u32 %v48, 4294901760
    %9936 = vmatpush1.msra.mxu0 %v9935
    %9937 = vmatprep.subr.mxu0 0.0
    %v9938 = vand.u32 %v49, 4294901760
    %9939 = vmatpush1.msra.mxu0 %v9938
    %9940 = vmatprep.subr.mxu0 0.0
    %v9941 = vand.u32 %v50, 4294901760
    %9942 = vmatpush1.msra.mxu0 %v9941
    %9943 = vmatprep.subr.mxu0 0.0
    %v9944 = vand.u32 %v51, 4294901760
    %9945 = vmatpush1.msra.mxu0 %v9944
    %9946 = vmatprep.subr.mxu0 0.0
    %v9947 = vand.u32 %v52, 4294901760
    %9948 = vmatpush1.msra.mxu0 %v9947
    %9949 = vmatprep.subr.mxu0 0.0
    %v9950 = vand.u32 %v53, 4294901760
    %9951 = vmatpush1.msra.mxu0 %v9950
    %9952 = vmatprep.subr.mxu0 0.0
    %v9953 = vand.u32 %v54, 4294901760
    %9954 = vmatpush1.msra.mxu0 %v9953
    %9955 = vmatprep.subr.mxu0 0.0
    %v9956 = vand.u32 %v55, 4294901760
    %9957 = vmatpush1.msra.mxu0 %v9956
    %9958 = vmatprep.subr.mxu0 0.0
    %v9959 = vand.u32 %v56, 4294901760
    %9960 = vmatpush1.msra.mxu0 %v9959
    %9961 = vmatprep.subr.mxu0 0.0
    %v9962 = vand.u32 %v57, 4294901760
    %9963 = vmatpush1.msra.mxu0 %v9962
    %9964 = vmatprep.subr.mxu0 0.0
    %v9965 = vand.u32 %v58, 4294901760
    %9966 = vmatpush1.msra.mxu0 %v9965
    %9967 = vmatprep.subr.mxu0 0.0
    %v9968 = vand.u32 %v59, 4294901760
    %9969 = vmatpush1.msra.mxu0 %v9968
    %9970 = vmatprep.subr.mxu0 0.0
    %v9971 = vand.u32 %v60, 4294901760
    %9972 = vmatpush1.msra.mxu0 %v9971
    %9973 = vmatprep.subr.mxu0 0.0
    %v9974 = vand.u32 %v61, 4294901760
    %9975 = vmatpush1.msra.mxu0 %v9974
    %9976 = vmatprep.subr.mxu0 0.0
    %v9977 = vand.u32 %v62, 4294901760
    %9978 = vmatpush1.msra.mxu0 %v9977
    %9979 = vmatprep.subr.mxu0 0.0
    %v9980 = vand.u32 %v63, 4294901760
    %9981 = vmatpush1.msra.mxu0 %v9980
    %9982 = vmatprep.subr.mxu0 0.0
    %v9983 = vand.u32 %v64, 4294901760
    %9984 = vmatpush1.msra.mxu0 %v9983
    %9985 = vmatprep.subr.mxu0 0.0
    %v9986 = vand.u32 %v65, 4294901760
    %9987 = vmatpush1.msra.mxu0 %v9986
    %9988 = vmatprep.subr.mxu0 0.0
    %v9989 = vand.u32 %v66, 4294901760
    %9990 = vmatpush1.msra.mxu0 %v9989
    %9991 = vmatprep.subr.mxu0 0.0
    %v9992 = vand.u32 %v67, 4294901760
    %9993 = vmatpush1.msra.mxu0 %v9992
    %9994 = vmatprep.subr.mxu0 0.0
    %v9995 = vand.u32 %v68, 4294901760
    %9996 = vmatpush1.msra.mxu0 %v9995
    %9997 = vmatprep.subr.mxu0 0.0
    %v9998 = vand.u32 %v69, 4294901760
    %9999 = vmatpush1.msra.mxu0 %v9998
    %10000 = vmatprep.subr.mxu0 0.0
    %v10001 = vand.u32 %v70, 4294901760
    %10002 = vmatpush1.msra.mxu0 %v10001
    %10003 = vmatprep.subr.mxu0 0.0
    %v10004 = vand.u32 %v71, 4294901760
    %10005 = vmatpush1.msra.mxu0 %v10004
    %10006 = vmatprep.subr.mxu0 0.0
    %v10007 = vand.u32 %v72, 4294901760
    %10008 = vmatpush1.msra.mxu0 %v10007
    %10009 = vmatprep.subr.mxu0 0.0
    %v10010 = vand.u32 %v73, 4294901760
    %10011 = vmatpush1.msra.mxu0 %v10010
    %v10012 = vand.u32 %v9157, 4294901760
    %10013 = vmatprep.mubr.f32.mxu0 %v10012
    %v10014 = vand.u32 %v8512, 4294901760
    %10015 = vmatmul.mubr.f32.gmra.mrb[0].mxu0 %v10014
    %v10016 = vpop.f32.mrb[0].mxu0
    %v10017 = vadd.f32 %v9913, %v10016
    %v10018 = vpop.f32.mrb[0].mxu0
    %10019 = vdwg.mxu0
    %v10020 = vtanh.pop %v10017
    %v10021 = vmul.f32 %v8512, 0.9
    %v10022 = vmul.f32 %v10020, 0.1
    %v10023 = vadd.f32 %v10021, %v10022
    %10024 = vmatprep.subr.mxu0 0.0
    %v10025 = vand.u32 %v74, 4294901760
    %10026 = vmatpush1.msra.mxu0 %v10025
    %10027 = vmatprep.subr.mxu0 0.0
    %v10028 = vand.u32 %v75, 4294901760
    %10029 = vmatpush1.msra.mxu0 %v10028
    %10030 = vmatprep.subr.mxu0 0.0
    %v10031 = vand.u32 %v76, 4294901760
    %10032 = vmatpush1.msra.mxu0 %v10031
    %10033 = vmatprep.subr.mxu0 0.0
    %v10034 = vand.u32 %v77, 4294901760
    %10035 = vmatpush1.msra.mxu0 %v10034
    %10036 = vmatprep.subr.mxu0 0.0
    %v10037 = vand.u32 %v78, 4294901760
    %10038 = vmatpush1.msra.mxu0 %v10037
    %10039 = vmatprep.subr.mxu0 0.0
    %v10040 = vand.u32 %v79, 4294901760
    %10041 = vmatpush1.msra.mxu0 %v10040
    %10042 = vmatprep.subr.mxu0 0.0
    %v10043 = vand.u32 %v80, 4294901760
    %10044 = vmatpush1.msra.mxu0 %v10043
    %10045 = vmatprep.subr.mxu0 0.0
    %v10046 = vand.u32 %v81, 4294901760
    %10047 = vmatpush1.msra.mxu0 %v10046
    %10048 = vmatprep.subr.mxu0 0.0
    %v10049 = vand.u32 %v82, 4294901760
    %10050 = vmatpush1.msra.mxu0 %v10049
    %10051 = vmatprep.subr.mxu0 0.0
    %v10052 = vand.u32 %v83, 4294901760
    %10053 = vmatpush1.msra.mxu0 %v10052
    %10054 = vmatprep.subr.mxu0 0.0
    %v10055 = vand.u32 %v84, 4294901760
    %10056 = vmatpush1.msra.mxu0 %v10055
    %10057 = vmatprep.subr.mxu0 0.0
    %v10058 = vand.u32 %v85, 4294901760
    %10059 = vmatpush1.msra.mxu0 %v10058
    %10060 = vmatprep.subr.mxu0 0.0
    %v10061 = vand.u32 %v86, 4294901760
    %10062 = vmatpush1.msra.mxu0 %v10061
    %10063 = vmatprep.subr.mxu0 0.0
    %v10064 = vand.u32 %v87, 4294901760
    %10065 = vmatpush1.msra.mxu0 %v10064
    %10066 = vmatprep.subr.mxu0 0.0
    %v10067 = vand.u32 %v88, 4294901760
    %10068 = vmatpush1.msra.mxu0 %v10067
    %10069 = vmatprep.subr.mxu0 0.0
    %v10070 = vand.u32 %v89, 4294901760
    %10071 = vmatpush1.msra.mxu0 %v10070
    %10072 = vmatprep.subr.mxu0 0.0
    %10073 = vmatpush1.msra.mxu0 0.0
    %10074 = vmatprep.subr.mxu0 0.0
    %10075 = vmatpush1.msra.mxu0 0.0
    %10076 = vmatprep.subr.mxu0 0.0
    %10077 = vmatpush1.msra.mxu0 0.0
    %10078 = vmatprep.subr.mxu0 0.0
    %10079 = vmatpush1.msra.mxu0 0.0
    %10080 = vmatprep.subr.mxu0 0.0
    %10081 = vmatpush1.msra.mxu0 0.0
    %10082 = vmatprep.subr.mxu0 0.0
    %10083 = vmatpush1.msra.mxu0 0.0
    %10084 = vmatprep.subr.mxu0 0.0
    %10085 = vmatpush1.msra.mxu0 0.0
    %10086 = vmatprep.subr.mxu0 0.0
    %10087 = vmatpush1.msra.mxu0 0.0
    %10088 = vmatprep.subr.mxu0 0.0
    %10089 = vmatpush1.msra.mxu0 0.0
    %10090 = vmatprep.subr.mxu0 0.0
    %10091 = vmatpush1.msra.mxu0 0.0
    %10092 = vmatprep.subr.mxu0 0.0
    %10093 = vmatpush1.msra.mxu0 0.0
    %10094 = vmatprep.subr.mxu0 0.0
    %10095 = vmatpush1.msra.mxu0 0.0
    %10096 = vmatprep.subr.mxu0 0.0
    %10097 = vmatpush1.msra.mxu0 0.0
    %10098 = vmatprep.subr.mxu0 0.0
    %10099 = vmatpush1.msra.mxu0 0.0
    %10100 = vmatprep.subr.mxu0 0.0
    %10101 = vmatpush1.msra.mxu0 0.0
    %10102 = vmatprep.subr.mxu0 0.0
    %10103 = vmatpush1.msra.mxu0 0.0
    %10104 = vmatprep.mubr.f32.mxu0 0.0
    %v10105 = vand.u32 %v10023, 4294901760
    %v10106 = vsub.f32 %v10023, %v10105
    %v10107 = vand.u32 %v10106, 4294901760
    %v10108 = vsub.f32 %v10106, %v10107
    %v10109 = vand.u32 %v10108, 4294901760
    %10110 = vmatmul.mubr.f32.gmra.mrb[0].mxu0 %v10109
    %v10111 = vpop.f32.mrb[0].mxu0
    %v10112 = vadd.f32 %v90, %v10111
    %v10113 = vpop.f32.mrb[0].mxu0
    %10114 = vdwg.mxu0
    %10115 = vmatprep.subr.mxu0 0.0
    %v10116 = vand.u32 %v74, 4294901760
    %v10117 = vsub.f32 %v74, %v10116
    %v10118 = vand.u32 %v10117, 4294901760
    %v10119 = vsub.f32 %v10117, %v10118
    %v10120 = vand.u32 %v10119, 4294901760
    %10121 = vmatpush1.msra.mxu0 %v10120
    %10122 = vmatprep.subr.mxu0 0.0
    %v10123 = vand.u32 %v75, 4294901760
    %v10124 = vsub.f32 %v75, %v10123
    %v10125 = vand.u32 %v10124, 4294901760
    %v10126 = vsub.f32 %v10124, %v10125
    %v10127 = vand.u32 %v10126, 4294901760
    %10128 = vmatpush1.msra.mxu0 %v10127
    %10129 = vmatprep.subr.mxu0 0.0
    %v10130 = vand.u32 %v76, 4294901760
    %v10131 = vsub.f32 %v76, %v10130
    %v10132 = vand.u32 %v10131, 4294901760
    %v10133 = vsub.f32 %v10131, %v10132
    %v10134 = vand.u32 %v10133, 4294901760
    %10135 = vmatpush1.msra.mxu0 %v10134
    %10136 = vmatprep.subr.mxu0 0.0
    %v10137 = vand.u32 %v77, 4294901760
    %v10138 = vsub.f32 %v77, %v10137
    %v10139 = vand.u32 %v10138, 4294901760
    %v10140 = vsub.f32 %v10138, %v10139
    %v10141 = vand.u32 %v10140, 4294901760
    %10142 = vmatpush1.msra.mxu0 %v10141
    %10143 = vmatprep.subr.mxu0 0.0
    %v10144 = vand.u32 %v78, 4294901760
    %v10145 = vsub.f32 %v78, %v10144
    %v10146 = vand.u32 %v10145, 4294901760
    %v10147 = vsub.f32 %v10145, %v10146
    %v10148 = vand.u32 %v10147, 4294901760
    %10149 = vmatpush1.msra.mxu0 %v10148
    %10150 = vmatprep.subr.mxu0 0.0
    %v10151 = vand.u32 %v79, 4294901760
    %v10152 = vsub.f32 %v79, %v10151
    %v10153 = vand.u32 %v10152, 4294901760
    %v10154 = vsub.f32 %v10152, %v10153
    %v10155 = vand.u32 %v10154, 4294901760
    %10156 = vmatpush1.msra.mxu0 %v10155
    %10157 = vmatprep.subr.mxu0 0.0
    %v10158 = vand.u32 %v80, 4294901760
    %v10159 = vsub.f32 %v80, %v10158
    %v10160 = vand.u32 %v10159, 4294901760
    %v10161 = vsub.f32 %v10159, %v10160
    %v10162 = vand.u32 %v10161, 4294901760
    %10163 = vmatpush1.msra.mxu0 %v10162
    %10164 = vmatprep.subr.mxu0 0.0
    %v10165 = vand.u32 %v81, 4294901760
    %v10166 = vsub.f32 %v81, %v10165
    %v10167 = vand.u32 %v10166, 4294901760
    %v10168 = vsub.f32 %v10166, %v10167
    %v10169 = vand.u32 %v10168, 4294901760
    %10170 = vmatpush1.msra.mxu0 %v10169
    %10171 = vmatprep.subr.mxu0 0.0
    %v10172 = vand.u32 %v82, 4294901760
    %v10173 = vsub.f32 %v82, %v10172
    %v10174 = vand.u32 %v10173, 4294901760
    %v10175 = vsub.f32 %v10173, %v10174
    %v10176 = vand.u32 %v10175, 4294901760
    %10177 = vmatpush1.msra.mxu0 %v10176
    %10178 = vmatprep.subr.mxu0 0.0
    %v10179 = vand.u32 %v83, 4294901760
    %v10180 = vsub.f32 %v83, %v10179
    %v10181 = vand.u32 %v10180, 4294901760
    %v10182 = vsub.f32 %v10180, %v10181
    %v10183 = vand.u32 %v10182, 4294901760
    %10184 = vmatpush1.msra.mxu0 %v10183
    %10185 = vmatprep.subr.mxu0 0.0
    %v10186 = vand.u32 %v84, 4294901760
    %v10187 = vsub.f32 %v84, %v10186
    %v10188 = vand.u32 %v10187, 4294901760
    %v10189 = vsub.f32 %v10187, %v10188
    %v10190 = vand.u32 %v10189, 4294901760
    %10191 = vmatpush1.msra.mxu0 %v10190
    %10192 = vmatprep.subr.mxu0 0.0
    %v10193 = vand.u32 %v85, 4294901760
    %v10194 = vsub.f32 %v85, %v10193
    %v10195 = vand.u32 %v10194, 4294901760
    %v10196 = vsub.f32 %v10194, %v10195
    %v10197 = vand.u32 %v10196, 4294901760
    %10198 = vmatpush1.msra.mxu0 %v10197
    %10199 = vmatprep.subr.mxu0 0.0
    %v10200 = vand.u32 %v86, 4294901760
    %v10201 = vsub.f32 %v86, %v10200
    %v10202 = vand.u32 %v10201, 4294901760
    %v10203 = vsub.f32 %v10201, %v10202
    %v10204 = vand.u32 %v10203, 4294901760
    %10205 = vmatpush1.msra.mxu0 %v10204
    %10206 = vmatprep.subr.mxu0 0.0
    %v10207 = vand.u32 %v87, 4294901760
    %v10208 = vsub.f32 %v87, %v10207
    %v10209 = vand.u32 %v10208, 4294901760
    %v10210 = vsub.f32 %v10208, %v10209
    %v10211 = vand.u32 %v10210, 4294901760
    %10212 = vmatpush1.msra.mxu0 %v10211
    %10213 = vmatprep.subr.mxu0 0.0
    %v10214 = vand.u32 %v88, 4294901760
    %v10215 = vsub.f32 %v88, %v10214
    %v10216 = vand.u32 %v10215, 4294901760
    %v10217 = vsub.f32 %v10215, %v10216
    %v10218 = vand.u32 %v10217, 4294901760
    %10219 = vmatpush1.msra.mxu0 %v10218
    %10220 = vmatprep.subr.mxu0 0.0
    %v10221 = vand.u32 %v89, 4294901760
    %v10222 = vsub.f32 %v89, %v10221
    %v10223 = vand.u32 %v10222, 4294901760
    %v10224 = vsub.f32 %v10222, %v10223
    %v10225 = vand.u32 %v10224, 4294901760
    %10226 = vmatpush1.msra.mxu0 %v10225
    %10227 = vmatprep.subr.mxu0 0.0
    %10228 = vmatpush1.msra.mxu0 0.0
    %10229 = vmatprep.subr.mxu0 0.0
    %10230 = vmatpush1.msra.mxu0 0.0
    %10231 = vmatprep.subr.mxu0 0.0
    %10232 = vmatpush1.msra.mxu0 0.0
    %10233 = vmatprep.subr.mxu0 0.0
    %10234 = vmatpush1.msra.mxu0 0.0
    %10235 = vmatprep.subr.mxu0 0.0
    %10236 = vmatpush1.msra.mxu0 0.0
    %10237 = vmatprep.subr.mxu0 0.0
    %10238 = vmatpush1.msra.mxu0 0.0
    %10239 = vmatprep.subr.mxu0 0.0
    %10240 = vmatpush1.msra.mxu0 0.0
    %10241 = vmatprep.subr.mxu0 0.0
    %10242 = vmatpush1.msra.mxu0 0.0
    %10243 = vmatprep.subr.mxu0 0.0
    %10244 = vmatpush1.msra.mxu0 0.0
    %10245 = vmatprep.subr.mxu0 0.0
    %10246 = vmatpush1.msra.mxu0 0.0
    %10247 = vmatprep.subr.mxu0 0.0
    %10248 = vmatpush1.msra.mxu0 0.0
    %10249 = vmatprep.subr.mxu0 0.0
    %10250 = vmatpush1.msra.mxu0 0.0
    %10251 = vmatprep.subr.mxu0 0.0
    %10252 = vmatpush1.msra.mxu0 0.0
    %10253 = vmatprep.subr.mxu0 0.0
    %10254 = vmatpush1.msra.mxu0 0.0
    %10255 = vmatprep.subr.mxu0 0.0
    %10256 = vmatpush1.msra.mxu0 0.0
    %10257 = vmatprep.subr.mxu0 0.0
    %10258 = vmatpush1.msra.mxu0 0.0
    %10259 = vmatprep.mubr.f32.mxu0 0.0
    %v10260 = vand.u32 %v10023, 4294901760
    %10261 = vmatmul.mubr.f32.gmra.mrb[0].mxu0 %v10260
    %v10262 = vpop.f32.mrb[0].mxu0
    %v10263 = vadd.f32 %v10112, %v10262
    %v10264 = vpop.f32.mrb[0].mxu0
    %10265 = vdwg.mxu0
    %10266 = vmatprep.subr.mxu0 0.0
    %v10267 = vand.u32 %v74, 4294901760
    %v10268 = vsub.f32 %v74, %v10267
    %10269 = vmatpush1.msra.mxu0 %v10268
    %10270 = vmatprep.subr.mxu0 0.0
    %v10271 = vand.u32 %v75, 4294901760
    %v10272 = vsub.f32 %v75, %v10271
    %10273 = vmatpush1.msra.mxu0 %v10272
    %10274 = vmatprep.subr.mxu0 0.0
    %v10275 = vand.u32 %v76, 4294901760
    %v10276 = vsub.f32 %v76, %v10275
    %10277 = vmatpush1.msra.mxu0 %v10276
    %10278 = vmatprep.subr.mxu0 0.0
    %v10279 = vand.u32 %v77, 4294901760
    %v10280 = vsub.f32 %v77, %v10279
    %10281 = vmatpush1.msra.mxu0 %v10280
    %10282 = vmatprep.subr.mxu0 0.0
    %v10283 = vand.u32 %v78, 4294901760
    %v10284 = vsub.f32 %v78, %v10283
    %10285 = vmatpush1.msra.mxu0 %v10284
    %10286 = vmatprep.subr.mxu0 0.0
    %v10287 = vand.u32 %v79, 4294901760
    %v10288 = vsub.f32 %v79, %v10287
    %10289 = vmatpush1.msra.mxu0 %v10288
    %10290 = vmatprep.subr.mxu0 0.0
    %v10291 = vand.u32 %v80, 4294901760
    %v10292 = vsub.f32 %v80, %v10291
    %10293 = vmatpush1.msra.mxu0 %v10292
    %10294 = vmatprep.subr.mxu0 0.0
    %v10295 = vand.u32 %v81, 4294901760
    %v10296 = vsub.f32 %v81, %v10295
    %10297 = vmatpush1.msra.mxu0 %v10296
    %10298 = vmatprep.subr.mxu0 0.0
    %v10299 = vand.u32 %v82, 4294901760
    %v10300 = vsub.f32 %v82, %v10299
    %10301 = vmatpush1.msra.mxu0 %v10300
    %10302 = vmatprep.subr.mxu0 0.0
    %v10303 = vand.u32 %v83, 4294901760
    %v10304 = vsub.f32 %v83, %v10303
    %10305 = vmatpush1.msra.mxu0 %v10304
    %10306 = vmatprep.subr.mxu0 0.0
    %v10307 = vand.u32 %v84, 4294901760
    %v10308 = vsub.f32 %v84, %v10307
    %10309 = vmatpush1.msra.mxu0 %v10308
    %10310 = vmatprep.subr.mxu0 0.0
    %v10311 = vand.u32 %v85, 4294901760
    %v10312 = vsub.f32 %v85, %v10311
    %10313 = vmatpush1.msra.mxu0 %v10312
    %10314 = vmatprep.subr.mxu0 0.0
    %v10315 = vand.u32 %v86, 4294901760
    %v10316 = vsub.f32 %v86, %v10315
    %10317 = vmatpush1.msra.mxu0 %v10316
    %10318 = vmatprep.subr.mxu0 0.0
    %v10319 = vand.u32 %v87, 4294901760
    %v10320 = vsub.f32 %v87, %v10319
    %10321 = vmatpush1.msra.mxu0 %v10320
    %10322 = vmatprep.subr.mxu0 0.0
    %v10323 = vand.u32 %v88, 4294901760
    %v10324 = vsub.f32 %v88, %v10323
    %10325 = vmatpush1.msra.mxu0 %v10324
    %10326 = vmatprep.subr.mxu0 0.0
    %v10327 = vand.u32 %v89, 4294901760
    %v10328 = vsub.f32 %v89, %v10327
    %10329 = vmatpush1.msra.mxu0 %v10328
    %10330 = vmatprep.subr.mxu0 0.0
    %10331 = vmatpush1.msra.mxu0 0.0
    %10332 = vmatprep.subr.mxu0 0.0
    %10333 = vmatpush1.msra.mxu0 0.0
    %10334 = vmatprep.subr.mxu0 0.0
    %10335 = vmatpush1.msra.mxu0 0.0
    %10336 = vmatprep.subr.mxu0 0.0
    %10337 = vmatpush1.msra.mxu0 0.0
    %10338 = vmatprep.subr.mxu0 0.0
    %10339 = vmatpush1.msra.mxu0 0.0
    %10340 = vmatprep.subr.mxu0 0.0
    %10341 = vmatpush1.msra.mxu0 0.0
    %10342 = vmatprep.subr.mxu0 0.0
    %10343 = vmatpush1.msra.mxu0 0.0
    %10344 = vmatprep.subr.mxu0 0.0
    %10345 = vmatpush1.msra.mxu0 0.0
    %10346 = vmatprep.subr.mxu0 0.0
    %10347 = vmatpush1.msra.mxu0 0.0
    %10348 = vmatprep.subr.mxu0 0.0
    %10349 = vmatpush1.msra.mxu0 0.0
    %10350 = vmatprep.subr.mxu0 0.0
    %10351 = vmatpush1.msra.mxu0 0.0
    %10352 = vmatprep.subr.mxu0 0.0
    %10353 = vmatpush1.msra.mxu0 0.0
    %10354 = vmatprep.subr.mxu0 0.0
    %10355 = vmatpush1.msra.mxu0 0.0
    %10356 = vmatprep.subr.mxu0 0.0
    %10357 = vmatpush1.msra.mxu0 0.0
    %10358 = vmatprep.subr.mxu0 0.0
    %10359 = vmatpush1.msra.mxu0 0.0
    %10360 = vmatprep.subr.mxu0 0.0
    %10361 = vmatpush1.msra.mxu0 0.0
    %10362 = vmatprep.mubr.f32.mxu0 0.0
    %v10363 = vand.u32 %v10023, 4294901760
    %v10364 = vsub.f32 %v10023, %v10363
    %10365 = vmatmul.mubr.f32.gmra.mrb[0].mxu0 %v10364
    %v10366 = vpop.f32.mrb[0].mxu0
    %v10367 = vadd.f32 %v10263, %v10366
    %v10368 = vpop.f32.mrb[0].mxu0
    %10369 = vdwg.mxu0
    %10370 = vmatprep.subr.mxu0 0.0
    %v10371 = vand.u32 %v74, 4294901760
    %10372 = vmatpush1.msra.mxu0 %v10371
    %10373 = vmatprep.subr.mxu0 0.0
    %v10374 = vand.u32 %v75, 4294901760
    %10375 = vmatpush1.msra.mxu0 %v10374
    %10376 = vmatprep.subr.mxu0 0.0
    %v10377 = vand.u32 %v76, 4294901760
    %10378 = vmatpush1.msra.mxu0 %v10377
    %10379 = vmatprep.subr.mxu0 0.0
    %v10380 = vand.u32 %v77, 4294901760
    %10381 = vmatpush1.msra.mxu0 %v10380
    %10382 = vmatprep.subr.mxu0 0.0
    %v10383 = vand.u32 %v78, 4294901760
    %10384 = vmatpush1.msra.mxu0 %v10383
    %10385 = vmatprep.subr.mxu0 0.0
    %v10386 = vand.u32 %v79, 4294901760
    %10387 = vmatpush1.msra.mxu0 %v10386
    %10388 = vmatprep.subr.mxu0 0.0
    %v10389 = vand.u32 %v80, 4294901760
    %10390 = vmatpush1.msra.mxu0 %v10389
    %10391 = vmatprep.subr.mxu0 0.0
    %v10392 = vand.u32 %v81, 4294901760
    %10393 = vmatpush1.msra.mxu0 %v10392
    %10394 = vmatprep.subr.mxu0 0.0
    %v10395 = vand.u32 %v82, 4294901760
    %10396 = vmatpush1.msra.mxu0 %v10395
    %10397 = vmatprep.subr.mxu0 0.0
    %v10398 = vand.u32 %v83, 4294901760
    %10399 = vmatpush1.msra.mxu0 %v10398
    %10400 = vmatprep.subr.mxu0 0.0
    %v10401 = vand.u32 %v84, 4294901760
    %10402 = vmatpush1.msra.mxu0 %v10401
    %10403 = vmatprep.subr.mxu0 0.0
    %v10404 = vand.u32 %v85, 4294901760
    %10405 = vmatpush1.msra.mxu0 %v10404
    %10406 = vmatprep.subr.mxu0 0.0
    %v10407 = vand.u32 %v86, 4294901760
    %10408 = vmatpush1.msra.mxu0 %v10407
    %10409 = vmatprep.subr.mxu0 0.0
    %v10410 = vand.u32 %v87, 4294901760
    %10411 = vmatpush1.msra.mxu0 %v10410
    %10412 = vmatprep.subr.mxu0 0.0
    %v10413 = vand.u32 %v88, 4294901760
    %10414 = vmatpush1.msra.mxu0 %v10413
    %10415 = vmatprep.subr.mxu0 0.0
    %v10416 = vand.u32 %v89, 4294901760
    %10417 = vmatpush1.msra.mxu0 %v10416
    %10418 = vmatprep.subr.mxu0 0.0
    %10419 = vmatpush1.msra.mxu0 0.0
    %10420 = vmatprep.subr.mxu0 0.0
    %10421 = vmatpush1.msra.mxu0 0.0
    %10422 = vmatprep.subr.mxu0 0.0
    %10423 = vmatpush1.msra.mxu0 0.0
    %10424 = vmatprep.subr.mxu0 0.0
    %10425 = vmatpush1.msra.mxu0 0.0
    %10426 = vmatprep.subr.mxu0 0.0
    %10427 = vmatpush1.msra.mxu0 0.0
    %10428 = vmatprep.subr.mxu0 0.0
    %10429 = vmatpush1.msra.mxu0 0.0
    %10430 = vmatprep.subr.mxu0 0.0
    %10431 = vmatpush1.msra.mxu0 0.0
    %10432 = vmatprep.subr.mxu0 0.0
    %10433 = vmatpush1.msra.mxu0 0.0
    %10434 = vmatprep.subr.mxu0 0.0
    %10435 = vmatpush1.msra.mxu0 0.0
    %10436 = vmatprep.subr.mxu0 0.0
    %10437 = vmatpush1.msra.mxu0 0.0
    %10438 = vmatprep.subr.mxu0 0.0
    %10439 = vmatpush1.msra.mxu0 0.0
    %10440 = vmatprep.subr.mxu0 0.0
    %10441 = vmatpush1.msra.mxu0 0.0
    %10442 = vmatprep.subr.mxu0 0.0
    %10443 = vmatpush1.msra.mxu0 0.0
    %10444 = vmatprep.subr.mxu0 0.0
    %10445 = vmatpush1.msra.mxu0 0.0
    %10446 = vmatprep.subr.mxu0 0.0
    %10447 = vmatpush1.msra.mxu0 0.0
    %10448 = vmatprep.subr.mxu0 0.0
    %10449 = vmatpush1.msra.mxu0 0.0
    %10450 = vmatprep.mubr.f32.mxu0 0.0
    %v10451 = vand.u32 %v10023, 4294901760
    %v10452 = vsub.f32 %v10023, %v10451
    %v10453 = vand.u32 %v10452, 4294901760
    %10454 = vmatmul.mubr.f32.gmra.mrb[0].mxu0 %v10453
    %v10455 = vpop.f32.mrb[0].mxu0
    %v10456 = vadd.f32 %v10367, %v10455
    %v10457 = vpop.f32.mrb[0].mxu0
    %10458 = vdwg.mxu0
    %10459 = vmatprep.subr.mxu0 0.0
    %v10460 = vand.u32 %v74, 4294901760
    %v10461 = vsub.f32 %v74, %v10460
    %v10462 = vand.u32 %v10461, 4294901760
    %10463 = vmatpush1.msra.mxu0 %v10462
    %10464 = vmatprep.subr.mxu0 0.0
    %v10465 = vand.u32 %v75, 4294901760
    %v10466 = vsub.f32 %v75, %v10465
    %v10467 = vand.u32 %v10466, 4294901760
    %10468 = vmatpush1.msra.mxu0 %v10467
    %10469 = vmatprep.subr.mxu0 0.0
    %v10470 = vand.u32 %v76, 4294901760
    %v10471 = vsub.f32 %v76, %v10470
    %v10472 = vand.u32 %v10471, 4294901760
    %10473 = vmatpush1.msra.mxu0 %v10472
    %10474 = vmatprep.subr.mxu0 0.0
    %v10475 = vand.u32 %v77, 4294901760
    %v10476 = vsub.f32 %v77, %v10475
    %v10477 = vand.u32 %v10476, 4294901760
    %10478 = vmatpush1.msra.mxu0 %v10477
    %10479 = vmatprep.subr.mxu0 0.0
    %v10480 = vand.u32 %v78, 4294901760
    %v10481 = vsub.f32 %v78, %v10480
    %v10482 = vand.u32 %v10481, 4294901760
    %10483 = vmatpush1.msra.mxu0 %v10482
    %10484 = vmatprep.subr.mxu0 0.0
    %v10485 = vand.u32 %v79, 4294901760
    %v10486 = vsub.f32 %v79, %v10485
    %v10487 = vand.u32 %v10486, 4294901760
    %10488 = vmatpush1.msra.mxu0 %v10487
    %10489 = vmatprep.subr.mxu0 0.0
    %v10490 = vand.u32 %v80, 4294901760
    %v10491 = vsub.f32 %v80, %v10490
    %v10492 = vand.u32 %v10491, 4294901760
    %10493 = vmatpush1.msra.mxu0 %v10492
    %10494 = vmatprep.subr.mxu0 0.0
    %v10495 = vand.u32 %v81, 4294901760
    %v10496 = vsub.f32 %v81, %v10495
    %v10497 = vand.u32 %v10496, 4294901760
    %10498 = vmatpush1.msra.mxu0 %v10497
    %10499 = vmatprep.subr.mxu0 0.0
    %v10500 = vand.u32 %v82, 4294901760
    %v10501 = vsub.f32 %v82, %v10500
    %v10502 = vand.u32 %v10501, 4294901760
    %10503 = vmatpush1.msra.mxu0 %v10502
    %10504 = vmatprep.subr.mxu0 0.0
    %v10505 = vand.u32 %v83, 4294901760
    %v10506 = vsub.f32 %v83, %v10505
    %v10507 = vand.u32 %v10506, 4294901760
    %10508 = vmatpush1.msra.mxu0 %v10507
    %10509 = vmatprep.subr.mxu0 0.0
    %v10510 = vand.u32 %v84, 4294901760
    %v10511 = vsub.f32 %v84, %v10510
    %v10512 = vand.u32 %v10511, 4294901760
    %10513 = vmatpush1.msra.mxu0 %v10512
    %10514 = vmatprep.subr.mxu0 0.0
    %v10515 = vand.u32 %v85, 4294901760
    %v10516 = vsub.f32 %v85, %v10515
    %v10517 = vand.u32 %v10516, 4294901760
    %10518 = vmatpush1.msra.mxu0 %v10517
    %10519 = vmatprep.subr.mxu0 0.0
    %v10520 = vand.u32 %v86, 4294901760
    %v10521 = vsub.f32 %v86, %v10520
    %v10522 = vand.u32 %v10521, 4294901760
    %10523 = vmatpush1.msra.mxu0 %v10522
    %10524 = vmatprep.subr.mxu0 0.0
    %v10525 = vand.u32 %v87, 4294901760
    %v10526 = vsub.f32 %v87, %v10525
    %v10527 = vand.u32 %v10526, 4294901760
    %10528 = vmatpush1.msra.mxu0 %v10527
    %10529 = vmatprep.subr.mxu0 0.0
    %v10530 = vand.u32 %v88, 4294901760
    %v10531 = vsub.f32 %v88, %v10530
    %v10532 = vand.u32 %v10531, 4294901760
    %10533 = vmatpush1.msra.mxu0 %v10532
    %10534 = vmatprep.subr.mxu0 0.0
    %v10535 = vand.u32 %v89, 4294901760
    %v10536 = vsub.f32 %v89, %v10535
    %v10537 = vand.u32 %v10536, 4294901760
    %10538 = vmatpush1.msra.mxu0 %v10537
    %10539 = vmatprep.subr.mxu0 0.0
    %10540 = vmatpush1.msra.mxu0 0.0
    %10541 = vmatprep.subr.mxu0 0.0
    %10542 = vmatpush1.msra.mxu0 0.0
    %10543 = vmatprep.subr.mxu0 0.0
    %10544 = vmatpush1.msra.mxu0 0.0
    %10545 = vmatprep.subr.mxu0 0.0
    %10546 = vmatpush1.msra.mxu0 0.0
    %10547 = vmatprep.subr.mxu0 0.0
    %10548 = vmatpush1.msra.mxu0 0.0
    %10549 = vmatprep.subr.mxu0 0.0
    %10550 = vmatpush1.msra.mxu0 0.0
    %10551 = vmatprep.subr.mxu0 0.0
    %10552 = vmatpush1.msra.mxu0 0.0
    %10553 = vmatprep.subr.mxu0 0.0
    %10554 = vmatpush1.msra.mxu0 0.0
    %10555 = vmatprep.subr.mxu0 0.0
    %10556 = vmatpush1.msra.mxu0 0.0
    %10557 = vmatprep.subr.mxu0 0.0
    %10558 = vmatpush1.msra.mxu0 0.0
    %10559 = vmatprep.subr.mxu0 0.0
    %10560 = vmatpush1.msra.mxu0 0.0
    %10561 = vmatprep.subr.mxu0 0.0
    %10562 = vmatpush1.msra.mxu0 0.0
    %10563 = vmatprep.subr.mxu0 0.0
    %10564 = vmatpush1.msra.mxu0 0.0
    %10565 = vmatprep.subr.mxu0 0.0
    %10566 = vmatpush1.msra.mxu0 0.0
    %10567 = vmatprep.subr.mxu0 0.0
    %10568 = vmatpush1.msra.mxu0 0.0
    %10569 = vmatprep.subr.mxu0 0.0
    %10570 = vmatpush1.msra.mxu0 0.0
    %10571 = vmatprep.mubr.f32.mxu0 0.0
    %v10572 = vand.u32 %v10023, 4294901760
    %10573 = vmatmul.mubr.f32.gmra.mrb[0].mxu0 %v10572
    %v10574 = vpop.f32.mrb[0].mxu0
    %v10575 = vadd.f32 %v10456, %v10574
    %v10576 = vpop.f32.mrb[0].mxu0
    %10577 = vdwg.mxu0
    %10578 = vmatprep.subr.mxu0 0.0
    %v10579 = vand.u32 %v74, 4294901760
    %10580 = vmatpush1.msra.mxu0 %v10579
    %10581 = vmatprep.subr.mxu0 0.0
    %v10582 = vand.u32 %v75, 4294901760
    %10583 = vmatpush1.msra.mxu0 %v10582
    %10584 = vmatprep.subr.mxu0 0.0
    %v10585 = vand.u32 %v76, 4294901760
    %10586 = vmatpush1.msra.mxu0 %v10585
    %10587 = vmatprep.subr.mxu0 0.0
    %v10588 = vand.u32 %v77, 4294901760
    %10589 = vmatpush1.msra.mxu0 %v10588
    %10590 = vmatprep.subr.mxu0 0.0
    %v10591 = vand.u32 %v78, 4294901760
    %10592 = vmatpush1.msra.mxu0 %v10591
    %10593 = vmatprep.subr.mxu0 0.0
    %v10594 = vand.u32 %v79, 4294901760
    %10595 = vmatpush1.msra.mxu0 %v10594
    %10596 = vmatprep.subr.mxu0 0.0
    %v10597 = vand.u32 %v80, 4294901760
    %10598 = vmatpush1.msra.mxu0 %v10597
    %10599 = vmatprep.subr.mxu0 0.0
    %v10600 = vand.u32 %v81, 4294901760
    %10601 = vmatpush1.msra.mxu0 %v10600
    %10602 = vmatprep.subr.mxu0 0.0
    %v10603 = vand.u32 %v82, 4294901760
    %10604 = vmatpush1.msra.mxu0 %v10603
    %10605 = vmatprep.subr.mxu0 0.0
    %v10606 = vand.u32 %v83, 4294901760
    %10607 = vmatpush1.msra.mxu0 %v10606
    %10608 = vmatprep.subr.mxu0 0.0
    %v10609 = vand.u32 %v84, 4294901760
    %10610 = vmatpush1.msra.mxu0 %v10609
    %10611 = vmatprep.subr.mxu0 0.0
    %v10612 = vand.u32 %v85, 4294901760
    %10613 = vmatpush1.msra.mxu0 %v10612
    %10614 = vmatprep.subr.mxu0 0.0
    %v10615 = vand.u32 %v86, 4294901760
    %10616 = vmatpush1.msra.mxu0 %v10615
    %10617 = vmatprep.subr.mxu0 0.0
    %v10618 = vand.u32 %v87, 4294901760
    %10619 = vmatpush1.msra.mxu0 %v10618
    %10620 = vmatprep.subr.mxu0 0.0
    %v10621 = vand.u32 %v88, 4294901760
    %10622 = vmatpush1.msra.mxu0 %v10621
    %10623 = vmatprep.subr.mxu0 0.0
    %v10624 = vand.u32 %v89, 4294901760
    %10625 = vmatpush1.msra.mxu0 %v10624
    %10626 = vmatprep.subr.mxu0 0.0
    %10627 = vmatpush1.msra.mxu0 0.0
    %10628 = vmatprep.subr.mxu0 0.0
    %10629 = vmatpush1.msra.mxu0 0.0
    %10630 = vmatprep.subr.mxu0 0.0
    %10631 = vmatpush1.msra.mxu0 0.0
    %10632 = vmatprep.subr.mxu0 0.0
    %10633 = vmatpush1.msra.mxu0 0.0
    %10634 = vmatprep.subr.mxu0 0.0
    %10635 = vmatpush1.msra.mxu0 0.0
    %10636 = vmatprep.subr.mxu0 0.0
    %10637 = vmatpush1.msra.mxu0 0.0
    %10638 = vmatprep.subr.mxu0 0.0
    %10639 = vmatpush1.msra.mxu0 0.0
    %10640 = vmatprep.subr.mxu0 0.0
    %10641 = vmatpush1.msra.mxu0 0.0
    %10642 = vmatprep.subr.mxu0 0.0
    %10643 = vmatpush1.msra.mxu0 0.0
    %10644 = vmatprep.subr.mxu0 0.0
    %10645 = vmatpush1.msra.mxu0 0.0
    %10646 = vmatprep.subr.mxu0 0.0
    %10647 = vmatpush1.msra.mxu0 0.0
    %10648 = vmatprep.subr.mxu0 0.0
    %10649 = vmatpush1.msra.mxu0 0.0
    %10650 = vmatprep.subr.mxu0 0.0
    %10651 = vmatpush1.msra.mxu0 0.0
    %10652 = vmatprep.subr.mxu0 0.0
    %10653 = vmatpush1.msra.mxu0 0.0
    %10654 = vmatprep.subr.mxu0 0.0
    %10655 = vmatpush1.msra.mxu0 0.0
    %10656 = vmatprep.subr.mxu0 0.0
    %10657 = vmatpush1.msra.mxu0 0.0
    %10658 = vmatprep.mubr.f32.mxu0 0.0
    %v10659 = vand.u32 %v10023, 4294901760
    %10660 = vmatmul.mubr.f32.gmra.mrb[0].mxu0 %v10659
    %v10661 = vpop.f32.mrb[0].mxu0
    %v10662 = vadd.f32 %v10575, %v10661
    %v10663 = vpop.f32.mrb[0].mxu0
    %10664 = vdwg.mxu0
    %s10665 = scalar_lea.vmem %s5, 48
    %10666 = vst [vmem:[%s10665] sm:$0xff] %v10662
    %s10667 = scalar_lea.vmem %s0, 56
    %v10668 = vld [vmem:[%s10667] sm:$0xff]
    %10669 = vmatprep.subr.mxu0 0.0
    %v10670 = vand.u32 %v42, 4294901760
    %10671 = vmatpush1.msra.mxu0 %v10670
    %10672 = vmatprep.subr.mxu0 0.0
    %v10673 = vand.u32 %v43, 4294901760
    %10674 = vmatpush1.msra.mxu0 %v10673
    %10675 = vmatprep.subr.mxu0 0.0
    %v10676 = vand.u32 %v44, 4294901760
    %10677 = vmatpush1.msra.mxu0 %v10676
    %10678 = vmatprep.subr.mxu0 0.0
    %v10679 = vand.u32 %v45, 4294901760
    %10680 = vmatpush1.msra.mxu0 %v10679
    %10681 = vmatprep.subr.mxu0 0.0
    %v10682 = vand.u32 %v46, 4294901760
    %10683 = vmatpush1.msra.mxu0 %v10682
    %10684 = vmatprep.subr.mxu0 0.0
    %v10685 = vand.u32 %v47, 4294901760
    %10686 = vmatpush1.msra.mxu0 %v10685
    %10687 = vmatprep.subr.mxu0 0.0
    %v10688 = vand.u32 %v48, 4294901760
    %10689 = vmatpush1.msra.mxu0 %v10688
    %10690 = vmatprep.subr.mxu0 0.0
    %v10691 = vand.u32 %v49, 4294901760
    %10692 = vmatpush1.msra.mxu0 %v10691
    %10693 = vmatprep.subr.mxu0 0.0
    %v10694 = vand.u32 %v50, 4294901760
    %10695 = vmatpush1.msra.mxu0 %v10694
    %10696 = vmatprep.subr.mxu0 0.0
    %v10697 = vand.u32 %v51, 4294901760
    %10698 = vmatpush1.msra.mxu0 %v10697
    %10699 = vmatprep.subr.mxu0 0.0
    %v10700 = vand.u32 %v52, 4294901760
    %10701 = vmatpush1.msra.mxu0 %v10700
    %10702 = vmatprep.subr.mxu0 0.0
    %v10703 = vand.u32 %v53, 4294901760
    %10704 = vmatpush1.msra.mxu0 %v10703
    %10705 = vmatprep.subr.mxu0 0.0
    %v10706 = vand.u32 %v54, 4294901760
    %10707 = vmatpush1.msra.mxu0 %v10706
    %10708 = vmatprep.subr.mxu0 0.0
    %v10709 = vand.u32 %v55, 4294901760
    %10710 = vmatpush1.msra.mxu0 %v10709
    %10711 = vmatprep.subr.mxu0 0.0
    %v10712 = vand.u32 %v56, 4294901760
    %10713 = vmatpush1.msra.mxu0 %v10712
    %10714 = vmatprep.subr.mxu0 0.0
    %v10715 = vand.u32 %v57, 4294901760
    %10716 = vmatpush1.msra.mxu0 %v10715
    %10717 = vmatprep.subr.mxu0 0.0
    %v10718 = vand.u32 %v58, 4294901760
    %10719 = vmatpush1.msra.mxu0 %v10718
    %10720 = vmatprep.subr.mxu0 0.0
    %v10721 = vand.u32 %v59, 4294901760
    %10722 = vmatpush1.msra.mxu0 %v10721
    %10723 = vmatprep.subr.mxu0 0.0
    %v10724 = vand.u32 %v60, 4294901760
    %10725 = vmatpush1.msra.mxu0 %v10724
    %10726 = vmatprep.subr.mxu0 0.0
    %v10727 = vand.u32 %v61, 4294901760
    %10728 = vmatpush1.msra.mxu0 %v10727
    %10729 = vmatprep.subr.mxu0 0.0
    %v10730 = vand.u32 %v62, 4294901760
    %10731 = vmatpush1.msra.mxu0 %v10730
    %10732 = vmatprep.subr.mxu0 0.0
    %v10733 = vand.u32 %v63, 4294901760
    %10734 = vmatpush1.msra.mxu0 %v10733
    %10735 = vmatprep.subr.mxu0 0.0
    %v10736 = vand.u32 %v64, 4294901760
    %10737 = vmatpush1.msra.mxu0 %v10736
    %10738 = vmatprep.subr.mxu0 0.0
    %v10739 = vand.u32 %v65, 4294901760
    %10740 = vmatpush1.msra.mxu0 %v10739
    %10741 = vmatprep.subr.mxu0 0.0
    %v10742 = vand.u32 %v66, 4294901760
    %10743 = vmatpush1.msra.mxu0 %v10742
    %10744 = vmatprep.subr.mxu0 0.0
    %v10745 = vand.u32 %v67, 4294901760
    %10746 = vmatpush1.msra.mxu0 %v10745
    %10747 = vmatprep.subr.mxu0 0.0
    %v10748 = vand.u32 %v68, 4294901760
    %10749 = vmatpush1.msra.mxu0 %v10748
    %10750 = vmatprep.subr.mxu0 0.0
    %v10751 = vand.u32 %v69, 4294901760
    %10752 = vmatpush1.msra.mxu0 %v10751
    %10753 = vmatprep.subr.mxu0 0.0
    %v10754 = vand.u32 %v70, 4294901760
    %10755 = vmatpush1.msra.mxu0 %v10754
    %10756 = vmatprep.subr.mxu0 0.0
    %v10757 = vand.u32 %v71, 4294901760
    %10758 = vmatpush1.msra.mxu0 %v10757
    %10759 = vmatprep.subr.mxu0 0.0
    %v10760 = vand.u32 %v72, 4294901760
    %10761 = vmatpush1.msra.mxu0 %v10760
    %10762 = vmatprep.subr.mxu0 0.0
    %v10763 = vand.u32 %v73, 4294901760
    %10764 = vmatpush1.msra.mxu0 %v10763
    %v10765 = vand.u32 %v10668, 4294901760
    %v10766 = vsub.f32 %v10668, %v10765
    %v10767 = vand.u32 %v10766, 4294901760
    %v10768 = vsub.f32 %v10766, %v10767
    %v10769 = vand.u32 %v10768, 4294901760
    %10770 = vmatprep.mubr.f32.mxu0 %v10769
    %v10771 = vand.u32 %v10023, 4294901760
    %v10772 = vsub.f32 %v10023, %v10771
    %v10773 = vand.u32 %v10772, 4294901760
    %v10774 = vsub.f32 %v10772, %v10773
    %v10775 = vand.u32 %v10774, 4294901760
    %10776 = vmatmul.mubr.f32.gmra.mrb[0].mxu0 %v10775
    %v10777 = vpop.f32.mrb[0].mxu0
    %v10778 = vadd.f32 0.0, %v10777
    %v10779 = vpop.f32.mrb[0].mxu0
    %10780 = vdwg.mxu0
    %10781 = vmatprep.subr.mxu0 0.0
    %v10782 = vand.u32 %v42, 4294901760
    %v10783 = vsub.f32 %v42, %v10782
    %v10784 = vand.u32 %v10783, 4294901760
    %v10785 = vsub.f32 %v10783, %v10784
    %v10786 = vand.u32 %v10785, 4294901760
    %10787 = vmatpush1.msra.mxu0 %v10786
    %10788 = vmatprep.subr.mxu0 0.0
    %v10789 = vand.u32 %v43, 4294901760
    %v10790 = vsub.f32 %v43, %v10789
    %v10791 = vand.u32 %v10790, 4294901760
    %v10792 = vsub.f32 %v10790, %v10791
    %v10793 = vand.u32 %v10792, 4294901760
    %10794 = vmatpush1.msra.mxu0 %v10793
    %10795 = vmatprep.subr.mxu0 0.0
    %v10796 = vand.u32 %v44, 4294901760
    %v10797 = vsub.f32 %v44, %v10796
    %v10798 = vand.u32 %v10797, 4294901760
    %v10799 = vsub.f32 %v10797, %v10798
    %v10800 = vand.u32 %v10799, 4294901760
    %10801 = vmatpush1.msra.mxu0 %v10800
    %10802 = vmatprep.subr.mxu0 0.0
    %v10803 = vand.u32 %v45, 4294901760
    %v10804 = vsub.f32 %v45, %v10803
    %v10805 = vand.u32 %v10804, 4294901760
    %v10806 = vsub.f32 %v10804, %v10805
    %v10807 = vand.u32 %v10806, 4294901760
    %10808 = vmatpush1.msra.mxu0 %v10807
    %10809 = vmatprep.subr.mxu0 0.0
    %v10810 = vand.u32 %v46, 4294901760
    %v10811 = vsub.f32 %v46, %v10810
    %v10812 = vand.u32 %v10811, 4294901760
    %v10813 = vsub.f32 %v10811, %v10812
    %v10814 = vand.u32 %v10813, 4294901760
    %10815 = vmatpush1.msra.mxu0 %v10814
    %10816 = vmatprep.subr.mxu0 0.0
    %v10817 = vand.u32 %v47, 4294901760
    %v10818 = vsub.f32 %v47, %v10817
    %v10819 = vand.u32 %v10818, 4294901760
    %v10820 = vsub.f32 %v10818, %v10819
    %v10821 = vand.u32 %v10820, 4294901760
    %10822 = vmatpush1.msra.mxu0 %v10821
    %10823 = vmatprep.subr.mxu0 0.0
    %v10824 = vand.u32 %v48, 4294901760
    %v10825 = vsub.f32 %v48, %v10824
    %v10826 = vand.u32 %v10825, 4294901760
    %v10827 = vsub.f32 %v10825, %v10826
    %v10828 = vand.u32 %v10827, 4294901760
    %10829 = vmatpush1.msra.mxu0 %v10828
    %10830 = vmatprep.subr.mxu0 0.0
    %v10831 = vand.u32 %v49, 4294901760
    %v10832 = vsub.f32 %v49, %v10831
    %v10833 = vand.u32 %v10832, 4294901760
    %v10834 = vsub.f32 %v10832, %v10833
    %v10835 = vand.u32 %v10834, 4294901760
    %10836 = vmatpush1.msra.mxu0 %v10835
    %10837 = vmatprep.subr.mxu0 0.0
    %v10838 = vand.u32 %v50, 4294901760
    %v10839 = vsub.f32 %v50, %v10838
    %v10840 = vand.u32 %v10839, 4294901760
    %v10841 = vsub.f32 %v10839, %v10840
    %v10842 = vand.u32 %v10841, 4294901760
    %10843 = vmatpush1.msra.mxu0 %v10842
    %10844 = vmatprep.subr.mxu0 0.0
    %v10845 = vand.u32 %v51, 4294901760
    %v10846 = vsub.f32 %v51, %v10845
    %v10847 = vand.u32 %v10846, 4294901760
    %v10848 = vsub.f32 %v10846, %v10847
    %v10849 = vand.u32 %v10848, 4294901760
    %10850 = vmatpush1.msra.mxu0 %v10849
    %10851 = vmatprep.subr.mxu0 0.0
    %v10852 = vand.u32 %v52, 4294901760
    %v10853 = vsub.f32 %v52, %v10852
    %v10854 = vand.u32 %v10853, 4294901760
    %v10855 = vsub.f32 %v10853, %v10854
    %v10856 = vand.u32 %v10855, 4294901760
    %10857 = vmatpush1.msra.mxu0 %v10856
    %10858 = vmatprep.subr.mxu0 0.0
    %v10859 = vand.u32 %v53, 4294901760
    %v10860 = vsub.f32 %v53, %v10859
    %v10861 = vand.u32 %v10860, 4294901760
    %v10862 = vsub.f32 %v10860, %v10861
    %v10863 = vand.u32 %v10862, 4294901760
    %10864 = vmatpush1.msra.mxu0 %v10863
    %10865 = vmatprep.subr.mxu0 0.0
    %v10866 = vand.u32 %v54, 4294901760
    %v10867 = vsub.f32 %v54, %v10866
    %v10868 = vand.u32 %v10867, 4294901760
    %v10869 = vsub.f32 %v10867, %v10868
    %v10870 = vand.u32 %v10869, 4294901760
    %10871 = vmatpush1.msra.mxu0 %v10870
    %10872 = vmatprep.subr.mxu0 0.0
    %v10873 = vand.u32 %v55, 4294901760
    %v10874 = vsub.f32 %v55, %v10873
    %v10875 = vand.u32 %v10874, 4294901760
    %v10876 = vsub.f32 %v10874, %v10875
    %v10877 = vand.u32 %v10876, 4294901760
    %10878 = vmatpush1.msra.mxu0 %v10877
    %10879 = vmatprep.subr.mxu0 0.0
    %v10880 = vand.u32 %v56, 4294901760
    %v10881 = vsub.f32 %v56, %v10880
    %v10882 = vand.u32 %v10881, 4294901760
    %v10883 = vsub.f32 %v10881, %v10882
    %v10884 = vand.u32 %v10883, 4294901760
    %10885 = vmatpush1.msra.mxu0 %v10884
    %10886 = vmatprep.subr.mxu0 0.0
    %v10887 = vand.u32 %v57, 4294901760
    %v10888 = vsub.f32 %v57, %v10887
    %v10889 = vand.u32 %v10888, 4294901760
    %v10890 = vsub.f32 %v10888, %v10889
    %v10891 = vand.u32 %v10890, 4294901760
    %10892 = vmatpush1.msra.mxu0 %v10891
    %10893 = vmatprep.subr.mxu0 0.0
    %v10894 = vand.u32 %v58, 4294901760
    %v10895 = vsub.f32 %v58, %v10894
    %v10896 = vand.u32 %v10895, 4294901760
    %v10897 = vsub.f32 %v10895, %v10896
    %v10898 = vand.u32 %v10897, 4294901760
    %10899 = vmatpush1.msra.mxu0 %v10898
    %10900 = vmatprep.subr.mxu0 0.0
    %v10901 = vand.u32 %v59, 4294901760
    %v10902 = vsub.f32 %v59, %v10901
    %v10903 = vand.u32 %v10902, 4294901760
    %v10904 = vsub.f32 %v10902, %v10903
    %v10905 = vand.u32 %v10904, 4294901760
    %10906 = vmatpush1.msra.mxu0 %v10905
    %10907 = vmatprep.subr.mxu0 0.0
    %v10908 = vand.u32 %v60, 4294901760
    %v10909 = vsub.f32 %v60, %v10908
    %v10910 = vand.u32 %v10909, 4294901760
    %v10911 = vsub.f32 %v10909, %v10910
    %v10912 = vand.u32 %v10911, 4294901760
    %10913 = vmatpush1.msra.mxu0 %v10912
    %10914 = vmatprep.subr.mxu0 0.0
    %v10915 = vand.u32 %v61, 4294901760
    %v10916 = vsub.f32 %v61, %v10915
    %v10917 = vand.u32 %v10916, 4294901760
    %v10918 = vsub.f32 %v10916, %v10917
    %v10919 = vand.u32 %v10918, 4294901760
    %10920 = vmatpush1.msra.mxu0 %v10919
    %10921 = vmatprep.subr.mxu0 0.0
    %v10922 = vand.u32 %v62, 4294901760
    %v10923 = vsub.f32 %v62, %v10922
    %v10924 = vand.u32 %v10923, 4294901760
    %v10925 = vsub.f32 %v10923, %v10924
    %v10926 = vand.u32 %v10925, 4294901760
    %10927 = vmatpush1.msra.mxu0 %v10926
    %10928 = vmatprep.subr.mxu0 0.0
    %v10929 = vand.u32 %v63, 4294901760
    %v10930 = vsub.f32 %v63, %v10929
    %v10931 = vand.u32 %v10930, 4294901760
    %v10932 = vsub.f32 %v10930, %v10931
    %v10933 = vand.u32 %v10932, 4294901760
    %10934 = vmatpush1.msra.mxu0 %v10933
    %10935 = vmatprep.subr.mxu0 0.0
    %v10936 = vand.u32 %v64, 4294901760
    %v10937 = vsub.f32 %v64, %v10936
    %v10938 = vand.u32 %v10937, 4294901760
    %v10939 = vsub.f32 %v10937, %v10938
    %v10940 = vand.u32 %v10939, 4294901760
    %10941 = vmatpush1.msra.mxu0 %v10940
    %10942 = vmatprep.subr.mxu0 0.0
    %v10943 = vand.u32 %v65, 4294901760
    %v10944 = vsub.f32 %v65, %v10943
    %v10945 = vand.u32 %v10944, 4294901760
    %v10946 = vsub.f32 %v10944, %v10945
    %v10947 = vand.u32 %v10946, 4294901760
    %10948 = vmatpush1.msra.mxu0 %v10947
    %10949 = vmatprep.subr.mxu0 0.0
    %v10950 = vand.u32 %v66, 4294901760
    %v10951 = vsub.f32 %v66, %v10950
    %v10952 = vand.u32 %v10951, 4294901760
    %v10953 = vsub.f32 %v10951, %v10952
    %v10954 = vand.u32 %v10953, 4294901760
    %10955 = vmatpush1.msra.mxu0 %v10954
    %10956 = vmatprep.subr.mxu0 0.0
    %v10957 = vand.u32 %v67, 4294901760
    %v10958 = vsub.f32 %v67, %v10957
    %v10959 = vand.u32 %v10958, 4294901760
    %v10960 = vsub.f32 %v10958, %v10959
    %v10961 = vand.u32 %v10960, 4294901760
    %10962 = vmatpush1.msra.mxu0 %v10961
    %10963 = vmatprep.subr.mxu0 0.0
    %v10964 = vand.u32 %v68, 4294901760
    %v10965 = vsub.f32 %v68, %v10964
    %v10966 = vand.u32 %v10965, 4294901760
    %v10967 = vsub.f32 %v10965, %v10966
    %v10968 = vand.u32 %v10967, 4294901760
    %10969 = vmatpush1.msra.mxu0 %v10968
    %10970 = vmatprep.subr.mxu0 0.0
    %v10971 = vand.u32 %v69, 4294901760
    %v10972 = vsub.f32 %v69, %v10971
    %v10973 = vand.u32 %v10972, 4294901760
    %v10974 = vsub.f32 %v10972, %v10973
    %v10975 = vand.u32 %v10974, 4294901760
    %10976 = vmatpush1.msra.mxu0 %v10975
    %10977 = vmatprep.subr.mxu0 0.0
    %v10978 = vand.u32 %v70, 4294901760
    %v10979 = vsub.f32 %v70, %v10978
    %v10980 = vand.u32 %v10979, 4294901760
    %v10981 = vsub.f32 %v10979, %v10980
    %v10982 = vand.u32 %v10981, 4294901760
    %10983 = vmatpush1.msra.mxu0 %v10982
    %10984 = vmatprep.subr.mxu0 0.0
    %v10985 = vand.u32 %v71, 4294901760
    %v10986 = vsub.f32 %v71, %v10985
    %v10987 = vand.u32 %v10986, 4294901760
    %v10988 = vsub.f32 %v10986, %v10987
    %v10989 = vand.u32 %v10988, 4294901760
    %10990 = vmatpush1.msra.mxu0 %v10989
    %10991 = vmatprep.subr.mxu0 0.0
    %v10992 = vand.u32 %v72, 4294901760
    %v10993 = vsub.f32 %v72, %v10992
    %v10994 = vand.u32 %v10993, 4294901760
    %v10995 = vsub.f32 %v10993, %v10994
    %v10996 = vand.u32 %v10995, 4294901760
    %10997 = vmatpush1.msra.mxu0 %v10996
    %10998 = vmatprep.subr.mxu0 0.0
    %v10999 = vand.u32 %v73, 4294901760
    %v11000 = vsub.f32 %v73, %v10999
    %v11001 = vand.u32 %v11000, 4294901760
    %v11002 = vsub.f32 %v11000, %v11001
    %v11003 = vand.u32 %v11002, 4294901760
    %11004 = vmatpush1.msra.mxu0 %v11003
    %v11005 = vand.u32 %v10668, 4294901760
    %11006 = vmatprep.mubr.f32.mxu0 %v11005
    %v11007 = vand.u32 %v10023, 4294901760
    %11008 = vmatmul.mubr.f32.gmra.mrb[0].mxu0 %v11007
    %v11009 = vpop.f32.mrb[0].mxu0
    %v11010 = vadd.f32 %v10778, %v11009
    %v11011 = vpop.f32.mrb[0].mxu0
    %11012 = vdwg.mxu0
    %11013 = vmatprep.subr.mxu0 0.0
    %v11014 = vand.u32 %v42, 4294901760
    %v11015 = vsub.f32 %v42, %v11014
    %11016 = vmatpush1.msra.mxu0 %v11015
    %11017 = vmatprep.subr.mxu0 0.0
    %v11018 = vand.u32 %v43, 4294901760
    %v11019 = vsub.f32 %v43, %v11018
    %11020 = vmatpush1.msra.mxu0 %v11019
    %11021 = vmatprep.subr.mxu0 0.0
    %v11022 = vand.u32 %v44, 4294901760
    %v11023 = vsub.f32 %v44, %v11022
    %11024 = vmatpush1.msra.mxu0 %v11023
    %11025 = vmatprep.subr.mxu0 0.0
    %v11026 = vand.u32 %v45, 4294901760
    %v11027 = vsub.f32 %v45, %v11026
    %11028 = vmatpush1.msra.mxu0 %v11027
    %11029 = vmatprep.subr.mxu0 0.0
    %v11030 = vand.u32 %v46, 4294901760
    %v11031 = vsub.f32 %v46, %v11030
    %11032 = vmatpush1.msra.mxu0 %v11031
    %11033 = vmatprep.subr.mxu0 0.0
    %v11034 = vand.u32 %v47, 4294901760
    %v11035 = vsub.f32 %v47, %v11034
    %11036 = vmatpush1.msra.mxu0 %v11035
    %11037 = vmatprep.subr.mxu0 0.0
    %v11038 = vand.u32 %v48, 4294901760
    %v11039 = vsub.f32 %v48, %v11038
    %11040 = vmatpush1.msra.mxu0 %v11039
    %11041 = vmatprep.subr.mxu0 0.0
    %v11042 = vand.u32 %v49, 4294901760
    %v11043 = vsub.f32 %v49, %v11042
    %11044 = vmatpush1.msra.mxu0 %v11043
    %11045 = vmatprep.subr.mxu0 0.0
    %v11046 = vand.u32 %v50, 4294901760
    %v11047 = vsub.f32 %v50, %v11046
    %11048 = vmatpush1.msra.mxu0 %v11047
    %11049 = vmatprep.subr.mxu0 0.0
    %v11050 = vand.u32 %v51, 4294901760
    %v11051 = vsub.f32 %v51, %v11050
    %11052 = vmatpush1.msra.mxu0 %v11051
    %11053 = vmatprep.subr.mxu0 0.0
    %v11054 = vand.u32 %v52, 4294901760
    %v11055 = vsub.f32 %v52, %v11054
    %11056 = vmatpush1.msra.mxu0 %v11055
    %11057 = vmatprep.subr.mxu0 0.0
    %v11058 = vand.u32 %v53, 4294901760
    %v11059 = vsub.f32 %v53, %v11058
    %11060 = vmatpush1.msra.mxu0 %v11059
    %11061 = vmatprep.subr.mxu0 0.0
    %v11062 = vand.u32 %v54, 4294901760
    %v11063 = vsub.f32 %v54, %v11062
    %11064 = vmatpush1.msra.mxu0 %v11063
    %11065 = vmatprep.subr.mxu0 0.0
    %v11066 = vand.u32 %v55, 4294901760
    %v11067 = vsub.f32 %v55, %v11066
    %11068 = vmatpush1.msra.mxu0 %v11067
    %11069 = vmatprep.subr.mxu0 0.0
    %v11070 = vand.u32 %v56, 4294901760
    %v11071 = vsub.f32 %v56, %v11070
    %11072 = vmatpush1.msra.mxu0 %v11071
    %11073 = vmatprep.subr.mxu0 0.0
    %v11074 = vand.u32 %v57, 4294901760
    %v11075 = vsub.f32 %v57, %v11074
    %11076 = vmatpush1.msra.mxu0 %v11075
    %11077 = vmatprep.subr.mxu0 0.0
    %v11078 = vand.u32 %v58, 4294901760
    %v11079 = vsub.f32 %v58, %v11078
    %11080 = vmatpush1.msra.mxu0 %v11079
    %11081 = vmatprep.subr.mxu0 0.0
    %v11082 = vand.u32 %v59, 4294901760
    %v11083 = vsub.f32 %v59, %v11082
    %11084 = vmatpush1.msra.mxu0 %v11083
    %11085 = vmatprep.subr.mxu0 0.0
    %v11086 = vand.u32 %v60, 4294901760
    %v11087 = vsub.f32 %v60, %v11086
    %11088 = vmatpush1.msra.mxu0 %v11087
    %11089 = vmatprep.subr.mxu0 0.0
    %v11090 = vand.u32 %v61, 4294901760
    %v11091 = vsub.f32 %v61, %v11090
    %11092 = vmatpush1.msra.mxu0 %v11091
    %11093 = vmatprep.subr.mxu0 0.0
    %v11094 = vand.u32 %v62, 4294901760
    %v11095 = vsub.f32 %v62, %v11094
    %11096 = vmatpush1.msra.mxu0 %v11095
    %11097 = vmatprep.subr.mxu0 0.0
    %v11098 = vand.u32 %v63, 4294901760
    %v11099 = vsub.f32 %v63, %v11098
    %11100 = vmatpush1.msra.mxu0 %v11099
    %11101 = vmatprep.subr.mxu0 0.0
    %v11102 = vand.u32 %v64, 4294901760
    %v11103 = vsub.f32 %v64, %v11102
    %11104 = vmatpush1.msra.mxu0 %v11103
    %11105 = vmatprep.subr.mxu0 0.0
    %v11106 = vand.u32 %v65, 4294901760
    %v11107 = vsub.f32 %v65, %v11106
    %11108 = vmatpush1.msra.mxu0 %v11107
    %11109 = vmatprep.subr.mxu0 0.0
    %v11110 = vand.u32 %v66, 4294901760
    %v11111 = vsub.f32 %v66, %v11110
    %11112 = vmatpush1.msra.mxu0 %v11111
    %11113 = vmatprep.subr.mxu0 0.0
    %v11114 = vand.u32 %v67, 4294901760
    %v11115 = vsub.f32 %v67, %v11114
    %11116 = vmatpush1.msra.mxu0 %v11115
    %11117 = vmatprep.subr.mxu0 0.0
    %v11118 = vand.u32 %v68, 4294901760
    %v11119 = vsub.f32 %v68, %v11118
    %11120 = vmatpush1.msra.mxu0 %v11119
    %11121 = vmatprep.subr.mxu0 0.0
    %v11122 = vand.u32 %v69, 4294901760
    %v11123 = vsub.f32 %v69, %v11122
    %11124 = vmatpush1.msra.mxu0 %v11123
    %11125 = vmatprep.subr.mxu0 0.0
    %v11126 = vand.u32 %v70, 4294901760
    %v11127 = vsub.f32 %v70, %v11126
    %11128 = vmatpush1.msra.mxu0 %v11127
    %11129 = vmatprep.subr.mxu0 0.0
    %v11130 = vand.u32 %v71, 4294901760
    %v11131 = vsub.f32 %v71, %v11130
    %11132 = vmatpush1.msra.mxu0 %v11131
    %11133 = vmatprep.subr.mxu0 0.0
    %v11134 = vand.u32 %v72, 4294901760
    %v11135 = vsub.f32 %v72, %v11134
    %11136 = vmatpush1.msra.mxu0 %v11135
    %11137 = vmatprep.subr.mxu0 0.0
    %v11138 = vand.u32 %v73, 4294901760
    %v11139 = vsub.f32 %v73, %v11138
    %11140 = vmatpush1.msra.mxu0 %v11139
    %v11141 = vand.u32 %v10668, 4294901760
    %v11142 = vsub.f32 %v10668, %v11141
    %11143 = vmatprep.mubr.f32.mxu0 %v11142
    %v11144 = vand.u32 %v10023, 4294901760
    %v11145 = vsub.f32 %v10023, %v11144
    %11146 = vmatmul.mubr.f32.gmra.mrb[0].mxu0 %v11145
    %v11147 = vpop.f32.mrb[0].mxu0
    %v11148 = vadd.f32 %v11010, %v11147
    %v11149 = vpop.f32.mrb[0].mxu0
    %11150 = vdwg.mxu0
    %11151 = vmatprep.subr.mxu0 0.0
    %v11152 = vand.u32 %v42, 4294901760
    %11153 = vmatpush1.msra.mxu0 %v11152
    %11154 = vmatprep.subr.mxu0 0.0
    %v11155 = vand.u32 %v43, 4294901760
    %11156 = vmatpush1.msra.mxu0 %v11155
    %11157 = vmatprep.subr.mxu0 0.0
    %v11158 = vand.u32 %v44, 4294901760
    %11159 = vmatpush1.msra.mxu0 %v11158
    %11160 = vmatprep.subr.mxu0 0.0
    %v11161 = vand.u32 %v45, 4294901760
    %11162 = vmatpush1.msra.mxu0 %v11161
    %11163 = vmatprep.subr.mxu0 0.0
    %v11164 = vand.u32 %v46, 4294901760
    %11165 = vmatpush1.msra.mxu0 %v11164
    %11166 = vmatprep.subr.mxu0 0.0
    %v11167 = vand.u32 %v47, 4294901760
    %11168 = vmatpush1.msra.mxu0 %v11167
    %11169 = vmatprep.subr.mxu0 0.0
    %v11170 = vand.u32 %v48, 4294901760
    %11171 = vmatpush1.msra.mxu0 %v11170
    %11172 = vmatprep.subr.mxu0 0.0
    %v11173 = vand.u32 %v49, 4294901760
    %11174 = vmatpush1.msra.mxu0 %v11173
    %11175 = vmatprep.subr.mxu0 0.0
    %v11176 = vand.u32 %v50, 4294901760
    %11177 = vmatpush1.msra.mxu0 %v11176
    %11178 = vmatprep.subr.mxu0 0.0
    %v11179 = vand.u32 %v51, 4294901760
    %11180 = vmatpush1.msra.mxu0 %v11179
    %11181 = vmatprep.subr.mxu0 0.0
    %v11182 = vand.u32 %v52, 4294901760
    %11183 = vmatpush1.msra.mxu0 %v11182
    %11184 = vmatprep.subr.mxu0 0.0
    %v11185 = vand.u32 %v53, 4294901760
    %11186 = vmatpush1.msra.mxu0 %v11185
    %11187 = vmatprep.subr.mxu0 0.0
    %v11188 = vand.u32 %v54, 4294901760
    %11189 = vmatpush1.msra.mxu0 %v11188
    %11190 = vmatprep.subr.mxu0 0.0
    %v11191 = vand.u32 %v55, 4294901760
    %11192 = vmatpush1.msra.mxu0 %v11191
    %11193 = vmatprep.subr.mxu0 0.0
    %v11194 = vand.u32 %v56, 4294901760
    %11195 = vmatpush1.msra.mxu0 %v11194
    %11196 = vmatprep.subr.mxu0 0.0
    %v11197 = vand.u32 %v57, 4294901760
    %11198 = vmatpush1.msra.mxu0 %v11197
    %11199 = vmatprep.subr.mxu0 0.0
    %v11200 = vand.u32 %v58, 4294901760
    %11201 = vmatpush1.msra.mxu0 %v11200
    %11202 = vmatprep.subr.mxu0 0.0
    %v11203 = vand.u32 %v59, 4294901760
    %11204 = vmatpush1.msra.mxu0 %v11203
    %11205 = vmatprep.subr.mxu0 0.0
    %v11206 = vand.u32 %v60, 4294901760
    %11207 = vmatpush1.msra.mxu0 %v11206
    %11208 = vmatprep.subr.mxu0 0.0
    %v11209 = vand.u32 %v61, 4294901760
    %11210 = vmatpush1.msra.mxu0 %v11209
    %11211 = vmatprep.subr.mxu0 0.0
    %v11212 = vand.u32 %v62, 4294901760
    %11213 = vmatpush1.msra.mxu0 %v11212
    %11214 = vmatprep.subr.mxu0 0.0
    %v11215 = vand.u32 %v63, 4294901760
    %11216 = vmatpush1.msra.mxu0 %v11215
    %11217 = vmatprep.subr.mxu0 0.0
    %v11218 = vand.u32 %v64, 4294901760
    %11219 = vmatpush1.msra.mxu0 %v11218
    %11220 = vmatprep.subr.mxu0 0.0
    %v11221 = vand.u32 %v65, 4294901760
    %11222 = vmatpush1.msra.mxu0 %v11221
    %11223 = vmatprep.subr.mxu0 0.0
    %v11224 = vand.u32 %v66, 4294901760
    %11225 = vmatpush1.msra.mxu0 %v11224
    %11226 = vmatprep.subr.mxu0 0.0
    %v11227 = vand.u32 %v67, 4294901760
    %11228 = vmatpush1.msra.mxu0 %v11227
    %11229 = vmatprep.subr.mxu0 0.0
    %v11230 = vand.u32 %v68, 4294901760
    %11231 = vmatpush1.msra.mxu0 %v11230
    %11232 = vmatprep.subr.mxu0 0.0
    %v11233 = vand.u32 %v69, 4294901760
    %11234 = vmatpush1.msra.mxu0 %v11233
    %11235 = vmatprep.subr.mxu0 0.0
    %v11236 = vand.u32 %v70, 4294901760
    %11237 = vmatpush1.msra.mxu0 %v11236
    %11238 = vmatprep.subr.mxu0 0.0
    %v11239 = vand.u32 %v71, 4294901760
    %11240 = vmatpush1.msra.mxu0 %v11239
    %11241 = vmatprep.subr.mxu0 0.0
    %v11242 = vand.u32 %v72, 4294901760
    %11243 = vmatpush1.msra.mxu0 %v11242
    %11244 = vmatprep.subr.mxu0 0.0
    %v11245 = vand.u32 %v73, 4294901760
    %11246 = vmatpush1.msra.mxu0 %v11245
    %v11247 = vand.u32 %v10668, 4294901760
    %v11248 = vsub.f32 %v10668, %v11247
    %v11249 = vand.u32 %v11248, 4294901760
    %11250 = vmatprep.mubr.f32.mxu0 %v11249
    %v11251 = vand.u32 %v10023, 4294901760
    %v11252 = vsub.f32 %v10023, %v11251
    %v11253 = vand.u32 %v11252, 4294901760
    %11254 = vmatmul.mubr.f32.gmra.mrb[0].mxu0 %v11253
    %v11255 = vpop.f32.mrb[0].mxu0
    %v11256 = vadd.f32 %v11148, %v11255
    %v11257 = vpop.f32.mrb[0].mxu0
    %11258 = vdwg.mxu0
    %11259 = vmatprep.subr.mxu0 0.0
    %v11260 = vand.u32 %v42, 4294901760
    %v11261 = vsub.f32 %v42, %v11260
    %v11262 = vand.u32 %v11261, 4294901760
    %11263 = vmatpush1.msra.mxu0 %v11262
    %11264 = vmatprep.subr.mxu0 0.0
    %v11265 = vand.u32 %v43, 4294901760
    %v11266 = vsub.f32 %v43, %v11265
    %v11267 = vand.u32 %v11266, 4294901760
    %11268 = vmatpush1.msra.mxu0 %v11267
    %11269 = vmatprep.subr.mxu0 0.0
    %v11270 = vand.u32 %v44, 4294901760
    %v11271 = vsub.f32 %v44, %v11270
    %v11272 = vand.u32 %v11271, 4294901760
    %11273 = vmatpush1.msra.mxu0 %v11272
    %11274 = vmatprep.subr.mxu0 0.0
    %v11275 = vand.u32 %v45, 4294901760
    %v11276 = vsub.f32 %v45, %v11275
    %v11277 = vand.u32 %v11276, 4294901760
    %11278 = vmatpush1.msra.mxu0 %v11277
    %11279 = vmatprep.subr.mxu0 0.0
    %v11280 = vand.u32 %v46, 4294901760
    %v11281 = vsub.f32 %v46, %v11280
    %v11282 = vand.u32 %v11281, 4294901760
    %11283 = vmatpush1.msra.mxu0 %v11282
    %11284 = vmatprep.subr.mxu0 0.0
    %v11285 = vand.u32 %v47, 4294901760
    %v11286 = vsub.f32 %v47, %v11285
    %v11287 = vand.u32 %v11286, 4294901760
    %11288 = vmatpush1.msra.mxu0 %v11287
    %11289 = vmatprep.subr.mxu0 0.0
    %v11290 = vand.u32 %v48, 4294901760
    %v11291 = vsub.f32 %v48, %v11290
    %v11292 = vand.u32 %v11291, 4294901760
    %11293 = vmatpush1.msra.mxu0 %v11292
    %11294 = vmatprep.subr.mxu0 0.0
    %v11295 = vand.u32 %v49, 4294901760
    %v11296 = vsub.f32 %v49, %v11295
    %v11297 = vand.u32 %v11296, 4294901760
    %11298 = vmatpush1.msra.mxu0 %v11297
    %11299 = vmatprep.subr.mxu0 0.0
    %v11300 = vand.u32 %v50, 4294901760
    %v11301 = vsub.f32 %v50, %v11300
    %v11302 = vand.u32 %v11301, 4294901760
    %11303 = vmatpush1.msra.mxu0 %v11302
    %11304 = vmatprep.subr.mxu0 0.0
    %v11305 = vand.u32 %v51, 4294901760
    %v11306 = vsub.f32 %v51, %v11305
    %v11307 = vand.u32 %v11306, 4294901760
    %11308 = vmatpush1.msra.mxu0 %v11307
    %11309 = vmatprep.subr.mxu0 0.0
    %v11310 = vand.u32 %v52, 4294901760
    %v11311 = vsub.f32 %v52, %v11310
    %v11312 = vand.u32 %v11311, 4294901760
    %11313 = vmatpush1.msra.mxu0 %v11312
    %11314 = vmatprep.subr.mxu0 0.0
    %v11315 = vand.u32 %v53, 4294901760
    %v11316 = vsub.f32 %v53, %v11315
    %v11317 = vand.u32 %v11316, 4294901760
    %11318 = vmatpush1.msra.mxu0 %v11317
    %11319 = vmatprep.subr.mxu0 0.0
    %v11320 = vand.u32 %v54, 4294901760
    %v11321 = vsub.f32 %v54, %v11320
    %v11322 = vand.u32 %v11321, 4294901760
    %11323 = vmatpush1.msra.mxu0 %v11322
    %11324 = vmatprep.subr.mxu0 0.0
    %v11325 = vand.u32 %v55, 4294901760
    %v11326 = vsub.f32 %v55, %v11325
    %v11327 = vand.u32 %v11326, 4294901760
    %11328 = vmatpush1.msra.mxu0 %v11327
    %11329 = vmatprep.subr.mxu0 0.0
    %v11330 = vand.u32 %v56, 4294901760
    %v11331 = vsub.f32 %v56, %v11330
    %v11332 = vand.u32 %v11331, 4294901760
    %11333 = vmatpush1.msra.mxu0 %v11332
    %11334 = vmatprep.subr.mxu0 0.0
    %v11335 = vand.u32 %v57, 4294901760
    %v11336 = vsub.f32 %v57, %v11335
    %v11337 = vand.u32 %v11336, 4294901760
    %11338 = vmatpush1.msra.mxu0 %v11337
    %11339 = vmatprep.subr.mxu0 0.0
    %v11340 = vand.u32 %v58, 4294901760
    %v11341 = vsub.f32 %v58, %v11340
    %v11342 = vand.u32 %v11341, 4294901760
    %11343 = vmatpush1.msra.mxu0 %v11342
    %11344 = vmatprep.subr.mxu0 0.0
    %v11345 = vand.u32 %v59, 4294901760
    %v11346 = vsub.f32 %v59, %v11345
    %v11347 = vand.u32 %v11346, 4294901760
    %11348 = vmatpush1.msra.mxu0 %v11347
    %11349 = vmatprep.subr.mxu0 0.0
    %v11350 = vand.u32 %v60, 4294901760
    %v11351 = vsub.f32 %v60, %v11350
    %v11352 = vand.u32 %v11351, 4294901760
    %11353 = vmatpush1.msra.mxu0 %v11352
    %11354 = vmatprep.subr.mxu0 0.0
    %v11355 = vand.u32 %v61, 4294901760
    %v11356 = vsub.f32 %v61, %v11355
    %v11357 = vand.u32 %v11356, 4294901760
    %11358 = vmatpush1.msra.mxu0 %v11357
    %11359 = vmatprep.subr.mxu0 0.0
    %v11360 = vand.u32 %v62, 4294901760
    %v11361 = vsub.f32 %v62, %v11360
    %v11362 = vand.u32 %v11361, 4294901760
    %11363 = vmatpush1.msra.mxu0 %v11362
    %11364 = vmatprep.subr.mxu0 0.0
    %v11365 = vand.u32 %v63, 4294901760
    %v11366 = vsub.f32 %v63, %v11365
    %v11367 = vand.u32 %v11366, 4294901760
    %11368 = vmatpush1.msra.mxu0 %v11367
    %11369 = vmatprep.subr.mxu0 0.0
    %v11370 = vand.u32 %v64, 4294901760
    %v11371 = vsub.f32 %v64, %v11370
    %v11372 = vand.u32 %v11371, 4294901760
    %11373 = vmatpush1.msra.mxu0 %v11372
    %11374 = vmatprep.subr.mxu0 0.0
    %v11375 = vand.u32 %v65, 4294901760
    %v11376 = vsub.f32 %v65, %v11375
    %v11377 = vand.u32 %v11376, 4294901760
    %11378 = vmatpush1.msra.mxu0 %v11377
    %11379 = vmatprep.subr.mxu0 0.0
    %v11380 = vand.u32 %v66, 4294901760
    %v11381 = vsub.f32 %v66, %v11380
    %v11382 = vand.u32 %v11381, 4294901760
    %11383 = vmatpush1.msra.mxu0 %v11382
    %11384 = vmatprep.subr.mxu0 0.0
    %v11385 = vand.u32 %v67, 4294901760
    %v11386 = vsub.f32 %v67, %v11385
    %v11387 = vand.u32 %v11386, 4294901760
    %11388 = vmatpush1.msra.mxu0 %v11387
    %11389 = vmatprep.subr.mxu0 0.0
    %v11390 = vand.u32 %v68, 4294901760
    %v11391 = vsub.f32 %v68, %v11390
    %v11392 = vand.u32 %v11391, 4294901760
    %11393 = vmatpush1.msra.mxu0 %v11392
    %11394 = vmatprep.subr.mxu0 0.0
    %v11395 = vand.u32 %v69, 4294901760
    %v11396 = vsub.f32 %v69, %v11395
    %v11397 = vand.u32 %v11396, 4294901760
    %11398 = vmatpush1.msra.mxu0 %v11397
    %11399 = vmatprep.subr.mxu0 0.0
    %v11400 = vand.u32 %v70, 4294901760
    %v11401 = vsub.f32 %v70, %v11400
    %v11402 = vand.u32 %v11401, 4294901760
    %11403 = vmatpush1.msra.mxu0 %v11402
    %11404 = vmatprep.subr.mxu0 0.0
    %v11405 = vand.u32 %v71, 4294901760
    %v11406 = vsub.f32 %v71, %v11405
    %v11407 = vand.u32 %v11406, 4294901760
    %11408 = vmatpush1.msra.mxu0 %v11407
    %11409 = vmatprep.subr.mxu0 0.0
    %v11410 = vand.u32 %v72, 4294901760
    %v11411 = vsub.f32 %v72, %v11410
    %v11412 = vand.u32 %v11411, 4294901760
    %11413 = vmatpush1.msra.mxu0 %v11412
    %11414 = vmatprep.subr.mxu0 0.0
    %v11415 = vand.u32 %v73, 4294901760
    %v11416 = vsub.f32 %v73, %v11415
    %v11417 = vand.u32 %v11416, 4294901760
    %11418 = vmatpush1.msra.mxu0 %v11417
    %v11419 = vand.u32 %v10668, 4294901760
    %11420 = vmatprep.mubr.f32.mxu0 %v11419
    %v11421 = vand.u32 %v10023, 4294901760
    %11422 = vmatmul.mubr.f32.gmra.mrb[0].mxu0 %v11421
    %v11423 = vpop.f32.mrb[0].mxu0
    %v11424 = vadd.f32 %v11256, %v11423
    %v11425 = vpop.f32.mrb[0].mxu0
    %11426 = vdwg.mxu0
    %11427 = vmatprep.subr.mxu0 0.0
    %v11428 = vand.u32 %v42, 4294901760
    %11429 = vmatpush1.msra.mxu0 %v11428
    %11430 = vmatprep.subr.mxu0 0.0
    %v11431 = vand.u32 %v43, 4294901760
    %11432 = vmatpush1.msra.mxu0 %v11431
    %11433 = vmatprep.subr.mxu0 0.0
    %v11434 = vand.u32 %v44, 4294901760
    %11435 = vmatpush1.msra.mxu0 %v11434
    %11436 = vmatprep.subr.mxu0 0.0
    %v11437 = vand.u32 %v45, 4294901760
    %11438 = vmatpush1.msra.mxu0 %v11437
    %11439 = vmatprep.subr.mxu0 0.0
    %v11440 = vand.u32 %v46, 4294901760
    %11441 = vmatpush1.msra.mxu0 %v11440
    %11442 = vmatprep.subr.mxu0 0.0
    %v11443 = vand.u32 %v47, 4294901760
    %11444 = vmatpush1.msra.mxu0 %v11443
    %11445 = vmatprep.subr.mxu0 0.0
    %v11446 = vand.u32 %v48, 4294901760
    %11447 = vmatpush1.msra.mxu0 %v11446
    %11448 = vmatprep.subr.mxu0 0.0
    %v11449 = vand.u32 %v49, 4294901760
    %11450 = vmatpush1.msra.mxu0 %v11449
    %11451 = vmatprep.subr.mxu0 0.0
    %v11452 = vand.u32 %v50, 4294901760
    %11453 = vmatpush1.msra.mxu0 %v11452
    %11454 = vmatprep.subr.mxu0 0.0
    %v11455 = vand.u32 %v51, 4294901760
    %11456 = vmatpush1.msra.mxu0 %v11455
    %11457 = vmatprep.subr.mxu0 0.0
    %v11458 = vand.u32 %v52, 4294901760
    %11459 = vmatpush1.msra.mxu0 %v11458
    %11460 = vmatprep.subr.mxu0 0.0
    %v11461 = vand.u32 %v53, 4294901760
    %11462 = vmatpush1.msra.mxu0 %v11461
    %11463 = vmatprep.subr.mxu0 0.0
    %v11464 = vand.u32 %v54, 4294901760
    %11465 = vmatpush1.msra.mxu0 %v11464
    %11466 = vmatprep.subr.mxu0 0.0
    %v11467 = vand.u32 %v55, 4294901760
    %11468 = vmatpush1.msra.mxu0 %v11467
    %11469 = vmatprep.subr.mxu0 0.0
    %v11470 = vand.u32 %v56, 4294901760
    %11471 = vmatpush1.msra.mxu0 %v11470
    %11472 = vmatprep.subr.mxu0 0.0
    %v11473 = vand.u32 %v57, 4294901760
    %11474 = vmatpush1.msra.mxu0 %v11473
    %11475 = vmatprep.subr.mxu0 0.0
    %v11476 = vand.u32 %v58, 4294901760
    %11477 = vmatpush1.msra.mxu0 %v11476
    %11478 = vmatprep.subr.mxu0 0.0
    %v11479 = vand.u32 %v59, 4294901760
    %11480 = vmatpush1.msra.mxu0 %v11479
    %11481 = vmatprep.subr.mxu0 0.0
    %v11482 = vand.u32 %v60, 4294901760
    %11483 = vmatpush1.msra.mxu0 %v11482
    %11484 = vmatprep.subr.mxu0 0.0
    %v11485 = vand.u32 %v61, 4294901760
    %11486 = vmatpush1.msra.mxu0 %v11485
    %11487 = vmatprep.subr.mxu0 0.0
    %v11488 = vand.u32 %v62, 4294901760
    %11489 = vmatpush1.msra.mxu0 %v11488
    %11490 = vmatprep.subr.mxu0 0.0
    %v11491 = vand.u32 %v63, 4294901760
    %11492 = vmatpush1.msra.mxu0 %v11491
    %11493 = vmatprep.subr.mxu0 0.0
    %v11494 = vand.u32 %v64, 4294901760
    %11495 = vmatpush1.msra.mxu0 %v11494
    %11496 = vmatprep.subr.mxu0 0.0
    %v11497 = vand.u32 %v65, 4294901760
    %11498 = vmatpush1.msra.mxu0 %v11497
    %11499 = vmatprep.subr.mxu0 0.0
    %v11500 = vand.u32 %v66, 4294901760
    %11501 = vmatpush1.msra.mxu0 %v11500
    %11502 = vmatprep.subr.mxu0 0.0
    %v11503 = vand.u32 %v67, 4294901760
    %11504 = vmatpush1.msra.mxu0 %v11503
    %11505 = vmatprep.subr.mxu0 0.0
    %v11506 = vand.u32 %v68, 4294901760
    %11507 = vmatpush1.msra.mxu0 %v11506
    %11508 = vmatprep.subr.mxu0 0.0
    %v11509 = vand.u32 %v69, 4294901760
    %11510 = vmatpush1.msra.mxu0 %v11509
    %11511 = vmatprep.subr.mxu0 0.0
    %v11512 = vand.u32 %v70, 4294901760
    %11513 = vmatpush1.msra.mxu0 %v11512
    %11514 = vmatprep.subr.mxu0 0.0
    %v11515 = vand.u32 %v71, 4294901760
    %11516 = vmatpush1.msra.mxu0 %v11515
    %11517 = vmatprep.subr.mxu0 0.0
    %v11518 = vand.u32 %v72, 4294901760
    %11519 = vmatpush1.msra.mxu0 %v11518
    %11520 = vmatprep.subr.mxu0 0.0
    %v11521 = vand.u32 %v73, 4294901760
    %11522 = vmatpush1.msra.mxu0 %v11521
    %v11523 = vand.u32 %v10668, 4294901760
    %11524 = vmatprep.mubr.f32.mxu0 %v11523
    %v11525 = vand.u32 %v10023, 4294901760
    %11526 = vmatmul.mubr.f32.gmra.mrb[0].mxu0 %v11525
    %v11527 = vpop.f32.mrb[0].mxu0
    %v11528 = vadd.f32 %v11424, %v11527
    %v11529 = vpop.f32.mrb[0].mxu0
    %11530 = vdwg.mxu0
    %v11531 = vtanh.pop %v11528
    %v11532 = vmul.f32 %v10023, 0.9
    %v11533 = vmul.f32 %v11531, 0.1
    %v11534 = vadd.f32 %v11532, %v11533
    %11535 = vmatprep.subr.mxu0 0.0
    %v11536 = vand.u32 %v74, 4294901760
    %11537 = vmatpush1.msra.mxu0 %v11536
    %11538 = vmatprep.subr.mxu0 0.0
    %v11539 = vand.u32 %v75, 4294901760
    %11540 = vmatpush1.msra.mxu0 %v11539
    %11541 = vmatprep.subr.mxu0 0.0
    %v11542 = vand.u32 %v76, 4294901760
    %11543 = vmatpush1.msra.mxu0 %v11542
    %11544 = vmatprep.subr.mxu0 0.0
    %v11545 = vand.u32 %v77, 4294901760
    %11546 = vmatpush1.msra.mxu0 %v11545
    %11547 = vmatprep.subr.mxu0 0.0
    %v11548 = vand.u32 %v78, 4294901760
    %11549 = vmatpush1.msra.mxu0 %v11548
    %11550 = vmatprep.subr.mxu0 0.0
    %v11551 = vand.u32 %v79, 4294901760
    %11552 = vmatpush1.msra.mxu0 %v11551
    %11553 = vmatprep.subr.mxu0 0.0
    %v11554 = vand.u32 %v80, 4294901760
    %11555 = vmatpush1.msra.mxu0 %v11554
    %11556 = vmatprep.subr.mxu0 0.0
    %v11557 = vand.u32 %v81, 4294901760
    %11558 = vmatpush1.msra.mxu0 %v11557
    %11559 = vmatprep.subr.mxu0 0.0
    %v11560 = vand.u32 %v82, 4294901760
    %11561 = vmatpush1.msra.mxu0 %v11560
    %11562 = vmatprep.subr.mxu0 0.0
    %v11563 = vand.u32 %v83, 4294901760
    %11564 = vmatpush1.msra.mxu0 %v11563
    %11565 = vmatprep.subr.mxu0 0.0
    %v11566 = vand.u32 %v84, 4294901760
    %11567 = vmatpush1.msra.mxu0 %v11566
    %11568 = vmatprep.subr.mxu0 0.0
    %v11569 = vand.u32 %v85, 4294901760
    %11570 = vmatpush1.msra.mxu0 %v11569
    %11571 = vmatprep.subr.mxu0 0.0
    %v11572 = vand.u32 %v86, 4294901760
    %11573 = vmatpush1.msra.mxu0 %v11572
    %11574 = vmatprep.subr.mxu0 0.0
    %v11575 = vand.u32 %v87, 4294901760
    %11576 = vmatpush1.msra.mxu0 %v11575
    %11577 = vmatprep.subr.mxu0 0.0
    %v11578 = vand.u32 %v88, 4294901760
    %11579 = vmatpush1.msra.mxu0 %v11578
    %11580 = vmatprep.subr.mxu0 0.0
    %v11581 = vand.u32 %v89, 4294901760
    %11582 = vmatpush1.msra.mxu0 %v11581
    %11583 = vmatprep.subr.mxu0 0.0
    %11584 = vmatpush1.msra.mxu0 0.0
    %11585 = vmatprep.subr.mxu0 0.0
    %11586 = vmatpush1.msra.mxu0 0.0
    %11587 = vmatprep.subr.mxu0 0.0
    %11588 = vmatpush1.msra.mxu0 0.0
    %11589 = vmatprep.subr.mxu0 0.0
    %11590 = vmatpush1.msra.mxu0 0.0
    %11591 = vmatprep.subr.mxu0 0.0
    %11592 = vmatpush1.msra.mxu0 0.0
    %11593 = vmatprep.subr.mxu0 0.0
    %11594 = vmatpush1.msra.mxu0 0.0
    %11595 = vmatprep.subr.mxu0 0.0
    %11596 = vmatpush1.msra.mxu0 0.0
    %11597 = vmatprep.subr.mxu0 0.0
    %11598 = vmatpush1.msra.mxu0 0.0
    %11599 = vmatprep.subr.mxu0 0.0
    %11600 = vmatpush1.msra.mxu0 0.0
    %11601 = vmatprep.subr.mxu0 0.0
    %11602 = vmatpush1.msra.mxu0 0.0
    %11603 = vmatprep.subr.mxu0 0.0
    %11604 = vmatpush1.msra.mxu0 0.0
    %11605 = vmatprep.subr.mxu0 0.0
    %11606 = vmatpush1.msra.mxu0 0.0
    %11607 = vmatprep.subr.mxu0 0.0
    %11608 = vmatpush1.msra.mxu0 0.0
    %11609 = vmatprep.subr.mxu0 0.0
    %11610 = vmatpush1.msra.mxu0 0.0
    %11611 = vmatprep.subr.mxu0 0.0
    %11612 = vmatpush1.msra.mxu0 0.0
    %11613 = vmatprep.subr.mxu0 0.0
    %11614 = vmatpush1.msra.mxu0 0.0
    %11615 = vmatprep.mubr.f32.mxu0 0.0
    %v11616 = vand.u32 %v11534, 4294901760
    %v11617 = vsub.f32 %v11534, %v11616
    %v11618 = vand.u32 %v11617, 4294901760
    %v11619 = vsub.f32 %v11617, %v11618
    %v11620 = vand.u32 %v11619, 4294901760
    %11621 = vmatmul.mubr.f32.gmra.mrb[0].mxu0 %v11620
    %v11622 = vpop.f32.mrb[0].mxu0
    %v11623 = vadd.f32 %v90, %v11622
    %v11624 = vpop.f32.mrb[0].mxu0
    %11625 = vdwg.mxu0
    %11626 = vmatprep.subr.mxu0 0.0
    %v11627 = vand.u32 %v74, 4294901760
    %v11628 = vsub.f32 %v74, %v11627
    %v11629 = vand.u32 %v11628, 4294901760
    %v11630 = vsub.f32 %v11628, %v11629
    %v11631 = vand.u32 %v11630, 4294901760
    %11632 = vmatpush1.msra.mxu0 %v11631
    %11633 = vmatprep.subr.mxu0 0.0
    %v11634 = vand.u32 %v75, 4294901760
    %v11635 = vsub.f32 %v75, %v11634
    %v11636 = vand.u32 %v11635, 4294901760
    %v11637 = vsub.f32 %v11635, %v11636
    %v11638 = vand.u32 %v11637, 4294901760
    %11639 = vmatpush1.msra.mxu0 %v11638
    %11640 = vmatprep.subr.mxu0 0.0
    %v11641 = vand.u32 %v76, 4294901760
    %v11642 = vsub.f32 %v76, %v11641
    %v11643 = vand.u32 %v11642, 4294901760
    %v11644 = vsub.f32 %v11642, %v11643
    %v11645 = vand.u32 %v11644, 4294901760
    %11646 = vmatpush1.msra.mxu0 %v11645
    %11647 = vmatprep.subr.mxu0 0.0
    %v11648 = vand.u32 %v77, 4294901760
    %v11649 = vsub.f32 %v77, %v11648
    %v11650 = vand.u32 %v11649, 4294901760
    %v11651 = vsub.f32 %v11649, %v11650
    %v11652 = vand.u32 %v11651, 4294901760
    %11653 = vmatpush1.msra.mxu0 %v11652
    %11654 = vmatprep.subr.mxu0 0.0
    %v11655 = vand.u32 %v78, 4294901760
    %v11656 = vsub.f32 %v78, %v11655
    %v11657 = vand.u32 %v11656, 4294901760
    %v11658 = vsub.f32 %v11656, %v11657
    %v11659 = vand.u32 %v11658, 4294901760
    %11660 = vmatpush1.msra.mxu0 %v11659
    %11661 = vmatprep.subr.mxu0 0.0
    %v11662 = vand.u32 %v79, 4294901760
    %v11663 = vsub.f32 %v79, %v11662
    %v11664 = vand.u32 %v11663, 4294901760
    %v11665 = vsub.f32 %v11663, %v11664
    %v11666 = vand.u32 %v11665, 4294901760
    %11667 = vmatpush1.msra.mxu0 %v11666
    %11668 = vmatprep.subr.mxu0 0.0
    %v11669 = vand.u32 %v80, 4294901760
    %v11670 = vsub.f32 %v80, %v11669
    %v11671 = vand.u32 %v11670, 4294901760
    %v11672 = vsub.f32 %v11670, %v11671
    %v11673 = vand.u32 %v11672, 4294901760
    %11674 = vmatpush1.msra.mxu0 %v11673
    %11675 = vmatprep.subr.mxu0 0.0
    %v11676 = vand.u32 %v81, 4294901760
    %v11677 = vsub.f32 %v81, %v11676
    %v11678 = vand.u32 %v11677, 4294901760
    %v11679 = vsub.f32 %v11677, %v11678
    %v11680 = vand.u32 %v11679, 4294901760
    %11681 = vmatpush1.msra.mxu0 %v11680
    %11682 = vmatprep.subr.mxu0 0.0
    %v11683 = vand.u32 %v82, 4294901760
    %v11684 = vsub.f32 %v82, %v11683
    %v11685 = vand.u32 %v11684, 4294901760
    %v11686 = vsub.f32 %v11684, %v11685
    %v11687 = vand.u32 %v11686, 4294901760
    %11688 = vmatpush1.msra.mxu0 %v11687
    %11689 = vmatprep.subr.mxu0 0.0
    %v11690 = vand.u32 %v83, 4294901760
    %v11691 = vsub.f32 %v83, %v11690
    %v11692 = vand.u32 %v11691, 4294901760
    %v11693 = vsub.f32 %v11691, %v11692
    %v11694 = vand.u32 %v11693, 4294901760
    %11695 = vmatpush1.msra.mxu0 %v11694
    %11696 = vmatprep.subr.mxu0 0.0
    %v11697 = vand.u32 %v84, 4294901760
    %v11698 = vsub.f32 %v84, %v11697
    %v11699 = vand.u32 %v11698, 4294901760
    %v11700 = vsub.f32 %v11698, %v11699
    %v11701 = vand.u32 %v11700, 4294901760
    %11702 = vmatpush1.msra.mxu0 %v11701
    %11703 = vmatprep.subr.mxu0 0.0
    %v11704 = vand.u32 %v85, 4294901760
    %v11705 = vsub.f32 %v85, %v11704
    %v11706 = vand.u32 %v11705, 4294901760
    %v11707 = vsub.f32 %v11705, %v11706
    %v11708 = vand.u32 %v11707, 4294901760
    %11709 = vmatpush1.msra.mxu0 %v11708
    %11710 = vmatprep.subr.mxu0 0.0
    %v11711 = vand.u32 %v86, 4294901760
    %v11712 = vsub.f32 %v86, %v11711
    %v11713 = vand.u32 %v11712, 4294901760
    %v11714 = vsub.f32 %v11712, %v11713
    %v11715 = vand.u32 %v11714, 4294901760
    %11716 = vmatpush1.msra.mxu0 %v11715
    %11717 = vmatprep.subr.mxu0 0.0
    %v11718 = vand.u32 %v87, 4294901760
    %v11719 = vsub.f32 %v87, %v11718
    %v11720 = vand.u32 %v11719, 4294901760
    %v11721 = vsub.f32 %v11719, %v11720
    %v11722 = vand.u32 %v11721, 4294901760
    %11723 = vmatpush1.msra.mxu0 %v11722
    %11724 = vmatprep.subr.mxu0 0.0
    %v11725 = vand.u32 %v88, 4294901760
    %v11726 = vsub.f32 %v88, %v11725
    %v11727 = vand.u32 %v11726, 4294901760
    %v11728 = vsub.f32 %v11726, %v11727
    %v11729 = vand.u32 %v11728, 4294901760
    %11730 = vmatpush1.msra.mxu0 %v11729
    %11731 = vmatprep.subr.mxu0 0.0
    %v11732 = vand.u32 %v89, 4294901760
    %v11733 = vsub.f32 %v89, %v11732
    %v11734 = vand.u32 %v11733, 4294901760
    %v11735 = vsub.f32 %v11733, %v11734
    %v11736 = vand.u32 %v11735, 4294901760
    %11737 = vmatpush1.msra.mxu0 %v11736
    %11738 = vmatprep.subr.mxu0 0.0
    %11739 = vmatpush1.msra.mxu0 0.0
    %11740 = vmatprep.subr.mxu0 0.0
    %11741 = vmatpush1.msra.mxu0 0.0
    %11742 = vmatprep.subr.mxu0 0.0
    %11743 = vmatpush1.msra.mxu0 0.0
    %11744 = vmatprep.subr.mxu0 0.0
    %11745 = vmatpush1.msra.mxu0 0.0
    %11746 = vmatprep.subr.mxu0 0.0
    %11747 = vmatpush1.msra.mxu0 0.0
    %11748 = vmatprep.subr.mxu0 0.0
    %11749 = vmatpush1.msra.mxu0 0.0
    %11750 = vmatprep.subr.mxu0 0.0
    %11751 = vmatpush1.msra.mxu0 0.0
    %11752 = vmatprep.subr.mxu0 0.0
    %11753 = vmatpush1.msra.mxu0 0.0
    %11754 = vmatprep.subr.mxu0 0.0
    %11755 = vmatpush1.msra.mxu0 0.0
    %11756 = vmatprep.subr.mxu0 0.0
    %11757 = vmatpush1.msra.mxu0 0.0
    %11758 = vmatprep.subr.mxu0 0.0
    %11759 = vmatpush1.msra.mxu0 0.0
    %11760 = vmatprep.subr.mxu0 0.0
    %11761 = vmatpush1.msra.mxu0 0.0
    %11762 = vmatprep.subr.mxu0 0.0
    %11763 = vmatpush1.msra.mxu0 0.0
    %11764 = vmatprep.subr.mxu0 0.0
    %11765 = vmatpush1.msra.mxu0 0.0
    %11766 = vmatprep.subr.mxu0 0.0
    %11767 = vmatpush1.msra.mxu0 0.0
    %11768 = vmatprep.subr.mxu0 0.0
    %11769 = vmatpush1.msra.mxu0 0.0
    %11770 = vmatprep.mubr.f32.mxu0 0.0
    %v11771 = vand.u32 %v11534, 4294901760
    %11772 = vmatmul.mubr.f32.gmra.mrb[0].mxu0 %v11771
    %v11773 = vpop.f32.mrb[0].mxu0
    %v11774 = vadd.f32 %v11623, %v11773
    %v11775 = vpop.f32.mrb[0].mxu0
    %11776 = vdwg.mxu0
    %11777 = vmatprep.subr.mxu0 0.0
    %v11778 = vand.u32 %v74, 4294901760
    %v11779 = vsub.f32 %v74, %v11778
    %11780 = vmatpush1.msra.mxu0 %v11779
    %11781 = vmatprep.subr.mxu0 0.0
    %v11782 = vand.u32 %v75, 4294901760
    %v11783 = vsub.f32 %v75, %v11782
    %11784 = vmatpush1.msra.mxu0 %v11783
    %11785 = vmatprep.subr.mxu0 0.0
    %v11786 = vand.u32 %v76, 4294901760
    %v11787 = vsub.f32 %v76, %v11786
    %11788 = vmatpush1.msra.mxu0 %v11787
    %11789 = vmatprep.subr.mxu0 0.0
    %v11790 = vand.u32 %v77, 4294901760
    %v11791 = vsub.f32 %v77, %v11790
    %11792 = vmatpush1.msra.mxu0 %v11791
    %11793 = vmatprep.subr.mxu0 0.0
    %v11794 = vand.u32 %v78, 4294901760
    %v11795 = vsub.f32 %v78, %v11794
    %11796 = vmatpush1.msra.mxu0 %v11795
    %11797 = vmatprep.subr.mxu0 0.0
    %v11798 = vand.u32 %v79, 4294901760
    %v11799 = vsub.f32 %v79, %v11798
    %11800 = vmatpush1.msra.mxu0 %v11799
    %11801 = vmatprep.subr.mxu0 0.0
    %v11802 = vand.u32 %v80, 4294901760
    %v11803 = vsub.f32 %v80, %v11802
    %11804 = vmatpush1.msra.mxu0 %v11803
    %11805 = vmatprep.subr.mxu0 0.0
    %v11806 = vand.u32 %v81, 4294901760
    %v11807 = vsub.f32 %v81, %v11806
    %11808 = vmatpush1.msra.mxu0 %v11807
    %11809 = vmatprep.subr.mxu0 0.0
    %v11810 = vand.u32 %v82, 4294901760
    %v11811 = vsub.f32 %v82, %v11810
    %11812 = vmatpush1.msra.mxu0 %v11811
    %11813 = vmatprep.subr.mxu0 0.0
    %v11814 = vand.u32 %v83, 4294901760
    %v11815 = vsub.f32 %v83, %v11814
    %11816 = vmatpush1.msra.mxu0 %v11815
    %11817 = vmatprep.subr.mxu0 0.0
    %v11818 = vand.u32 %v84, 4294901760
    %v11819 = vsub.f32 %v84, %v11818
    %11820 = vmatpush1.msra.mxu0 %v11819
    %11821 = vmatprep.subr.mxu0 0.0
    %v11822 = vand.u32 %v85, 4294901760
    %v11823 = vsub.f32 %v85, %v11822
    %11824 = vmatpush1.msra.mxu0 %v11823
    %11825 = vmatprep.subr.mxu0 0.0
    %v11826 = vand.u32 %v86, 4294901760
    %v11827 = vsub.f32 %v86, %v11826
    %11828 = vmatpush1.msra.mxu0 %v11827
    %11829 = vmatprep.subr.mxu0 0.0
    %v11830 = vand.u32 %v87, 4294901760
    %v11831 = vsub.f32 %v87, %v11830
    %11832 = vmatpush1.msra.mxu0 %v11831
    %11833 = vmatprep.subr.mxu0 0.0
    %v11834 = vand.u32 %v88, 4294901760
    %v11835 = vsub.f32 %v88, %v11834
    %11836 = vmatpush1.msra.mxu0 %v11835
    %11837 = vmatprep.subr.mxu0 0.0
    %v11838 = vand.u32 %v89, 4294901760
    %v11839 = vsub.f32 %v89, %v11838
    %11840 = vmatpush1.msra.mxu0 %v11839
    %11841 = vmatprep.subr.mxu0 0.0
    %11842 = vmatpush1.msra.mxu0 0.0
    %11843 = vmatprep.subr.mxu0 0.0
    %11844 = vmatpush1.msra.mxu0 0.0
    %11845 = vmatprep.subr.mxu0 0.0
    %11846 = vmatpush1.msra.mxu0 0.0
    %11847 = vmatprep.subr.mxu0 0.0
    %11848 = vmatpush1.msra.mxu0 0.0
    %11849 = vmatprep.subr.mxu0 0.0
    %11850 = vmatpush1.msra.mxu0 0.0
    %11851 = vmatprep.subr.mxu0 0.0
    %11852 = vmatpush1.msra.mxu0 0.0
    %11853 = vmatprep.subr.mxu0 0.0
    %11854 = vmatpush1.msra.mxu0 0.0
    %11855 = vmatprep.subr.mxu0 0.0
    %11856 = vmatpush1.msra.mxu0 0.0
    %11857 = vmatprep.subr.mxu0 0.0
    %11858 = vmatpush1.msra.mxu0 0.0
    %11859 = vmatprep.subr.mxu0 0.0
    %11860 = vmatpush1.msra.mxu0 0.0
    %11861 = vmatprep.subr.mxu0 0.0
    %11862 = vmatpush1.msra.mxu0 0.0
    %11863 = vmatprep.subr.mxu0 0.0
    %11864 = vmatpush1.msra.mxu0 0.0
    %11865 = vmatprep.subr.mxu0 0.0
    %11866 = vmatpush1.msra.mxu0 0.0
    %11867 = vmatprep.subr.mxu0 0.0
    %11868 = vmatpush1.msra.mxu0 0.0
    %11869 = vmatprep.subr.mxu0 0.0
    %11870 = vmatpush1.msra.mxu0 0.0
    %11871 = vmatprep.subr.mxu0 0.0
    %11872 = vmatpush1.msra.mxu0 0.0
    %11873 = vmatprep.mubr.f32.mxu0 0.0
    %v11874 = vand.u32 %v11534, 4294901760
    %v11875 = vsub.f32 %v11534, %v11874
    %11876 = vmatmul.mubr.f32.gmra.mrb[0].mxu0 %v11875
    %v11877 = vpop.f32.mrb[0].mxu0
    %v11878 = vadd.f32 %v11774, %v11877
    %v11879 = vpop.f32.mrb[0].mxu0
    %11880 = vdwg.mxu0
    %11881 = vmatprep.subr.mxu0 0.0
    %v11882 = vand.u32 %v74, 4294901760
    %11883 = vmatpush1.msra.mxu0 %v11882
    %11884 = vmatprep.subr.mxu0 0.0
    %v11885 = vand.u32 %v75, 4294901760
    %11886 = vmatpush1.msra.mxu0 %v11885
    %11887 = vmatprep.subr.mxu0 0.0
    %v11888 = vand.u32 %v76, 4294901760
    %11889 = vmatpush1.msra.mxu0 %v11888
    %11890 = vmatprep.subr.mxu0 0.0
    %v11891 = vand.u32 %v77, 4294901760
    %11892 = vmatpush1.msra.mxu0 %v11891
    %11893 = vmatprep.subr.mxu0 0.0
    %v11894 = vand.u32 %v78, 4294901760
    %11895 = vmatpush1.msra.mxu0 %v11894
    %11896 = vmatprep.subr.mxu0 0.0
    %v11897 = vand.u32 %v79, 4294901760
    %11898 = vmatpush1.msra.mxu0 %v11897
    %11899 = vmatprep.subr.mxu0 0.0
    %v11900 = vand.u32 %v80, 4294901760
    %11901 = vmatpush1.msra.mxu0 %v11900
    %11902 = vmatprep.subr.mxu0 0.0
    %v11903 = vand.u32 %v81, 4294901760
    %11904 = vmatpush1.msra.mxu0 %v11903
    %11905 = vmatprep.subr.mxu0 0.0
    %v11906 = vand.u32 %v82, 4294901760
    %11907 = vmatpush1.msra.mxu0 %v11906
    %11908 = vmatprep.subr.mxu0 0.0
    %v11909 = vand.u32 %v83, 4294901760
    %11910 = vmatpush1.msra.mxu0 %v11909
    %11911 = vmatprep.subr.mxu0 0.0
    %v11912 = vand.u32 %v84, 4294901760
    %11913 = vmatpush1.msra.mxu0 %v11912
    %11914 = vmatprep.subr.mxu0 0.0
    %v11915 = vand.u32 %v85, 4294901760
    %11916 = vmatpush1.msra.mxu0 %v11915
    %11917 = vmatprep.subr.mxu0 0.0
    %v11918 = vand.u32 %v86, 4294901760
    %11919 = vmatpush1.msra.mxu0 %v11918
    %11920 = vmatprep.subr.mxu0 0.0
    %v11921 = vand.u32 %v87, 4294901760
    %11922 = vmatpush1.msra.mxu0 %v11921
    %11923 = vmatprep.subr.mxu0 0.0
    %v11924 = vand.u32 %v88, 4294901760
    %11925 = vmatpush1.msra.mxu0 %v11924
    %11926 = vmatprep.subr.mxu0 0.0
    %v11927 = vand.u32 %v89, 4294901760
    %11928 = vmatpush1.msra.mxu0 %v11927
    %11929 = vmatprep.subr.mxu0 0.0
    %11930 = vmatpush1.msra.mxu0 0.0
    %11931 = vmatprep.subr.mxu0 0.0
    %11932 = vmatpush1.msra.mxu0 0.0
    %11933 = vmatprep.subr.mxu0 0.0
    %11934 = vmatpush1.msra.mxu0 0.0
    %11935 = vmatprep.subr.mxu0 0.0
    %11936 = vmatpush1.msra.mxu0 0.0
    %11937 = vmatprep.subr.mxu0 0.0
    %11938 = vmatpush1.msra.mxu0 0.0
    %11939 = vmatprep.subr.mxu0 0.0
    %11940 = vmatpush1.msra.mxu0 0.0
    %11941 = vmatprep.subr.mxu0 0.0
    %11942 = vmatpush1.msra.mxu0 0.0
    %11943 = vmatprep.subr.mxu0 0.0
    %11944 = vmatpush1.msra.mxu0 0.0
    %11945 = vmatprep.subr.mxu0 0.0
    %11946 = vmatpush1.msra.mxu0 0.0
    %11947 = vmatprep.subr.mxu0 0.0
    %11948 = vmatpush1.msra.mxu0 0.0
    %11949 = vmatprep.subr.mxu0 0.0
    %11950 = vmatpush1.msra.mxu0 0.0
    %11951 = vmatprep.subr.mxu0 0.0
    %11952 = vmatpush1.msra.mxu0 0.0
    %11953 = vmatprep.subr.mxu0 0.0
    %11954 = vmatpush1.msra.mxu0 0.0
    %11955 = vmatprep.subr.mxu0 0.0
    %11956 = vmatpush1.msra.mxu0 0.0
    %11957 = vmatprep.subr.mxu0 0.0
    %11958 = vmatpush1.msra.mxu0 0.0
    %11959 = vmatprep.subr.mxu0 0.0
    %11960 = vmatpush1.msra.mxu0 0.0
    %11961 = vmatprep.mubr.f32.mxu0 0.0
    %v11962 = vand.u32 %v11534, 4294901760
    %v11963 = vsub.f32 %v11534, %v11962
    %v11964 = vand.u32 %v11963, 4294901760
    %11965 = vmatmul.mubr.f32.gmra.mrb[0].mxu0 %v11964
    %v11966 = vpop.f32.mrb[0].mxu0
    %v11967 = vadd.f32 %v11878, %v11966
    %v11968 = vpop.f32.mrb[0].mxu0
    %11969 = vdwg.mxu0
    %11970 = vmatprep.subr.mxu0 0.0
    %v11971 = vand.u32 %v74, 4294901760
    %v11972 = vsub.f32 %v74, %v11971
    %v11973 = vand.u32 %v11972, 4294901760
    %11974 = vmatpush1.msra.mxu0 %v11973
    %11975 = vmatprep.subr.mxu0 0.0
    %v11976 = vand.u32 %v75, 4294901760
    %v11977 = vsub.f32 %v75, %v11976
    %v11978 = vand.u32 %v11977, 4294901760
    %11979 = vmatpush1.msra.mxu0 %v11978
    %11980 = vmatprep.subr.mxu0 0.0
    %v11981 = vand.u32 %v76, 4294901760
    %v11982 = vsub.f32 %v76, %v11981
    %v11983 = vand.u32 %v11982, 4294901760
    %11984 = vmatpush1.msra.mxu0 %v11983
    %11985 = vmatprep.subr.mxu0 0.0
    %v11986 = vand.u32 %v77, 4294901760
    %v11987 = vsub.f32 %v77, %v11986
    %v11988 = vand.u32 %v11987, 4294901760
    %11989 = vmatpush1.msra.mxu0 %v11988
    %11990 = vmatprep.subr.mxu0 0.0
    %v11991 = vand.u32 %v78, 4294901760
    %v11992 = vsub.f32 %v78, %v11991
    %v11993 = vand.u32 %v11992, 4294901760
    %11994 = vmatpush1.msra.mxu0 %v11993
    %11995 = vmatprep.subr.mxu0 0.0
    %v11996 = vand.u32 %v79, 4294901760
    %v11997 = vsub.f32 %v79, %v11996
    %v11998 = vand.u32 %v11997, 4294901760
    %11999 = vmatpush1.msra.mxu0 %v11998
    %12000 = vmatprep.subr.mxu0 0.0
    %v12001 = vand.u32 %v80, 4294901760
    %v12002 = vsub.f32 %v80, %v12001
    %v12003 = vand.u32 %v12002, 4294901760
    %12004 = vmatpush1.msra.mxu0 %v12003
    %12005 = vmatprep.subr.mxu0 0.0
    %v12006 = vand.u32 %v81, 4294901760
    %v12007 = vsub.f32 %v81, %v12006
    %v12008 = vand.u32 %v12007, 4294901760
    %12009 = vmatpush1.msra.mxu0 %v12008
    %12010 = vmatprep.subr.mxu0 0.0
    %v12011 = vand.u32 %v82, 4294901760
    %v12012 = vsub.f32 %v82, %v12011
    %v12013 = vand.u32 %v12012, 4294901760
    %12014 = vmatpush1.msra.mxu0 %v12013
    %12015 = vmatprep.subr.mxu0 0.0
    %v12016 = vand.u32 %v83, 4294901760
    %v12017 = vsub.f32 %v83, %v12016
    %v12018 = vand.u32 %v12017, 4294901760
    %12019 = vmatpush1.msra.mxu0 %v12018
    %12020 = vmatprep.subr.mxu0 0.0
    %v12021 = vand.u32 %v84, 4294901760
    %v12022 = vsub.f32 %v84, %v12021
    %v12023 = vand.u32 %v12022, 4294901760
    %12024 = vmatpush1.msra.mxu0 %v12023
    %12025 = vmatprep.subr.mxu0 0.0
    %v12026 = vand.u32 %v85, 4294901760
    %v12027 = vsub.f32 %v85, %v12026
    %v12028 = vand.u32 %v12027, 4294901760
    %12029 = vmatpush1.msra.mxu0 %v12028
    %12030 = vmatprep.subr.mxu0 0.0
    %v12031 = vand.u32 %v86, 4294901760
    %v12032 = vsub.f32 %v86, %v12031
    %v12033 = vand.u32 %v12032, 4294901760
    %12034 = vmatpush1.msra.mxu0 %v12033
    %12035 = vmatprep.subr.mxu0 0.0
    %v12036 = vand.u32 %v87, 4294901760
    %v12037 = vsub.f32 %v87, %v12036
    %v12038 = vand.u32 %v12037, 4294901760
    %12039 = vmatpush1.msra.mxu0 %v12038
    %12040 = vmatprep.subr.mxu0 0.0
    %v12041 = vand.u32 %v88, 4294901760
    %v12042 = vsub.f32 %v88, %v12041
    %v12043 = vand.u32 %v12042, 4294901760
    %12044 = vmatpush1.msra.mxu0 %v12043
    %12045 = vmatprep.subr.mxu0 0.0
    %v12046 = vand.u32 %v89, 4294901760
    %v12047 = vsub.f32 %v89, %v12046
    %v12048 = vand.u32 %v12047, 4294901760
    %12049 = vmatpush1.msra.mxu0 %v12048
    %12050 = vmatprep.subr.mxu0 0.0
    %12051 = vmatpush1.msra.mxu0 0.0
    %12052 = vmatprep.subr.mxu0 0.0
    %12053 = vmatpush1.msra.mxu0 0.0
    %12054 = vmatprep.subr.mxu0 0.0
    %12055 = vmatpush1.msra.mxu0 0.0
    %12056 = vmatprep.subr.mxu0 0.0
    %12057 = vmatpush1.msra.mxu0 0.0
    %12058 = vmatprep.subr.mxu0 0.0
    %12059 = vmatpush1.msra.mxu0 0.0
    %12060 = vmatprep.subr.mxu0 0.0
    %12061 = vmatpush1.msra.mxu0 0.0
    %12062 = vmatprep.subr.mxu0 0.0
    %12063 = vmatpush1.msra.mxu0 0.0
    %12064 = vmatprep.subr.mxu0 0.0
    %12065 = vmatpush1.msra.mxu0 0.0
    %12066 = vmatprep.subr.mxu0 0.0
    %12067 = vmatpush1.msra.mxu0 0.0
    %12068 = vmatprep.subr.mxu0 0.0
    %12069 = vmatpush1.msra.mxu0 0.0
    %12070 = vmatprep.subr.mxu0 0.0
    %12071 = vmatpush1.msra.mxu0 0.0
    %12072 = vmatprep.subr.mxu0 0.0
    %12073 = vmatpush1.msra.mxu0 0.0
    %12074 = vmatprep.subr.mxu0 0.0
    %12075 = vmatpush1.msra.mxu0 0.0
    %12076 = vmatprep.subr.mxu0 0.0
    %12077 = vmatpush1.msra.mxu0 0.0
    %12078 = vmatprep.subr.mxu0 0.0
    %12079 = vmatpush1.msra.mxu0 0.0
    %12080 = vmatprep.subr.mxu0 0.0
    %12081 = vmatpush1.msra.mxu0 0.0
    %12082 = vmatprep.mubr.f32.mxu0 0.0
    %v12083 = vand.u32 %v11534, 4294901760
    %12084 = vmatmul.mubr.f32.gmra.mrb[0].mxu0 %v12083
    %v12085 = vpop.f32.mrb[0].mxu0
    %v12086 = vadd.f32 %v11967, %v12085
    %v12087 = vpop.f32.mrb[0].mxu0
    %12088 = vdwg.mxu0
    %12089 = vmatprep.subr.mxu0 0.0
    %v12090 = vand.u32 %v74, 4294901760
    %12091 = vmatpush1.msra.mxu0 %v12090
    %12092 = vmatprep.subr.mxu0 0.0
    %v12093 = vand.u32 %v75, 4294901760
    %12094 = vmatpush1.msra.mxu0 %v12093
    %12095 = vmatprep.subr.mxu0 0.0
    %v12096 = vand.u32 %v76, 4294901760
    %12097 = vmatpush1.msra.mxu0 %v12096
    %12098 = vmatprep.subr.mxu0 0.0
    %v12099 = vand.u32 %v77, 4294901760
    %12100 = vmatpush1.msra.mxu0 %v12099
    %12101 = vmatprep.subr.mxu0 0.0
    %v12102 = vand.u32 %v78, 4294901760
    %12103 = vmatpush1.msra.mxu0 %v12102
    %12104 = vmatprep.subr.mxu0 0.0
    %v12105 = vand.u32 %v79, 4294901760
    %12106 = vmatpush1.msra.mxu0 %v12105
    %12107 = vmatprep.subr.mxu0 0.0
    %v12108 = vand.u32 %v80, 4294901760
    %12109 = vmatpush1.msra.mxu0 %v12108
    %12110 = vmatprep.subr.mxu0 0.0
    %v12111 = vand.u32 %v81, 4294901760
    %12112 = vmatpush1.msra.mxu0 %v12111
    %12113 = vmatprep.subr.mxu0 0.0
    %v12114 = vand.u32 %v82, 4294901760
    %12115 = vmatpush1.msra.mxu0 %v12114
    %12116 = vmatprep.subr.mxu0 0.0
    %v12117 = vand.u32 %v83, 4294901760
    %12118 = vmatpush1.msra.mxu0 %v12117
    %12119 = vmatprep.subr.mxu0 0.0
    %v12120 = vand.u32 %v84, 4294901760
    %12121 = vmatpush1.msra.mxu0 %v12120
    %12122 = vmatprep.subr.mxu0 0.0
    %v12123 = vand.u32 %v85, 4294901760
    %12124 = vmatpush1.msra.mxu0 %v12123
    %12125 = vmatprep.subr.mxu0 0.0
    %v12126 = vand.u32 %v86, 4294901760
    %12127 = vmatpush1.msra.mxu0 %v12126
    %12128 = vmatprep.subr.mxu0 0.0
    %v12129 = vand.u32 %v87, 4294901760
    %12130 = vmatpush1.msra.mxu0 %v12129
    %12131 = vmatprep.subr.mxu0 0.0
    %v12132 = vand.u32 %v88, 4294901760
    %12133 = vmatpush1.msra.mxu0 %v12132
    %12134 = vmatprep.subr.mxu0 0.0
    %v12135 = vand.u32 %v89, 4294901760
    %12136 = vmatpush1.msra.mxu0 %v12135
    %12137 = vmatprep.subr.mxu0 0.0
    %12138 = vmatpush1.msra.mxu0 0.0
    %12139 = vmatprep.subr.mxu0 0.0
    %12140 = vmatpush1.msra.mxu0 0.0
    %12141 = vmatprep.subr.mxu0 0.0
    %12142 = vmatpush1.msra.mxu0 0.0
    %12143 = vmatprep.subr.mxu0 0.0
    %12144 = vmatpush1.msra.mxu0 0.0
    %12145 = vmatprep.subr.mxu0 0.0
    %12146 = vmatpush1.msra.mxu0 0.0
    %12147 = vmatprep.subr.mxu0 0.0
    %12148 = vmatpush1.msra.mxu0 0.0
    %12149 = vmatprep.subr.mxu0 0.0
    %12150 = vmatpush1.msra.mxu0 0.0
    %12151 = vmatprep.subr.mxu0 0.0
    %12152 = vmatpush1.msra.mxu0 0.0
    %12153 = vmatprep.subr.mxu0 0.0
    %12154 = vmatpush1.msra.mxu0 0.0
    %12155 = vmatprep.subr.mxu0 0.0
    %12156 = vmatpush1.msra.mxu0 0.0
    %12157 = vmatprep.subr.mxu0 0.0
    %12158 = vmatpush1.msra.mxu0 0.0
    %12159 = vmatprep.subr.mxu0 0.0
    %12160 = vmatpush1.msra.mxu0 0.0
    %12161 = vmatprep.subr.mxu0 0.0
    %12162 = vmatpush1.msra.mxu0 0.0
    %12163 = vmatprep.subr.mxu0 0.0
    %12164 = vmatpush1.msra.mxu0 0.0
    %12165 = vmatprep.subr.mxu0 0.0
    %12166 = vmatpush1.msra.mxu0 0.0
    %12167 = vmatprep.subr.mxu0 0.0
    %12168 = vmatpush1.msra.mxu0 0.0
    %12169 = vmatprep.mubr.f32.mxu0 0.0
    %v12170 = vand.u32 %v11534, 4294901760
    %12171 = vmatmul.mubr.f32.gmra.mrb[0].mxu0 %v12170
    %v12172 = vpop.f32.mrb[0].mxu0
    %v12173 = vadd.f32 %v12086, %v12172
    %v12174 = vpop.f32.mrb[0].mxu0
    %12175 = vdwg.mxu0
    %s12176 = scalar_lea.vmem %s5, 56
    %12177 = vst [vmem:[%s12176] sm:$0xff] %v12173
    %12178 = vst [vmem:[%s6] sm:$0xff] %v11534
    // Predicated region
    $region30: #{m2net_rollout.1} parent=1 // pred_check
      _
    $region31: #{m2net_rollout.1} parent=1 // pred_check_branch
      %12180 = sbr.rel (0) target = $region33
    $region32: #{m2net_rollout.1} parent=1 // pred_region
      _
    $region33: #{m2net_rollout.1} parent=1 // pred_fallthru
      _
    // Predicated region
    $region34: #{m2net_rollout.1} parent=1 // pred_check
      _
    $region35: #{m2net_rollout.1} parent=1 // pred_check_branch
      %12182 = sbr.rel (0) target = $region37
    $region36: #{m2net_rollout.1} parent=1 // pred_region
      _
    $region37: #{m2net_rollout.1} parent=1 // pred_fallthru
      _
    // Predicated region
    $region38: #{m2net_rollout.1} parent=1 // pred_check
      _
    $region39: #{m2net_rollout.1} parent=1 // pred_check_branch
      %12184 = sbr.rel (0) target = $region41
    $region40: #{m2net_rollout.1} parent=1 // pred_region
      _
    $region41: #{m2net_rollout.1} parent=1 // pred_fallthru
      _
    // Predicated region
    $region42: #{m2net_rollout.1} parent=1 // pred_check
      _
    $region43: #{m2net_rollout.1} parent=1 // pred_check_branch
      %12186 = sbr.rel (0) target = $region45
    $region44: #{m2net_rollout.1} parent=1 // pred_region
      _
    $region45: #{m2net_rollout.1} parent=1 // pred_fallthru
      _
    %12187 = vsyncpa [#allocation3], 1

</llo_original>
